<compile_context>
chip_gen: v7x
topology: tpu7x:2x2x1
jax: 0.10.0
libtpu: 0.0.40
codegen_flags: <defaults>
</compile_context>

<pallas_src>
import math
from functools import partial

import jax
import jax.numpy as jnp
from jax import lax
from jax.experimental import pallas as pl
from jax.experimental.pallas import tpu as pltpu

GROWTH_RATE = 32
BLOCK_CONFIG = (6, 12, 24, 16)      # densenet121
NUM_INIT_FEATURES = 64
BN_SIZE = 4
NUM_CLASSES = 10
BN_EPS = 1e-5


def _round_up(x, m):
    return ((x + m - 1) // m) * m


def _choose_m_tiling(m):
    """Pick (padded M, tile M).  >=2 grid points when possible (v7x megacore),
    512-row tiles for large M (HBM roofline), multiples of 16 for bf16."""
    mp = _round_up(m, 16)
    if mp <= 32:
        return mp, mp
    if mp <= 1024:
        mp = _round_up(mp, 32)
        return mp, mp // 2
    return _round_up(mp, 512), 512


# ----------------------------- Pallas kernel -------------------------------

def fused_matmul(a, w_p, *, prologue=None, prologue_relu=False,
                 epilogue=None, epilogue_relu=False,
                 out_dtype=jnp.bfloat16):
    """relu?((relu?(a*ps+pt)) @ w_p * es + et).

    a:        (M, K) activations (any float dtype; stored/DMA'd as bf16)
    w_p:      (Kp, Np) bf16, pre-padded, 128-aligned weight matrix (K <= Kp)
    prologue: optional (ps, pt) each (1, Kp) f32  -- per-input-channel BN
    epilogue: optional (es, et) each (1, Np) f32  -- per-output-channel BN
    Returns (Mp, Np) out_dtype; caller slices the valid region.
    """
    M, K = a.shape
    Kp, Np = w_p.shape
    assert K <= Kp and Kp % 128 == 0 and Np % 128 == 0
    if prologue is not None:
        assert prologue[0].shape == (1, Kp) and prologue[1].shape == (1, Kp)
    if epilogue is not None:
        assert epilogue[0].shape == (1, Np) and epilogue[1].shape == (1, Np)

    Mp, tm = _choose_m_tiling(M)
    tn = Np if Np <= 128 else 128

    a_p = a.astype(jnp.bfloat16)
    if (Mp, Kp) != (M, K):
        a_p = jnp.zeros((Mp, Kp), jnp.bfloat16).at[:M, :K].set(a_p)

    pre = prologue is not None
    post = epilogue is not None

    args = [a_p]
    in_specs = [pl.BlockSpec((tm, Kp), lambda i, j: (i, 0))]
    if pre:
        args += [prologue[0], prologue[1]]
        in_specs += [pl.BlockSpec((1, Kp), lambda i, j: (0, 0)),
                     pl.BlockSpec((1, Kp), lambda i, j: (0, 0))]
    if post:
        args += [epilogue[0], epilogue[1]]
        in_specs += [pl.BlockSpec((1, tn), lambda i, j: (0, j)),
                     pl.BlockSpec((1, tn), lambda i, j: (0, j))]
    args.append(w_p)
    in_specs.append(pl.BlockSpec((Kp, tn), lambda i, j: (0, j)))

    def kernel(*refs):
        a_ref = refs[0]
        idx = 1
        if pre:
            ps_ref, pt_ref = refs[idx], refs[idx + 1]
            idx += 2
        if post:
            es_ref, et_ref = refs[idx], refs[idx + 1]
            idx += 2
        w_ref, o_ref = refs[idx], refs[idx + 1]

        if pre or prologue_relu:
            # BN affine + ReLU in f32 on the VPU (v5e has no bf16 VPU),
            # cast back to bf16 only for the MXU operand.
            x = a_ref[...].astype(jnp.float32)
            if pre:
                x = x * ps_ref[...] + pt_ref[...]
            if prologue_relu:
                x = jnp.maximum(x, 0.0)
            x = x.astype(jnp.bfloat16)
        else:
            x = a_ref[...]
        y = jnp.dot(x, w_ref[...], preferred_element_type=jnp.float32)
        if post:
            y = y * es_ref[...] + et_ref[...]
        if epilogue_relu:
            y = jnp.maximum(y, 0.0)
        o_ref[...] = y.astype(o_ref.dtype)

    return pl.pallas_call(
        kernel,
        out_shape=jax.ShapeDtypeStruct((Mp, Np), out_dtype),
        grid_spec=pltpu.PrefetchScalarGridSpec(
            num_scalar_prefetch=0,
            grid=(Mp // tm, Np // tn),
            in_specs=in_specs,
            out_specs=pl.BlockSpec((tm, tn), lambda i, j: (i, j)),
        ),
        compiler_params=pltpu.CompilerParams(
            dimension_semantics=("parallel", "parallel")),
    )(*args)


# ------------------------------ JAX glue ops -------------------------------
# TODO(synk): im2col / pooling remain XLA glue fused under the outer jit.

def im2col(x, kh, kw, stride, pad):
    N, H, W, C = x.shape
    Ho = (H + 2 * pad - kh) // stride + 1
    Wo = (W + 2 * pad - kw) // stride + 1
    xp = jnp.pad(x, ((0, 0), (pad, pad), (pad, pad), (0, 0)))
    cols = []
    for i in range(kh):
        for j in range(kw):
            cols.append(xp[:, i:i + stride * Ho:stride,
                           j:j + stride * Wo:stride, :])
    patches = jnp.concatenate(cols, axis=-1)          # (N, Ho, Wo, kh*kw*C)
    return patches.reshape(N * Ho * Wo, kh * kw * C), Ho, Wo


def max_pool(x, k, stride, pad):
    init = jnp.array(-jnp.inf, x.dtype)
    return lax.reduce_window(x, init, lax.max,
                             (1, k, k, 1), (1, stride, stride, 1),
                             [(0, 0), (pad, pad), (pad, pad), (0, 0)])


def avg_pool2(x):
    init = jnp.array(0.0, x.dtype)
    s = lax.reduce_window(x, init, lax.add, (1, 2, 2, 1), (1, 2, 2, 1),
                          [(0, 0)] * 4)
    return s * 0.25


# ------------------------- parameter construction --------------------------

def build_densenet121_params(key):
    keys = iter(jax.random.split(key, 400))

    def nk():
        return next(keys)

    def conv_w(kh, kw, cin, cout, kp=None):
        """Conv weight reshaped to a (Kp, Np) bf16, 128-aligned, zero-padded."""
        fan_in = kh * kw * cin
        w = (jax.random.normal(nk(), (kh, kw, cin, cout), jnp.float32)
             / math.sqrt(fan_in))
        w2 = w.reshape(kh * kw * cin, cout)
        Kp = kp if kp is not None else _round_up(w2.shape[0], 128)
        Np = _round_up(cout, 128)
        return (jnp.zeros((Kp, Np), jnp.float32)
                .at[:w2.shape[0], :cout].set(w2).astype(jnp.bfloat16))

    def bn_rows(c, width):
        """Eval-mode BN folded to (scale, shift), zero-padded to (1, width)."""
        gamma = jnp.ones((c,), jnp.float32)
        beta = jnp.zeros((c,), jnp.float32)
        running_mean = 0.1 * jax.random.normal(nk(), (c,), jnp.float32)
        running_var = jnp.ones((c,), jnp.float32)
        scale = gamma / jnp.sqrt(running_var + BN_EPS)
        shift = beta - running_mean * scale
        s = jnp.zeros((1, width), jnp.float32).at[0, :c].set(scale)
        t = jnp.zeros((1, width), jnp.float32).at[0, :c].set(shift)
        return s, t

    # Stem: conv0 (no bias); norm0 folded as the conv epilogue.
    es0, et0 = bn_rows(NUM_INIT_FEATURES, _round_up(NUM_INIT_FEATURES, 128))
    params = {"stem": {"w": conv_w(7, 7, 3, NUM_INIT_FEATURES),
                       "es": es0, "et": et0}}

    nf = NUM_INIT_FEATURES
    blocks, transitions = [], []
    for bi, num_layers in enumerate(BLOCK_CONFIG):
        c_final = nf + num_layers * GROWTH_RATE      # multiple of 128
        layers = []
        for li in range(num_layers):
            cin = nf + li * GROWTH_RATE
            s1, t1 = bn_rows(cin, c_final)           # prologue of 1x1 (pad->block width)
            w1 = conv_w(1, 1, cin, BN_SIZE * GROWTH_RATE, kp=c_final)
            s2, t2 = bn_rows(BN_SIZE * GROWTH_RATE, BN_SIZE * GROWTH_RATE)
            w2 = conv_w(3, 3, BN_SIZE * GROWTH_RATE, GROWTH_RATE)
            layers.append({"s1": s1, "t1": t1, "w1": w1,
                           "s2": s2, "t2": t2, "w2": w2})
        blocks.append(layers)
        nf = c_final
        if bi != len(BLOCK_CONFIG) - 1:
            st, tt = bn_rows(nf, nf)
            transitions.append({"s": st, "t": tt,
                                "w": conv_w(1, 1, nf, nf // 2)})
            nf = nf // 2
    params["blocks"] = blocks
    params["transitions"] = transitions

    # norm5 folded as the classifier-matmul prologue.
    s5, t5 = bn_rows(nf, nf)                           # nf == 1024
    params["bn5"] = {"s": s5, "t": t5}
    params["cls"] = {"w": conv_w(1, 1, nf, NUM_CLASSES),
                     "b": jnp.zeros((NUM_CLASSES,), jnp.float32)}
    return params


# --------------------------------- forward ---------------------------------

def densenet_forward(params, x_nchw):
    x = jnp.transpose(x_nchw, (0, 2, 3, 1)).astype(jnp.bfloat16)  # NCHW->NHWC
    N = x.shape[0]

    # Stem: conv7x7/s2 (+folded norm0 + ReLU epilogue) -> maxpool3x3/s2
    patches, Ho, Wo = im2col(x, 7, 7, 2, 3)
    st = params["stem"]
    y = fused_matmul(patches, st["w"],
                     epilogue=(st["es"], st["et"]), epilogue_relu=True)
    x = y[:N * Ho * Wo, :NUM_INIT_FEATURES].reshape(N, Ho, Wo,
                                                    NUM_INIT_FEATURES)
    x = max_pool(x, 3, 2, 1)

    # Dense blocks + transitions
    nf = NUM_INIT_FEATURES
    for bi, num_layers in enumerate(BLOCK_CONFIG):
        c_final = nf + num_layers * GROWTH_RATE            # 128-aligned
        Nb, H, W, _ = x.shape
        M = Nb * H * W
        # Preallocated, 128-aligned bf16 channel buffer for dense connectivity.
        buf = jnp.zeros((M, c_final), jnp.bfloat16)
        buf = buf.at[:, :nf].set(x.reshape(M, nf))
        for li, lp in enumerate(params["blocks"][bi]):
            # 1x1 bottleneck: BN1+ReLU prologue, matmul, BN2+ReLU epilogue.
            # (BN2+ReLU before spatial padding -> matches PyTorch exactly.)
            y1 = fused_matmul(buf, lp["w1"],
                              prologue=(lp["s1"], lp["t1"]), prologue_relu=True,
                              epilogue=(lp["s2"], lp["t2"]), epilogue_relu=True)
            y1 = y1[:M, :BN_SIZE * GROWTH_RATE].reshape(
                Nb, H, W, BN_SIZE * GROWTH_RATE)
            # 3x3 conv: im2col (bf16, post-activation) then plain matmul.
            p2, _, _ = im2col(y1, 3, 3, 1, 1)
            y2 = fused_matmul(p2, lp["w2"])
            c0 = nf + li * GROWTH_RATE
            buf = buf.at[:, c0:c0 + GROWTH_RATE].set(y2[:M, :GROWTH_RATE])
        nf = c_final
        x = buf.reshape(Nb, H, W, nf)
        if bi != len(BLOCK_CONFIG) - 1:
            tp = params["transitions"][bi]
            y = fused_matmul(buf, tp["w"],
                             prologue=(tp["s"], tp["t"]), prologue_relu=True)
            nf = nf // 2
            x = y[:M, :nf].reshape(Nb, H, W, nf)
            x = avg_pool2(x)

    # Head: relu(norm5(x)) -> adaptive_avg_pool(1) -> linear.  norm5+ReLU are
    # the classifier-matmul prologue; mean commutes with the (linear) matmul.
    Nb, H, W, C = x.shape
    M = Nb * H * W
    y = fused_matmul(x.reshape(M, C), params["cls"]["w"],
                     prologue=(params["bn5"]["s"], params["bn5"]["t"]),
                     prologue_relu=True, out_dtype=jnp.float32)
    logits = y[:M, :NUM_CLASSES].reshape(Nb, H * W, NUM_CLASSES).mean(axis=1)
    return logits + params["cls"]["b"]


if __name__ == "__main__":
    key = jax.random.PRNGKey(0)
    pkey, xkey = jax.random.split(key)
    params = build_densenet121_params(pkey)
    # NCHW input like the PyTorch module (3 input channels required by conv0).
    x = jax.random.normal(xkey, (2, 3, 32, 32), jnp.float32)
    forward = jax.jit(densenet_forward)        # one jit for the whole network
    logits = forward(params, x)
    logits = jax.block_until_ready(logits)
    assert logits.shape == (2, NUM_CLASSES), logits.shape
    assert bool(jnp.all(jnp.isfinite(logits)))
    print("KERNEL_OK")
</pallas_src>

<mosaic_0001>
module attributes {stable_mosaic.version = 11 : i64} {
  func.func @kernel(%arg0: i32, %arg1: i32, %arg2: memref<256x256xbf16, #tpu.memory_space<vmem>>, %arg3: memref<1x128xf32, #tpu.memory_space<vmem>>, %arg4: memref<1x128xf32, #tpu.memory_space<vmem>>, %arg5: memref<256x128xbf16, #tpu.memory_space<vmem>>, %arg6: memref<256x128xbf16, #tpu.memory_space<vmem>>) attributes {dimension_semantics = [#tpu.dimension_semantics<parallel>, #tpu.dimension_semantics<parallel>], iteration_bounds = array<i64: 2, 1>, scalar_prefetch = 0 : i64, scratch_operands = 0 : i64, tpu.core_type = #tpu.core_type<tc>, window_params = [{transform_indices = @transform_0, window_bounds = array<i64: 256, 256>}, {transform_indices = @transform_1, window_bounds = array<i64: 1, 128>}, {transform_indices = @transform_2, window_bounds = array<i64: 1, 128>}, {transform_indices = @transform_3, window_bounds = array<i64: 256, 128>}, {transform_indices = @transform_4, window_bounds = array<i64: 256, 128>}]} {
    %c0 = arith.constant 0 : index
    %c0_0 = arith.constant 0 : index
    %0 = vector.load %arg2[%c0, %c0_0] : memref<256x256xbf16, #tpu.memory_space<vmem>>, vector<256x256xbf16>
    %c0_1 = arith.constant 0 : index
    %c0_2 = arith.constant 0 : index
    %1 = vector.load %arg5[%c0_1, %c0_2] : memref<256x128xbf16, #tpu.memory_space<vmem>>, vector<256x128xbf16>
    %cst = arith.constant dense<0.000000e+00> : vector<256x128xf32>
    %2 = tpu.matmul %0, %1, %cst {dimension_numbers = #tpu.dot_dimension_numbers<[1], [0], [0], [1], [0, 0, 1, 1], [], []>} : vector<256x256xbf16>, vector<256x128xbf16>, vector<256x128xf32> -> vector<256x128xf32>
    %c0_3 = arith.constant 0 : index
    %c0_4 = arith.constant 0 : index
    %3 = vector.load %arg3[%c0_3, %c0_4] : memref<1x128xf32, #tpu.memory_space<vmem>>, vector<1x128xf32>
    %4 = vector.broadcast %3 : vector<1x128xf32> to vector<256x128xf32>
    %5 = arith.mulf %2, %4 : vector<256x128xf32>
    %c0_5 = arith.constant 0 : index
    %c0_6 = arith.constant 0 : index
    %6 = vector.load %arg4[%c0_5, %c0_6] : memref<1x128xf32, #tpu.memory_space<vmem>>, vector<1x128xf32>
    %7 = vector.broadcast %6 : vector<1x128xf32> to vector<256x128xf32>
    %8 = arith.addf %5, %7 : vector<256x128xf32>
    %cst_7 = arith.constant 0.000000e+00 : f32
    %9 = vector.broadcast %cst_7 : f32 to vector<256x128xf32>
    %10 = arith.maximumf %8, %9 : vector<256x128xf32>
    %11 = arith.truncf %10 : vector<256x128xf32> to vector<256x128xbf16>
    %c0_8 = arith.constant 0 : index
    %c0_9 = arith.constant 0 : index
    %12 = vector.load %arg6[%c0_8, %c0_9] : memref<256x128xbf16, #tpu.memory_space<vmem>>, vector<256x128xbf16>
    tpu.vector_store %arg6[%c0_8, %c0_9], %11 {strides = array<i32>} : memref<256x128xbf16, #tpu.memory_space<vmem>>, vector<256x128xbf16>,
    return
  }
  func.func @transform_0(%arg0: i32, %arg1: i32) -> (i32, i32) {
    %c0_i32 = arith.constant 0 : i32
    %c0_i32_0 = arith.constant 0 : i32
    return %arg0, %c0_i32 : i32, i32
  }
  func.func @transform_1(%arg0: i32, %arg1: i32) -> (i32, i32) {
    %c0_i32 = arith.constant 0 : i32
    %c0_i32_0 = arith.constant 0 : i32
    return %c0_i32, %arg1 : i32, i32
  }
  func.func @transform_2(%arg0: i32, %arg1: i32) -> (i32, i32) {
    %c0_i32 = arith.constant 0 : i32
    %c0_i32_0 = arith.constant 0 : i32
    return %c0_i32, %arg1 : i32, i32
  }
  func.func @transform_3(%arg0: i32, %arg1: i32) -> (i32, i32) {
    %c0_i32 = arith.constant 0 : i32
    %c0_i32_0 = arith.constant 0 : i32
    return %c0_i32, %arg1 : i32, i32
  }
  func.func @transform_4(%arg0: i32, %arg1: i32) -> (i32, i32) {
    %c0_i32 = arith.constant 0 : i32
    return %arg0, %arg1 : i32, i32
  }
}

module attributes {stable_mosaic.version = 11 : i64} {
  func.func @kernel(%arg0: i32, %arg1: i32, %arg2: memref<64x256xbf16, #tpu.memory_space<vmem>>, %arg3: memref<1x256xf32, #tpu.memory_space<vmem>>, %arg4: memref<1x256xf32, #tpu.memory_space<vmem>>, %arg5: memref<1x128xf32, #tpu.memory_space<vmem>>, %arg6: memref<1x128xf32, #tpu.memory_space<vmem>>, %arg7: memref<256x128xbf16, #tpu.memory_space<vmem>>, %arg8: memref<64x128xbf16, #tpu.memory_space<vmem>>) attributes {dimension_semantics = [#tpu.dimension_semantics<parallel>, #tpu.dimension_semantics<parallel>], iteration_bounds = array<i64: 2, 1>, scalar_prefetch = 0 : i64, scratch_operands = 0 : i64, tpu.core_type = #tpu.core_type<tc>, window_params = [{transform_indices = @transform_0, window_bounds = array<i64: 64, 256>}, {pipeline_mode = #tpu.pipeline_mode<synchronous>, transform_indices = @transform_1, window_bounds = array<i64: 1, 256>}, {pipeline_mode = #tpu.pipeline_mode<synchronous>, transform_indices = @transform_2, window_bounds = array<i64: 1, 256>}, {transform_indices = @transform_3, window_bounds = array<i64: 1, 128>}, {transform_indices = @transform_4, window_bounds = array<i64: 1, 128>}, {transform_indices = @transform_5, window_bounds = array<i64: 256, 128>}, {transform_indices = @transform_6, window_bounds = array<i64: 64, 128>}]} {
    %c0 = arith.constant 0 : index
    %c0_0 = arith.constant 0 : index
    %0 = vector.load %arg2[%c0, %c0_0] : memref<64x256xbf16, #tpu.memory_space<vmem>>, vector<64x256xbf16>
    %1 = arith.extf %0 : vector<64x256xbf16> to vector<64x256xf32>
    %c0_1 = arith.constant 0 : index
    %c0_2 = arith.constant 0 : index
    %2 = vector.load %arg3[%c0_1, %c0_2] : memref<1x256xf32, #tpu.memory_space<vmem>>, vector<1x256xf32>
    %3 = vector.broadcast %2 : vector<1x256xf32> to vector<64x256xf32>
    %4 = arith.mulf %1, %3 : vector<64x256xf32>
    %c0_3 = arith.constant 0 : index
    %c0_4 = arith.constant 0 : index
    %5 = vector.load %arg4[%c0_3, %c0_4] : memref<1x256xf32, #tpu.memory_space<vmem>>, vector<1x256xf32>
    %6 = vector.broadcast %5 : vector<1x256xf32> to vector<64x256xf32>
    %7 = arith.addf %4, %6 : vector<64x256xf32>
    %cst = arith.constant 0.000000e+00 : f32
    %8 = vector.broadcast %cst : f32 to vector<64x256xf32>
    %9 = arith.maximumf %7, %8 : vector<64x256xf32>
    %10 = arith.truncf %9 : vector<64x256xf32> to vector<64x256xbf16>
    %c0_5 = arith.constant 0 : index
    %c0_6 = arith.constant 0 : index
    %11 = vector.load %arg7[%c0_5, %c0_6] : memref<256x128xbf16, #tpu.memory_space<vmem>>, vector<256x128xbf16>
    %cst_7 = arith.constant dense<0.000000e+00> : vector<64x128xf32>
    %12 = tpu.matmul %10, %11, %cst_7 {dimension_numbers = #tpu.dot_dimension_numbers<[1], [0], [0], [1], [0, 0, 1, 1], [], []>} : vector<64x256xbf16>, vector<256x128xbf16>, vector<64x128xf32> -> vector<64x128xf32>
    %c0_8 = arith.constant 0 : index
    %c0_9 = arith.constant 0 : index
    %13 = vector.load %arg5[%c0_8, %c0_9] : memref<1x128xf32, #tpu.memory_space<vmem>>, vector<1x128xf32>
    %14 = vector.broadcast %13 : vector<1x128xf32> to vector<64x128xf32>
    %15 = arith.mulf %12, %14 : vector<64x128xf32>
    %c0_10 = arith.constant 0 : index
    %c0_11 = arith.constant 0 : index
    %16 = vector.load %arg6[%c0_10, %c0_11] : memref<1x128xf32, #tpu.memory_space<vmem>>, vector<1x128xf32>
    %17 = vector.broadcast %16 : vector<1x128xf32> to vector<64x128xf32>
    %18 = arith.addf %15, %17 : vector<64x128xf32>
    %cst_12 = arith.constant 0.000000e+00 : f32
    %19 = vector.broadcast %cst_12 : f32 to vector<64x128xf32>
    %20 = arith.maximumf %18, %19 : vector<64x128xf32>
    %21 = arith.truncf %20 : vector<64x128xf32> to vector<64x128xbf16>
    %c0_13 = arith.constant 0 : index
    %c0_14 = arith.constant 0 : index
    %22 = vector.load %arg8[%c0_13, %c0_14] : memref<64x128xbf16, #tpu.memory_space<vmem>>, vector<64x128xbf16>
    tpu.vector_store %arg8[%c0_13, %c0_14], %21 {strides = array<i32>} : memref<64x128xbf16, #tpu.memory_space<vmem>>, vector<64x128xbf16>,
    return
  }
  func.func @transform_0(%arg0: i32, %arg1: i32) -> (i32, i32) {
    %c0_i32 = arith.constant 0 : i32
    %c0_i32_0 = arith.constant 0 : i32
    return %arg0, %c0_i32 : i32, i32
  }
  func.func @transform_1(%arg0: i32, %arg1: i32) -> (i32, i32) {
    %c0_i32 = arith.constant 0 : i32
    %c0_i32_0 = arith.constant 0 : i32
    %c0_i32_1 = arith.constant 0 : i32
    return %c0_i32, %c0_i32_0 : i32, i32
  }
  func.func @transform_2(%arg0: i32, %arg1: i32) -> (i32, i32) {
    %c0_i32 = arith.constant 0 : i32
    %c0_i32_0 = arith.constant 0 : i32
    %c0_i32_1 = arith.constant 0 : i32
    return %c0_i32, %c0_i32_0 : i32, i32
  }
  func.func @transform_3(%arg0: i32, %arg1: i32) -> (i32, i32) {
    %c0_i32 = arith.constant 0 : i32
    %c0_i32_0 = arith.constant 0 : i32
    return %c0_i32, %arg1 : i32, i32
  }
  func.func @transform_4(%arg0: i32, %arg1: i32) -> (i32, i32) {
    %c0_i32 = arith.constant 0 : i32
    %c0_i32_0 = arith.constant 0 : i32
    return %c0_i32, %arg1 : i32, i32
  }
  func.func @transform_5(%arg0: i32, %arg1: i32) -> (i32, i32) {
    %c0_i32 = arith.constant 0 : i32
    %c0_i32_0 = arith.constant 0 : i32
    return %c0_i32, %arg1 : i32, i32
  }
  func.func @transform_6(%arg0: i32, %arg1: i32) -> (i32, i32) {
    %c0_i32 = arith.constant 0 : i32
    return %arg0, %arg1 : i32, i32
  }
}

module attributes {stable_mosaic.version = 11 : i64} {
  func.func @kernel(%arg0: i32, %arg1: i32, %arg2: memref<64x1152xbf16, #tpu.memory_space<vmem>>, %arg3: memref<1152x128xbf16, #tpu.memory_space<vmem>>, %arg4: memref<64x128xbf16, #tpu.memory_space<vmem>>) attributes {dimension_semantics = [#tpu.dimension_semantics<parallel>, #tpu.dimension_semantics<parallel>], iteration_bounds = array<i64: 2, 1>, scalar_prefetch = 0 : i64, scratch_operands = 0 : i64, tpu.core_type = #tpu.core_type<tc>, window_params = [{transform_indices = @transform_0, window_bounds = array<i64: 64, 1152>}, {transform_indices = @transform_1, window_bounds = array<i64: 1152, 128>}, {transform_indices = @transform_2, window_bounds = array<i64: 64, 128>}]} {
    %c0 = arith.constant 0 : index
    %c0_0 = arith.constant 0 : index
    %0 = vector.load %arg2[%c0, %c0_0] : memref<64x1152xbf16, #tpu.memory_space<vmem>>, vector<64x1152xbf16>
    %c0_1 = arith.constant 0 : index
    %c0_2 = arith.constant 0 : index
    %1 = vector.load %arg3[%c0_1, %c0_2] : memref<1152x128xbf16, #tpu.memory_space<vmem>>, vector<1152x128xbf16>
    %cst = arith.constant dense<0.000000e+00> : vector<64x128xf32>
    %2 = tpu.matmul %0, %1, %cst {dimension_numbers = #tpu.dot_dimension_numbers<[1], [0], [0], [1], [0, 0, 1, 1], [], []>} : vector<64x1152xbf16>, vector<1152x128xbf16>, vector<64x128xf32> -> vector<64x128xf32>
    %3 = arith.truncf %2 : vector<64x128xf32> to vector<64x128xbf16>
    %c0_3 = arith.constant 0 : index
    %c0_4 = arith.constant 0 : index
    %4 = vector.load %arg4[%c0_3, %c0_4] : memref<64x128xbf16, #tpu.memory_space<vmem>>, vector<64x128xbf16>
    tpu.vector_store %arg4[%c0_3, %c0_4], %3 {strides = array<i32>} : memref<64x128xbf16, #tpu.memory_space<vmem>>, vector<64x128xbf16>,
    return
  }
  func.func @transform_0(%arg0: i32, %arg1: i32) -> (i32, i32) {
    %c0_i32 = arith.constant 0 : i32
    %c0_i32_0 = arith.constant 0 : i32
    return %arg0, %c0_i32 : i32, i32
  }
  func.func @transform_1(%arg0: i32, %arg1: i32) -> (i32, i32) {
    %c0_i32 = arith.constant 0 : i32
    %c0_i32_0 = arith.constant 0 : i32
    return %c0_i32, %arg1 : i32, i32
  }
  func.func @transform_2(%arg0: i32, %arg1: i32) -> (i32, i32) {
    %c0_i32 = arith.constant 0 : i32
    return %arg0, %arg1 : i32, i32
  }
}

module attributes {stable_mosaic.version = 11 : i64} {
  func.func @kernel(%arg0: i32, %arg1: i32, %arg2: memref<64x256xbf16, #tpu.memory_space<vmem>>, %arg3: memref<1x256xf32, #tpu.memory_space<vmem>>, %arg4: memref<1x256xf32, #tpu.memory_space<vmem>>, %arg5: memref<256x128xbf16, #tpu.memory_space<vmem>>, %arg6: memref<64x128xbf16, #tpu.memory_space<vmem>>) attributes {dimension_semantics = [#tpu.dimension_semantics<parallel>, #tpu.dimension_semantics<parallel>], iteration_bounds = array<i64: 2, 1>, scalar_prefetch = 0 : i64, scratch_operands = 0 : i64, tpu.core_type = #tpu.core_type<tc>, window_params = [{transform_indices = @transform_0, window_bounds = array<i64: 64, 256>}, {pipeline_mode = #tpu.pipeline_mode<synchronous>, transform_indices = @transform_1, window_bounds = array<i64: 1, 256>}, {pipeline_mode = #tpu.pipeline_mode<synchronous>, transform_indices = @transform_2, window_bounds = array<i64: 1, 256>}, {transform_indices = @transform_3, window_bounds = array<i64: 256, 128>}, {transform_indices = @transform_4, window_bounds = array<i64: 64, 128>}]} {
    %c0 = arith.constant 0 : index
    %c0_0 = arith.constant 0 : index
    %0 = vector.load %arg2[%c0, %c0_0] : memref<64x256xbf16, #tpu.memory_space<vmem>>, vector<64x256xbf16>
    %1 = arith.extf %0 : vector<64x256xbf16> to vector<64x256xf32>
    %c0_1 = arith.constant 0 : index
    %c0_2 = arith.constant 0 : index
    %2 = vector.load %arg3[%c0_1, %c0_2] : memref<1x256xf32, #tpu.memory_space<vmem>>, vector<1x256xf32>
    %3 = vector.broadcast %2 : vector<1x256xf32> to vector<64x256xf32>
    %4 = arith.mulf %1, %3 : vector<64x256xf32>
    %c0_3 = arith.constant 0 : index
    %c0_4 = arith.constant 0 : index
    %5 = vector.load %arg4[%c0_3, %c0_4] : memref<1x256xf32, #tpu.memory_space<vmem>>, vector<1x256xf32>
    %6 = vector.broadcast %5 : vector<1x256xf32> to vector<64x256xf32>
    %7 = arith.addf %4, %6 : vector<64x256xf32>
    %cst = arith.constant 0.000000e+00 : f32
    %8 = vector.broadcast %cst : f32 to vector<64x256xf32>
    %9 = arith.maximumf %7, %8 : vector<64x256xf32>
    %10 = arith.truncf %9 : vector<64x256xf32> to vector<64x256xbf16>
    %c0_5 = arith.constant 0 : index
    %c0_6 = arith.constant 0 : index
    %11 = vector.load %arg5[%c0_5, %c0_6] : memref<256x128xbf16, #tpu.memory_space<vmem>>, vector<256x128xbf16>
    %cst_7 = arith.constant dense<0.000000e+00> : vector<64x128xf32>
    %12 = tpu.matmul %10, %11, %cst_7 {dimension_numbers = #tpu.dot_dimension_numbers<[1], [0], [0], [1], [0, 0, 1, 1], [], []>} : vector<64x256xbf16>, vector<256x128xbf16>, vector<64x128xf32> -> vector<64x128xf32>
    %13 = arith.truncf %12 : vector<64x128xf32> to vector<64x128xbf16>
    %c0_8 = arith.constant 0 : index
    %c0_9 = arith.constant 0 : index
    %14 = vector.load %arg6[%c0_8, %c0_9] : memref<64x128xbf16, #tpu.memory_space<vmem>>, vector<64x128xbf16>
    tpu.vector_store %arg6[%c0_8, %c0_9], %13 {strides = array<i32>} : memref<64x128xbf16, #tpu.memory_space<vmem>>, vector<64x128xbf16>,
    return
  }
  func.func @transform_0(%arg0: i32, %arg1: i32) -> (i32, i32) {
    %c0_i32 = arith.constant 0 : i32
    %c0_i32_0 = arith.constant 0 : i32
    return %arg0, %c0_i32 : i32, i32
  }
  func.func @transform_1(%arg0: i32, %arg1: i32) -> (i32, i32) {
    %c0_i32 = arith.constant 0 : i32
    %c0_i32_0 = arith.constant 0 : i32
    %c0_i32_1 = arith.constant 0 : i32
    return %c0_i32, %c0_i32_0 : i32, i32
  }
  func.func @transform_2(%arg0: i32, %arg1: i32) -> (i32, i32) {
    %c0_i32 = arith.constant 0 : i32
    %c0_i32_0 = arith.constant 0 : i32
    %c0_i32_1 = arith.constant 0 : i32
    return %c0_i32, %c0_i32_0 : i32, i32
  }
  func.func @transform_3(%arg0: i32, %arg1: i32) -> (i32, i32) {
    %c0_i32 = arith.constant 0 : i32
    %c0_i32_0 = arith.constant 0 : i32
    return %c0_i32, %arg1 : i32, i32
  }
  func.func @transform_4(%arg0: i32, %arg1: i32) -> (i32, i32) {
    %c0_i32 = arith.constant 0 : i32
    return %arg0, %arg1 : i32, i32
  }
}

module attributes {stable_mosaic.version = 11 : i64} {
  func.func @kernel(%arg0: i32, %arg1: i32, %arg2: memref<32x512xbf16, #tpu.memory_space<vmem>>, %arg3: memref<1x512xf32, #tpu.memory_space<vmem>>, %arg4: memref<1x512xf32, #tpu.memory_space<vmem>>, %arg5: memref<1x128xf32, #tpu.memory_space<vmem>>, %arg6: memref<1x128xf32, #tpu.memory_space<vmem>>, %arg7: memref<512x128xbf16, #tpu.memory_space<vmem>>, %arg8: memref<32x128xbf16, #tpu.memory_space<vmem>>) attributes {dimension_semantics = [#tpu.dimension_semantics<parallel>, #tpu.dimension_semantics<parallel>], iteration_bounds = array<i64: 1, 1>, scalar_prefetch = 0 : i64, scratch_operands = 0 : i64, tpu.core_type = #tpu.core_type<tc>, window_params = [{transform_indices = @transform_0, window_bounds = array<i64: 32, 512>}, {pipeline_mode = #tpu.pipeline_mode<synchronous>, transform_indices = @transform_1, window_bounds = array<i64: 1, 512>}, {pipeline_mode = #tpu.pipeline_mode<synchronous>, transform_indices = @transform_2, window_bounds = array<i64: 1, 512>}, {transform_indices = @transform_3, window_bounds = array<i64: 1, 128>}, {transform_indices = @transform_4, window_bounds = array<i64: 1, 128>}, {transform_indices = @transform_5, window_bounds = array<i64: 512, 128>}, {transform_indices = @transform_6, window_bounds = array<i64: 32, 128>}]} {
    %c0 = arith.constant 0 : index
    %c0_0 = arith.constant 0 : index
    %0 = vector.load %arg2[%c0, %c0_0] : memref<32x512xbf16, #tpu.memory_space<vmem>>, vector<32x512xbf16>
    %1 = arith.extf %0 : vector<32x512xbf16> to vector<32x512xf32>
    %c0_1 = arith.constant 0 : index
    %c0_2 = arith.constant 0 : index
    %2 = vector.load %arg3[%c0_1, %c0_2] : memref<1x512xf32, #tpu.memory_space<vmem>>, vector<1x512xf32>
    %3 = vector.broadcast %2 : vector<1x512xf32> to vector<32x512xf32>
    %4 = arith.mulf %1, %3 : vector<32x512xf32>
    %c0_3 = arith.constant 0 : index
    %c0_4 = arith.constant 0 : index
    %5 = vector.load %arg4[%c0_3, %c0_4] : memref<1x512xf32, #tpu.memory_space<vmem>>, vector<1x512xf32>
    %6 = vector.broadcast %5 : vector<1x512xf32> to vector<32x512xf32>
    %7 = arith.addf %4, %6 : vector<32x512xf32>
    %cst = arith.constant 0.000000e+00 : f32
    %8 = vector.broadcast %cst : f32 to vector<32x512xf32>
    %9 = arith.maximumf %7, %8 : vector<32x512xf32>
    %10 = arith.truncf %9 : vector<32x512xf32> to vector<32x512xbf16>
    %c0_5 = arith.constant 0 : index
    %c0_6 = arith.constant 0 : index
    %11 = vector.load %arg7[%c0_5, %c0_6] : memref<512x128xbf16, #tpu.memory_space<vmem>>, vector<512x128xbf16>
    %cst_7 = arith.constant dense<0.000000e+00> : vector<32x128xf32>
    %12 = tpu.matmul %10, %11, %cst_7 {dimension_numbers = #tpu.dot_dimension_numbers<[1], [0], [0], [1], [0, 0, 1, 1], [], []>} : vector<32x512xbf16>, vector<512x128xbf16>, vector<32x128xf32> -> vector<32x128xf32>
    %c0_8 = arith.constant 0 : index
    %c0_9 = arith.constant 0 : index
    %13 = vector.load %arg5[%c0_8, %c0_9] : memref<1x128xf32, #tpu.memory_space<vmem>>, vector<1x128xf32>
    %14 = vector.broadcast %13 : vector<1x128xf32> to vector<32x128xf32>
    %15 = arith.mulf %12, %14 : vector<32x128xf32>
    %c0_10 = arith.constant 0 : index
    %c0_11 = arith.constant 0 : index
    %16 = vector.load %arg6[%c0_10, %c0_11] : memref<1x128xf32, #tpu.memory_space<vmem>>, vector<1x128xf32>
    %17 = vector.broadcast %16 : vector<1x128xf32> to vector<32x128xf32>
    %18 = arith.addf %15, %17 : vector<32x128xf32>
    %cst_12 = arith.constant 0.000000e+00 : f32
    %19 = vector.broadcast %cst_12 : f32 to vector<32x128xf32>
    %20 = arith.maximumf %18, %19 : vector<32x128xf32>
    %21 = arith.truncf %20 : vector<32x128xf32> to vector<32x128xbf16>
    %c0_13 = arith.constant 0 : index
    %c0_14 = arith.constant 0 : index
    %22 = vector.load %arg8[%c0_13, %c0_14] : memref<32x128xbf16, #tpu.memory_space<vmem>>, vector<32x128xbf16>
    tpu.vector_store %arg8[%c0_13, %c0_14], %21 {strides = array<i32>} : memref<32x128xbf16, #tpu.memory_space<vmem>>, vector<32x128xbf16>,
    return
  }
  func.func @transform_0(%arg0: i32, %arg1: i32) -> (i32, i32) {
    %c0_i32 = arith.constant 0 : i32
    %c0_i32_0 = arith.constant 0 : i32
    return %arg0, %c0_i32 : i32, i32
  }
  func.func @transform_1(%arg0: i32, %arg1: i32) -> (i32, i32) {
    %c0_i32 = arith.constant 0 : i32
    %c0_i32_0 = arith.constant 0 : i32
    %c0_i32_1 = arith.constant 0 : i32
    return %c0_i32, %c0_i32_0 : i32, i32
  }
  func.func @transform_2(%arg0: i32, %arg1: i32) -> (i32, i32) {
    %c0_i32 = arith.constant 0 : i32
    %c0_i32_0 = arith.constant 0 : i32
    %c0_i32_1 = arith.constant 0 : i32
    return %c0_i32, %c0_i32_0 : i32, i32
  }
  func.func @transform_3(%arg0: i32, %arg1: i32) -> (i32, i32) {
    %c0_i32 = arith.constant 0 : i32
    %c0_i32_0 = arith.constant 0 : i32
    return %c0_i32, %arg1 : i32, i32
  }
  func.func @transform_4(%arg0: i32, %arg1: i32) -> (i32, i32) {
    %c0_i32 = arith.constant 0 : i32
    %c0_i32_0 = arith.constant 0 : i32
    return %c0_i32, %arg1 : i32, i32
  }
  func.func @transform_5(%arg0: i32, %arg1: i32) -> (i32, i32) {
    %c0_i32 = arith.constant 0 : i32
    %c0_i32_0 = arith.constant 0 : i32
    return %c0_i32, %arg1 : i32, i32
  }
  func.func @transform_6(%arg0: i32, %arg1: i32) -> (i32, i32) {
    %c0_i32 = arith.constant 0 : i32
    return %arg0, %arg1 : i32, i32
  }
}

module attributes {stable_mosaic.version = 11 : i64} {
  func.func @kernel(%arg0: i32, %arg1: i32, %arg2: memref<32x1152xbf16, #tpu.memory_space<vmem>>, %arg3: memref<1152x128xbf16, #tpu.memory_space<vmem>>, %arg4: memref<32x128xbf16, #tpu.memory_space<vmem>>) attributes {dimension_semantics = [#tpu.dimension_semantics<parallel>, #tpu.dimension_semantics<parallel>], iteration_bounds = array<i64: 1, 1>, scalar_prefetch = 0 : i64, scratch_operands = 0 : i64, tpu.core_type = #tpu.core_type<tc>, window_params = [{transform_indices = @transform_0, window_bounds = array<i64: 32, 1152>}, {transform_indices = @transform_1, window_bounds = array<i64: 1152, 128>}, {transform_indices = @transform_2, window_bounds = array<i64: 32, 128>}]} {
    %c0 = arith.constant 0 : index
    %c0_0 = arith.constant 0 : index
    %0 = vector.load %arg2[%c0, %c0_0] : memref<32x1152xbf16, #tpu.memory_space<vmem>>, vector<32x1152xbf16>
    %c0_1 = arith.constant 0 : index
    %c0_2 = arith.constant 0 : index
    %1 = vector.load %arg3[%c0_1, %c0_2] : memref<1152x128xbf16, #tpu.memory_space<vmem>>, vector<1152x128xbf16>
    %cst = arith.constant dense<0.000000e+00> : vector<32x128xf32>
    %2 = tpu.matmul %0, %1, %cst {dimension_numbers = #tpu.dot_dimension_numbers<[1], [0], [0], [1], [0, 0, 1, 1], [], []>} : vector<32x1152xbf16>, vector<1152x128xbf16>, vector<32x128xf32> -> vector<32x128xf32>
    %3 = arith.truncf %2 : vector<32x128xf32> to vector<32x128xbf16>
    %c0_3 = arith.constant 0 : index
    %c0_4 = arith.constant 0 : index
    %4 = vector.load %arg4[%c0_3, %c0_4] : memref<32x128xbf16, #tpu.memory_space<vmem>>, vector<32x128xbf16>
    tpu.vector_store %arg4[%c0_3, %c0_4], %3 {strides = array<i32>} : memref<32x128xbf16, #tpu.memory_space<vmem>>, vector<32x128xbf16>,
    return
  }
  func.func @transform_0(%arg0: i32, %arg1: i32) -> (i32, i32) {
    %c0_i32 = arith.constant 0 : i32
    %c0_i32_0 = arith.constant 0 : i32
    return %arg0, %c0_i32 : i32, i32
  }
  func.func @transform_1(%arg0: i32, %arg1: i32) -> (i32, i32) {
    %c0_i32 = arith.constant 0 : i32
    %c0_i32_0 = arith.constant 0 : i32
    return %c0_i32, %arg1 : i32, i32
  }
  func.func @transform_2(%arg0: i32, %arg1: i32) -> (i32, i32) {
    %c0_i32 = arith.constant 0 : i32
    return %arg0, %arg1 : i32, i32
  }
}

module attributes {stable_mosaic.version = 11 : i64} {
  func.func @kernel(%arg0: i32, %arg1: i32, %arg2: memref<32x1152xbf16, #tpu.memory_space<vmem>>, %arg3: memref<1152x128xbf16, #tpu.memory_space<vmem>>, %arg4: memref<32x128xbf16, #tpu.memory_space<vmem>>) attributes {dimension_semantics = [#tpu.dimension_semantics<parallel>, #tpu.dimension_semantics<parallel>], iteration_bounds = array<i64: 1, 1>, scalar_prefetch = 0 : i64, scratch_operands = 0 : i64, tpu.core_type = #tpu.core_type<tc>, window_params = [{transform_indices = @transform_0, window_bounds = array<i64: 32, 1152>}, {transform_indices = @transform_1, window_bounds = array<i64: 1152, 128>}, {transform_indices = @transform_2, window_bounds = array<i64: 32, 128>}]} {
    %c0 = arith.constant 0 : index
    %c0_0 = arith.constant 0 : index
    %0 = vector.load %arg2[%c0, %c0_0] : memref<32x1152xbf16, #tpu.memory_space<vmem>>, vector<32x1152xbf16>
    %c0_1 = arith.constant 0 : index
    %c0_2 = arith.constant 0 : index
    %1 = vector.load %arg3[%c0_1, %c0_2] : memref<1152x128xbf16, #tpu.memory_space<vmem>>, vector<1152x128xbf16>
    %cst = arith.constant dense<0.000000e+00> : vector<32x128xf32>
    %2 = tpu.matmul %0, %1, %cst {dimension_numbers = #tpu.dot_dimension_numbers<[1], [0], [0], [1], [0, 0, 1, 1], [], []>} : vector<32x1152xbf16>, vector<1152x128xbf16>, vector<32x128xf32> -> vector<32x128xf32>
    %3 = arith.truncf %2 : vector<32x128xf32> to vector<32x128xbf16>
    %c0_3 = arith.constant 0 : index
    %c0_4 = arith.constant 0 : index
    %4 = vector.load %arg4[%c0_3, %c0_4] : memref<32x128xbf16, #tpu.memory_space<vmem>>, vector<32x128xbf16>
    tpu.vector_store %arg4[%c0_3, %c0_4], %3 {strides = array<i32>} : memref<32x128xbf16, #tpu.memory_space<vmem>>, vector<32x128xbf16>,
    return
  }
  func.func @transform_0(%arg0: i32, %arg1: i32) -> (i32, i32) {
    %c0_i32 = arith.constant 0 : i32
    %c0_i32_0 = arith.constant 0 : i32
    return %arg0, %c0_i32 : i32, i32
  }
  func.func @transform_1(%arg0: i32, %arg1: i32) -> (i32, i32) {
    %c0_i32 = arith.constant 0 : i32
    %c0_i32_0 = arith.constant 0 : i32
    return %c0_i32, %arg1 : i32, i32
  }
  func.func @transform_2(%arg0: i32, %arg1: i32) -> (i32, i32) {
    %c0_i32 = arith.constant 0 : i32
    return %arg0, %arg1 : i32, i32
  }
}

module attributes {stable_mosaic.version = 11 : i64} {
  func.func @kernel(%arg0: i32, %arg1: i32, %arg2: memref<32x512xbf16, #tpu.memory_space<vmem>>, %arg3: memref<1x512xf32, #tpu.memory_space<vmem>>, %arg4: memref<1x512xf32, #tpu.memory_space<vmem>>, %arg5: memref<512x128xbf16, #tpu.memory_space<vmem>>, %arg6: memref<32x128xbf16, #tpu.memory_space<vmem>>) attributes {dimension_semantics = [#tpu.dimension_semantics<parallel>, #tpu.dimension_semantics<parallel>], iteration_bounds = array<i64: 1, 2>, scalar_prefetch = 0 : i64, scratch_operands = 0 : i64, tpu.core_type = #tpu.core_type<tc>, window_params = [{transform_indices = @transform_0, window_bounds = array<i64: 32, 512>}, {pipeline_mode = #tpu.pipeline_mode<synchronous>, transform_indices = @transform_1, window_bounds = array<i64: 1, 512>}, {pipeline_mode = #tpu.pipeline_mode<synchronous>, transform_indices = @transform_2, window_bounds = array<i64: 1, 512>}, {transform_indices = @transform_3, window_bounds = array<i64: 512, 128>}, {transform_indices = @transform_4, window_bounds = array<i64: 32, 128>}]} {
    %c0 = arith.constant 0 : index
    %c0_0 = arith.constant 0 : index
    %0 = vector.load %arg2[%c0, %c0_0] : memref<32x512xbf16, #tpu.memory_space<vmem>>, vector<32x512xbf16>
    %1 = arith.extf %0 : vector<32x512xbf16> to vector<32x512xf32>
    %c0_1 = arith.constant 0 : index
    %c0_2 = arith.constant 0 : index
    %2 = vector.load %arg3[%c0_1, %c0_2] : memref<1x512xf32, #tpu.memory_space<vmem>>, vector<1x512xf32>
    %3 = vector.broadcast %2 : vector<1x512xf32> to vector<32x512xf32>
    %4 = arith.mulf %1, %3 : vector<32x512xf32>
    %c0_3 = arith.constant 0 : index
    %c0_4 = arith.constant 0 : index
    %5 = vector.load %arg4[%c0_3, %c0_4] : memref<1x512xf32, #tpu.memory_space<vmem>>, vector<1x512xf32>
    %6 = vector.broadcast %5 : vector<1x512xf32> to vector<32x512xf32>
    %7 = arith.addf %4, %6 : vector<32x512xf32>
    %cst = arith.constant 0.000000e+00 : f32
    %8 = vector.broadcast %cst : f32 to vector<32x512xf32>
    %9 = arith.maximumf %7, %8 : vector<32x512xf32>
    %10 = arith.truncf %9 : vector<32x512xf32> to vector<32x512xbf16>
    %c0_5 = arith.constant 0 : index
    %c0_6 = arith.constant 0 : index
    %11 = vector.load %arg5[%c0_5, %c0_6] : memref<512x128xbf16, #tpu.memory_space<vmem>>, vector<512x128xbf16>
    %cst_7 = arith.constant dense<0.000000e+00> : vector<32x128xf32>
    %12 = tpu.matmul %10, %11, %cst_7 {dimension_numbers = #tpu.dot_dimension_numbers<[1], [0], [0], [1], [0, 0, 1, 1], [], []>} : vector<32x512xbf16>, vector<512x128xbf16>, vector<32x128xf32> -> vector<32x128xf32>
    %13 = arith.truncf %12 : vector<32x128xf32> to vector<32x128xbf16>
    %c0_8 = arith.constant 0 : index
    %c0_9 = arith.constant 0 : index
    %14 = vector.load %arg6[%c0_8, %c0_9] : memref<32x128xbf16, #tpu.memory_space<vmem>>, vector<32x128xbf16>
    tpu.vector_store %arg6[%c0_8, %c0_9], %13 {strides = array<i32>} : memref<32x128xbf16, #tpu.memory_space<vmem>>, vector<32x128xbf16>,
    return
  }
  func.func @transform_0(%arg0: i32, %arg1: i32) -> (i32, i32) {
    %c0_i32 = arith.constant 0 : i32
    %c0_i32_0 = arith.constant 0 : i32
    return %arg0, %c0_i32 : i32, i32
  }
  func.func @transform_1(%arg0: i32, %arg1: i32) -> (i32, i32) {
    %c0_i32 = arith.constant 0 : i32
    %c0_i32_0 = arith.constant 0 : i32
    %c0_i32_1 = arith.constant 0 : i32
    return %c0_i32, %c0_i32_0 : i32, i32
  }
  func.func @transform_2(%arg0: i32, %arg1: i32) -> (i32, i32) {
    %c0_i32 = arith.constant 0 : i32
    %c0_i32_0 = arith.constant 0 : i32
    %c0_i32_1 = arith.constant 0 : i32
    return %c0_i32, %c0_i32_0 : i32, i32
  }
  func.func @transform_3(%arg0: i32, %arg1: i32) -> (i32, i32) {
    %c0_i32 = arith.constant 0 : i32
    %c0_i32_0 = arith.constant 0 : i32
    return %c0_i32, %arg1 : i32, i32
  }
  func.func @transform_4(%arg0: i32, %arg1: i32) -> (i32, i32) {
    %c0_i32 = arith.constant 0 : i32
    return %arg0, %arg1 : i32, i32
  }
}

module attributes {stable_mosaic.version = 11 : i64} {
  func.func @kernel(%arg0: i32, %arg1: i32, %arg2: memref<16x1152xbf16, #tpu.memory_space<vmem>>, %arg3: memref<1152x128xbf16, #tpu.memory_space<vmem>>, %arg4: memref<16x128xbf16, #tpu.memory_space<vmem>>) attributes {dimension_semantics = [#tpu.dimension_semantics<parallel>, #tpu.dimension_semantics<parallel>], iteration_bounds = array<i64: 1, 1>, scalar_prefetch = 0 : i64, scratch_operands = 0 : i64, tpu.core_type = #tpu.core_type<tc>, window_params = [{transform_indices = @transform_0, window_bounds = array<i64: 16, 1152>}, {transform_indices = @transform_1, window_bounds = array<i64: 1152, 128>}, {transform_indices = @transform_2, window_bounds = array<i64: 16, 128>}]} {
    %c0 = arith.constant 0 : index
    %c0_0 = arith.constant 0 : index
    %0 = vector.load %arg2[%c0, %c0_0] : memref<16x1152xbf16, #tpu.memory_space<vmem>>, vector<16x1152xbf16>
    %c0_1 = arith.constant 0 : index
    %c0_2 = arith.constant 0 : index
    %1 = vector.load %arg3[%c0_1, %c0_2] : memref<1152x128xbf16, #tpu.memory_space<vmem>>, vector<1152x128xbf16>
    %cst = arith.constant dense<0.000000e+00> : vector<16x128xf32>
    %2 = tpu.matmul %0, %1, %cst {dimension_numbers = #tpu.dot_dimension_numbers<[1], [0], [0], [1], [0, 0, 1, 1], [], []>} : vector<16x1152xbf16>, vector<1152x128xbf16>, vector<16x128xf32> -> vector<16x128xf32>
    %3 = arith.truncf %2 : vector<16x128xf32> to vector<16x128xbf16>
    %c0_3 = arith.constant 0 : index
    %c0_4 = arith.constant 0 : index
    %4 = vector.load %arg4[%c0_3, %c0_4] : memref<16x128xbf16, #tpu.memory_space<vmem>>, vector<16x128xbf16>
    tpu.vector_store %arg4[%c0_3, %c0_4], %3 {strides = array<i32>} : memref<16x128xbf16, #tpu.memory_space<vmem>>, vector<16x128xbf16>,
    return
  }
  func.func @transform_0(%arg0: i32, %arg1: i32) -> (i32, i32) {
    %c0_i32 = arith.constant 0 : i32
    %c0_i32_0 = arith.constant 0 : i32
    return %arg0, %c0_i32 : i32, i32
  }
  func.func @transform_1(%arg0: i32, %arg1: i32) -> (i32, i32) {
    %c0_i32 = arith.constant 0 : i32
    %c0_i32_0 = arith.constant 0 : i32
    return %c0_i32, %arg1 : i32, i32
  }
  func.func @transform_2(%arg0: i32, %arg1: i32) -> (i32, i32) {
    %c0_i32 = arith.constant 0 : i32
    return %arg0, %arg1 : i32, i32
  }
}

module attributes {stable_mosaic.version = 11 : i64} {
  func.func @kernel(%arg0: i32, %arg1: i32, %arg2: memref<16x1024xbf16, #tpu.memory_space<vmem>>, %arg3: memref<1x1024xf32, #tpu.memory_space<vmem>>, %arg4: memref<1x1024xf32, #tpu.memory_space<vmem>>, %arg5: memref<1x128xf32, #tpu.memory_space<vmem>>, %arg6: memref<1x128xf32, #tpu.memory_space<vmem>>, %arg7: memref<1024x128xbf16, #tpu.memory_space<vmem>>, %arg8: memref<16x128xbf16, #tpu.memory_space<vmem>>) attributes {dimension_semantics = [#tpu.dimension_semantics<parallel>, #tpu.dimension_semantics<parallel>], iteration_bounds = array<i64: 1, 1>, scalar_prefetch = 0 : i64, scratch_operands = 0 : i64, tpu.core_type = #tpu.core_type<tc>, window_params = [{transform_indices = @transform_0, window_bounds = array<i64: 16, 1024>}, {pipeline_mode = #tpu.pipeline_mode<synchronous>, transform_indices = @transform_1, window_bounds = array<i64: 1, 1024>}, {pipeline_mode = #tpu.pipeline_mode<synchronous>, transform_indices = @transform_2, window_bounds = array<i64: 1, 1024>}, {transform_indices = @transform_3, window_bounds = array<i64: 1, 128>}, {transform_indices = @transform_4, window_bounds = array<i64: 1, 128>}, {transform_indices = @transform_5, window_bounds = array<i64: 1024, 128>}, {transform_indices = @transform_6, window_bounds = array<i64: 16, 128>}]} {
    %c0 = arith.constant 0 : index
    %c0_0 = arith.constant 0 : index
    %0 = vector.load %arg2[%c0, %c0_0] : memref<16x1024xbf16, #tpu.memory_space<vmem>>, vector<16x1024xbf16>
    %1 = arith.extf %0 : vector<16x1024xbf16> to vector<16x1024xf32>
    %c0_1 = arith.constant 0 : index
    %c0_2 = arith.constant 0 : index
    %2 = vector.load %arg3[%c0_1, %c0_2] : memref<1x1024xf32, #tpu.memory_space<vmem>>, vector<1x1024xf32>
    %3 = vector.broadcast %2 : vector<1x1024xf32> to vector<16x1024xf32>
    %4 = arith.mulf %1, %3 : vector<16x1024xf32>
    %c0_3 = arith.constant 0 : index
    %c0_4 = arith.constant 0 : index
    %5 = vector.load %arg4[%c0_3, %c0_4] : memref<1x1024xf32, #tpu.memory_space<vmem>>, vector<1x1024xf32>
    %6 = vector.broadcast %5 : vector<1x1024xf32> to vector<16x1024xf32>
    %7 = arith.addf %4, %6 : vector<16x1024xf32>
    %cst = arith.constant 0.000000e+00 : f32
    %8 = vector.broadcast %cst : f32 to vector<16x1024xf32>
    %9 = arith.maximumf %7, %8 : vector<16x1024xf32>
    %10 = arith.truncf %9 : vector<16x1024xf32> to vector<16x1024xbf16>
    %c0_5 = arith.constant 0 : index
    %c0_6 = arith.constant 0 : index
    %11 = vector.load %arg7[%c0_5, %c0_6] : memref<1024x128xbf16, #tpu.memory_space<vmem>>, vector<1024x128xbf16>
    %cst_7 = arith.constant dense<0.000000e+00> : vector<16x128xf32>
    %12 = tpu.matmul %10, %11, %cst_7 {dimension_numbers = #tpu.dot_dimension_numbers<[1], [0], [0], [1], [0, 0, 1, 1], [], []>} : vector<16x1024xbf16>, vector<1024x128xbf16>, vector<16x128xf32> -> vector<16x128xf32>
    %c0_8 = arith.constant 0 : index
    %c0_9 = arith.constant 0 : index
    %13 = vector.load %arg5[%c0_8, %c0_9] : memref<1x128xf32, #tpu.memory_space<vmem>>, vector<1x128xf32>
    %14 = vector.broadcast %13 : vector<1x128xf32> to vector<16x128xf32>
    %15 = arith.mulf %12, %14 : vector<16x128xf32>
    %c0_10 = arith.constant 0 : index
    %c0_11 = arith.constant 0 : index
    %16 = vector.load %arg6[%c0_10, %c0_11] : memref<1x128xf32, #tpu.memory_space<vmem>>, vector<1x128xf32>
    %17 = vector.broadcast %16 : vector<1x128xf32> to vector<16x128xf32>
    %18 = arith.addf %15, %17 : vector<16x128xf32>
    %cst_12 = arith.constant 0.000000e+00 : f32
    %19 = vector.broadcast %cst_12 : f32 to vector<16x128xf32>
    %20 = arith.maximumf %18, %19 : vector<16x128xf32>
    %21 = arith.truncf %20 : vector<16x128xf32> to vector<16x128xbf16>
    %c0_13 = arith.constant 0 : index
    %c0_14 = arith.constant 0 : index
    %22 = vector.load %arg8[%c0_13, %c0_14] : memref<16x128xbf16, #tpu.memory_space<vmem>>, vector<16x128xbf16>
    tpu.vector_store %arg8[%c0_13, %c0_14], %21 {strides = array<i32>} : memref<16x128xbf16, #tpu.memory_space<vmem>>, vector<16x128xbf16>,
    return
  }
  func.func @transform_0(%arg0: i32, %arg1: i32) -> (i32, i32) {
    %c0_i32 = arith.constant 0 : i32
    %c0_i32_0 = arith.constant 0 : i32
    return %arg0, %c0_i32 : i32, i32
  }
  func.func @transform_1(%arg0: i32, %arg1: i32) -> (i32, i32) {
    %c0_i32 = arith.constant 0 : i32
    %c0_i32_0 = arith.constant 0 : i32
    %c0_i32_1 = arith.constant 0 : i32
    return %c0_i32, %c0_i32_0 : i32, i32
  }
  func.func @transform_2(%arg0: i32, %arg1: i32) -> (i32, i32) {
    %c0_i32 = arith.constant 0 : i32
    %c0_i32_0 = arith.constant 0 : i32
    %c0_i32_1 = arith.constant 0 : i32
    return %c0_i32, %c0_i32_0 : i32, i32
  }
  func.func @transform_3(%arg0: i32, %arg1: i32) -> (i32, i32) {
    %c0_i32 = arith.constant 0 : i32
    %c0_i32_0 = arith.constant 0 : i32
    return %c0_i32, %arg1 : i32, i32
  }
  func.func @transform_4(%arg0: i32, %arg1: i32) -> (i32, i32) {
    %c0_i32 = arith.constant 0 : i32
    %c0_i32_0 = arith.constant 0 : i32
    return %c0_i32, %arg1 : i32, i32
  }
  func.func @transform_5(%arg0: i32, %arg1: i32) -> (i32, i32) {
    %c0_i32 = arith.constant 0 : i32
    %c0_i32_0 = arith.constant 0 : i32
    return %c0_i32, %arg1 : i32, i32
  }
  func.func @transform_6(%arg0: i32, %arg1: i32) -> (i32, i32) {
    %c0_i32 = arith.constant 0 : i32
    return %arg0, %arg1 : i32, i32
  }
}

module attributes {stable_mosaic.version = 11 : i64} {
  func.func @kernel(%arg0: i32, %arg1: i32, %arg2: memref<16x1024xbf16, #tpu.memory_space<vmem>>, %arg3: memref<1x1024xf32, #tpu.memory_space<vmem>>, %arg4: memref<1x1024xf32, #tpu.memory_space<vmem>>, %arg5: memref<1024x128xbf16, #tpu.memory_space<vmem>>, %arg6: memref<16x128xbf16, #tpu.memory_space<vmem>>) attributes {dimension_semantics = [#tpu.dimension_semantics<parallel>, #tpu.dimension_semantics<parallel>], iteration_bounds = array<i64: 1, 4>, scalar_prefetch = 0 : i64, scratch_operands = 0 : i64, tpu.core_type = #tpu.core_type<tc>, window_params = [{transform_indices = @transform_0, window_bounds = array<i64: 16, 1024>}, {pipeline_mode = #tpu.pipeline_mode<synchronous>, transform_indices = @transform_1, window_bounds = array<i64: 1, 1024>}, {pipeline_mode = #tpu.pipeline_mode<synchronous>, transform_indices = @transform_2, window_bounds = array<i64: 1, 1024>}, {transform_indices = @transform_3, window_bounds = array<i64: 1024, 128>}, {transform_indices = @transform_4, window_bounds = array<i64: 16, 128>}]} {
    %c0 = arith.constant 0 : index
    %c0_0 = arith.constant 0 : index
    %0 = vector.load %arg2[%c0, %c0_0] : memref<16x1024xbf16, #tpu.memory_space<vmem>>, vector<16x1024xbf16>
    %1 = arith.extf %0 : vector<16x1024xbf16> to vector<16x1024xf32>
    %c0_1 = arith.constant 0 : index
    %c0_2 = arith.constant 0 : index
    %2 = vector.load %arg3[%c0_1, %c0_2] : memref<1x1024xf32, #tpu.memory_space<vmem>>, vector<1x1024xf32>
    %3 = vector.broadcast %2 : vector<1x1024xf32> to vector<16x1024xf32>
    %4 = arith.mulf %1, %3 : vector<16x1024xf32>
    %c0_3 = arith.constant 0 : index
    %c0_4 = arith.constant 0 : index
    %5 = vector.load %arg4[%c0_3, %c0_4] : memref<1x1024xf32, #tpu.memory_space<vmem>>, vector<1x1024xf32>
    %6 = vector.broadcast %5 : vector<1x1024xf32> to vector<16x1024xf32>
    %7 = arith.addf %4, %6 : vector<16x1024xf32>
    %cst = arith.constant 0.000000e+00 : f32
    %8 = vector.broadcast %cst : f32 to vector<16x1024xf32>
    %9 = arith.maximumf %7, %8 : vector<16x1024xf32>
    %10 = arith.truncf %9 : vector<16x1024xf32> to vector<16x1024xbf16>
    %c0_5 = arith.constant 0 : index
    %c0_6 = arith.constant 0 : index
    %11 = vector.load %arg5[%c0_5, %c0_6] : memref<1024x128xbf16, #tpu.memory_space<vmem>>, vector<1024x128xbf16>
    %cst_7 = arith.constant dense<0.000000e+00> : vector<16x128xf32>
    %12 = tpu.matmul %10, %11, %cst_7 {dimension_numbers = #tpu.dot_dimension_numbers<[1], [0], [0], [1], [0, 0, 1, 1], [], []>} : vector<16x1024xbf16>, vector<1024x128xbf16>, vector<16x128xf32> -> vector<16x128xf32>
    %13 = arith.truncf %12 : vector<16x128xf32> to vector<16x128xbf16>
    %c0_8 = arith.constant 0 : index
    %c0_9 = arith.constant 0 : index
    %14 = vector.load %arg6[%c0_8, %c0_9] : memref<16x128xbf16, #tpu.memory_space<vmem>>, vector<16x128xbf16>
    tpu.vector_store %arg6[%c0_8, %c0_9], %13 {strides = array<i32>} : memref<16x128xbf16, #tpu.memory_space<vmem>>, vector<16x128xbf16>,
    return
  }
  func.func @transform_0(%arg0: i32, %arg1: i32) -> (i32, i32) {
    %c0_i32 = arith.constant 0 : i32
    %c0_i32_0 = arith.constant 0 : i32
    return %arg0, %c0_i32 : i32, i32
  }
  func.func @transform_1(%arg0: i32, %arg1: i32) -> (i32, i32) {
    %c0_i32 = arith.constant 0 : i32
    %c0_i32_0 = arith.constant 0 : i32
    %c0_i32_1 = arith.constant 0 : i32
    return %c0_i32, %c0_i32_0 : i32, i32
  }
  func.func @transform_2(%arg0: i32, %arg1: i32) -> (i32, i32) {
    %c0_i32 = arith.constant 0 : i32
    %c0_i32_0 = arith.constant 0 : i32
    %c0_i32_1 = arith.constant 0 : i32
    return %c0_i32, %c0_i32_0 : i32, i32
  }
  func.func @transform_3(%arg0: i32, %arg1: i32) -> (i32, i32) {
    %c0_i32 = arith.constant 0 : i32
    %c0_i32_0 = arith.constant 0 : i32
    return %c0_i32, %arg1 : i32, i32
  }
  func.func @transform_4(%arg0: i32, %arg1: i32) -> (i32, i32) {
    %c0_i32 = arith.constant 0 : i32
    return %arg0, %arg1 : i32, i32
  }
}

module attributes {stable_mosaic.version = 11 : i64} {
  func.func @kernel(%arg0: i32, %arg1: i32, %arg2: memref<16x1024xbf16, #tpu.memory_space<vmem>>, %arg3: memref<1x1024xf32, #tpu.memory_space<vmem>>, %arg4: memref<1x1024xf32, #tpu.memory_space<vmem>>, %arg5: memref<1024x128xbf16, #tpu.memory_space<vmem>>, %arg6: memref<16x128xf32, #tpu.memory_space<vmem>>) attributes {dimension_semantics = [#tpu.dimension_semantics<parallel>, #tpu.dimension_semantics<parallel>], iteration_bounds = array<i64: 1, 1>, scalar_prefetch = 0 : i64, scratch_operands = 0 : i64, tpu.core_type = #tpu.core_type<tc>, window_params = [{transform_indices = @transform_0, window_bounds = array<i64: 16, 1024>}, {pipeline_mode = #tpu.pipeline_mode<synchronous>, transform_indices = @transform_1, window_bounds = array<i64: 1, 1024>}, {pipeline_mode = #tpu.pipeline_mode<synchronous>, transform_indices = @transform_2, window_bounds = array<i64: 1, 1024>}, {transform_indices = @transform_3, window_bounds = array<i64: 1024, 128>}, {transform_indices = @transform_4, window_bounds = array<i64: 16, 128>}]} {
    %c0 = arith.constant 0 : index
    %c0_0 = arith.constant 0 : index
    %0 = vector.load %arg2[%c0, %c0_0] : memref<16x1024xbf16, #tpu.memory_space<vmem>>, vector<16x1024xbf16>
    %1 = arith.extf %0 : vector<16x1024xbf16> to vector<16x1024xf32>
    %c0_1 = arith.constant 0 : index
    %c0_2 = arith.constant 0 : index
    %2 = vector.load %arg3[%c0_1, %c0_2] : memref<1x1024xf32, #tpu.memory_space<vmem>>, vector<1x1024xf32>
    %3 = vector.broadcast %2 : vector<1x1024xf32> to vector<16x1024xf32>
    %4 = arith.mulf %1, %3 : vector<16x1024xf32>
    %c0_3 = arith.constant 0 : index
    %c0_4 = arith.constant 0 : index
    %5 = vector.load %arg4[%c0_3, %c0_4] : memref<1x1024xf32, #tpu.memory_space<vmem>>, vector<1x1024xf32>
    %6 = vector.broadcast %5 : vector<1x1024xf32> to vector<16x1024xf32>
    %7 = arith.addf %4, %6 : vector<16x1024xf32>
    %cst = arith.constant 0.000000e+00 : f32
    %8 = vector.broadcast %cst : f32 to vector<16x1024xf32>
    %9 = arith.maximumf %7, %8 : vector<16x1024xf32>
    %10 = arith.truncf %9 : vector<16x1024xf32> to vector<16x1024xbf16>
    %c0_5 = arith.constant 0 : index
    %c0_6 = arith.constant 0 : index
    %11 = vector.load %arg5[%c0_5, %c0_6] : memref<1024x128xbf16, #tpu.memory_space<vmem>>, vector<1024x128xbf16>
    %cst_7 = arith.constant dense<0.000000e+00> : vector<16x128xf32>
    %12 = tpu.matmul %10, %11, %cst_7 {dimension_numbers = #tpu.dot_dimension_numbers<[1], [0], [0], [1], [0, 0, 1, 1], [], []>} : vector<16x1024xbf16>, vector<1024x128xbf16>, vector<16x128xf32> -> vector<16x128xf32>
    %c0_8 = arith.constant 0 : index
    %c0_9 = arith.constant 0 : index
    %13 = vector.load %arg6[%c0_8, %c0_9] : memref<16x128xf32, #tpu.memory_space<vmem>>, vector<16x128xf32>
    tpu.vector_store %arg6[%c0_8, %c0_9], %12 {strides = array<i32>} : memref<16x128xf32, #tpu.memory_space<vmem>>, vector<16x128xf32>,
    return
  }
  func.func @transform_0(%arg0: i32, %arg1: i32) -> (i32, i32) {
    %c0_i32 = arith.constant 0 : i32
    %c0_i32_0 = arith.constant 0 : i32
    return %arg0, %c0_i32 : i32, i32
  }
  func.func @transform_1(%arg0: i32, %arg1: i32) -> (i32, i32) {
    %c0_i32 = arith.constant 0 : i32
    %c0_i32_0 = arith.constant 0 : i32
    %c0_i32_1 = arith.constant 0 : i32
    return %c0_i32, %c0_i32_0 : i32, i32
  }
  func.func @transform_2(%arg0: i32, %arg1: i32) -> (i32, i32) {
    %c0_i32 = arith.constant 0 : i32
    %c0_i32_0 = arith.constant 0 : i32
    %c0_i32_1 = arith.constant 0 : i32
    return %c0_i32, %c0_i32_0 : i32, i32
  }
  func.func @transform_3(%arg0: i32, %arg1: i32) -> (i32, i32) {
    %c0_i32 = arith.constant 0 : i32
    %c0_i32_0 = arith.constant 0 : i32
    return %c0_i32, %arg1 : i32, i32
  }
  func.func @transform_4(%arg0: i32, %arg1: i32) -> (i32, i32) {
    %c0_i32 = arith.constant 0 : i32
    return %arg0, %arg1 : i32, i32
  }
}

</mosaic_0001>

<llo_original>
// kernel: densenet_forward.122
$region0: #{densenet_forward.122}
  #allocation0 [shape = 'u32[]', space=smem, size = 0x4, offset = 0x4, fixed_abs, tag = 'smem constant byte address 0x4 - core index']
  #allocation1 [shape = 'u32[144,128]{1,0:T(1,128)}', space=vmem, size = 0x12000, scoped, tag = 'internal scratch']
  %s0 = inlined_call_operand.vmem [shape: bf16[128,256], index: 0, kind: input, shape index: {}]
  %s1 = inlined_call_operand.vmem [shape: f32[1,256], index: 1, kind: input, shape index: {}]
  %s2 = inlined_call_operand.vmem [shape: f32[1,256], index: 2, kind: input, shape index: {}]
  %s3 = inlined_call_operand.vmem [shape: f32[1,128], index: 3, kind: input, shape index: {}]
  %s4 = inlined_call_operand.vmem [shape: f32[1,128], index: 4, kind: input, shape index: {}]
  %s5 = inlined_call_operand.vmem [shape: bf16[256,128], index: 5, kind: input, shape index: {}]
  %s6 = inlined_call_operand.vmem [shape: bf16[128,128], index: 6, kind: output, shape index: {}]
  %s7 = sld [smem:[#allocation0]]
  $region57: #{densenet_forward.122} parent=0
    _
  %s9 = ssub.s32 1, %s7
  %s10 = scalar_select 0, %s9, %s7
  loop: start=0, step=1, limit=4
  $region2: #{densenet_forward.122} parent=0 // loop_pre_header
    _
  $region3: #{densenet_forward.122} parent=0 // loop_header
    %s12 = sphi 0, %s16
    %p13 = scmp.ge.s32.totalorder %s12, 4
    %s19 = sphi 0, %s31
    %s20 = sphi 0, %s27
    %s21 = sphi 0, %s19
    %s22 = sphi 0, %s20
    %s23 = sphi 0, %s21
    %s24 = sphi 0, %s22
    %s34 = sphi 0, %s36
    %s37 = sphi 0, %s34
    %s38 = sphi 0, %s37
    %s54 = sphi 0, %s38
    %s58 = sphi 0, %s58
    %s60 = sphi 0, %s58
    %s61 = sphi 0, %s60
    %s75 = sphi 0, %s61
    %s79 = sphi 0, %s79
    %s81 = sphi 0, %s79
    %s82 = sphi 0, %s81
    %s96 = sphi 0, %s82
    %s102 = sphi 0, %s104
    %s105 = sphi 0, %s102
    %s106 = sphi 0, %s105
    %s122 = sphi 0, %s106
    %s128 = sphi 0, %s130
    %s131 = sphi 0, %s128
    %s132 = sphi 0, %s131
    %s148 = sphi 0, %s132
    %s154 = sphi 0, %s156
    %s157 = sphi 0, %s154
    %s158 = sphi 0, %s157
    %s174 = sphi 0, %s158
    %s182 = sphi 0, %s184
    %s185 = sphi 0, %s182
    %s186 = sphi 0, %s185
    %s202 = sphi 0, %s186
  $region4: #{densenet_forward.122} parent=0 // loop_header_branch
    %15 = sbr.rel (%p13) target = $region8
  $region5: #{densenet_forward.122} parent=0 // loop_body
    %s17 = ssub.s32 %s12, 1
    %s18 = ssub.s32 %s12, 2
    %s25 = sadd.s32 1, %s20
    %p26 = scmp.ge.s32.totalorder %s25, 1
    %s27 = scalar_select %p26, 0, %s25
    %s28 = sadd.s32 1, %s19
    %s29 = scalar_select %p26, %s28, %s19
    %p30 = scmp.ge.s32.totalorder %s29, 2
    %s31 = scalar_select %p30, 0, %s29
    %s32 = ssub.s32 %s19, %s31
    %p33 = scmp.eq.s32.totalorder %s32, 0
    %s35 = sadd.s32 %s34, 1
    %s36 = scalar_select %p33, %s34, %s35
    %p39 = pneg %p33
    %p40 = scmp.eq.s32.totalorder %s12, 1
    %p41 = por %p39, %p40
    %p42 = scmp.ne.s32.totalorder %s34, %s37
    %p43 = scmp.eq.s32.totalorder %s12, 0
    %p44 = por %p42, %p43
    %p45 = scmp.ne.s32.totalorder %s34, %s37
    %p46 = scmp.eq.s32.totalorder %s17, 1
    %p47 = por %p45, %p46
    %p48 = scmp.ne.s32.totalorder %s37, %s38
    %p49 = scmp.eq.s32.totalorder %s17, 0
    %p50 = por %p48, %p49
    %p51 = scmp.ne.s32.totalorder %s37, %s38
    %p52 = scmp.eq.s32.totalorder %s18, 1
    %p53 = por %p51, %p52
    %p55 = scmp.ne.s32.totalorder %s38, %s54
    %p56 = scmp.eq.s32.totalorder %s18, 0
    %p57 = por %p55, %p56
    %s59 = sadd.s32 %s58, 1
    %p62 = scmp.eq.s32.totalorder %s12, 1
    %p63 = scmp.ne.s32.totalorder %s58, %s60
    %p64 = scmp.eq.s32.totalorder %s12, 0
    %p65 = por %p63, %p64
    %p66 = scmp.ne.s32.totalorder %s58, %s60
    %p67 = scmp.eq.s32.totalorder %s17, 1
    %p68 = por %p66, %p67
    %p69 = scmp.ne.s32.totalorder %s60, %s61
    %p70 = scmp.eq.s32.totalorder %s17, 0
    %p71 = por %p69, %p70
    %p72 = scmp.ne.s32.totalorder %s60, %s61
    %p73 = scmp.eq.s32.totalorder %s18, 1
    %p74 = por %p72, %p73
    %p76 = scmp.ne.s32.totalorder %s61, %s75
    %p77 = scmp.eq.s32.totalorder %s18, 0
    %p78 = por %p76, %p77
    %s80 = sadd.s32 %s79, 1
    %p83 = scmp.eq.s32.totalorder %s12, 1
    %p84 = scmp.ne.s32.totalorder %s79, %s81
    %p85 = scmp.eq.s32.totalorder %s12, 0
    %p86 = por %p84, %p85
    %p87 = scmp.ne.s32.totalorder %s79, %s81
    %p88 = scmp.eq.s32.totalorder %s17, 1
    %p89 = por %p87, %p88
    %p90 = scmp.ne.s32.totalorder %s81, %s82
    %p91 = scmp.eq.s32.totalorder %s17, 0
    %p92 = por %p90, %p91
    %p93 = scmp.ne.s32.totalorder %s81, %s82
    %p94 = scmp.eq.s32.totalorder %s18, 1
    %p95 = por %p93, %p94
    %p97 = scmp.ne.s32.totalorder %s82, %s96
    %p98 = scmp.eq.s32.totalorder %s18, 0
    %p99 = por %p97, %p98
    %s100 = ssub.s32 %s20, %s27
    %p101 = scmp.eq.s32.totalorder %s100, 0
    %s103 = sadd.s32 %s102, 1
    %s104 = scalar_select %p101, %s102, %s103
    %p107 = pneg %p101
    %p108 = scmp.eq.s32.totalorder %s12, 1
    %p109 = por %p107, %p108
    %p110 = scmp.ne.s32.totalorder %s102, %s105
    %p111 = scmp.eq.s32.totalorder %s12, 0
    %p112 = por %p110, %p111
    %p113 = scmp.ne.s32.totalorder %s102, %s105
    %p114 = scmp.eq.s32.totalorder %s17, 1
    %p115 = por %p113, %p114
    %p116 = scmp.ne.s32.totalorder %s105, %s106
    %p117 = scmp.eq.s32.totalorder %s17, 0
    %p118 = por %p116, %p117
    %p119 = scmp.ne.s32.totalorder %s105, %s106
    %p120 = scmp.eq.s32.totalorder %s18, 1
    %p121 = por %p119, %p120
    %p123 = scmp.ne.s32.totalorder %s106, %s122
    %p124 = scmp.eq.s32.totalorder %s18, 0
    %p125 = por %p123, %p124
    %s126 = ssub.s32 %s20, %s27
    %p127 = scmp.eq.s32.totalorder %s126, 0
    %s129 = sadd.s32 %s128, 1
    %s130 = scalar_select %p127, %s128, %s129
    %p133 = pneg %p127
    %p134 = scmp.eq.s32.totalorder %s12, 1
    %p135 = por %p133, %p134
    %p136 = scmp.ne.s32.totalorder %s128, %s131
    %p137 = scmp.eq.s32.totalorder %s12, 0
    %p138 = por %p136, %p137
    %p139 = scmp.ne.s32.totalorder %s128, %s131
    %p140 = scmp.eq.s32.totalorder %s17, 1
    %p141 = por %p139, %p140
    %p142 = scmp.ne.s32.totalorder %s131, %s132
    %p143 = scmp.eq.s32.totalorder %s17, 0
    %p144 = por %p142, %p143
    %p145 = scmp.ne.s32.totalorder %s131, %s132
    %p146 = scmp.eq.s32.totalorder %s18, 1
    %p147 = por %p145, %p146
    %p149 = scmp.ne.s32.totalorder %s132, %s148
    %p150 = scmp.eq.s32.totalorder %s18, 0
    %p151 = por %p149, %p150
    %s152 = ssub.s32 %s20, %s27
    %p153 = scmp.eq.s32.totalorder %s152, 0
    %s155 = sadd.s32 %s154, 1
    %s156 = scalar_select %p153, %s154, %s155
    %p159 = pneg %p153
    %p160 = scmp.eq.s32.totalorder %s12, 1
    %p161 = por %p159, %p160
    %p162 = scmp.ne.s32.totalorder %s154, %s157
    %p163 = scmp.eq.s32.totalorder %s12, 0
    %p164 = por %p162, %p163
    %p165 = scmp.ne.s32.totalorder %s154, %s157
    %p166 = scmp.eq.s32.totalorder %s17, 1
    %p167 = por %p165, %p166
    %p168 = scmp.ne.s32.totalorder %s157, %s158
    %p169 = scmp.eq.s32.totalorder %s17, 0
    %p170 = por %p168, %p169
    %p171 = scmp.ne.s32.totalorder %s157, %s158
    %p172 = scmp.eq.s32.totalorder %s18, 1
    %p173 = por %p171, %p172
    %p175 = scmp.ne.s32.totalorder %s158, %s174
    %p176 = scmp.eq.s32.totalorder %s18, 0
    %p177 = por %p175, %p176
    %s178 = ssub.s32 %s19, %s31
    %s179 = ssub.s32 %s20, %s27
    %s180 = sor.u32 %s178, %s179
    %p181 = scmp.eq.s32.totalorder %s180, 0
    %s183 = sadd.s32 %s182, 1
    %s184 = scalar_select %p181, %s182, %s183
    %p187 = pneg %p181
    %p188 = scmp.eq.s32.totalorder %s12, 1
    %p189 = por %p187, %p188
    %p190 = scmp.ne.s32.totalorder %s182, %s185
    %p191 = scmp.eq.s32.totalorder %s12, 0
    %p192 = por %p190, %p191
    %p193 = scmp.ne.s32.totalorder %s182, %s185
    %p194 = scmp.eq.s32.totalorder %s17, 1
    %p195 = por %p193, %p194
    %p196 = scmp.ne.s32.totalorder %s185, %s186
    %p197 = scmp.eq.s32.totalorder %s17, 0
    %p198 = por %p196, %p197
    %p199 = scmp.ne.s32.totalorder %s185, %s186
    %p200 = scmp.eq.s32.totalorder %s18, 1
    %p201 = por %p199, %p200
    %p203 = scmp.ne.s32.totalorder %s186, %s202
    %p204 = scmp.eq.s32.totalorder %s18, 0
    %p205 = por %p203, %p204
    %p206 = scmp.le.s32.totalorder 1, %s12
    %p207 = scmp.lt.s32.totalorder %s12, 3
    %p208 = pnand %p206, %p207
    %p209 = pneg %p208
    // Predicated region
    $region9: #{densenet_forward.122} parent=5 // pred_check
      _
    $region10: #{densenet_forward.122} parent=5 // pred_check_branch
      %211 = sbr.rel (%p208) target = $region12
    $region11: #{densenet_forward.122} parent=5 // pred_region
      %s212 = ssub.s32 %s12, 1
      // Predicated region
      $region13: #{densenet_forward.122} parent=11 // pred_check
        %p213 = pneg %p71
      $region14: #{densenet_forward.122} parent=11 // pred_check_branch
        %215 = sbr.rel (%p213) target = $region16
      $region15: #{densenet_forward.122} parent=11 // pred_region
        _
      $region16: #{densenet_forward.122} parent=11 // pred_fallthru
        _
      // Predicated region
      $region17: #{densenet_forward.122} parent=11 // pred_check
        %p216 = pneg %p92
      $region18: #{densenet_forward.122} parent=11 // pred_check_branch
        %218 = sbr.rel (%p216) target = $region20
      $region19: #{densenet_forward.122} parent=11 // pred_region
        _
      $region20: #{densenet_forward.122} parent=11 // pred_fallthru
        _
      // Predicated region
      $region21: #{densenet_forward.122} parent=11 // pred_check
        %p219 = pneg %p118
      $region22: #{densenet_forward.122} parent=11 // pred_check_branch
        %221 = sbr.rel (%p219) target = $region24
      $region23: #{densenet_forward.122} parent=11 // pred_region
        %p222 = scmp.lt.s32.totalorder %s22, 0
        %s223 = scalar_select %p222, %s22, 0
        %s224 = scalar_lea.vmem %s3, %s223
      $region24: #{densenet_forward.122} parent=11 // pred_fallthru
        _
      // Predicated region
      $region25: #{densenet_forward.122} parent=11 // pred_check
        %p225 = pneg %p144
      $region26: #{densenet_forward.122} parent=11 // pred_check_branch
        %227 = sbr.rel (%p225) target = $region28
      $region27: #{densenet_forward.122} parent=11 // pred_region
        %p228 = scmp.lt.s32.totalorder %s22, 0
        %s229 = scalar_select %p228, %s22, 0
        %s230 = scalar_lea.vmem %s4, %s229
      $region28: #{densenet_forward.122} parent=11 // pred_fallthru
        _
      // Predicated region
      $region29: #{densenet_forward.122} parent=11 // pred_check
        %p231 = pneg %p170
      $region30: #{densenet_forward.122} parent=11 // pred_check_branch
        %233 = sbr.rel (%p231) target = $region32
      $region31: #{densenet_forward.122} parent=11 // pred_region
        %p234 = scmp.lt.s32.totalorder %s22, 0
        %s235 = scalar_select %p234, %s22, 0
        %s236 = smul.addr %s235, 4
        %s237 = scalar_lea.vmem %s5, %s236
      $region32: #{densenet_forward.122} parent=11 // pred_fallthru
        _
    $region12: #{densenet_forward.122} parent=5 // pred_fallthru
      _
    %p238 = scmp.lt.s32.totalorder %s12, 2
    // Predicated region
    $region33: #{densenet_forward.122} parent=5 // pred_check
      %p239 = pneg %p238
    $region34: #{densenet_forward.122} parent=5 // pred_check_branch
      %241 = sbr.rel (%p239) target = $region36
    $region35: #{densenet_forward.122} parent=5 // pred_region
      // Predicated region
      $region37: #{densenet_forward.122} parent=35 // pred_check
        %p242 = pneg %p44
      $region38: #{densenet_forward.122} parent=35 // pred_check_branch
        %244 = sbr.rel (%p242) target = $region40
      $region39: #{densenet_forward.122} parent=35 // pred_region
        %s245 = smul.u32 8, %s19
        %p246 = scmp.lt.s32.totalorder %s245, 15
        %s247 = scalar_select %p246, %s245, 15
        %s248 = smul.addr %s247, 2
        %s249 = smul.addr %s248, 4
        %s250 = scalar_lea.vmem %s0, %s249
        %s251 = smul.u32 8, %s19
      $region40: #{densenet_forward.122} parent=35 // pred_fallthru
        _
    $region36: #{densenet_forward.122} parent=5 // pred_fallthru
      _
    %p252 = scmp.le.s32.totalorder 1, %s12
    %p253 = scmp.lt.s32.totalorder %s12, 3
    %p254 = pnand %p252, %p253
    %p255 = pneg %p254
    // Predicated region
    $region41: #{densenet_forward.122} parent=5 // pred_check
      _
    $region42: #{densenet_forward.122} parent=5 // pred_check_branch
      %257 = sbr.rel (%p254) target = $region44
    $region43: #{densenet_forward.122} parent=5 // pred_region
      %s258 = ssub.s32 %s12, 1
      %s259 = smul.u32 8, %s21
      %p260 = scmp.lt.s32.totalorder %s259, 15
      %s261 = scalar_select %p260, %s259, 15
      %s262 = smul.addr %s261, 2
      %s263 = smul.addr %s262, 4
      %s264 = scalar_lea.vmem %s0, %s263
      %p265 = pneg %p50
      %p266 = pneg %p47
      %p267 = pneg %p71
      %p268 = pneg %p68
      %p269 = pneg %p92
      %p270 = pneg %p89
      %p271 = scmp.lt.s32.totalorder %s22, 0
      %s272 = scalar_select %p271, %s22, 0
      %s273 = scalar_lea.vmem %s3, %s272
      %p274 = pneg %p118
      %p275 = pneg %p115
      %p276 = scmp.lt.s32.totalorder %s22, 0
      %s277 = scalar_select %p276, %s22, 0
      %s278 = scalar_lea.vmem %s4, %s277
      %p279 = pneg %p144
      %p280 = pneg %p141
      %p281 = scmp.lt.s32.totalorder %s22, 0
      %s282 = scalar_select %p281, %s22, 0
      %s283 = smul.addr %s282, 4
      %s284 = scalar_lea.vmem %s5, %s283
      %p285 = pneg %p170
      %p286 = pneg %p167
      %p287 = pneg %p198
      %p288 = pneg %p195
      %s289 = smul.u32 8, %s21
      %p290 = scmp.lt.s32.totalorder %s289, 15
      %s291 = scalar_select %p290, %s289, 15
      %p292 = scmp.lt.s32.totalorder %s22, 0
      %s293 = scalar_select %p292, %s22, 0
      %s294 = sadd.s32 %s293, %s291
      %s295 = smul.addr %s294, 4
      %s296 = scalar_lea.vmem %s6, %s295
      %s297 = smul.u32 8, %s21
      %p298 = scmp.lt.s32.totalorder %s297, 15
      %s299 = scalar_select %p298, %s297, 15
      %s300 = smul.addr %s299, 2
      %s301 = smul.addr %s300, 4
      %s302 = scalar_lea.vmem %s0, %s301
      %s303 = smul.u32 8, %s21
      %p304 = scmp.lt.s32.totalorder %s22, 0
      %s305 = scalar_select %p304, %s22, 0
      %s306 = scalar_lea.vmem %s3, %s305
      %p307 = scmp.lt.s32.totalorder %s22, 0
      %s308 = scalar_select %p307, %s22, 0
      %s309 = scalar_lea.vmem %s4, %s308
      %p310 = scmp.lt.s32.totalorder %s22, 0
      %s311 = scalar_select %p310, %s22, 0
      %s312 = smul.addr %s311, 4
      %s313 = scalar_lea.vmem %s5, %s312
      %s314 = smul.u32 8, %s21
      %p315 = scmp.lt.s32.totalorder %s314, 15
      %s316 = scalar_select %p315, %s314, 15
      %p317 = scmp.lt.s32.totalorder %s22, 0
      %s318 = scalar_select %p317, %s22, 0
      %s319 = sadd.s32 %s318, %s316
      %s320 = smul.addr %s319, 4
      %s321 = scalar_lea.vmem %s6, %s320
      %s322 = smul.u32 8, %s21
      %v324 = vld [vmem:[%s302] sm:$0xff]
      %v325 = vld [vmem:[%s302 + $0x8] sm:$0xff]
      %v326 = vld [vmem:[%s302 + $0x10] sm:$0xff]
      %v327 = vld [vmem:[%s302 + $0x18] sm:$0xff]
      %v328 = vld [vmem:[%s302 + $0x20] sm:$0xff]
      %v329 = vld [vmem:[%s302 + $0x28] sm:$0xff]
      %v330 = vld [vmem:[%s302 + $0x30] sm:$0xff]
      %v331 = vld [vmem:[%s302 + $0x38] sm:$0xff]
      %v332 = vunpack.c.l.bf16 %v324
      %v333 = vunpack.c.h.bf16 %v324
      %v334 = vunpack.c.l.bf16 %v325
      %v335 = vunpack.c.h.bf16 %v325
      %v336 = vunpack.c.l.bf16 %v326
      %v337 = vunpack.c.h.bf16 %v326
      %v338 = vunpack.c.l.bf16 %v327
      %v339 = vunpack.c.h.bf16 %v327
      %v340 = vunpack.c.l.bf16 %v328
      %v341 = vunpack.c.h.bf16 %v328
      %v342 = vunpack.c.l.bf16 %v329
      %v343 = vunpack.c.h.bf16 %v329
      %v344 = vunpack.c.l.bf16 %v330
      %v345 = vunpack.c.h.bf16 %v330
      %v346 = vunpack.c.l.bf16 %v331
      %v347 = vunpack.c.h.bf16 %v331
      %v348 = vld [vmem:[%s1] sm:$0x3]
      %v350 = vlaneseq
      %v351 = vshrl.u32 %v350, 7
      %v352 = vsub.s32 0, %v351
      %v353 = vrot.slane %v348, %v352
      %v354 = vlaneseq
      %v355 = vshrl.u32 %v354, 7
      %v356 = vsub.s32 1, %v355
      %v357 = vrot.slane %v348, %v356
      %v360 = vmul.f32 %v332, %v353
      %v361 = vmul.f32 %v333, %v357
      %v362 = vmul.f32 %v334, %v353
      %v363 = vmul.f32 %v335, %v357
      %v364 = vmul.f32 %v336, %v353
      %v365 = vmul.f32 %v337, %v357
      %v366 = vmul.f32 %v338, %v353
      %v367 = vmul.f32 %v339, %v357
      %v368 = vmul.f32 %v340, %v353
      %v369 = vmul.f32 %v341, %v357
      %v370 = vmul.f32 %v342, %v353
      %v371 = vmul.f32 %v343, %v357
      %v372 = vmul.f32 %v344, %v353
      %v373 = vmul.f32 %v345, %v357
      %v374 = vmul.f32 %v346, %v353
      %v375 = vmul.f32 %v347, %v357
      %v376 = vld [vmem:[%s2] sm:$0x3]
      %v378 = vlaneseq
      %v379 = vshrl.u32 %v378, 7
      %v380 = vsub.s32 0, %v379
      %v381 = vrot.slane %v376, %v380
      %v382 = vlaneseq
      %v383 = vshrl.u32 %v382, 7
      %v384 = vsub.s32 1, %v383
      %v385 = vrot.slane %v376, %v384
      %v388 = vadd.f32 %v360, %v381
      %v389 = vadd.f32 %v361, %v385
      %v390 = vadd.f32 %v362, %v381
      %v391 = vadd.f32 %v363, %v385
      %v392 = vadd.f32 %v364, %v381
      %v393 = vadd.f32 %v365, %v385
      %v394 = vadd.f32 %v366, %v381
      %v395 = vadd.f32 %v367, %v385
      %v396 = vadd.f32 %v368, %v381
      %v397 = vadd.f32 %v369, %v385
      %v398 = vadd.f32 %v370, %v381
      %v399 = vadd.f32 %v371, %v385
      %v400 = vadd.f32 %v372, %v381
      %v401 = vadd.f32 %v373, %v385
      %v402 = vadd.f32 %v374, %v381
      %v403 = vadd.f32 %v375, %v385
      %v404 = vmax.f32 %v388, 0.0
      %v405 = vmax.f32 %v389, 0.0
      %v406 = vmax.f32 %v390, 0.0
      %v407 = vmax.f32 %v391, 0.0
      %v408 = vmax.f32 %v392, 0.0
      %v409 = vmax.f32 %v393, 0.0
      %v410 = vmax.f32 %v394, 0.0
      %v411 = vmax.f32 %v395, 0.0
      %v412 = vmax.f32 %v396, 0.0
      %v413 = vmax.f32 %v397, 0.0
      %v414 = vmax.f32 %v398, 0.0
      %v415 = vmax.f32 %v399, 0.0
      %v416 = vmax.f32 %v400, 0.0
      %v417 = vmax.f32 %v401, 0.0
      %v418 = vmax.f32 %v402, 0.0
      %v419 = vmax.f32 %v403, 0.0
      %v420 = vpack.c.bf16 %v406, %v404
      %v421 = vpack.c.bf16 %v407, %v405
      %v422 = vpack.c.bf16 %v410, %v408
      %v423 = vpack.c.bf16 %v411, %v409
      %v424 = vpack.c.bf16 %v414, %v412
      %v425 = vpack.c.bf16 %v415, %v413
      %v426 = vpack.c.bf16 %v418, %v416
      %v427 = vpack.c.bf16 %v419, %v417
      %v428 = vld [vmem:[%s313] sm:$0xf]
      %v429 = vld [vmem:[%s313 + $0x4] sm:$0xf]
      %v430 = vld [vmem:[%s313 + $0x8] sm:$0xf]
      %v431 = vld [vmem:[%s313 + $0xc] sm:$0xf]
      %v432 = vld [vmem:[%s313 + $0x10] sm:$0xf]
      %v433 = vld [vmem:[%s313 + $0x14] sm:$0xf]
      %v434 = vld [vmem:[%s313 + $0x18] sm:$0xf]
      %v435 = vld [vmem:[%s313 + $0x1c] sm:$0xf]
      %v436 = vld [vmem:[%s313 + $0x20] sm:$0xf]
      %v437 = vld [vmem:[%s313 + $0x24] sm:$0xf]
      %v438 = vld [vmem:[%s313 + $0x28] sm:$0xf]
      %v439 = vld [vmem:[%s313 + $0x2c] sm:$0xf]
      %v440 = vld [vmem:[%s313 + $0x30] sm:$0xf]
      %v441 = vld [vmem:[%s313 + $0x34] sm:$0xf]
      %v442 = vld [vmem:[%s313 + $0x38] sm:$0xf]
      %v443 = vld [vmem:[%s313 + $0x3c] sm:$0xf]
      %v444 = vld [vmem:[%s313 + $0x40] sm:$0xf]
      %v445 = vld [vmem:[%s313 + $0x44] sm:$0xf]
      %v446 = vld [vmem:[%s313 + $0x48] sm:$0xf]
      %v447 = vld [vmem:[%s313 + $0x4c] sm:$0xf]
      %v448 = vld [vmem:[%s313 + $0x50] sm:$0xf]
      %v449 = vld [vmem:[%s313 + $0x54] sm:$0xf]
      %v450 = vld [vmem:[%s313 + $0x58] sm:$0xf]
      %v451 = vld [vmem:[%s313 + $0x5c] sm:$0xf]
      %v452 = vld [vmem:[%s313 + $0x60] sm:$0xf]
      %v453 = vld [vmem:[%s313 + $0x64] sm:$0xf]
      %v454 = vld [vmem:[%s313 + $0x68] sm:$0xf]
      %v455 = vld [vmem:[%s313 + $0x6c] sm:$0xf]
      %v456 = vld [vmem:[%s313 + $0x70] sm:$0xf]
      %v457 = vld [vmem:[%s313 + $0x74] sm:$0xf]
      %v458 = vld [vmem:[%s313 + $0x78] sm:$0xf]
      %v459 = vld [vmem:[%s313 + $0x7c] sm:$0xf]
      %v492 = vunpack.c.l.b16 %v428
      %v493 = vunpack.c.l.b16 %v429
      %v494 = vunpack.c.l.b16 %v430
      %v495 = vunpack.c.l.b16 %v431
      %v496 = vunpack.c.l.b16 %v432
      %v497 = vunpack.c.l.b16 %v433
      %v498 = vunpack.c.l.b16 %v434
      %v499 = vunpack.c.l.b16 %v435
      %v500 = vunpack.c.l.b16 %v436
      %v501 = vunpack.c.l.b16 %v437
      %v502 = vunpack.c.l.b16 %v438
      %v503 = vunpack.c.l.b16 %v439
      %v504 = vunpack.c.l.b16 %v440
      %v505 = vunpack.c.l.b16 %v441
      %v506 = vunpack.c.l.b16 %v442
      %v507 = vunpack.c.l.b16 %v443
      %v508 = vunpack.c.l.b16 %v444
      %v509 = vunpack.c.l.b16 %v445
      %v510 = vunpack.c.l.b16 %v446
      %v511 = vunpack.c.l.b16 %v447
      %v512 = vunpack.c.l.b16 %v448
      %v513 = vunpack.c.l.b16 %v449
      %v514 = vunpack.c.l.b16 %v450
      %v515 = vunpack.c.l.b16 %v451
      %v516 = vunpack.c.l.b16 %v452
      %v517 = vunpack.c.l.b16 %v453
      %v518 = vunpack.c.l.b16 %v454
      %v519 = vunpack.c.l.b16 %v455
      %v520 = vunpack.c.l.b16 %v456
      %v521 = vunpack.c.l.b16 %v457
      %v522 = vunpack.c.l.b16 %v458
      %v523 = vunpack.c.l.b16 %v459
      %v524 = vpack.c.b16 %v493, %v492
      %v525 = vpack.c.b16 %v495, %v494
      %v526 = vpack.c.b16 %v497, %v496
      %v527 = vpack.c.b16 %v499, %v498
      %v528 = vpack.c.b16 %v501, %v500
      %v529 = vpack.c.b16 %v503, %v502
      %v530 = vpack.c.b16 %v505, %v504
      %v531 = vpack.c.b16 %v507, %v506
      %v532 = vpack.c.b16 %v509, %v508
      %v533 = vpack.c.b16 %v511, %v510
      %v534 = vpack.c.b16 %v513, %v512
      %v535 = vpack.c.b16 %v515, %v514
      %v536 = vpack.c.b16 %v517, %v516
      %v537 = vpack.c.b16 %v519, %v518
      %v538 = vpack.c.b16 %v521, %v520
      %v539 = vpack.c.b16 %v523, %v522
      %556 = vmatprep.subr.bf16.mxu0 0
      %557 = vmatpush1.bf16.msra.mxu0 %v524
      %558 = vmatprep.subr.bf16.mxu0 0
      %559 = vmatpush1.bf16.msra.mxu0 %v525
      %560 = vmatprep.subr.bf16.mxu0 0
      %561 = vmatpush1.bf16.msra.mxu0 %v526
      %562 = vmatprep.subr.bf16.mxu0 0
      %563 = vmatpush1.bf16.msra.mxu0 %v527
      %564 = vmatprep.subr.bf16.mxu0 0
      %565 = vmatpush1.bf16.msra.mxu0 %v528
      %566 = vmatprep.subr.bf16.mxu0 0
      %567 = vmatpush1.bf16.msra.mxu0 %v529
      %568 = vmatprep.subr.bf16.mxu0 0
      %569 = vmatpush1.bf16.msra.mxu0 %v530
      %570 = vmatprep.subr.bf16.mxu0 0
      %571 = vmatpush1.bf16.msra.mxu0 %v531
      %572 = vmatprep.subr.bf16.mxu0 0
      %573 = vmatpush1.bf16.msra.mxu0 %v532
      %574 = vmatprep.subr.bf16.mxu0 0
      %575 = vmatpush1.bf16.msra.mxu0 %v533
      %576 = vmatprep.subr.bf16.mxu0 0
      %577 = vmatpush1.bf16.msra.mxu0 %v534
      %578 = vmatprep.subr.bf16.mxu0 0
      %579 = vmatpush1.bf16.msra.mxu0 %v535
      %580 = vmatprep.subr.bf16.mxu0 0
      %581 = vmatpush1.bf16.msra.mxu0 %v536
      %582 = vmatprep.subr.bf16.mxu0 0
      %583 = vmatpush1.bf16.msra.mxu0 %v537
      %584 = vmatprep.subr.bf16.mxu0 0
      %585 = vmatpush1.bf16.msra.mxu0 %v538
      %586 = vmatprep.subr.bf16.mxu0 0
      %587 = vmatpush1.bf16.msra.mxu0 %v539
      %588 = vmatprep.mubr.bf16.mxu0 %v421
      %589 = vmatmul.mubr.bf16.gmra.mrb[0].mxu0 %v420
      %v590 = vpop.f32.mrb[0].mxu0
      %v591 = vadd.f32 0.0, %v590
      %v592 = vpop.f32.mrb[0].mxu0
      %v593 = vpop.f32.mrb[0].mxu0
      %v594 = vadd.f32 0.0, %v593
      %v595 = vpop.f32.mrb[0].mxu0
      %596 = vmatprep.mubr.bf16.mxu0 %v423
      %597 = vmatmul.mubr.bf16.gmra.mrb[0].mxu0 %v422
      %v598 = vpop.f32.mrb[0].mxu0
      %v599 = vadd.f32 0.0, %v598
      %v600 = vpop.f32.mrb[0].mxu0
      %v601 = vpop.f32.mrb[0].mxu0
      %v602 = vadd.f32 0.0, %v601
      %v603 = vpop.f32.mrb[0].mxu0
      %604 = vmatprep.mubr.bf16.mxu0 %v425
      %605 = vmatmul.mubr.bf16.gmra.mrb[0].mxu0 %v424
      %v606 = vpop.f32.mrb[0].mxu0
      %v607 = vadd.f32 0.0, %v606
      %v608 = vpop.f32.mrb[0].mxu0
      %v609 = vpop.f32.mrb[0].mxu0
      %v610 = vadd.f32 0.0, %v609
      %v611 = vpop.f32.mrb[0].mxu0
      %612 = vmatprep.mubr.bf16.mxu0 %v427
      %613 = vmatmul.mubr.bf16.gmra.mrb[0].mxu0 %v426
      %v614 = vpop.f32.mrb[0].mxu0
      %v615 = vadd.f32 0.0, %v614
      %v616 = vpop.f32.mrb[0].mxu0
      %v617 = vpop.f32.mrb[0].mxu0
      %v618 = vadd.f32 0.0, %v617
      %v619 = vpop.f32.mrb[0].mxu0
      %620 = vdwg.mxu0
      %v621 = vld [vmem:[%s306] sm:$0x1]
      %v623 = vlaneseq
      %v624 = vshrl.u32 %v623, 7
      %v625 = vsub.s32 0, %v624
      %v626 = vrot.slane %v621, %v625
      %v628 = vmul.f32 %v591, %v626
      %v629 = vmul.f32 %v594, %v626
      %v630 = vmul.f32 %v599, %v626
      %v631 = vmul.f32 %v602, %v626
      %v632 = vmul.f32 %v607, %v626
      %v633 = vmul.f32 %v610, %v626
      %v634 = vmul.f32 %v615, %v626
      %v635 = vmul.f32 %v618, %v626
      %v636 = vld [vmem:[%s309] sm:$0x1]
      %v638 = vlaneseq
      %v639 = vshrl.u32 %v638, 7
      %v640 = vsub.s32 0, %v639
      %v641 = vrot.slane %v636, %v640
      %v643 = vadd.f32 %v628, %v641
      %v644 = vadd.f32 %v629, %v641
      %v645 = vadd.f32 %v630, %v641
      %v646 = vadd.f32 %v631, %v641
      %v647 = vadd.f32 %v632, %v641
      %v648 = vadd.f32 %v633, %v641
      %v649 = vadd.f32 %v634, %v641
      %v650 = vadd.f32 %v635, %v641
      %v651 = vmax.f32 %v643, 0.0
      %v652 = vmax.f32 %v644, 0.0
      %v653 = vmax.f32 %v645, 0.0
      %v654 = vmax.f32 %v646, 0.0
      %v655 = vmax.f32 %v647, 0.0
      %v656 = vmax.f32 %v648, 0.0
      %v657 = vmax.f32 %v649, 0.0
      %v658 = vmax.f32 %v650, 0.0
      %v659 = vpack.c.bf16 %v652, %v651
      %v660 = vpack.c.bf16 %v654, %v653
      %v661 = vpack.c.bf16 %v656, %v655
      %v662 = vpack.c.bf16 %v658, %v657
      %v667 = vunpack.c.l.b16 %v659
      %v668 = vunpack.c.h.b16 %v659
      %v669 = vunpack.c.l.b16 %v660
      %v670 = vunpack.c.h.b16 %v660
      %v671 = vunpack.c.l.b16 %v661
      %v672 = vunpack.c.h.b16 %v661
      %v673 = vunpack.c.l.b16 %v662
      %v674 = vunpack.c.h.b16 %v662
      %v675 = vpack.c.b16 %v667, %v667
      %v676 = vpack.c.b16 %v668, %v668
      %v677 = vpack.c.b16 %v669, %v669
      %v678 = vpack.c.b16 %v670, %v670
      %v679 = vpack.c.b16 %v671, %v671
      %v680 = vpack.c.b16 %v672, %v672
      %v681 = vpack.c.b16 %v673, %v673
      %v682 = vpack.c.b16 %v674, %v674
      %691 = vst [vmem:[%s321] sm:$0xf] %v675
      %692 = vst [vmem:[%s321 + $0x4] sm:$0xf] %v676
      %693 = vst [vmem:[%s321 + $0x8] sm:$0xf] %v677
      %694 = vst [vmem:[%s321 + $0xc] sm:$0xf] %v678
      %695 = vst [vmem:[%s321 + $0x10] sm:$0xf] %v679
      %696 = vst [vmem:[%s321 + $0x14] sm:$0xf] %v680
      %697 = vst [vmem:[%s321 + $0x18] sm:$0xf] %v681
      %698 = vst [vmem:[%s321 + $0x1c] sm:$0xf] %v682
      %s699 = smul.u32 8, %s21
      %p700 = scmp.lt.s32.totalorder %s699, 15
      %s701 = scalar_select %p700, %s699, 15
      %p702 = scmp.lt.s32.totalorder %s22, 0
      %s703 = scalar_select %p702, %s22, 0
      %s704 = sadd.s32 %s703, %s701
      %s705 = smul.addr %s704, 4
      %s706 = scalar_lea.vmem %s6, %s705
      // Predicated region
      $region45: #{densenet_forward.122} parent=43 // pred_check
        %p707 = pneg %p195
      $region46: #{densenet_forward.122} parent=43 // pred_check_branch
        %709 = sbr.rel (%p707) target = $region48
      $region47: #{densenet_forward.122} parent=43 // pred_region
        %s710 = smul.u32 8, %s21
      $region48: #{densenet_forward.122} parent=43 // pred_fallthru
        _
    $region44: #{densenet_forward.122} parent=5 // pred_fallthru
      _
    %p711 = scmp.le.s32.totalorder 2, %s12
    // Predicated region
    $region49: #{densenet_forward.122} parent=5 // pred_check
      %p712 = pneg %p711
    $region50: #{densenet_forward.122} parent=5 // pred_check_branch
      %714 = sbr.rel (%p712) target = $region52
    $region51: #{densenet_forward.122} parent=5 // pred_region
      %s715 = ssub.s32 %s12, 2
      // Predicated region
      $region53: #{densenet_forward.122} parent=51 // pred_check
        %p716 = pneg %p201
      $region54: #{densenet_forward.122} parent=51 // pred_check_branch
        %718 = sbr.rel (%p716) target = $region56
      $region55: #{densenet_forward.122} parent=51 // pred_region
        %s719 = smul.u32 8, %s23
        %p720 = scmp.lt.s32.totalorder %s719, 15
        %s721 = scalar_select %p720, %s719, 15
        %p722 = scmp.lt.s32.totalorder %s24, 0
        %s723 = scalar_select %p722, %s24, 0
        %s724 = sadd.s32 %s723, %s721
        %s725 = smul.addr %s724, 4
        %s726 = scalar_lea.vmem %s6, %s725
      $region56: #{densenet_forward.122} parent=51 // pred_fallthru
        _
    $region52: #{densenet_forward.122} parent=5 // pred_fallthru
      _
  $region6: #{densenet_forward.122} parent=0 // loop_footer
    %s16 = sadd.s32 1, %s12
  $region7: #{densenet_forward.122} parent=0 // loop_footer_branch
    %11 = sbr.rel target = $region3
  $region8: #{densenet_forward.122} parent=0 // loop_exit
    _

// kernel: densenet_forward.121
$region0: #{densenet_forward.121}
  #allocation0 [shape = 'u32[]', space=smem, size = 0x4, offset = 0x4, fixed_abs, tag = 'smem constant byte address 0x4 - core index']
  #allocation1 [shape = 'u32[144,128]{1,0:T(1,128)}', space=vmem, size = 0x12000, scoped, tag = 'internal scratch']
  %s0 = inlined_call_operand.vmem [shape: bf16[512,256], index: 0, kind: input, shape index: {}]
  %s1 = inlined_call_operand.vmem [shape: f32[1,128], index: 1, kind: input, shape index: {}]
  %s2 = inlined_call_operand.vmem [shape: f32[1,128], index: 2, kind: input, shape index: {}]
  %s3 = inlined_call_operand.vmem [shape: bf16[256,128], index: 3, kind: input, shape index: {}]
  %s4 = inlined_call_operand.vmem [shape: bf16[512,128], index: 4, kind: output, shape index: {}]
  %s5 = sld [smem:[#allocation0]]
  $region49: #{densenet_forward.121} parent=0
    _
  %s7 = ssub.s32 1, %s5
  %s8 = scalar_select 0, %s7, %s5
  loop: start=0, step=1, limit=4
  $region2: #{densenet_forward.121} parent=0 // loop_pre_header
    _
  $region3: #{densenet_forward.121} parent=0 // loop_header
    %s10 = sphi 0, %s14
    %p11 = scmp.ge.s32.totalorder %s10, 4
    %s17 = sphi 0, %s29
    %s18 = sphi 0, %s25
    %s19 = sphi 0, %s17
    %s20 = sphi 0, %s18
    %s21 = sphi 0, %s19
    %s22 = sphi 0, %s20
    %s32 = sphi 0, %s34
    %s35 = sphi 0, %s32
    %s36 = sphi 0, %s35
    %s52 = sphi 0, %s36
    %s58 = sphi 0, %s60
    %s61 = sphi 0, %s58
    %s62 = sphi 0, %s61
    %s78 = sphi 0, %s62
    %s84 = sphi 0, %s86
    %s87 = sphi 0, %s84
    %s88 = sphi 0, %s87
    %s104 = sphi 0, %s88
    %s110 = sphi 0, %s112
    %s113 = sphi 0, %s110
    %s114 = sphi 0, %s113
    %s130 = sphi 0, %s114
    %s138 = sphi 0, %s140
    %s141 = sphi 0, %s138
    %s142 = sphi 0, %s141
    %s158 = sphi 0, %s142
  $region4: #{densenet_forward.121} parent=0 // loop_header_branch
    %13 = sbr.rel (%p11) target = $region8
  $region5: #{densenet_forward.121} parent=0 // loop_body
    %s15 = ssub.s32 %s10, 1
    %s16 = ssub.s32 %s10, 2
    %s23 = sadd.s32 1, %s18
    %p24 = scmp.ge.s32.totalorder %s23, 1
    %s25 = scalar_select %p24, 0, %s23
    %s26 = sadd.s32 1, %s17
    %s27 = scalar_select %p24, %s26, %s17
    %p28 = scmp.ge.s32.totalorder %s27, 2
    %s29 = scalar_select %p28, 0, %s27
    %s30 = ssub.s32 %s17, %s29
    %p31 = scmp.eq.s32.totalorder %s30, 0
    %s33 = sadd.s32 %s32, 1
    %s34 = scalar_select %p31, %s32, %s33
    %p37 = pneg %p31
    %p38 = scmp.eq.s32.totalorder %s10, 1
    %p39 = por %p37, %p38
    %p40 = scmp.ne.s32.totalorder %s32, %s35
    %p41 = scmp.eq.s32.totalorder %s10, 0
    %p42 = por %p40, %p41
    %p43 = scmp.ne.s32.totalorder %s32, %s35
    %p44 = scmp.eq.s32.totalorder %s15, 1
    %p45 = por %p43, %p44
    %p46 = scmp.ne.s32.totalorder %s35, %s36
    %p47 = scmp.eq.s32.totalorder %s15, 0
    %p48 = por %p46, %p47
    %p49 = scmp.ne.s32.totalorder %s35, %s36
    %p50 = scmp.eq.s32.totalorder %s16, 1
    %p51 = por %p49, %p50
    %p53 = scmp.ne.s32.totalorder %s36, %s52
    %p54 = scmp.eq.s32.totalorder %s16, 0
    %p55 = por %p53, %p54
    %s56 = ssub.s32 %s18, %s25
    %p57 = scmp.eq.s32.totalorder %s56, 0
    %s59 = sadd.s32 %s58, 1
    %s60 = scalar_select %p57, %s58, %s59
    %p63 = pneg %p57
    %p64 = scmp.eq.s32.totalorder %s10, 1
    %p65 = por %p63, %p64
    %p66 = scmp.ne.s32.totalorder %s58, %s61
    %p67 = scmp.eq.s32.totalorder %s10, 0
    %p68 = por %p66, %p67
    %p69 = scmp.ne.s32.totalorder %s58, %s61
    %p70 = scmp.eq.s32.totalorder %s15, 1
    %p71 = por %p69, %p70
    %p72 = scmp.ne.s32.totalorder %s61, %s62
    %p73 = scmp.eq.s32.totalorder %s15, 0
    %p74 = por %p72, %p73
    %p75 = scmp.ne.s32.totalorder %s61, %s62
    %p76 = scmp.eq.s32.totalorder %s16, 1
    %p77 = por %p75, %p76
    %p79 = scmp.ne.s32.totalorder %s62, %s78
    %p80 = scmp.eq.s32.totalorder %s16, 0
    %p81 = por %p79, %p80
    %s82 = ssub.s32 %s18, %s25
    %p83 = scmp.eq.s32.totalorder %s82, 0
    %s85 = sadd.s32 %s84, 1
    %s86 = scalar_select %p83, %s84, %s85
    %p89 = pneg %p83
    %p90 = scmp.eq.s32.totalorder %s10, 1
    %p91 = por %p89, %p90
    %p92 = scmp.ne.s32.totalorder %s84, %s87
    %p93 = scmp.eq.s32.totalorder %s10, 0
    %p94 = por %p92, %p93
    %p95 = scmp.ne.s32.totalorder %s84, %s87
    %p96 = scmp.eq.s32.totalorder %s15, 1
    %p97 = por %p95, %p96
    %p98 = scmp.ne.s32.totalorder %s87, %s88
    %p99 = scmp.eq.s32.totalorder %s15, 0
    %p100 = por %p98, %p99
    %p101 = scmp.ne.s32.totalorder %s87, %s88
    %p102 = scmp.eq.s32.totalorder %s16, 1
    %p103 = por %p101, %p102
    %p105 = scmp.ne.s32.totalorder %s88, %s104
    %p106 = scmp.eq.s32.totalorder %s16, 0
    %p107 = por %p105, %p106
    %s108 = ssub.s32 %s18, %s25
    %p109 = scmp.eq.s32.totalorder %s108, 0
    %s111 = sadd.s32 %s110, 1
    %s112 = scalar_select %p109, %s110, %s111
    %p115 = pneg %p109
    %p116 = scmp.eq.s32.totalorder %s10, 1
    %p117 = por %p115, %p116
    %p118 = scmp.ne.s32.totalorder %s110, %s113
    %p119 = scmp.eq.s32.totalorder %s10, 0
    %p120 = por %p118, %p119
    %p121 = scmp.ne.s32.totalorder %s110, %s113
    %p122 = scmp.eq.s32.totalorder %s15, 1
    %p123 = por %p121, %p122
    %p124 = scmp.ne.s32.totalorder %s113, %s114
    %p125 = scmp.eq.s32.totalorder %s15, 0
    %p126 = por %p124, %p125
    %p127 = scmp.ne.s32.totalorder %s113, %s114
    %p128 = scmp.eq.s32.totalorder %s16, 1
    %p129 = por %p127, %p128
    %p131 = scmp.ne.s32.totalorder %s114, %s130
    %p132 = scmp.eq.s32.totalorder %s16, 0
    %p133 = por %p131, %p132
    %s134 = ssub.s32 %s17, %s29
    %s135 = ssub.s32 %s18, %s25
    %s136 = sor.u32 %s134, %s135
    %p137 = scmp.eq.s32.totalorder %s136, 0
    %s139 = sadd.s32 %s138, 1
    %s140 = scalar_select %p137, %s138, %s139
    %p143 = pneg %p137
    %p144 = scmp.eq.s32.totalorder %s10, 1
    %p145 = por %p143, %p144
    %p146 = scmp.ne.s32.totalorder %s138, %s141
    %p147 = scmp.eq.s32.totalorder %s10, 0
    %p148 = por %p146, %p147
    %p149 = scmp.ne.s32.totalorder %s138, %s141
    %p150 = scmp.eq.s32.totalorder %s15, 1
    %p151 = por %p149, %p150
    %p152 = scmp.ne.s32.totalorder %s141, %s142
    %p153 = scmp.eq.s32.totalorder %s15, 0
    %p154 = por %p152, %p153
    %p155 = scmp.ne.s32.totalorder %s141, %s142
    %p156 = scmp.eq.s32.totalorder %s16, 1
    %p157 = por %p155, %p156
    %p159 = scmp.ne.s32.totalorder %s142, %s158
    %p160 = scmp.eq.s32.totalorder %s16, 0
    %p161 = por %p159, %p160
    %p162 = scmp.le.s32.totalorder 1, %s10
    %p163 = scmp.lt.s32.totalorder %s10, 3
    %p164 = pnand %p162, %p163
    %p165 = pneg %p164
    // Predicated region
    $region9: #{densenet_forward.121} parent=5 // pred_check
      _
    $region10: #{densenet_forward.121} parent=5 // pred_check_branch
      %167 = sbr.rel (%p164) target = $region12
    $region11: #{densenet_forward.121} parent=5 // pred_region
      %s168 = ssub.s32 %s10, 1
      // Predicated region
      $region13: #{densenet_forward.121} parent=11 // pred_check
        %p169 = pneg %p74
      $region14: #{densenet_forward.121} parent=11 // pred_check_branch
        %171 = sbr.rel (%p169) target = $region16
      $region15: #{densenet_forward.121} parent=11 // pred_region
        %p172 = scmp.lt.s32.totalorder %s20, 0
        %s173 = scalar_select %p172, %s20, 0
        %s174 = scalar_lea.vmem %s1, %s173
      $region16: #{densenet_forward.121} parent=11 // pred_fallthru
        _
      // Predicated region
      $region17: #{densenet_forward.121} parent=11 // pred_check
        %p175 = pneg %p100
      $region18: #{densenet_forward.121} parent=11 // pred_check_branch
        %177 = sbr.rel (%p175) target = $region20
      $region19: #{densenet_forward.121} parent=11 // pred_region
        %p178 = scmp.lt.s32.totalorder %s20, 0
        %s179 = scalar_select %p178, %s20, 0
        %s180 = scalar_lea.vmem %s2, %s179
      $region20: #{densenet_forward.121} parent=11 // pred_fallthru
        _
      // Predicated region
      $region21: #{densenet_forward.121} parent=11 // pred_check
        %p181 = pneg %p126
      $region22: #{densenet_forward.121} parent=11 // pred_check_branch
        %183 = sbr.rel (%p181) target = $region24
      $region23: #{densenet_forward.121} parent=11 // pred_region
        %p184 = scmp.lt.s32.totalorder %s20, 0
        %s185 = scalar_select %p184, %s20, 0
        %s186 = smul.addr %s185, 4
        %s187 = scalar_lea.vmem %s3, %s186
      $region24: #{densenet_forward.121} parent=11 // pred_fallthru
        _
    $region12: #{densenet_forward.121} parent=5 // pred_fallthru
      _
    %p188 = scmp.lt.s32.totalorder %s10, 2
    // Predicated region
    $region25: #{densenet_forward.121} parent=5 // pred_check
      %p189 = pneg %p188
    $region26: #{densenet_forward.121} parent=5 // pred_check_branch
      %191 = sbr.rel (%p189) target = $region28
    $region27: #{densenet_forward.121} parent=5 // pred_region
      // Predicated region
      $region29: #{densenet_forward.121} parent=27 // pred_check
        %p192 = pneg %p42
      $region30: #{densenet_forward.121} parent=27 // pred_check_branch
        %194 = sbr.rel (%p192) target = $region32
      $region31: #{densenet_forward.121} parent=27 // pred_region
        %s195 = smul.u32 32, %s17
        %p196 = scmp.lt.s32.totalorder %s195, 63
        %s197 = scalar_select %p196, %s195, 63
        %s198 = smul.addr %s197, 2
        %s199 = smul.addr %s198, 4
        %s200 = scalar_lea.vmem %s0, %s199
        %s201 = smul.u32 32, %s17
      $region32: #{densenet_forward.121} parent=27 // pred_fallthru
        _
    $region28: #{densenet_forward.121} parent=5 // pred_fallthru
      _
    %p202 = scmp.le.s32.totalorder 1, %s10
    %p203 = scmp.lt.s32.totalorder %s10, 3
    %p204 = pnand %p202, %p203
    %p205 = pneg %p204
    // Predicated region
    $region33: #{densenet_forward.121} parent=5 // pred_check
      _
    $region34: #{densenet_forward.121} parent=5 // pred_check_branch
      %207 = sbr.rel (%p204) target = $region36
    $region35: #{densenet_forward.121} parent=5 // pred_region
      %s208 = ssub.s32 %s10, 1
      %s209 = smul.u32 32, %s19
      %p210 = scmp.lt.s32.totalorder %s209, 63
      %s211 = scalar_select %p210, %s209, 63
      %s212 = smul.addr %s211, 2
      %s213 = smul.addr %s212, 4
      %s214 = scalar_lea.vmem %s0, %s213
      %p215 = pneg %p48
      %p216 = pneg %p45
      %p217 = scmp.lt.s32.totalorder %s20, 0
      %s218 = scalar_select %p217, %s20, 0
      %s219 = scalar_lea.vmem %s1, %s218
      %p220 = pneg %p74
      %p221 = pneg %p71
      %p222 = scmp.lt.s32.totalorder %s20, 0
      %s223 = scalar_select %p222, %s20, 0
      %s224 = scalar_lea.vmem %s2, %s223
      %p225 = pneg %p100
      %p226 = pneg %p97
      %p227 = scmp.lt.s32.totalorder %s20, 0
      %s228 = scalar_select %p227, %s20, 0
      %s229 = smul.addr %s228, 4
      %s230 = scalar_lea.vmem %s3, %s229
      %p231 = pneg %p126
      %p232 = pneg %p123
      %p233 = pneg %p154
      %p234 = pneg %p151
      %s235 = smul.u32 32, %s19
      %p236 = scmp.lt.s32.totalorder %s235, 63
      %s237 = scalar_select %p236, %s235, 63
      %p238 = scmp.lt.s32.totalorder %s20, 0
      %s239 = scalar_select %p238, %s20, 0
      %s240 = sadd.s32 %s239, %s237
      %s241 = smul.addr %s240, 4
      %s242 = scalar_lea.vmem %s4, %s241
      %s243 = smul.u32 32, %s19
      %p244 = scmp.lt.s32.totalorder %s243, 63
      %s245 = scalar_select %p244, %s243, 63
      %s246 = smul.addr %s245, 2
      %s247 = smul.addr %s246, 4
      %s248 = scalar_lea.vmem %s0, %s247
      %s249 = smul.u32 32, %s19
      %p250 = scmp.lt.s32.totalorder %s20, 0
      %s251 = scalar_select %p250, %s20, 0
      %s252 = scalar_lea.vmem %s1, %s251
      %p253 = scmp.lt.s32.totalorder %s20, 0
      %s254 = scalar_select %p253, %s20, 0
      %s255 = scalar_lea.vmem %s2, %s254
      %p256 = scmp.lt.s32.totalorder %s20, 0
      %s257 = scalar_select %p256, %s20, 0
      %s258 = smul.addr %s257, 4
      %s259 = scalar_lea.vmem %s3, %s258
      %s260 = smul.u32 32, %s19
      %p261 = scmp.lt.s32.totalorder %s260, 63
      %s262 = scalar_select %p261, %s260, 63
      %p263 = scmp.lt.s32.totalorder %s20, 0
      %s264 = scalar_select %p263, %s20, 0
      %s265 = sadd.s32 %s264, %s262
      %s266 = smul.addr %s265, 4
      %s267 = scalar_lea.vmem %s4, %s266
      %s268 = smul.u32 32, %s19
      %v270 = vld [vmem:[%s248] sm:$0xff]
      %v271 = vld [vmem:[%s248 + $0x8] sm:$0xff]
      %v272 = vld [vmem:[%s248 + $0x10] sm:$0xff]
      %v273 = vld [vmem:[%s248 + $0x18] sm:$0xff]
      %v274 = vld [vmem:[%s248 + $0x20] sm:$0xff]
      %v275 = vld [vmem:[%s248 + $0x28] sm:$0xff]
      %v276 = vld [vmem:[%s248 + $0x30] sm:$0xff]
      %v277 = vld [vmem:[%s248 + $0x38] sm:$0xff]
      %v278 = vld [vmem:[%s248 + $0x40] sm:$0xff]
      %v279 = vld [vmem:[%s248 + $0x48] sm:$0xff]
      %v280 = vld [vmem:[%s248 + $0x50] sm:$0xff]
      %v281 = vld [vmem:[%s248 + $0x58] sm:$0xff]
      %v282 = vld [vmem:[%s248 + $0x60] sm:$0xff]
      %v283 = vld [vmem:[%s248 + $0x68] sm:$0xff]
      %v284 = vld [vmem:[%s248 + $0x70] sm:$0xff]
      %v285 = vld [vmem:[%s248 + $0x78] sm:$0xff]
      %v286 = vld [vmem:[%s248 + $0x80] sm:$0xff]
      %v287 = vld [vmem:[%s248 + $0x88] sm:$0xff]
      %v288 = vld [vmem:[%s248 + $0x90] sm:$0xff]
      %v289 = vld [vmem:[%s248 + $0x98] sm:$0xff]
      %v290 = vld [vmem:[%s248 + $0xa0] sm:$0xff]
      %v291 = vld [vmem:[%s248 + $0xa8] sm:$0xff]
      %v292 = vld [vmem:[%s248 + $0xb0] sm:$0xff]
      %v293 = vld [vmem:[%s248 + $0xb8] sm:$0xff]
      %v294 = vld [vmem:[%s248 + $0xc0] sm:$0xff]
      %v295 = vld [vmem:[%s248 + $0xc8] sm:$0xff]
      %v296 = vld [vmem:[%s248 + $0xd0] sm:$0xff]
      %v297 = vld [vmem:[%s248 + $0xd8] sm:$0xff]
      %v298 = vld [vmem:[%s248 + $0xe0] sm:$0xff]
      %v299 = vld [vmem:[%s248 + $0xe8] sm:$0xff]
      %v300 = vld [vmem:[%s248 + $0xf0] sm:$0xff]
      %v301 = vld [vmem:[%s248 + $0xf8] sm:$0xff]
      %v302 = vld [vmem:[%s259] sm:$0xf]
      %v303 = vld [vmem:[%s259 + $0x4] sm:$0xf]
      %v304 = vld [vmem:[%s259 + $0x8] sm:$0xf]
      %v305 = vld [vmem:[%s259 + $0xc] sm:$0xf]
      %v306 = vld [vmem:[%s259 + $0x10] sm:$0xf]
      %v307 = vld [vmem:[%s259 + $0x14] sm:$0xf]
      %v308 = vld [vmem:[%s259 + $0x18] sm:$0xf]
      %v309 = vld [vmem:[%s259 + $0x1c] sm:$0xf]
      %v310 = vld [vmem:[%s259 + $0x20] sm:$0xf]
      %v311 = vld [vmem:[%s259 + $0x24] sm:$0xf]
      %v312 = vld [vmem:[%s259 + $0x28] sm:$0xf]
      %v313 = vld [vmem:[%s259 + $0x2c] sm:$0xf]
      %v314 = vld [vmem:[%s259 + $0x30] sm:$0xf]
      %v315 = vld [vmem:[%s259 + $0x34] sm:$0xf]
      %v316 = vld [vmem:[%s259 + $0x38] sm:$0xf]
      %v317 = vld [vmem:[%s259 + $0x3c] sm:$0xf]
      %v318 = vld [vmem:[%s259 + $0x40] sm:$0xf]
      %v319 = vld [vmem:[%s259 + $0x44] sm:$0xf]
      %v320 = vld [vmem:[%s259 + $0x48] sm:$0xf]
      %v321 = vld [vmem:[%s259 + $0x4c] sm:$0xf]
      %v322 = vld [vmem:[%s259 + $0x50] sm:$0xf]
      %v323 = vld [vmem:[%s259 + $0x54] sm:$0xf]
      %v324 = vld [vmem:[%s259 + $0x58] sm:$0xf]
      %v325 = vld [vmem:[%s259 + $0x5c] sm:$0xf]
      %v326 = vld [vmem:[%s259 + $0x60] sm:$0xf]
      %v327 = vld [vmem:[%s259 + $0x64] sm:$0xf]
      %v328 = vld [vmem:[%s259 + $0x68] sm:$0xf]
      %v329 = vld [vmem:[%s259 + $0x6c] sm:$0xf]
      %v330 = vld [vmem:[%s259 + $0x70] sm:$0xf]
      %v331 = vld [vmem:[%s259 + $0x74] sm:$0xf]
      %v332 = vld [vmem:[%s259 + $0x78] sm:$0xf]
      %v333 = vld [vmem:[%s259 + $0x7c] sm:$0xf]
      %v366 = vunpack.c.l.b16 %v270
      %v367 = vunpack.c.h.b16 %v270
      %v368 = vunpack.c.l.b16 %v271
      %v369 = vunpack.c.h.b16 %v271
      %v370 = vunpack.c.l.b16 %v272
      %v371 = vunpack.c.h.b16 %v272
      %v372 = vunpack.c.l.b16 %v273
      %v373 = vunpack.c.h.b16 %v273
      %v374 = vunpack.c.l.b16 %v274
      %v375 = vunpack.c.h.b16 %v274
      %v376 = vunpack.c.l.b16 %v275
      %v377 = vunpack.c.h.b16 %v275
      %v378 = vunpack.c.l.b16 %v276
      %v379 = vunpack.c.h.b16 %v276
      %v380 = vunpack.c.l.b16 %v277
      %v381 = vunpack.c.h.b16 %v277
      %v382 = vunpack.c.l.b16 %v278
      %v383 = vunpack.c.h.b16 %v278
      %v384 = vunpack.c.l.b16 %v279
      %v385 = vunpack.c.h.b16 %v279
      %v386 = vunpack.c.l.b16 %v280
      %v387 = vunpack.c.h.b16 %v280
      %v388 = vunpack.c.l.b16 %v281
      %v389 = vunpack.c.h.b16 %v281
      %v390 = vunpack.c.l.b16 %v282
      %v391 = vunpack.c.h.b16 %v282
      %v392 = vunpack.c.l.b16 %v283
      %v393 = vunpack.c.h.b16 %v283
      %v394 = vunpack.c.l.b16 %v284
      %v395 = vunpack.c.h.b16 %v284
      %v396 = vunpack.c.l.b16 %v285
      %v397 = vunpack.c.h.b16 %v285
      %v398 = vunpack.c.l.b16 %v286
      %v399 = vunpack.c.h.b16 %v286
      %v400 = vunpack.c.l.b16 %v287
      %v401 = vunpack.c.h.b16 %v287
      %v402 = vunpack.c.l.b16 %v288
      %v403 = vunpack.c.h.b16 %v288
      %v404 = vunpack.c.l.b16 %v289
      %v405 = vunpack.c.h.b16 %v289
      %v406 = vunpack.c.l.b16 %v290
      %v407 = vunpack.c.h.b16 %v290
      %v408 = vunpack.c.l.b16 %v291
      %v409 = vunpack.c.h.b16 %v291
      %v410 = vunpack.c.l.b16 %v292
      %v411 = vunpack.c.h.b16 %v292
      %v412 = vunpack.c.l.b16 %v293
      %v413 = vunpack.c.h.b16 %v293
      %v414 = vunpack.c.l.b16 %v294
      %v415 = vunpack.c.h.b16 %v294
      %v416 = vunpack.c.l.b16 %v295
      %v417 = vunpack.c.h.b16 %v295
      %v418 = vunpack.c.l.b16 %v296
      %v419 = vunpack.c.h.b16 %v296
      %v420 = vunpack.c.l.b16 %v297
      %v421 = vunpack.c.h.b16 %v297
      %v422 = vunpack.c.l.b16 %v298
      %v423 = vunpack.c.h.b16 %v298
      %v424 = vunpack.c.l.b16 %v299
      %v425 = vunpack.c.h.b16 %v299
      %v426 = vunpack.c.l.b16 %v300
      %v427 = vunpack.c.h.b16 %v300
      %v428 = vunpack.c.l.b16 %v301
      %v429 = vunpack.c.h.b16 %v301
      %v430 = vpack.c.b16 %v368, %v366
      %v431 = vpack.c.b16 %v369, %v367
      %v432 = vpack.c.b16 %v372, %v370
      %v433 = vpack.c.b16 %v373, %v371
      %v434 = vpack.c.b16 %v376, %v374
      %v435 = vpack.c.b16 %v377, %v375
      %v436 = vpack.c.b16 %v380, %v378
      %v437 = vpack.c.b16 %v381, %v379
      %v438 = vpack.c.b16 %v384, %v382
      %v439 = vpack.c.b16 %v385, %v383
      %v440 = vpack.c.b16 %v388, %v386
      %v441 = vpack.c.b16 %v389, %v387
      %v442 = vpack.c.b16 %v392, %v390
      %v443 = vpack.c.b16 %v393, %v391
      %v444 = vpack.c.b16 %v396, %v394
      %v445 = vpack.c.b16 %v397, %v395
      %v446 = vpack.c.b16 %v400, %v398
      %v447 = vpack.c.b16 %v401, %v399
      %v448 = vpack.c.b16 %v404, %v402
      %v449 = vpack.c.b16 %v405, %v403
      %v450 = vpack.c.b16 %v408, %v406
      %v451 = vpack.c.b16 %v409, %v407
      %v452 = vpack.c.b16 %v412, %v410
      %v453 = vpack.c.b16 %v413, %v411
      %v454 = vpack.c.b16 %v416, %v414
      %v455 = vpack.c.b16 %v417, %v415
      %v456 = vpack.c.b16 %v420, %v418
      %v457 = vpack.c.b16 %v421, %v419
      %v458 = vpack.c.b16 %v424, %v422
      %v459 = vpack.c.b16 %v425, %v423
      %v460 = vpack.c.b16 %v428, %v426
      %v461 = vpack.c.b16 %v429, %v427
      %v526 = vunpack.c.l.b16 %v302
      %v527 = vunpack.c.l.b16 %v303
      %v528 = vunpack.c.l.b16 %v304
      %v529 = vunpack.c.l.b16 %v305
      %v530 = vunpack.c.l.b16 %v306
      %v531 = vunpack.c.l.b16 %v307
      %v532 = vunpack.c.l.b16 %v308
      %v533 = vunpack.c.l.b16 %v309
      %v534 = vunpack.c.l.b16 %v310
      %v535 = vunpack.c.l.b16 %v311
      %v536 = vunpack.c.l.b16 %v312
      %v537 = vunpack.c.l.b16 %v313
      %v538 = vunpack.c.l.b16 %v314
      %v539 = vunpack.c.l.b16 %v315
      %v540 = vunpack.c.l.b16 %v316
      %v541 = vunpack.c.l.b16 %v317
      %v542 = vunpack.c.l.b16 %v318
      %v543 = vunpack.c.l.b16 %v319
      %v544 = vunpack.c.l.b16 %v320
      %v545 = vunpack.c.l.b16 %v321
      %v546 = vunpack.c.l.b16 %v322
      %v547 = vunpack.c.l.b16 %v323
      %v548 = vunpack.c.l.b16 %v324
      %v549 = vunpack.c.l.b16 %v325
      %v550 = vunpack.c.l.b16 %v326
      %v551 = vunpack.c.l.b16 %v327
      %v552 = vunpack.c.l.b16 %v328
      %v553 = vunpack.c.l.b16 %v329
      %v554 = vunpack.c.l.b16 %v330
      %v555 = vunpack.c.l.b16 %v331
      %v556 = vunpack.c.l.b16 %v332
      %v557 = vunpack.c.l.b16 %v333
      %v558 = vpack.c.b16 %v527, %v526
      %v559 = vpack.c.b16 %v529, %v528
      %v560 = vpack.c.b16 %v531, %v530
      %v561 = vpack.c.b16 %v533, %v532
      %v562 = vpack.c.b16 %v535, %v534
      %v563 = vpack.c.b16 %v537, %v536
      %v564 = vpack.c.b16 %v539, %v538
      %v565 = vpack.c.b16 %v541, %v540
      %v566 = vpack.c.b16 %v543, %v542
      %v567 = vpack.c.b16 %v545, %v544
      %v568 = vpack.c.b16 %v547, %v546
      %v569 = vpack.c.b16 %v549, %v548
      %v570 = vpack.c.b16 %v551, %v550
      %v571 = vpack.c.b16 %v553, %v552
      %v572 = vpack.c.b16 %v555, %v554
      %v573 = vpack.c.b16 %v557, %v556
      %590 = vmatprep.subr.bf16.mxu0 0
      %591 = vmatpush1.bf16.msra.mxu0 %v558
      %592 = vmatprep.subr.bf16.mxu0 0
      %593 = vmatpush1.bf16.msra.mxu0 %v559
      %594 = vmatprep.subr.bf16.mxu0 0
      %595 = vmatpush1.bf16.msra.mxu0 %v560
      %596 = vmatprep.subr.bf16.mxu0 0
      %597 = vmatpush1.bf16.msra.mxu0 %v561
      %598 = vmatprep.subr.bf16.mxu0 0
      %599 = vmatpush1.bf16.msra.mxu0 %v562
      %600 = vmatprep.subr.bf16.mxu0 0
      %601 = vmatpush1.bf16.msra.mxu0 %v563
      %602 = vmatprep.subr.bf16.mxu0 0
      %603 = vmatpush1.bf16.msra.mxu0 %v564
      %604 = vmatprep.subr.bf16.mxu0 0
      %605 = vmatpush1.bf16.msra.mxu0 %v565
      %606 = vmatprep.subr.bf16.mxu0 0
      %607 = vmatpush1.bf16.msra.mxu0 %v566
      %608 = vmatprep.subr.bf16.mxu0 0
      %609 = vmatpush1.bf16.msra.mxu0 %v567
      %610 = vmatprep.subr.bf16.mxu0 0
      %611 = vmatpush1.bf16.msra.mxu0 %v568
      %612 = vmatprep.subr.bf16.mxu0 0
      %613 = vmatpush1.bf16.msra.mxu0 %v569
      %614 = vmatprep.subr.bf16.mxu0 0
      %615 = vmatpush1.bf16.msra.mxu0 %v570
      %616 = vmatprep.subr.bf16.mxu0 0
      %617 = vmatpush1.bf16.msra.mxu0 %v571
      %618 = vmatprep.subr.bf16.mxu0 0
      %619 = vmatpush1.bf16.msra.mxu0 %v572
      %620 = vmatprep.subr.bf16.mxu0 0
      %621 = vmatpush1.bf16.msra.mxu0 %v573
      %622 = vmatprep.mubr.bf16.mxu0 %v431
      %623 = vmatmul.mubr.bf16.gmra.mrb[0].mxu0 %v430
      %v624 = vpop.f32.mrb[0].mxu0
      %v625 = vadd.f32 0.0, %v624
      %v626 = vpop.f32.mrb[0].mxu0
      %v627 = vpop.f32.mrb[0].mxu0
      %v628 = vadd.f32 0.0, %v627
      %v629 = vpop.f32.mrb[0].mxu0
      %630 = vmatprep.mubr.bf16.mxu0 %v433
      %631 = vmatmul.mubr.bf16.gmra.mrb[0].mxu0 %v432
      %v632 = vpop.f32.mrb[0].mxu0
      %v633 = vadd.f32 0.0, %v632
      %v634 = vpop.f32.mrb[0].mxu0
      %v635 = vpop.f32.mrb[0].mxu0
      %v636 = vadd.f32 0.0, %v635
      %v637 = vpop.f32.mrb[0].mxu0
      %638 = vmatprep.mubr.bf16.mxu0 %v435
      %639 = vmatmul.mubr.bf16.gmra.mrb[0].mxu0 %v434
      %v640 = vpop.f32.mrb[0].mxu0
      %v641 = vadd.f32 0.0, %v640
      %v642 = vpop.f32.mrb[0].mxu0
      %v643 = vpop.f32.mrb[0].mxu0
      %v644 = vadd.f32 0.0, %v643
      %v645 = vpop.f32.mrb[0].mxu0
      %646 = vmatprep.mubr.bf16.mxu0 %v437
      %647 = vmatmul.mubr.bf16.gmra.mrb[0].mxu0 %v436
      %v648 = vpop.f32.mrb[0].mxu0
      %v649 = vadd.f32 0.0, %v648
      %v650 = vpop.f32.mrb[0].mxu0
      %v651 = vpop.f32.mrb[0].mxu0
      %v652 = vadd.f32 0.0, %v651
      %v653 = vpop.f32.mrb[0].mxu0
      %654 = vmatprep.mubr.bf16.mxu0 %v439
      %655 = vmatmul.mubr.bf16.gmra.mrb[0].mxu0 %v438
      %v656 = vpop.f32.mrb[0].mxu0
      %v657 = vadd.f32 0.0, %v656
      %v658 = vpop.f32.mrb[0].mxu0
      %v659 = vpop.f32.mrb[0].mxu0
      %v660 = vadd.f32 0.0, %v659
      %v661 = vpop.f32.mrb[0].mxu0
      %662 = vmatprep.mubr.bf16.mxu0 %v441
      %663 = vmatmul.mubr.bf16.gmra.mrb[0].mxu0 %v440
      %v664 = vpop.f32.mrb[0].mxu0
      %v665 = vadd.f32 0.0, %v664
      %v666 = vpop.f32.mrb[0].mxu0
      %v667 = vpop.f32.mrb[0].mxu0
      %v668 = vadd.f32 0.0, %v667
      %v669 = vpop.f32.mrb[0].mxu0
      %670 = vmatprep.mubr.bf16.mxu0 %v443
      %671 = vmatmul.mubr.bf16.gmra.mrb[0].mxu0 %v442
      %v672 = vpop.f32.mrb[0].mxu0
      %v673 = vadd.f32 0.0, %v672
      %v674 = vpop.f32.mrb[0].mxu0
      %v675 = vpop.f32.mrb[0].mxu0
      %v676 = vadd.f32 0.0, %v675
      %v677 = vpop.f32.mrb[0].mxu0
      %678 = vmatprep.mubr.bf16.mxu0 %v445
      %679 = vmatmul.mubr.bf16.gmra.mrb[0].mxu0 %v444
      %v680 = vpop.f32.mrb[0].mxu0
      %v681 = vadd.f32 0.0, %v680
      %v682 = vpop.f32.mrb[0].mxu0
      %v683 = vpop.f32.mrb[0].mxu0
      %v684 = vadd.f32 0.0, %v683
      %v685 = vpop.f32.mrb[0].mxu0
      %686 = vmatprep.mubr.bf16.mxu0 %v447
      %687 = vmatmul.mubr.bf16.gmra.mrb[0].mxu0 %v446
      %v688 = vpop.f32.mrb[0].mxu0
      %v689 = vadd.f32 0.0, %v688
      %v690 = vpop.f32.mrb[0].mxu0
      %v691 = vpop.f32.mrb[0].mxu0
      %v692 = vadd.f32 0.0, %v691
      %v693 = vpop.f32.mrb[0].mxu0
      %694 = vmatprep.mubr.bf16.mxu0 %v449
      %695 = vmatmul.mubr.bf16.gmra.mrb[0].mxu0 %v448
      %v696 = vpop.f32.mrb[0].mxu0
      %v697 = vadd.f32 0.0, %v696
      %v698 = vpop.f32.mrb[0].mxu0
      %v699 = vpop.f32.mrb[0].mxu0
      %v700 = vadd.f32 0.0, %v699
      %v701 = vpop.f32.mrb[0].mxu0
      %702 = vmatprep.mubr.bf16.mxu0 %v451
      %703 = vmatmul.mubr.bf16.gmra.mrb[0].mxu0 %v450
      %v704 = vpop.f32.mrb[0].mxu0
      %v705 = vadd.f32 0.0, %v704
      %v706 = vpop.f32.mrb[0].mxu0
      %v707 = vpop.f32.mrb[0].mxu0
      %v708 = vadd.f32 0.0, %v707
      %v709 = vpop.f32.mrb[0].mxu0
      %710 = vmatprep.mubr.bf16.mxu0 %v453
      %711 = vmatmul.mubr.bf16.gmra.mrb[0].mxu0 %v452
      %v712 = vpop.f32.mrb[0].mxu0
      %v713 = vadd.f32 0.0, %v712
      %v714 = vpop.f32.mrb[0].mxu0
      %v715 = vpop.f32.mrb[0].mxu0
      %v716 = vadd.f32 0.0, %v715
      %v717 = vpop.f32.mrb[0].mxu0
      %718 = vmatprep.mubr.bf16.mxu0 %v455
      %719 = vmatmul.mubr.bf16.gmra.mrb[0].mxu0 %v454
      %v720 = vpop.f32.mrb[0].mxu0
      %v721 = vadd.f32 0.0, %v720
      %v722 = vpop.f32.mrb[0].mxu0
      %v723 = vpop.f32.mrb[0].mxu0
      %v724 = vadd.f32 0.0, %v723
      %v725 = vpop.f32.mrb[0].mxu0
      %726 = vmatprep.mubr.bf16.mxu0 %v457
      %727 = vmatmul.mubr.bf16.gmra.mrb[0].mxu0 %v456
      %v728 = vpop.f32.mrb[0].mxu0
      %v729 = vadd.f32 0.0, %v728
      %v730 = vpop.f32.mrb[0].mxu0
      %v731 = vpop.f32.mrb[0].mxu0
      %v732 = vadd.f32 0.0, %v731
      %v733 = vpop.f32.mrb[0].mxu0
      %734 = vmatprep.mubr.bf16.mxu0 %v459
      %735 = vmatmul.mubr.bf16.gmra.mrb[0].mxu0 %v458
      %v736 = vpop.f32.mrb[0].mxu0
      %v737 = vadd.f32 0.0, %v736
      %v738 = vpop.f32.mrb[0].mxu0
      %v739 = vpop.f32.mrb[0].mxu0
      %v740 = vadd.f32 0.0, %v739
      %v741 = vpop.f32.mrb[0].mxu0
      %742 = vmatprep.mubr.bf16.mxu0 %v461
      %743 = vmatmul.mubr.bf16.gmra.mrb[0].mxu0 %v460
      %v744 = vpop.f32.mrb[0].mxu0
      %v745 = vadd.f32 0.0, %v744
      %v746 = vpop.f32.mrb[0].mxu0
      %v747 = vpop.f32.mrb[0].mxu0
      %v748 = vadd.f32 0.0, %v747
      %v749 = vpop.f32.mrb[0].mxu0
      %750 = vdwg.mxu0
      %v751 = vld [vmem:[%s252] sm:$0x1]
      %v753 = vlaneseq
      %v754 = vshrl.u32 %v753, 7
      %v755 = vsub.s32 0, %v754
      %v756 = vrot.slane %v751, %v755
      %v758 = vmul.f32 %v625, %v756
      %v759 = vmul.f32 %v628, %v756
      %v760 = vmul.f32 %v633, %v756
      %v761 = vmul.f32 %v636, %v756
      %v762 = vmul.f32 %v641, %v756
      %v763 = vmul.f32 %v644, %v756
      %v764 = vmul.f32 %v649, %v756
      %v765 = vmul.f32 %v652, %v756
      %v766 = vmul.f32 %v657, %v756
      %v767 = vmul.f32 %v660, %v756
      %v768 = vmul.f32 %v665, %v756
      %v769 = vmul.f32 %v668, %v756
      %v770 = vmul.f32 %v673, %v756
      %v771 = vmul.f32 %v676, %v756
      %v772 = vmul.f32 %v681, %v756
      %v773 = vmul.f32 %v684, %v756
      %v774 = vmul.f32 %v689, %v756
      %v775 = vmul.f32 %v692, %v756
      %v776 = vmul.f32 %v697, %v756
      %v777 = vmul.f32 %v700, %v756
      %v778 = vmul.f32 %v705, %v756
      %v779 = vmul.f32 %v708, %v756
      %v780 = vmul.f32 %v713, %v756
      %v781 = vmul.f32 %v716, %v756
      %v782 = vmul.f32 %v721, %v756
      %v783 = vmul.f32 %v724, %v756
      %v784 = vmul.f32 %v729, %v756
      %v785 = vmul.f32 %v732, %v756
      %v786 = vmul.f32 %v737, %v756
      %v787 = vmul.f32 %v740, %v756
      %v788 = vmul.f32 %v745, %v756
      %v789 = vmul.f32 %v748, %v756
      %v790 = vld [vmem:[%s255] sm:$0x1]
      %v792 = vlaneseq
      %v793 = vshrl.u32 %v792, 7
      %v794 = vsub.s32 0, %v793
      %v795 = vrot.slane %v790, %v794
      %v797 = vadd.f32 %v758, %v795
      %v798 = vadd.f32 %v759, %v795
      %v799 = vadd.f32 %v760, %v795
      %v800 = vadd.f32 %v761, %v795
      %v801 = vadd.f32 %v762, %v795
      %v802 = vadd.f32 %v763, %v795
      %v803 = vadd.f32 %v764, %v795
      %v804 = vadd.f32 %v765, %v795
      %v805 = vadd.f32 %v766, %v795
      %v806 = vadd.f32 %v767, %v795
      %v807 = vadd.f32 %v768, %v795
      %v808 = vadd.f32 %v769, %v795
      %v809 = vadd.f32 %v770, %v795
      %v810 = vadd.f32 %v771, %v795
      %v811 = vadd.f32 %v772, %v795
      %v812 = vadd.f32 %v773, %v795
      %v813 = vadd.f32 %v774, %v795
      %v814 = vadd.f32 %v775, %v795
      %v815 = vadd.f32 %v776, %v795
      %v816 = vadd.f32 %v777, %v795
      %v817 = vadd.f32 %v778, %v795
      %v818 = vadd.f32 %v779, %v795
      %v819 = vadd.f32 %v780, %v795
      %v820 = vadd.f32 %v781, %v795
      %v821 = vadd.f32 %v782, %v795
      %v822 = vadd.f32 %v783, %v795
      %v823 = vadd.f32 %v784, %v795
      %v824 = vadd.f32 %v785, %v795
      %v825 = vadd.f32 %v786, %v795
      %v826 = vadd.f32 %v787, %v795
      %v827 = vadd.f32 %v788, %v795
      %v828 = vadd.f32 %v789, %v795
      %v829 = vmax.f32 %v797, 0.0
      %v830 = vmax.f32 %v798, 0.0
      %v831 = vmax.f32 %v799, 0.0
      %v832 = vmax.f32 %v800, 0.0
      %v833 = vmax.f32 %v801, 0.0
      %v834 = vmax.f32 %v802, 0.0
      %v835 = vmax.f32 %v803, 0.0
      %v836 = vmax.f32 %v804, 0.0
      %v837 = vmax.f32 %v805, 0.0
      %v838 = vmax.f32 %v806, 0.0
      %v839 = vmax.f32 %v807, 0.0
      %v840 = vmax.f32 %v808, 0.0
      %v841 = vmax.f32 %v809, 0.0
      %v842 = vmax.f32 %v810, 0.0
      %v843 = vmax.f32 %v811, 0.0
      %v844 = vmax.f32 %v812, 0.0
      %v845 = vmax.f32 %v813, 0.0
      %v846 = vmax.f32 %v814, 0.0
      %v847 = vmax.f32 %v815, 0.0
      %v848 = vmax.f32 %v816, 0.0
      %v849 = vmax.f32 %v817, 0.0
      %v850 = vmax.f32 %v818, 0.0
      %v851 = vmax.f32 %v819, 0.0
      %v852 = vmax.f32 %v820, 0.0
      %v853 = vmax.f32 %v821, 0.0
      %v854 = vmax.f32 %v822, 0.0
      %v855 = vmax.f32 %v823, 0.0
      %v856 = vmax.f32 %v824, 0.0
      %v857 = vmax.f32 %v825, 0.0
      %v858 = vmax.f32 %v826, 0.0
      %v859 = vmax.f32 %v827, 0.0
      %v860 = vmax.f32 %v828, 0.0
      %v861 = vpack.c.bf16 %v830, %v829
      %v862 = vpack.c.bf16 %v832, %v831
      %v863 = vpack.c.bf16 %v834, %v833
      %v864 = vpack.c.bf16 %v836, %v835
      %v865 = vpack.c.bf16 %v838, %v837
      %v866 = vpack.c.bf16 %v840, %v839
      %v867 = vpack.c.bf16 %v842, %v841
      %v868 = vpack.c.bf16 %v844, %v843
      %v869 = vpack.c.bf16 %v846, %v845
      %v870 = vpack.c.bf16 %v848, %v847
      %v871 = vpack.c.bf16 %v850, %v849
      %v872 = vpack.c.bf16 %v852, %v851
      %v873 = vpack.c.bf16 %v854, %v853
      %v874 = vpack.c.bf16 %v856, %v855
      %v875 = vpack.c.bf16 %v858, %v857
      %v876 = vpack.c.bf16 %v860, %v859
      %v893 = vunpack.c.l.b16 %v861
      %v894 = vunpack.c.h.b16 %v861
      %v895 = vunpack.c.l.b16 %v862
      %v896 = vunpack.c.h.b16 %v862
      %v897 = vunpack.c.l.b16 %v863
      %v898 = vunpack.c.h.b16 %v863
      %v899 = vunpack.c.l.b16 %v864
      %v900 = vunpack.c.h.b16 %v864
      %v901 = vunpack.c.l.b16 %v865
      %v902 = vunpack.c.h.b16 %v865
      %v903 = vunpack.c.l.b16 %v866
      %v904 = vunpack.c.h.b16 %v866
      %v905 = vunpack.c.l.b16 %v867
      %v906 = vunpack.c.h.b16 %v867
      %v907 = vunpack.c.l.b16 %v868
      %v908 = vunpack.c.h.b16 %v868
      %v909 = vunpack.c.l.b16 %v869
      %v910 = vunpack.c.h.b16 %v869
      %v911 = vunpack.c.l.b16 %v870
      %v912 = vunpack.c.h.b16 %v870
      %v913 = vunpack.c.l.b16 %v871
      %v914 = vunpack.c.h.b16 %v871
      %v915 = vunpack.c.l.b16 %v872
      %v916 = vunpack.c.h.b16 %v872
      %v917 = vunpack.c.l.b16 %v873
      %v918 = vunpack.c.h.b16 %v873
      %v919 = vunpack.c.l.b16 %v874
      %v920 = vunpack.c.h.b16 %v874
      %v921 = vunpack.c.l.b16 %v875
      %v922 = vunpack.c.h.b16 %v875
      %v923 = vunpack.c.l.b16 %v876
      %v924 = vunpack.c.h.b16 %v876
      %v925 = vpack.c.b16 %v893, %v893
      %v926 = vpack.c.b16 %v894, %v894
      %v927 = vpack.c.b16 %v895, %v895
      %v928 = vpack.c.b16 %v896, %v896
      %v929 = vpack.c.b16 %v897, %v897
      %v930 = vpack.c.b16 %v898, %v898
      %v931 = vpack.c.b16 %v899, %v899
      %v932 = vpack.c.b16 %v900, %v900
      %v933 = vpack.c.b16 %v901, %v901
      %v934 = vpack.c.b16 %v902, %v902
      %v935 = vpack.c.b16 %v903, %v903
      %v936 = vpack.c.b16 %v904, %v904
      %v937 = vpack.c.b16 %v905, %v905
      %v938 = vpack.c.b16 %v906, %v906
      %v939 = vpack.c.b16 %v907, %v907
      %v940 = vpack.c.b16 %v908, %v908
      %v941 = vpack.c.b16 %v909, %v909
      %v942 = vpack.c.b16 %v910, %v910
      %v943 = vpack.c.b16 %v911, %v911
      %v944 = vpack.c.b16 %v912, %v912
      %v945 = vpack.c.b16 %v913, %v913
      %v946 = vpack.c.b16 %v914, %v914
      %v947 = vpack.c.b16 %v915, %v915
      %v948 = vpack.c.b16 %v916, %v916
      %v949 = vpack.c.b16 %v917, %v917
      %v950 = vpack.c.b16 %v918, %v918
      %v951 = vpack.c.b16 %v919, %v919
      %v952 = vpack.c.b16 %v920, %v920
      %v953 = vpack.c.b16 %v921, %v921
      %v954 = vpack.c.b16 %v922, %v922
      %v955 = vpack.c.b16 %v923, %v923
      %v956 = vpack.c.b16 %v924, %v924
      %989 = vst [vmem:[%s267] sm:$0xf] %v925
      %990 = vst [vmem:[%s267 + $0x4] sm:$0xf] %v926
      %991 = vst [vmem:[%s267 + $0x8] sm:$0xf] %v927
      %992 = vst [vmem:[%s267 + $0xc] sm:$0xf] %v928
      %993 = vst [vmem:[%s267 + $0x10] sm:$0xf] %v929
      %994 = vst [vmem:[%s267 + $0x14] sm:$0xf] %v930
      %995 = vst [vmem:[%s267 + $0x18] sm:$0xf] %v931
      %996 = vst [vmem:[%s267 + $0x1c] sm:$0xf] %v932
      %997 = vst [vmem:[%s267 + $0x20] sm:$0xf] %v933
      %998 = vst [vmem:[%s267 + $0x24] sm:$0xf] %v934
      %999 = vst [vmem:[%s267 + $0x28] sm:$0xf] %v935
      %1000 = vst [vmem:[%s267 + $0x2c] sm:$0xf] %v936
      %1001 = vst [vmem:[%s267 + $0x30] sm:$0xf] %v937
      %1002 = vst [vmem:[%s267 + $0x34] sm:$0xf] %v938
      %1003 = vst [vmem:[%s267 + $0x38] sm:$0xf] %v939
      %1004 = vst [vmem:[%s267 + $0x3c] sm:$0xf] %v940
      %1005 = vst [vmem:[%s267 + $0x40] sm:$0xf] %v941
      %1006 = vst [vmem:[%s267 + $0x44] sm:$0xf] %v942
      %1007 = vst [vmem:[%s267 + $0x48] sm:$0xf] %v943
      %1008 = vst [vmem:[%s267 + $0x4c] sm:$0xf] %v944
      %1009 = vst [vmem:[%s267 + $0x50] sm:$0xf] %v945
      %1010 = vst [vmem:[%s267 + $0x54] sm:$0xf] %v946
      %1011 = vst [vmem:[%s267 + $0x58] sm:$0xf] %v947
      %1012 = vst [vmem:[%s267 + $0x5c] sm:$0xf] %v948
      %1013 = vst [vmem:[%s267 + $0x60] sm:$0xf] %v949
      %1014 = vst [vmem:[%s267 + $0x64] sm:$0xf] %v950
      %1015 = vst [vmem:[%s267 + $0x68] sm:$0xf] %v951
      %1016 = vst [vmem:[%s267 + $0x6c] sm:$0xf] %v952
      %1017 = vst [vmem:[%s267 + $0x70] sm:$0xf] %v953
      %1018 = vst [vmem:[%s267 + $0x74] sm:$0xf] %v954
      %1019 = vst [vmem:[%s267 + $0x78] sm:$0xf] %v955
      %1020 = vst [vmem:[%s267 + $0x7c] sm:$0xf] %v956
      %s1021 = smul.u32 32, %s19
      %p1022 = scmp.lt.s32.totalorder %s1021, 63
      %s1023 = scalar_select %p1022, %s1021, 63
      %p1024 = scmp.lt.s32.totalorder %s20, 0
      %s1025 = scalar_select %p1024, %s20, 0
      %s1026 = sadd.s32 %s1025, %s1023
      %s1027 = smul.addr %s1026, 4
      %s1028 = scalar_lea.vmem %s4, %s1027
      // Predicated region
      $region37: #{densenet_forward.121} parent=35 // pred_check
        %p1029 = pneg %p151
      $region38: #{densenet_forward.121} parent=35 // pred_check_branch
        %1031 = sbr.rel (%p1029) target = $region40
      $region39: #{densenet_forward.121} parent=35 // pred_region
        %s1032 = smul.u32 32, %s19
      $region40: #{densenet_forward.121} parent=35 // pred_fallthru
        _
    $region36: #{densenet_forward.121} parent=5 // pred_fallthru
      _
    %p1033 = scmp.le.s32.totalorder 2, %s10
    // Predicated region
    $region41: #{densenet_forward.121} parent=5 // pred_check
      %p1034 = pneg %p1033
    $region42: #{densenet_forward.121} parent=5 // pred_check_branch
      %1036 = sbr.rel (%p1034) target = $region44
    $region43: #{densenet_forward.121} parent=5 // pred_region
      %s1037 = ssub.s32 %s10, 2
      // Predicated region
      $region45: #{densenet_forward.121} parent=43 // pred_check
        %p1038 = pneg %p157
      $region46: #{densenet_forward.121} parent=43 // pred_check_branch
        %1040 = sbr.rel (%p1038) target = $region48
      $region47: #{densenet_forward.121} parent=43 // pred_region
        %s1041 = smul.u32 32, %s21
        %p1042 = scmp.lt.s32.totalorder %s1041, 63
        %s1043 = scalar_select %p1042, %s1041, 63
        %p1044 = scmp.lt.s32.totalorder %s22, 0
        %s1045 = scalar_select %p1044, %s22, 0
        %s1046 = sadd.s32 %s1045, %s1043
        %s1047 = smul.addr %s1046, 4
        %s1048 = scalar_lea.vmem %s4, %s1047
      $region48: #{densenet_forward.121} parent=43 // pred_fallthru
        _
    $region44: #{densenet_forward.121} parent=5 // pred_fallthru
      _
  $region6: #{densenet_forward.121} parent=0 // loop_footer
    %s14 = sadd.s32 1, %s10
  $region7: #{densenet_forward.121} parent=0 // loop_footer_branch
    %9 = sbr.rel target = $region3
  $region8: #{densenet_forward.121} parent=0 // loop_exit
    _

// kernel: densenet_forward.123
$region0: #{densenet_forward.123}
  #allocation0 [shape = 'u32[]', space=smem, size = 0x4, offset = 0x4, fixed_abs, tag = 'smem constant byte address 0x4 - core index']
  #allocation1 [shape = 'u32[144,128]{1,0:T(1,128)}', space=vmem, size = 0x12000, scoped, tag = 'internal scratch']
  %s0 = inlined_call_operand.vmem [shape: bf16[128,1152], index: 0, kind: input, shape index: {}]
  %s1 = inlined_call_operand.vmem [shape: bf16[1152,128], index: 1, kind: input, shape index: {}]
  %s2 = inlined_call_operand.vmem [shape: bf16[128,128], index: 2, kind: output, shape index: {}]
  %s3 = sld [smem:[#allocation0]]
  $region41: #{densenet_forward.123} parent=0
    _
  %s5 = ssub.s32 1, %s3
  %s6 = scalar_select 0, %s5, %s3
  loop: start=0, step=1, limit=4
  $region2: #{densenet_forward.123} parent=0 // loop_pre_header
    _
  $region3: #{densenet_forward.123} parent=0 // loop_header
    %s8 = sphi 0, %s12
    %p9 = scmp.ge.s32.totalorder %s8, 4
    %s15 = sphi 0, %s27
    %s16 = sphi 0, %s23
    %s17 = sphi 0, %s15
    %s18 = sphi 0, %s16
    %s19 = sphi 0, %s17
    %s20 = sphi 0, %s18
    %s30 = sphi 0, %s32
    %s33 = sphi 0, %s30
    %s34 = sphi 0, %s33
    %s50 = sphi 0, %s34
    %s56 = sphi 0, %s58
    %s59 = sphi 0, %s56
    %s60 = sphi 0, %s59
    %s76 = sphi 0, %s60
    %s84 = sphi 0, %s86
    %s87 = sphi 0, %s84
    %s88 = sphi 0, %s87
    %s104 = sphi 0, %s88
  $region4: #{densenet_forward.123} parent=0 // loop_header_branch
    %11 = sbr.rel (%p9) target = $region8
  $region5: #{densenet_forward.123} parent=0 // loop_body
    %s13 = ssub.s32 %s8, 1
    %s14 = ssub.s32 %s8, 2
    %s21 = sadd.s32 1, %s16
    %p22 = scmp.ge.s32.totalorder %s21, 1
    %s23 = scalar_select %p22, 0, %s21
    %s24 = sadd.s32 1, %s15
    %s25 = scalar_select %p22, %s24, %s15
    %p26 = scmp.ge.s32.totalorder %s25, 2
    %s27 = scalar_select %p26, 0, %s25
    %s28 = ssub.s32 %s15, %s27
    %p29 = scmp.eq.s32.totalorder %s28, 0
    %s31 = sadd.s32 %s30, 1
    %s32 = scalar_select %p29, %s30, %s31
    %p35 = pneg %p29
    %p36 = scmp.eq.s32.totalorder %s8, 1
    %p37 = por %p35, %p36
    %p38 = scmp.ne.s32.totalorder %s30, %s33
    %p39 = scmp.eq.s32.totalorder %s8, 0
    %p40 = por %p38, %p39
    %p41 = scmp.ne.s32.totalorder %s30, %s33
    %p42 = scmp.eq.s32.totalorder %s13, 1
    %p43 = por %p41, %p42
    %p44 = scmp.ne.s32.totalorder %s33, %s34
    %p45 = scmp.eq.s32.totalorder %s13, 0
    %p46 = por %p44, %p45
    %p47 = scmp.ne.s32.totalorder %s33, %s34
    %p48 = scmp.eq.s32.totalorder %s14, 1
    %p49 = por %p47, %p48
    %p51 = scmp.ne.s32.totalorder %s34, %s50
    %p52 = scmp.eq.s32.totalorder %s14, 0
    %p53 = por %p51, %p52
    %s54 = ssub.s32 %s16, %s23
    %p55 = scmp.eq.s32.totalorder %s54, 0
    %s57 = sadd.s32 %s56, 1
    %s58 = scalar_select %p55, %s56, %s57
    %p61 = pneg %p55
    %p62 = scmp.eq.s32.totalorder %s8, 1
    %p63 = por %p61, %p62
    %p64 = scmp.ne.s32.totalorder %s56, %s59
    %p65 = scmp.eq.s32.totalorder %s8, 0
    %p66 = por %p64, %p65
    %p67 = scmp.ne.s32.totalorder %s56, %s59
    %p68 = scmp.eq.s32.totalorder %s13, 1
    %p69 = por %p67, %p68
    %p70 = scmp.ne.s32.totalorder %s59, %s60
    %p71 = scmp.eq.s32.totalorder %s13, 0
    %p72 = por %p70, %p71
    %p73 = scmp.ne.s32.totalorder %s59, %s60
    %p74 = scmp.eq.s32.totalorder %s14, 1
    %p75 = por %p73, %p74
    %p77 = scmp.ne.s32.totalorder %s60, %s76
    %p78 = scmp.eq.s32.totalorder %s14, 0
    %p79 = por %p77, %p78
    %s80 = ssub.s32 %s15, %s27
    %s81 = ssub.s32 %s16, %s23
    %s82 = sor.u32 %s80, %s81
    %p83 = scmp.eq.s32.totalorder %s82, 0
    %s85 = sadd.s32 %s84, 1
    %s86 = scalar_select %p83, %s84, %s85
    %p89 = pneg %p83
    %p90 = scmp.eq.s32.totalorder %s8, 1
    %p91 = por %p89, %p90
    %p92 = scmp.ne.s32.totalorder %s84, %s87
    %p93 = scmp.eq.s32.totalorder %s8, 0
    %p94 = por %p92, %p93
    %p95 = scmp.ne.s32.totalorder %s84, %s87
    %p96 = scmp.eq.s32.totalorder %s13, 1
    %p97 = por %p95, %p96
    %p98 = scmp.ne.s32.totalorder %s87, %s88
    %p99 = scmp.eq.s32.totalorder %s13, 0
    %p100 = por %p98, %p99
    %p101 = scmp.ne.s32.totalorder %s87, %s88
    %p102 = scmp.eq.s32.totalorder %s14, 1
    %p103 = por %p101, %p102
    %p105 = scmp.ne.s32.totalorder %s88, %s104
    %p106 = scmp.eq.s32.totalorder %s14, 0
    %p107 = por %p105, %p106
    %p108 = scmp.le.s32.totalorder 1, %s8
    %p109 = scmp.lt.s32.totalorder %s8, 3
    %p110 = pnand %p108, %p109
    %p111 = pneg %p110
    // Predicated region
    $region9: #{densenet_forward.123} parent=5 // pred_check
      _
    $region10: #{densenet_forward.123} parent=5 // pred_check_branch
      %113 = sbr.rel (%p110) target = $region12
    $region11: #{densenet_forward.123} parent=5 // pred_region
      %s114 = ssub.s32 %s8, 1
      // Predicated region
      $region13: #{densenet_forward.123} parent=11 // pred_check
        %p115 = pneg %p72
      $region14: #{densenet_forward.123} parent=11 // pred_check_branch
        %117 = sbr.rel (%p115) target = $region16
      $region15: #{densenet_forward.123} parent=11 // pred_region
        %p118 = scmp.lt.s32.totalorder %s18, 0
        %s119 = scalar_select %p118, %s18, 0
        %s120 = smul.addr %s119, 4
        %s121 = scalar_lea.vmem %s1, %s120
      $region16: #{densenet_forward.123} parent=11 // pred_fallthru
        _
    $region12: #{densenet_forward.123} parent=5 // pred_fallthru
      _
    %p122 = scmp.lt.s32.totalorder %s8, 2
    // Predicated region
    $region17: #{densenet_forward.123} parent=5 // pred_check
      %p123 = pneg %p122
    $region18: #{densenet_forward.123} parent=5 // pred_check_branch
      %125 = sbr.rel (%p123) target = $region20
    $region19: #{densenet_forward.123} parent=5 // pred_region
      // Predicated region
      $region21: #{densenet_forward.123} parent=19 // pred_check
        %p126 = pneg %p40
      $region22: #{densenet_forward.123} parent=19 // pred_check_branch
        %128 = sbr.rel (%p126) target = $region24
      $region23: #{densenet_forward.123} parent=19 // pred_region
        %s129 = smul.u32 8, %s15
        %p130 = scmp.lt.s32.totalorder %s129, 15
        %s131 = scalar_select %p130, %s129, 15
        %s132 = smul.addr %s131, 9
        %s133 = smul.addr %s132, 4
        %s134 = scalar_lea.vmem %s0, %s133
        %s135 = smul.u32 8, %s15
      $region24: #{densenet_forward.123} parent=19 // pred_fallthru
        _
    $region20: #{densenet_forward.123} parent=5 // pred_fallthru
      _
    %p136 = scmp.le.s32.totalorder 1, %s8
    %p137 = scmp.lt.s32.totalorder %s8, 3
    %p138 = pnand %p136, %p137
    %p139 = pneg %p138
    // Predicated region
    $region25: #{densenet_forward.123} parent=5 // pred_check
      _
    $region26: #{densenet_forward.123} parent=5 // pred_check_branch
      %141 = sbr.rel (%p138) target = $region28
    $region27: #{densenet_forward.123} parent=5 // pred_region
      %s142 = ssub.s32 %s8, 1
      %s143 = smul.u32 8, %s17
      %p144 = scmp.lt.s32.totalorder %s143, 15
      %s145 = scalar_select %p144, %s143, 15
      %s146 = smul.addr %s145, 9
      %s147 = smul.addr %s146, 4
      %s148 = scalar_lea.vmem %s0, %s147
      %p149 = pneg %p46
      %p150 = pneg %p43
      %p151 = scmp.lt.s32.totalorder %s18, 0
      %s152 = scalar_select %p151, %s18, 0
      %s153 = smul.addr %s152, 4
      %s154 = scalar_lea.vmem %s1, %s153
      %p155 = pneg %p72
      %p156 = pneg %p69
      %p157 = pneg %p100
      %p158 = pneg %p97
      %s159 = smul.u32 8, %s17
      %p160 = scmp.lt.s32.totalorder %s159, 15
      %s161 = scalar_select %p160, %s159, 15
      %p162 = scmp.lt.s32.totalorder %s18, 0
      %s163 = scalar_select %p162, %s18, 0
      %s164 = sadd.s32 %s163, %s161
      %s165 = smul.addr %s164, 4
      %s166 = scalar_lea.vmem %s2, %s165
      %s167 = smul.u32 8, %s17
      %p168 = scmp.lt.s32.totalorder %s167, 15
      %s169 = scalar_select %p168, %s167, 15
      %s170 = smul.addr %s169, 9
      %s171 = smul.addr %s170, 4
      %s172 = scalar_lea.vmem %s0, %s171
      %s173 = smul.u32 8, %s17
      %p174 = scmp.lt.s32.totalorder %s18, 0
      %s175 = scalar_select %p174, %s18, 0
      %s176 = smul.addr %s175, 4
      %s177 = scalar_lea.vmem %s1, %s176
      %s178 = smul.u32 8, %s17
      %p179 = scmp.lt.s32.totalorder %s178, 15
      %s180 = scalar_select %p179, %s178, 15
      %p181 = scmp.lt.s32.totalorder %s18, 0
      %s182 = scalar_select %p181, %s18, 0
      %s183 = sadd.s32 %s182, %s180
      %s184 = smul.addr %s183, 4
      %s185 = scalar_lea.vmem %s2, %s184
      %s186 = smul.u32 8, %s17
      %v188 = vld [vmem:[%s172] sm:$0xff]
      %v189 = vld [vmem:[%s172 + $0x8] sm:$0xff]
      %v190 = vld [vmem:[%s172 + $0x10] sm:$0xff]
      %v191 = vld [vmem:[%s172 + $0x18] sm:$0xff]
      %v192 = vld [vmem:[%s172 + $0x20] sm:$0xf]
      %v193 = vld [vmem:[%s172 + $0x24] sm:$0xff]
      %v194 = vld [vmem:[%s172 + $0x2c] sm:$0xff]
      %v195 = vld [vmem:[%s172 + $0x34] sm:$0xff]
      %v196 = vld [vmem:[%s172 + $0x3c] sm:$0xff]
      %v197 = vld [vmem:[%s172 + $0x44] sm:$0xf]
      %v198 = vld [vmem:[%s172 + $0x48] sm:$0xff]
      %v199 = vld [vmem:[%s172 + $0x50] sm:$0xff]
      %v200 = vld [vmem:[%s172 + $0x58] sm:$0xff]
      %v201 = vld [vmem:[%s172 + $0x60] sm:$0xff]
      %v202 = vld [vmem:[%s172 + $0x68] sm:$0xf]
      %v203 = vld [vmem:[%s172 + $0x6c] sm:$0xff]
      %v204 = vld [vmem:[%s172 + $0x74] sm:$0xff]
      %v205 = vld [vmem:[%s172 + $0x7c] sm:$0xff]
      %v206 = vld [vmem:[%s172 + $0x84] sm:$0xff]
      %v207 = vld [vmem:[%s172 + $0x8c] sm:$0xf]
      %v208 = vld [vmem:[%s172 + $0x90] sm:$0xff]
      %v209 = vld [vmem:[%s172 + $0x98] sm:$0xff]
      %v210 = vld [vmem:[%s172 + $0xa0] sm:$0xff]
      %v211 = vld [vmem:[%s172 + $0xa8] sm:$0xff]
      %v212 = vld [vmem:[%s172 + $0xb0] sm:$0xf]
      %v213 = vld [vmem:[%s172 + $0xb4] sm:$0xff]
      %v214 = vld [vmem:[%s172 + $0xbc] sm:$0xff]
      %v215 = vld [vmem:[%s172 + $0xc4] sm:$0xff]
      %v216 = vld [vmem:[%s172 + $0xcc] sm:$0xff]
      %v217 = vld [vmem:[%s172 + $0xd4] sm:$0xf]
      %v218 = vld [vmem:[%s172 + $0xd8] sm:$0xff]
      %v219 = vld [vmem:[%s172 + $0xe0] sm:$0xff]
      %v220 = vld [vmem:[%s172 + $0xe8] sm:$0xff]
      %v221 = vld [vmem:[%s172 + $0xf0] sm:$0xff]
      %v222 = vld [vmem:[%s172 + $0xf8] sm:$0xf]
      %v223 = vld [vmem:[%s172 + $0xfc] sm:$0xff]
      %v224 = vld [vmem:[%s172 + $0x104] sm:$0xff]
      %v225 = vld [vmem:[%s172 + $0x10c] sm:$0xff]
      %v226 = vld [vmem:[%s172 + $0x114] sm:$0xff]
      %v227 = vld [vmem:[%s172 + $0x11c] sm:$0xf]
      %v228 = vld [vmem:[%s177] sm:$0xf]
      %v229 = vld [vmem:[%s177 + $0x4] sm:$0xf]
      %v230 = vld [vmem:[%s177 + $0x8] sm:$0xf]
      %v231 = vld [vmem:[%s177 + $0xc] sm:$0xf]
      %v232 = vld [vmem:[%s177 + $0x10] sm:$0xf]
      %v233 = vld [vmem:[%s177 + $0x14] sm:$0xf]
      %v234 = vld [vmem:[%s177 + $0x18] sm:$0xf]
      %v235 = vld [vmem:[%s177 + $0x1c] sm:$0xf]
      %v236 = vld [vmem:[%s177 + $0x20] sm:$0xf]
      %v237 = vld [vmem:[%s177 + $0x24] sm:$0xf]
      %v238 = vld [vmem:[%s177 + $0x28] sm:$0xf]
      %v239 = vld [vmem:[%s177 + $0x2c] sm:$0xf]
      %v240 = vld [vmem:[%s177 + $0x30] sm:$0xf]
      %v241 = vld [vmem:[%s177 + $0x34] sm:$0xf]
      %v242 = vld [vmem:[%s177 + $0x38] sm:$0xf]
      %v243 = vld [vmem:[%s177 + $0x3c] sm:$0xf]
      %v244 = vld [vmem:[%s177 + $0x40] sm:$0xf]
      %v245 = vld [vmem:[%s177 + $0x44] sm:$0xf]
      %v246 = vld [vmem:[%s177 + $0x48] sm:$0xf]
      %v247 = vld [vmem:[%s177 + $0x4c] sm:$0xf]
      %v248 = vld [vmem:[%s177 + $0x50] sm:$0xf]
      %v249 = vld [vmem:[%s177 + $0x54] sm:$0xf]
      %v250 = vld [vmem:[%s177 + $0x58] sm:$0xf]
      %v251 = vld [vmem:[%s177 + $0x5c] sm:$0xf]
      %v252 = vld [vmem:[%s177 + $0x60] sm:$0xf]
      %v253 = vld [vmem:[%s177 + $0x64] sm:$0xf]
      %v254 = vld [vmem:[%s177 + $0x68] sm:$0xf]
      %v255 = vld [vmem:[%s177 + $0x6c] sm:$0xf]
      %v256 = vld [vmem:[%s177 + $0x70] sm:$0xf]
      %v257 = vld [vmem:[%s177 + $0x74] sm:$0xf]
      %v258 = vld [vmem:[%s177 + $0x78] sm:$0xf]
      %v259 = vld [vmem:[%s177 + $0x7c] sm:$0xf]
      %v260 = vld [vmem:[%s177 + $0x80] sm:$0xf]
      %v261 = vld [vmem:[%s177 + $0x84] sm:$0xf]
      %v262 = vld [vmem:[%s177 + $0x88] sm:$0xf]
      %v263 = vld [vmem:[%s177 + $0x8c] sm:$0xf]
      %v264 = vld [vmem:[%s177 + $0x90] sm:$0xf]
      %v265 = vld [vmem:[%s177 + $0x94] sm:$0xf]
      %v266 = vld [vmem:[%s177 + $0x98] sm:$0xf]
      %v267 = vld [vmem:[%s177 + $0x9c] sm:$0xf]
      %v268 = vld [vmem:[%s177 + $0xa0] sm:$0xf]
      %v269 = vld [vmem:[%s177 + $0xa4] sm:$0xf]
      %v270 = vld [vmem:[%s177 + $0xa8] sm:$0xf]
      %v271 = vld [vmem:[%s177 + $0xac] sm:$0xf]
      %v272 = vld [vmem:[%s177 + $0xb0] sm:$0xf]
      %v273 = vld [vmem:[%s177 + $0xb4] sm:$0xf]
      %v274 = vld [vmem:[%s177 + $0xb8] sm:$0xf]
      %v275 = vld [vmem:[%s177 + $0xbc] sm:$0xf]
      %v276 = vld [vmem:[%s177 + $0xc0] sm:$0xf]
      %v277 = vld [vmem:[%s177 + $0xc4] sm:$0xf]
      %v278 = vld [vmem:[%s177 + $0xc8] sm:$0xf]
      %v279 = vld [vmem:[%s177 + $0xcc] sm:$0xf]
      %v280 = vld [vmem:[%s177 + $0xd0] sm:$0xf]
      %v281 = vld [vmem:[%s177 + $0xd4] sm:$0xf]
      %v282 = vld [vmem:[%s177 + $0xd8] sm:$0xf]
      %v283 = vld [vmem:[%s177 + $0xdc] sm:$0xf]
      %v284 = vld [vmem:[%s177 + $0xe0] sm:$0xf]
      %v285 = vld [vmem:[%s177 + $0xe4] sm:$0xf]
      %v286 = vld [vmem:[%s177 + $0xe8] sm:$0xf]
      %v287 = vld [vmem:[%s177 + $0xec] sm:$0xf]
      %v288 = vld [vmem:[%s177 + $0xf0] sm:$0xf]
      %v289 = vld [vmem:[%s177 + $0xf4] sm:$0xf]
      %v290 = vld [vmem:[%s177 + $0xf8] sm:$0xf]
      %v291 = vld [vmem:[%s177 + $0xfc] sm:$0xf]
      %v292 = vld [vmem:[%s177 + $0x100] sm:$0xf]
      %v293 = vld [vmem:[%s177 + $0x104] sm:$0xf]
      %v294 = vld [vmem:[%s177 + $0x108] sm:$0xf]
      %v295 = vld [vmem:[%s177 + $0x10c] sm:$0xf]
      %v296 = vld [vmem:[%s177 + $0x110] sm:$0xf]
      %v297 = vld [vmem:[%s177 + $0x114] sm:$0xf]
      %v298 = vld [vmem:[%s177 + $0x118] sm:$0xf]
      %v299 = vld [vmem:[%s177 + $0x11c] sm:$0xf]
      %v300 = vld [vmem:[%s177 + $0x120] sm:$0xf]
      %v301 = vld [vmem:[%s177 + $0x124] sm:$0xf]
      %v302 = vld [vmem:[%s177 + $0x128] sm:$0xf]
      %v303 = vld [vmem:[%s177 + $0x12c] sm:$0xf]
      %v304 = vld [vmem:[%s177 + $0x130] sm:$0xf]
      %v305 = vld [vmem:[%s177 + $0x134] sm:$0xf]
      %v306 = vld [vmem:[%s177 + $0x138] sm:$0xf]
      %v307 = vld [vmem:[%s177 + $0x13c] sm:$0xf]
      %v308 = vld [vmem:[%s177 + $0x140] sm:$0xf]
      %v309 = vld [vmem:[%s177 + $0x144] sm:$0xf]
      %v310 = vld [vmem:[%s177 + $0x148] sm:$0xf]
      %v311 = vld [vmem:[%s177 + $0x14c] sm:$0xf]
      %v312 = vld [vmem:[%s177 + $0x150] sm:$0xf]
      %v313 = vld [vmem:[%s177 + $0x154] sm:$0xf]
      %v314 = vld [vmem:[%s177 + $0x158] sm:$0xf]
      %v315 = vld [vmem:[%s177 + $0x15c] sm:$0xf]
      %v316 = vld [vmem:[%s177 + $0x160] sm:$0xf]
      %v317 = vld [vmem:[%s177 + $0x164] sm:$0xf]
      %v318 = vld [vmem:[%s177 + $0x168] sm:$0xf]
      %v319 = vld [vmem:[%s177 + $0x16c] sm:$0xf]
      %v320 = vld [vmem:[%s177 + $0x170] sm:$0xf]
      %v321 = vld [vmem:[%s177 + $0x174] sm:$0xf]
      %v322 = vld [vmem:[%s177 + $0x178] sm:$0xf]
      %v323 = vld [vmem:[%s177 + $0x17c] sm:$0xf]
      %v324 = vld [vmem:[%s177 + $0x180] sm:$0xf]
      %v325 = vld [vmem:[%s177 + $0x184] sm:$0xf]
      %v326 = vld [vmem:[%s177 + $0x188] sm:$0xf]
      %v327 = vld [vmem:[%s177 + $0x18c] sm:$0xf]
      %v328 = vld [vmem:[%s177 + $0x190] sm:$0xf]
      %v329 = vld [vmem:[%s177 + $0x194] sm:$0xf]
      %v330 = vld [vmem:[%s177 + $0x198] sm:$0xf]
      %v331 = vld [vmem:[%s177 + $0x19c] sm:$0xf]
      %v332 = vld [vmem:[%s177 + $0x1a0] sm:$0xf]
      %v333 = vld [vmem:[%s177 + $0x1a4] sm:$0xf]
      %v334 = vld [vmem:[%s177 + $0x1a8] sm:$0xf]
      %v335 = vld [vmem:[%s177 + $0x1ac] sm:$0xf]
      %v336 = vld [vmem:[%s177 + $0x1b0] sm:$0xf]
      %v337 = vld [vmem:[%s177 + $0x1b4] sm:$0xf]
      %v338 = vld [vmem:[%s177 + $0x1b8] sm:$0xf]
      %v339 = vld [vmem:[%s177 + $0x1bc] sm:$0xf]
      %v340 = vld [vmem:[%s177 + $0x1c0] sm:$0xf]
      %v341 = vld [vmem:[%s177 + $0x1c4] sm:$0xf]
      %v342 = vld [vmem:[%s177 + $0x1c8] sm:$0xf]
      %v343 = vld [vmem:[%s177 + $0x1cc] sm:$0xf]
      %v344 = vld [vmem:[%s177 + $0x1d0] sm:$0xf]
      %v345 = vld [vmem:[%s177 + $0x1d4] sm:$0xf]
      %v346 = vld [vmem:[%s177 + $0x1d8] sm:$0xf]
      %v347 = vld [vmem:[%s177 + $0x1dc] sm:$0xf]
      %v348 = vld [vmem:[%s177 + $0x1e0] sm:$0xf]
      %v349 = vld [vmem:[%s177 + $0x1e4] sm:$0xf]
      %v350 = vld [vmem:[%s177 + $0x1e8] sm:$0xf]
      %v351 = vld [vmem:[%s177 + $0x1ec] sm:$0xf]
      %v352 = vld [vmem:[%s177 + $0x1f0] sm:$0xf]
      %v353 = vld [vmem:[%s177 + $0x1f4] sm:$0xf]
      %v354 = vld [vmem:[%s177 + $0x1f8] sm:$0xf]
      %v355 = vld [vmem:[%s177 + $0x1fc] sm:$0xf]
      %v356 = vld [vmem:[%s177 + $0x200] sm:$0xf]
      %v357 = vld [vmem:[%s177 + $0x204] sm:$0xf]
      %v358 = vld [vmem:[%s177 + $0x208] sm:$0xf]
      %v359 = vld [vmem:[%s177 + $0x20c] sm:$0xf]
      %v360 = vld [vmem:[%s177 + $0x210] sm:$0xf]
      %v361 = vld [vmem:[%s177 + $0x214] sm:$0xf]
      %v362 = vld [vmem:[%s177 + $0x218] sm:$0xf]
      %v363 = vld [vmem:[%s177 + $0x21c] sm:$0xf]
      %v364 = vld [vmem:[%s177 + $0x220] sm:$0xf]
      %v365 = vld [vmem:[%s177 + $0x224] sm:$0xf]
      %v366 = vld [vmem:[%s177 + $0x228] sm:$0xf]
      %v367 = vld [vmem:[%s177 + $0x22c] sm:$0xf]
      %v368 = vld [vmem:[%s177 + $0x230] sm:$0xf]
      %v369 = vld [vmem:[%s177 + $0x234] sm:$0xf]
      %v370 = vld [vmem:[%s177 + $0x238] sm:$0xf]
      %v371 = vld [vmem:[%s177 + $0x23c] sm:$0xf]
      %v412 = vunpack.c.l.b16 %v188
      %v413 = vunpack.c.h.b16 %v188
      %v414 = vunpack.c.l.b16 %v189
      %v415 = vunpack.c.h.b16 %v189
      %v416 = vunpack.c.l.b16 %v190
      %v417 = vunpack.c.h.b16 %v190
      %v418 = vunpack.c.l.b16 %v191
      %v419 = vunpack.c.h.b16 %v191
      %v420 = vunpack.c.l.b16 %v192
      %v421 = vunpack.c.l.b16 %v193
      %v422 = vunpack.c.h.b16 %v193
      %v423 = vunpack.c.l.b16 %v194
      %v424 = vunpack.c.h.b16 %v194
      %v425 = vunpack.c.l.b16 %v195
      %v426 = vunpack.c.h.b16 %v195
      %v427 = vunpack.c.l.b16 %v196
      %v428 = vunpack.c.h.b16 %v196
      %v429 = vunpack.c.l.b16 %v197
      %v430 = vunpack.c.l.b16 %v198
      %v431 = vunpack.c.h.b16 %v198
      %v432 = vunpack.c.l.b16 %v199
      %v433 = vunpack.c.h.b16 %v199
      %v434 = vunpack.c.l.b16 %v200
      %v435 = vunpack.c.h.b16 %v200
      %v436 = vunpack.c.l.b16 %v201
      %v437 = vunpack.c.h.b16 %v201
      %v438 = vunpack.c.l.b16 %v202
      %v439 = vunpack.c.l.b16 %v203
      %v440 = vunpack.c.h.b16 %v203
      %v441 = vunpack.c.l.b16 %v204
      %v442 = vunpack.c.h.b16 %v204
      %v443 = vunpack.c.l.b16 %v205
      %v444 = vunpack.c.h.b16 %v205
      %v445 = vunpack.c.l.b16 %v206
      %v446 = vunpack.c.h.b16 %v206
      %v447 = vunpack.c.l.b16 %v207
      %v448 = vunpack.c.l.b16 %v208
      %v449 = vunpack.c.h.b16 %v208
      %v450 = vunpack.c.l.b16 %v209
      %v451 = vunpack.c.h.b16 %v209
      %v452 = vunpack.c.l.b16 %v210
      %v453 = vunpack.c.h.b16 %v210
      %v454 = vunpack.c.l.b16 %v211
      %v455 = vunpack.c.h.b16 %v211
      %v456 = vunpack.c.l.b16 %v212
      %v457 = vunpack.c.l.b16 %v213
      %v458 = vunpack.c.h.b16 %v213
      %v459 = vunpack.c.l.b16 %v214
      %v460 = vunpack.c.h.b16 %v214
      %v461 = vunpack.c.l.b16 %v215
      %v462 = vunpack.c.h.b16 %v215
      %v463 = vunpack.c.l.b16 %v216
      %v464 = vunpack.c.h.b16 %v216
      %v465 = vunpack.c.l.b16 %v217
      %v466 = vunpack.c.l.b16 %v218
      %v467 = vunpack.c.h.b16 %v218
      %v468 = vunpack.c.l.b16 %v219
      %v469 = vunpack.c.h.b16 %v219
      %v470 = vunpack.c.l.b16 %v220
      %v471 = vunpack.c.h.b16 %v220
      %v472 = vunpack.c.l.b16 %v221
      %v473 = vunpack.c.h.b16 %v221
      %v474 = vunpack.c.l.b16 %v222
      %v475 = vunpack.c.l.b16 %v223
      %v476 = vunpack.c.h.b16 %v223
      %v477 = vunpack.c.l.b16 %v224
      %v478 = vunpack.c.h.b16 %v224
      %v479 = vunpack.c.l.b16 %v225
      %v480 = vunpack.c.h.b16 %v225
      %v481 = vunpack.c.l.b16 %v226
      %v482 = vunpack.c.h.b16 %v226
      %v483 = vunpack.c.l.b16 %v227
      %v484 = vpack.c.b16 %v421, %v412
      %v485 = vpack.c.b16 %v422, %v413
      %v486 = vpack.c.b16 %v423, %v414
      %v487 = vpack.c.b16 %v424, %v415
      %v488 = vpack.c.b16 %v425, %v416
      %v489 = vpack.c.b16 %v426, %v417
      %v490 = vpack.c.b16 %v427, %v418
      %v491 = vpack.c.b16 %v428, %v419
      %v492 = vpack.c.b16 %v429, %v420
      %v493 = vpack.c.b16 %v439, %v430
      %v494 = vpack.c.b16 %v440, %v431
      %v495 = vpack.c.b16 %v441, %v432
      %v496 = vpack.c.b16 %v442, %v433
      %v497 = vpack.c.b16 %v443, %v434
      %v498 = vpack.c.b16 %v444, %v435
      %v499 = vpack.c.b16 %v445, %v436
      %v500 = vpack.c.b16 %v446, %v437
      %v501 = vpack.c.b16 %v447, %v438
      %v502 = vpack.c.b16 %v457, %v448
      %v503 = vpack.c.b16 %v458, %v449
      %v504 = vpack.c.b16 %v459, %v450
      %v505 = vpack.c.b16 %v460, %v451
      %v506 = vpack.c.b16 %v461, %v452
      %v507 = vpack.c.b16 %v462, %v453
      %v508 = vpack.c.b16 %v463, %v454
      %v509 = vpack.c.b16 %v464, %v455
      %v510 = vpack.c.b16 %v465, %v456
      %v511 = vpack.c.b16 %v475, %v466
      %v512 = vpack.c.b16 %v476, %v467
      %v513 = vpack.c.b16 %v477, %v468
      %v514 = vpack.c.b16 %v478, %v469
      %v515 = vpack.c.b16 %v479, %v470
      %v516 = vpack.c.b16 %v480, %v471
      %v517 = vpack.c.b16 %v481, %v472
      %v518 = vpack.c.b16 %v482, %v473
      %v519 = vpack.c.b16 %v483, %v474
      %v700 = vunpack.c.l.b16 %v228
      %v701 = vunpack.c.l.b16 %v229
      %v702 = vunpack.c.l.b16 %v230
      %v703 = vunpack.c.l.b16 %v231
      %v704 = vunpack.c.l.b16 %v232
      %v705 = vunpack.c.l.b16 %v233
      %v706 = vunpack.c.l.b16 %v234
      %v707 = vunpack.c.l.b16 %v235
      %v708 = vunpack.c.l.b16 %v236
      %v709 = vunpack.c.l.b16 %v237
      %v710 = vunpack.c.l.b16 %v238
      %v711 = vunpack.c.l.b16 %v239
      %v712 = vunpack.c.l.b16 %v240
      %v713 = vunpack.c.l.b16 %v241
      %v714 = vunpack.c.l.b16 %v242
      %v715 = vunpack.c.l.b16 %v243
      %v716 = vunpack.c.l.b16 %v244
      %v717 = vunpack.c.l.b16 %v245
      %v718 = vunpack.c.l.b16 %v246
      %v719 = vunpack.c.l.b16 %v247
      %v720 = vunpack.c.l.b16 %v248
      %v721 = vunpack.c.l.b16 %v249
      %v722 = vunpack.c.l.b16 %v250
      %v723 = vunpack.c.l.b16 %v251
      %v724 = vunpack.c.l.b16 %v252
      %v725 = vunpack.c.l.b16 %v253
      %v726 = vunpack.c.l.b16 %v254
      %v727 = vunpack.c.l.b16 %v255
      %v728 = vunpack.c.l.b16 %v256
      %v729 = vunpack.c.l.b16 %v257
      %v730 = vunpack.c.l.b16 %v258
      %v731 = vunpack.c.l.b16 %v259
      %v732 = vunpack.c.l.b16 %v260
      %v733 = vunpack.c.l.b16 %v261
      %v734 = vunpack.c.l.b16 %v262
      %v735 = vunpack.c.l.b16 %v263
      %v736 = vunpack.c.l.b16 %v264
      %v737 = vunpack.c.l.b16 %v265
      %v738 = vunpack.c.l.b16 %v266
      %v739 = vunpack.c.l.b16 %v267
      %v740 = vunpack.c.l.b16 %v268
      %v741 = vunpack.c.l.b16 %v269
      %v742 = vunpack.c.l.b16 %v270
      %v743 = vunpack.c.l.b16 %v271
      %v744 = vunpack.c.l.b16 %v272
      %v745 = vunpack.c.l.b16 %v273
      %v746 = vunpack.c.l.b16 %v274
      %v747 = vunpack.c.l.b16 %v275
      %v748 = vunpack.c.l.b16 %v276
      %v749 = vunpack.c.l.b16 %v277
      %v750 = vunpack.c.l.b16 %v278
      %v751 = vunpack.c.l.b16 %v279
      %v752 = vunpack.c.l.b16 %v280
      %v753 = vunpack.c.l.b16 %v281
      %v754 = vunpack.c.l.b16 %v282
      %v755 = vunpack.c.l.b16 %v283
      %v756 = vunpack.c.l.b16 %v284
      %v757 = vunpack.c.l.b16 %v285
      %v758 = vunpack.c.l.b16 %v286
      %v759 = vunpack.c.l.b16 %v287
      %v760 = vunpack.c.l.b16 %v288
      %v761 = vunpack.c.l.b16 %v289
      %v762 = vunpack.c.l.b16 %v290
      %v763 = vunpack.c.l.b16 %v291
      %v764 = vunpack.c.l.b16 %v292
      %v765 = vunpack.c.l.b16 %v293
      %v766 = vunpack.c.l.b16 %v294
      %v767 = vunpack.c.l.b16 %v295
      %v768 = vunpack.c.l.b16 %v296
      %v769 = vunpack.c.l.b16 %v297
      %v770 = vunpack.c.l.b16 %v298
      %v771 = vunpack.c.l.b16 %v299
      %v772 = vunpack.c.l.b16 %v300
      %v773 = vunpack.c.l.b16 %v301
      %v774 = vunpack.c.l.b16 %v302
      %v775 = vunpack.c.l.b16 %v303
      %v776 = vunpack.c.l.b16 %v304
      %v777 = vunpack.c.l.b16 %v305
      %v778 = vunpack.c.l.b16 %v306
      %v779 = vunpack.c.l.b16 %v307
      %v780 = vunpack.c.l.b16 %v308
      %v781 = vunpack.c.l.b16 %v309
      %v782 = vunpack.c.l.b16 %v310
      %v783 = vunpack.c.l.b16 %v311
      %v784 = vunpack.c.l.b16 %v312
      %v785 = vunpack.c.l.b16 %v313
      %v786 = vunpack.c.l.b16 %v314
      %v787 = vunpack.c.l.b16 %v315
      %v788 = vunpack.c.l.b16 %v316
      %v789 = vunpack.c.l.b16 %v317
      %v790 = vunpack.c.l.b16 %v318
      %v791 = vunpack.c.l.b16 %v319
      %v792 = vunpack.c.l.b16 %v320
      %v793 = vunpack.c.l.b16 %v321
      %v794 = vunpack.c.l.b16 %v322
      %v795 = vunpack.c.l.b16 %v323
      %v796 = vunpack.c.l.b16 %v324
      %v797 = vunpack.c.l.b16 %v325
      %v798 = vunpack.c.l.b16 %v326
      %v799 = vunpack.c.l.b16 %v327
      %v800 = vunpack.c.l.b16 %v328
      %v801 = vunpack.c.l.b16 %v329
      %v802 = vunpack.c.l.b16 %v330
      %v803 = vunpack.c.l.b16 %v331
      %v804 = vunpack.c.l.b16 %v332
      %v805 = vunpack.c.l.b16 %v333
      %v806 = vunpack.c.l.b16 %v334
      %v807 = vunpack.c.l.b16 %v335
      %v808 = vunpack.c.l.b16 %v336
      %v809 = vunpack.c.l.b16 %v337
      %v810 = vunpack.c.l.b16 %v338
      %v811 = vunpack.c.l.b16 %v339
      %v812 = vunpack.c.l.b16 %v340
      %v813 = vunpack.c.l.b16 %v341
      %v814 = vunpack.c.l.b16 %v342
      %v815 = vunpack.c.l.b16 %v343
      %v816 = vunpack.c.l.b16 %v344
      %v817 = vunpack.c.l.b16 %v345
      %v818 = vunpack.c.l.b16 %v346
      %v819 = vunpack.c.l.b16 %v347
      %v820 = vunpack.c.l.b16 %v348
      %v821 = vunpack.c.l.b16 %v349
      %v822 = vunpack.c.l.b16 %v350
      %v823 = vunpack.c.l.b16 %v351
      %v824 = vunpack.c.l.b16 %v352
      %v825 = vunpack.c.l.b16 %v353
      %v826 = vunpack.c.l.b16 %v354
      %v827 = vunpack.c.l.b16 %v355
      %v828 = vunpack.c.l.b16 %v356
      %v829 = vunpack.c.l.b16 %v357
      %v830 = vunpack.c.l.b16 %v358
      %v831 = vunpack.c.l.b16 %v359
      %v832 = vunpack.c.l.b16 %v360
      %v833 = vunpack.c.l.b16 %v361
      %v834 = vunpack.c.l.b16 %v362
      %v835 = vunpack.c.l.b16 %v363
      %v836 = vunpack.c.l.b16 %v364
      %v837 = vunpack.c.l.b16 %v365
      %v838 = vunpack.c.l.b16 %v366
      %v839 = vunpack.c.l.b16 %v367
      %v840 = vunpack.c.l.b16 %v368
      %v841 = vunpack.c.l.b16 %v369
      %v842 = vunpack.c.l.b16 %v370
      %v843 = vunpack.c.l.b16 %v371
      %v844 = vpack.c.b16 %v701, %v700
      %v845 = vpack.c.b16 %v703, %v702
      %v846 = vpack.c.b16 %v705, %v704
      %v847 = vpack.c.b16 %v707, %v706
      %v848 = vpack.c.b16 %v709, %v708
      %v849 = vpack.c.b16 %v711, %v710
      %v850 = vpack.c.b16 %v713, %v712
      %v851 = vpack.c.b16 %v715, %v714
      %v852 = vpack.c.b16 %v717, %v716
      %v853 = vpack.c.b16 %v719, %v718
      %v854 = vpack.c.b16 %v721, %v720
      %v855 = vpack.c.b16 %v723, %v722
      %v856 = vpack.c.b16 %v725, %v724
      %v857 = vpack.c.b16 %v727, %v726
      %v858 = vpack.c.b16 %v729, %v728
      %v859 = vpack.c.b16 %v731, %v730
      %v860 = vpack.c.b16 %v733, %v732
      %v861 = vpack.c.b16 %v735, %v734
      %v862 = vpack.c.b16 %v737, %v736
      %v863 = vpack.c.b16 %v739, %v738
      %v864 = vpack.c.b16 %v741, %v740
      %v865 = vpack.c.b16 %v743, %v742
      %v866 = vpack.c.b16 %v745, %v744
      %v867 = vpack.c.b16 %v747, %v746
      %v868 = vpack.c.b16 %v749, %v748
      %v869 = vpack.c.b16 %v751, %v750
      %v870 = vpack.c.b16 %v753, %v752
      %v871 = vpack.c.b16 %v755, %v754
      %v872 = vpack.c.b16 %v757, %v756
      %v873 = vpack.c.b16 %v759, %v758
      %v874 = vpack.c.b16 %v761, %v760
      %v875 = vpack.c.b16 %v763, %v762
      %v876 = vpack.c.b16 %v765, %v764
      %v877 = vpack.c.b16 %v767, %v766
      %v878 = vpack.c.b16 %v769, %v768
      %v879 = vpack.c.b16 %v771, %v770
      %v880 = vpack.c.b16 %v773, %v772
      %v881 = vpack.c.b16 %v775, %v774
      %v882 = vpack.c.b16 %v777, %v776
      %v883 = vpack.c.b16 %v779, %v778
      %v884 = vpack.c.b16 %v781, %v780
      %v885 = vpack.c.b16 %v783, %v782
      %v886 = vpack.c.b16 %v785, %v784
      %v887 = vpack.c.b16 %v787, %v786
      %v888 = vpack.c.b16 %v789, %v788
      %v889 = vpack.c.b16 %v791, %v790
      %v890 = vpack.c.b16 %v793, %v792
      %v891 = vpack.c.b16 %v795, %v794
      %v892 = vpack.c.b16 %v797, %v796
      %v893 = vpack.c.b16 %v799, %v798
      %v894 = vpack.c.b16 %v801, %v800
      %v895 = vpack.c.b16 %v803, %v802
      %v896 = vpack.c.b16 %v805, %v804
      %v897 = vpack.c.b16 %v807, %v806
      %v898 = vpack.c.b16 %v809, %v808
      %v899 = vpack.c.b16 %v811, %v810
      %v900 = vpack.c.b16 %v813, %v812
      %v901 = vpack.c.b16 %v815, %v814
      %v902 = vpack.c.b16 %v817, %v816
      %v903 = vpack.c.b16 %v819, %v818
      %v904 = vpack.c.b16 %v821, %v820
      %v905 = vpack.c.b16 %v823, %v822
      %v906 = vpack.c.b16 %v825, %v824
      %v907 = vpack.c.b16 %v827, %v826
      %v908 = vpack.c.b16 %v829, %v828
      %v909 = vpack.c.b16 %v831, %v830
      %v910 = vpack.c.b16 %v833, %v832
      %v911 = vpack.c.b16 %v835, %v834
      %v912 = vpack.c.b16 %v837, %v836
      %v913 = vpack.c.b16 %v839, %v838
      %v914 = vpack.c.b16 %v841, %v840
      %v915 = vpack.c.b16 %v843, %v842
      %988 = vmatprep.subr.bf16.mxu0 0
      %989 = vmatpush1.bf16.msra.mxu0 %v844
      %990 = vmatprep.subr.bf16.mxu0 0
      %991 = vmatpush1.bf16.msra.mxu0 %v845
      %992 = vmatprep.subr.bf16.mxu0 0
      %993 = vmatpush1.bf16.msra.mxu0 %v846
      %994 = vmatprep.subr.bf16.mxu0 0
      %995 = vmatpush1.bf16.msra.mxu0 %v847
      %996 = vmatprep.subr.bf16.mxu0 0
      %997 = vmatpush1.bf16.msra.mxu0 %v848
      %998 = vmatprep.subr.bf16.mxu0 0
      %999 = vmatpush1.bf16.msra.mxu0 %v849
      %1000 = vmatprep.subr.bf16.mxu0 0
      %1001 = vmatpush1.bf16.msra.mxu0 %v850
      %1002 = vmatprep.subr.bf16.mxu0 0
      %1003 = vmatpush1.bf16.msra.mxu0 %v851
      %1004 = vmatprep.subr.bf16.mxu0 0
      %1005 = vmatpush1.bf16.msra.mxu0 %v852
      %1006 = vmatprep.subr.bf16.mxu0 0
      %1007 = vmatpush1.bf16.msra.mxu0 %v853
      %1008 = vmatprep.subr.bf16.mxu0 0
      %1009 = vmatpush1.bf16.msra.mxu0 %v854
      %1010 = vmatprep.subr.bf16.mxu0 0
      %1011 = vmatpush1.bf16.msra.mxu0 %v855
      %1012 = vmatprep.subr.bf16.mxu0 0
      %1013 = vmatpush1.bf16.msra.mxu0 %v856
      %1014 = vmatprep.subr.bf16.mxu0 0
      %1015 = vmatpush1.bf16.msra.mxu0 %v857
      %1016 = vmatprep.subr.bf16.mxu0 0
      %1017 = vmatpush1.bf16.msra.mxu0 %v858
      %1018 = vmatprep.subr.bf16.mxu0 0
      %1019 = vmatpush1.bf16.msra.mxu0 %v859
      %1020 = vmatprep.mubr.bf16.mxu0 %v485
      %1021 = vmatmul.mubr.bf16.gmra.mrb[0].mxu0 %v484
      %v1022 = vpop.f32.mrb[0].mxu0
      %v1023 = vadd.f32 0.0, %v1022
      %v1024 = vpop.f32.mrb[0].mxu0
      %v1025 = vpop.f32.mrb[0].mxu0
      %v1026 = vadd.f32 0.0, %v1025
      %v1027 = vpop.f32.mrb[0].mxu0
      %1028 = vmatprep.mubr.bf16.mxu0 %v494
      %1029 = vmatmul.mubr.bf16.gmra.mrb[0].mxu0 %v493
      %v1030 = vpop.f32.mrb[0].mxu0
      %v1031 = vadd.f32 0.0, %v1030
      %v1032 = vpop.f32.mrb[0].mxu0
      %v1033 = vpop.f32.mrb[0].mxu0
      %v1034 = vadd.f32 0.0, %v1033
      %v1035 = vpop.f32.mrb[0].mxu0
      %1036 = vmatprep.mubr.bf16.mxu0 %v503
      %1037 = vmatmul.mubr.bf16.gmra.mrb[0].mxu0 %v502
      %v1038 = vpop.f32.mrb[0].mxu0
      %v1039 = vadd.f32 0.0, %v1038
      %v1040 = vpop.f32.mrb[0].mxu0
      %v1041 = vpop.f32.mrb[0].mxu0
      %v1042 = vadd.f32 0.0, %v1041
      %v1043 = vpop.f32.mrb[0].mxu0
      %1044 = vmatprep.mubr.bf16.mxu0 %v512
      %1045 = vmatmul.mubr.bf16.gmra.mrb[0].mxu0 %v511
      %v1046 = vpop.f32.mrb[0].mxu0
      %v1047 = vadd.f32 0.0, %v1046
      %v1048 = vpop.f32.mrb[0].mxu0
      %v1049 = vpop.f32.mrb[0].mxu0
      %v1050 = vadd.f32 0.0, %v1049
      %v1051 = vpop.f32.mrb[0].mxu0
      %1052 = vdwg.mxu0
      %1053 = vmatprep.subr.bf16.mxu0 0
      %1054 = vmatpush1.bf16.msra.mxu0 %v860
      %1055 = vmatprep.subr.bf16.mxu0 0
      %1056 = vmatpush1.bf16.msra.mxu0 %v861
      %1057 = vmatprep.subr.bf16.mxu0 0
      %1058 = vmatpush1.bf16.msra.mxu0 %v862
      %1059 = vmatprep.subr.bf16.mxu0 0
      %1060 = vmatpush1.bf16.msra.mxu0 %v863
      %1061 = vmatprep.subr.bf16.mxu0 0
      %1062 = vmatpush1.bf16.msra.mxu0 %v864
      %1063 = vmatprep.subr.bf16.mxu0 0
      %1064 = vmatpush1.bf16.msra.mxu0 %v865
      %1065 = vmatprep.subr.bf16.mxu0 0
      %1066 = vmatpush1.bf16.msra.mxu0 %v866
      %1067 = vmatprep.subr.bf16.mxu0 0
      %1068 = vmatpush1.bf16.msra.mxu0 %v867
      %1069 = vmatprep.subr.bf16.mxu0 0
      %1070 = vmatpush1.bf16.msra.mxu0 %v868
      %1071 = vmatprep.subr.bf16.mxu0 0
      %1072 = vmatpush1.bf16.msra.mxu0 %v869
      %1073 = vmatprep.subr.bf16.mxu0 0
      %1074 = vmatpush1.bf16.msra.mxu0 %v870
      %1075 = vmatprep.subr.bf16.mxu0 0
      %1076 = vmatpush1.bf16.msra.mxu0 %v871
      %1077 = vmatprep.subr.bf16.mxu0 0
      %1078 = vmatpush1.bf16.msra.mxu0 %v872
      %1079 = vmatprep.subr.bf16.mxu0 0
      %1080 = vmatpush1.bf16.msra.mxu0 %v873
      %1081 = vmatprep.subr.bf16.mxu0 0
      %1082 = vmatpush1.bf16.msra.mxu0 %v874
      %1083 = vmatprep.subr.bf16.mxu0 0
      %1084 = vmatpush1.bf16.msra.mxu0 %v875
      %1085 = vmatprep.mubr.bf16.mxu0 %v487
      %1086 = vmatmul.mubr.bf16.gmra.mrb[0].mxu0 %v486
      %v1087 = vpop.f32.mrb[0].mxu0
      %v1088 = vadd.f32 %v1023, %v1087
      %v1089 = vpop.f32.mrb[0].mxu0
      %v1090 = vpop.f32.mrb[0].mxu0
      %v1091 = vadd.f32 %v1026, %v1090
      %v1092 = vpop.f32.mrb[0].mxu0
      %1093 = vmatprep.mubr.bf16.mxu0 %v496
      %1094 = vmatmul.mubr.bf16.gmra.mrb[0].mxu0 %v495
      %v1095 = vpop.f32.mrb[0].mxu0
      %v1096 = vadd.f32 %v1031, %v1095
      %v1097 = vpop.f32.mrb[0].mxu0
      %v1098 = vpop.f32.mrb[0].mxu0
      %v1099 = vadd.f32 %v1034, %v1098
      %v1100 = vpop.f32.mrb[0].mxu0
      %1101 = vmatprep.mubr.bf16.mxu0 %v505
      %1102 = vmatmul.mubr.bf16.gmra.mrb[0].mxu0 %v504
      %v1103 = vpop.f32.mrb[0].mxu0
      %v1104 = vadd.f32 %v1039, %v1103
      %v1105 = vpop.f32.mrb[0].mxu0
      %v1106 = vpop.f32.mrb[0].mxu0
      %v1107 = vadd.f32 %v1042, %v1106
      %v1108 = vpop.f32.mrb[0].mxu0
      %1109 = vmatprep.mubr.bf16.mxu0 %v514
      %1110 = vmatmul.mubr.bf16.gmra.mrb[0].mxu0 %v513
      %v1111 = vpop.f32.mrb[0].mxu0
      %v1112 = vadd.f32 %v1047, %v1111
      %v1113 = vpop.f32.mrb[0].mxu0
      %v1114 = vpop.f32.mrb[0].mxu0
      %v1115 = vadd.f32 %v1050, %v1114
      %v1116 = vpop.f32.mrb[0].mxu0
      %1117 = vdwg.mxu0
      %1118 = vmatprep.subr.bf16.mxu0 0
      %1119 = vmatpush1.bf16.msra.mxu0 %v876
      %1120 = vmatprep.subr.bf16.mxu0 0
      %1121 = vmatpush1.bf16.msra.mxu0 %v877
      %1122 = vmatprep.subr.bf16.mxu0 0
      %1123 = vmatpush1.bf16.msra.mxu0 %v878
      %1124 = vmatprep.subr.bf16.mxu0 0
      %1125 = vmatpush1.bf16.msra.mxu0 %v879
      %1126 = vmatprep.subr.bf16.mxu0 0
      %1127 = vmatpush1.bf16.msra.mxu0 %v880
      %1128 = vmatprep.subr.bf16.mxu0 0
      %1129 = vmatpush1.bf16.msra.mxu0 %v881
      %1130 = vmatprep.subr.bf16.mxu0 0
      %1131 = vmatpush1.bf16.msra.mxu0 %v882
      %1132 = vmatprep.subr.bf16.mxu0 0
      %1133 = vmatpush1.bf16.msra.mxu0 %v883
      %1134 = vmatprep.subr.bf16.mxu0 0
      %1135 = vmatpush1.bf16.msra.mxu0 %v884
      %1136 = vmatprep.subr.bf16.mxu0 0
      %1137 = vmatpush1.bf16.msra.mxu0 %v885
      %1138 = vmatprep.subr.bf16.mxu0 0
      %1139 = vmatpush1.bf16.msra.mxu0 %v886
      %1140 = vmatprep.subr.bf16.mxu0 0
      %1141 = vmatpush1.bf16.msra.mxu0 %v887
      %1142 = vmatprep.subr.bf16.mxu0 0
      %1143 = vmatpush1.bf16.msra.mxu0 %v888
      %1144 = vmatprep.subr.bf16.mxu0 0
      %1145 = vmatpush1.bf16.msra.mxu0 %v889
      %1146 = vmatprep.subr.bf16.mxu0 0
      %1147 = vmatpush1.bf16.msra.mxu0 %v890
      %1148 = vmatprep.subr.bf16.mxu0 0
      %1149 = vmatpush1.bf16.msra.mxu0 %v891
      %1150 = vmatprep.mubr.bf16.mxu0 %v489
      %1151 = vmatmul.mubr.bf16.gmra.mrb[0].mxu0 %v488
      %v1152 = vpop.f32.mrb[0].mxu0
      %v1153 = vadd.f32 %v1088, %v1152
      %v1154 = vpop.f32.mrb[0].mxu0
      %v1155 = vpop.f32.mrb[0].mxu0
      %v1156 = vadd.f32 %v1091, %v1155
      %v1157 = vpop.f32.mrb[0].mxu0
      %1158 = vmatprep.mubr.bf16.mxu0 %v498
      %1159 = vmatmul.mubr.bf16.gmra.mrb[0].mxu0 %v497
      %v1160 = vpop.f32.mrb[0].mxu0
      %v1161 = vadd.f32 %v1096, %v1160
      %v1162 = vpop.f32.mrb[0].mxu0
      %v1163 = vpop.f32.mrb[0].mxu0
      %v1164 = vadd.f32 %v1099, %v1163
      %v1165 = vpop.f32.mrb[0].mxu0
      %1166 = vmatprep.mubr.bf16.mxu0 %v507
      %1167 = vmatmul.mubr.bf16.gmra.mrb[0].mxu0 %v506
      %v1168 = vpop.f32.mrb[0].mxu0
      %v1169 = vadd.f32 %v1104, %v1168
      %v1170 = vpop.f32.mrb[0].mxu0
      %v1171 = vpop.f32.mrb[0].mxu0
      %v1172 = vadd.f32 %v1107, %v1171
      %v1173 = vpop.f32.mrb[0].mxu0
      %1174 = vmatprep.mubr.bf16.mxu0 %v516
      %1175 = vmatmul.mubr.bf16.gmra.mrb[0].mxu0 %v515
      %v1176 = vpop.f32.mrb[0].mxu0
      %v1177 = vadd.f32 %v1112, %v1176
      %v1178 = vpop.f32.mrb[0].mxu0
      %v1179 = vpop.f32.mrb[0].mxu0
      %v1180 = vadd.f32 %v1115, %v1179
      %v1181 = vpop.f32.mrb[0].mxu0
      %1182 = vdwg.mxu0
      %1183 = vmatprep.subr.bf16.mxu0 0
      %1184 = vmatpush1.bf16.msra.mxu0 %v892
      %1185 = vmatprep.subr.bf16.mxu0 0
      %1186 = vmatpush1.bf16.msra.mxu0 %v893
      %1187 = vmatprep.subr.bf16.mxu0 0
      %1188 = vmatpush1.bf16.msra.mxu0 %v894
      %1189 = vmatprep.subr.bf16.mxu0 0
      %1190 = vmatpush1.bf16.msra.mxu0 %v895
      %1191 = vmatprep.subr.bf16.mxu0 0
      %1192 = vmatpush1.bf16.msra.mxu0 %v896
      %1193 = vmatprep.subr.bf16.mxu0 0
      %1194 = vmatpush1.bf16.msra.mxu0 %v897
      %1195 = vmatprep.subr.bf16.mxu0 0
      %1196 = vmatpush1.bf16.msra.mxu0 %v898
      %1197 = vmatprep.subr.bf16.mxu0 0
      %1198 = vmatpush1.bf16.msra.mxu0 %v899
      %1199 = vmatprep.subr.bf16.mxu0 0
      %1200 = vmatpush1.bf16.msra.mxu0 %v900
      %1201 = vmatprep.subr.bf16.mxu0 0
      %1202 = vmatpush1.bf16.msra.mxu0 %v901
      %1203 = vmatprep.subr.bf16.mxu0 0
      %1204 = vmatpush1.bf16.msra.mxu0 %v902
      %1205 = vmatprep.subr.bf16.mxu0 0
      %1206 = vmatpush1.bf16.msra.mxu0 %v903
      %1207 = vmatprep.subr.bf16.mxu0 0
      %1208 = vmatpush1.bf16.msra.mxu0 %v904
      %1209 = vmatprep.subr.bf16.mxu0 0
      %1210 = vmatpush1.bf16.msra.mxu0 %v905
      %1211 = vmatprep.subr.bf16.mxu0 0
      %1212 = vmatpush1.bf16.msra.mxu0 %v906
      %1213 = vmatprep.subr.bf16.mxu0 0
      %1214 = vmatpush1.bf16.msra.mxu0 %v907
      %1215 = vmatprep.mubr.bf16.mxu0 %v491
      %1216 = vmatmul.mubr.bf16.gmra.mrb[0].mxu0 %v490
      %v1217 = vpop.f32.mrb[0].mxu0
      %v1218 = vadd.f32 %v1153, %v1217
      %v1219 = vpop.f32.mrb[0].mxu0
      %v1220 = vpop.f32.mrb[0].mxu0
      %v1221 = vadd.f32 %v1156, %v1220
      %v1222 = vpop.f32.mrb[0].mxu0
      %1223 = vmatprep.mubr.bf16.mxu0 %v500
      %1224 = vmatmul.mubr.bf16.gmra.mrb[0].mxu0 %v499
      %v1225 = vpop.f32.mrb[0].mxu0
      %v1226 = vadd.f32 %v1161, %v1225
      %v1227 = vpop.f32.mrb[0].mxu0
      %v1228 = vpop.f32.mrb[0].mxu0
      %v1229 = vadd.f32 %v1164, %v1228
      %v1230 = vpop.f32.mrb[0].mxu0
      %1231 = vmatprep.mubr.bf16.mxu0 %v509
      %1232 = vmatmul.mubr.bf16.gmra.mrb[0].mxu0 %v508
      %v1233 = vpop.f32.mrb[0].mxu0
      %v1234 = vadd.f32 %v1169, %v1233
      %v1235 = vpop.f32.mrb[0].mxu0
      %v1236 = vpop.f32.mrb[0].mxu0
      %v1237 = vadd.f32 %v1172, %v1236
      %v1238 = vpop.f32.mrb[0].mxu0
      %1239 = vmatprep.mubr.bf16.mxu0 %v518
      %1240 = vmatmul.mubr.bf16.gmra.mrb[0].mxu0 %v517
      %v1241 = vpop.f32.mrb[0].mxu0
      %v1242 = vadd.f32 %v1177, %v1241
      %v1243 = vpop.f32.mrb[0].mxu0
      %v1244 = vpop.f32.mrb[0].mxu0
      %v1245 = vadd.f32 %v1180, %v1244
      %v1246 = vpop.f32.mrb[0].mxu0
      %1247 = vdwg.mxu0
      %1248 = vmatprep.subr.bf16.mxu0 0
      %1249 = vmatpush1.bf16.msra.mxu0 %v908
      %1250 = vmatprep.subr.bf16.mxu0 0
      %1251 = vmatpush1.bf16.msra.mxu0 %v909
      %1252 = vmatprep.subr.bf16.mxu0 0
      %1253 = vmatpush1.bf16.msra.mxu0 %v910
      %1254 = vmatprep.subr.bf16.mxu0 0
      %1255 = vmatpush1.bf16.msra.mxu0 %v911
      %1256 = vmatprep.subr.bf16.mxu0 0
      %1257 = vmatpush1.bf16.msra.mxu0 %v912
      %1258 = vmatprep.subr.bf16.mxu0 0
      %1259 = vmatpush1.bf16.msra.mxu0 %v913
      %1260 = vmatprep.subr.bf16.mxu0 0
      %1261 = vmatpush1.bf16.msra.mxu0 %v914
      %1262 = vmatprep.subr.bf16.mxu0 0
      %1263 = vmatpush1.bf16.msra.mxu0 %v915
      %1264 = vmatprep.subr.bf16.mxu0 0
      %1265 = vmatpush1.bf16.msra.mxu0 0
      %1266 = vmatprep.subr.bf16.mxu0 0
      %1267 = vmatpush1.bf16.msra.mxu0 0
      %1268 = vmatprep.subr.bf16.mxu0 0
      %1269 = vmatpush1.bf16.msra.mxu0 0
      %1270 = vmatprep.subr.bf16.mxu0 0
      %1271 = vmatpush1.bf16.msra.mxu0 0
      %1272 = vmatprep.subr.bf16.mxu0 0
      %1273 = vmatpush1.bf16.msra.mxu0 0
      %1274 = vmatprep.subr.bf16.mxu0 0
      %1275 = vmatpush1.bf16.msra.mxu0 0
      %1276 = vmatprep.subr.bf16.mxu0 0
      %1277 = vmatpush1.bf16.msra.mxu0 0
      %1278 = vmatprep.subr.bf16.mxu0 0
      %1279 = vmatpush1.bf16.msra.mxu0 0
      %1280 = vmatprep.mubr.bf16.mxu0 0
      %1281 = vmatmul.mubr.bf16.gmra.mrb[0].mxu0 %v492
      %v1282 = vpop.f32.mrb[0].mxu0
      %v1283 = vadd.f32 %v1218, %v1282
      %v1284 = vpop.f32.mrb[0].mxu0
      %v1285 = vpop.f32.mrb[0].mxu0
      %v1286 = vadd.f32 %v1221, %v1285
      %v1287 = vpop.f32.mrb[0].mxu0
      %1288 = vmatprep.mubr.bf16.mxu0 0
      %1289 = vmatmul.mubr.bf16.gmra.mrb[0].mxu0 %v501
      %v1290 = vpop.f32.mrb[0].mxu0
      %v1291 = vadd.f32 %v1226, %v1290
      %v1292 = vpop.f32.mrb[0].mxu0
      %v1293 = vpop.f32.mrb[0].mxu0
      %v1294 = vadd.f32 %v1229, %v1293
      %v1295 = vpop.f32.mrb[0].mxu0
      %1296 = vmatprep.mubr.bf16.mxu0 0
      %1297 = vmatmul.mubr.bf16.gmra.mrb[0].mxu0 %v510
      %v1298 = vpop.f32.mrb[0].mxu0
      %v1299 = vadd.f32 %v1234, %v1298
      %v1300 = vpop.f32.mrb[0].mxu0
      %v1301 = vpop.f32.mrb[0].mxu0
      %v1302 = vadd.f32 %v1237, %v1301
      %v1303 = vpop.f32.mrb[0].mxu0
      %1304 = vmatprep.mubr.bf16.mxu0 0
      %1305 = vmatmul.mubr.bf16.gmra.mrb[0].mxu0 %v519
      %v1306 = vpop.f32.mrb[0].mxu0
      %v1307 = vadd.f32 %v1242, %v1306
      %v1308 = vpop.f32.mrb[0].mxu0
      %v1309 = vpop.f32.mrb[0].mxu0
      %v1310 = vadd.f32 %v1245, %v1309
      %v1311 = vpop.f32.mrb[0].mxu0
      %1312 = vdwg.mxu0
      %v1313 = vpack.c.bf16 %v1286, %v1283
      %v1314 = vpack.c.bf16 %v1294, %v1291
      %v1315 = vpack.c.bf16 %v1302, %v1299
      %v1316 = vpack.c.bf16 %v1310, %v1307
      %v1321 = vunpack.c.l.b16 %v1313
      %v1322 = vunpack.c.h.b16 %v1313
      %v1323 = vunpack.c.l.b16 %v1314
      %v1324 = vunpack.c.h.b16 %v1314
      %v1325 = vunpack.c.l.b16 %v1315
      %v1326 = vunpack.c.h.b16 %v1315
      %v1327 = vunpack.c.l.b16 %v1316
      %v1328 = vunpack.c.h.b16 %v1316
      %v1329 = vpack.c.b16 %v1321, %v1321
      %v1330 = vpack.c.b16 %v1322, %v1322
      %v1331 = vpack.c.b16 %v1323, %v1323
      %v1332 = vpack.c.b16 %v1324, %v1324
      %v1333 = vpack.c.b16 %v1325, %v1325
      %v1334 = vpack.c.b16 %v1326, %v1326
      %v1335 = vpack.c.b16 %v1327, %v1327
      %v1336 = vpack.c.b16 %v1328, %v1328
      %1345 = vst [vmem:[%s185] sm:$0xf] %v1329
      %1346 = vst [vmem:[%s185 + $0x4] sm:$0xf] %v1330
      %1347 = vst [vmem:[%s185 + $0x8] sm:$0xf] %v1331
      %1348 = vst [vmem:[%s185 + $0xc] sm:$0xf] %v1332
      %1349 = vst [vmem:[%s185 + $0x10] sm:$0xf] %v1333
      %1350 = vst [vmem:[%s185 + $0x14] sm:$0xf] %v1334
      %1351 = vst [vmem:[%s185 + $0x18] sm:$0xf] %v1335
      %1352 = vst [vmem:[%s185 + $0x1c] sm:$0xf] %v1336
      %s1353 = smul.u32 8, %s17
      %p1354 = scmp.lt.s32.totalorder %s1353, 15
      %s1355 = scalar_select %p1354, %s1353, 15
      %p1356 = scmp.lt.s32.totalorder %s18, 0
      %s1357 = scalar_select %p1356, %s18, 0
      %s1358 = sadd.s32 %s1357, %s1355
      %s1359 = smul.addr %s1358, 4
      %s1360 = scalar_lea.vmem %s2, %s1359
      // Predicated region
      $region29: #{densenet_forward.123} parent=27 // pred_check
        %p1361 = pneg %p97
      $region30: #{densenet_forward.123} parent=27 // pred_check_branch
        %1363 = sbr.rel (%p1361) target = $region32
      $region31: #{densenet_forward.123} parent=27 // pred_region
        %s1364 = smul.u32 8, %s17
      $region32: #{densenet_forward.123} parent=27 // pred_fallthru
        _
    $region28: #{densenet_forward.123} parent=5 // pred_fallthru
      _
    %p1365 = scmp.le.s32.totalorder 2, %s8
    // Predicated region
    $region33: #{densenet_forward.123} parent=5 // pred_check
      %p1366 = pneg %p1365
    $region34: #{densenet_forward.123} parent=5 // pred_check_branch
      %1368 = sbr.rel (%p1366) target = $region36
    $region35: #{densenet_forward.123} parent=5 // pred_region
      %s1369 = ssub.s32 %s8, 2
      // Predicated region
      $region37: #{densenet_forward.123} parent=35 // pred_check
        %p1370 = pneg %p103
      $region38: #{densenet_forward.123} parent=35 // pred_check_branch
        %1372 = sbr.rel (%p1370) target = $region40
      $region39: #{densenet_forward.123} parent=35 // pred_region
        %s1373 = smul.u32 8, %s19
        %p1374 = scmp.lt.s32.totalorder %s1373, 15
        %s1375 = scalar_select %p1374, %s1373, 15
        %p1376 = scmp.lt.s32.totalorder %s20, 0
        %s1377 = scalar_select %p1376, %s20, 0
        %s1378 = sadd.s32 %s1377, %s1375
        %s1379 = smul.addr %s1378, 4
        %s1380 = scalar_lea.vmem %s2, %s1379
      $region40: #{densenet_forward.123} parent=35 // pred_fallthru
        _
    $region36: #{densenet_forward.123} parent=5 // pred_fallthru
      _
  $region6: #{densenet_forward.123} parent=0 // loop_footer
    %s12 = sadd.s32 1, %s8
  $region7: #{densenet_forward.123} parent=0 // loop_footer_branch
    %7 = sbr.rel target = $region3
  $region8: #{densenet_forward.123} parent=0 // loop_exit
    _

// kernel: densenet_forward.134
$region0: #{densenet_forward.134}
  #allocation0 [shape = 'u32[]', space=smem, size = 0x4, offset = 0x4, fixed_abs, tag = 'smem constant byte address 0x4 - core index']
  #allocation1 [shape = 'u32[144,128]{1,0:T(1,128)}', space=vmem, size = 0x12000, scoped, tag = 'internal scratch']
  %s0 = inlined_call_operand.vmem [shape: bf16[128,256], index: 0, kind: input, shape index: {}]
  %s1 = inlined_call_operand.vmem [shape: f32[1,256], index: 1, kind: input, shape index: {}]
  %s2 = inlined_call_operand.vmem [shape: f32[1,256], index: 2, kind: input, shape index: {}]
  %s3 = inlined_call_operand.vmem [shape: bf16[256,128], index: 3, kind: input, shape index: {}]
  %s4 = inlined_call_operand.vmem [shape: bf16[128,128], index: 4, kind: output, shape index: {}]
  %s5 = sld [smem:[#allocation0]]
  $region49: #{densenet_forward.134} parent=0
    _
  %s7 = ssub.s32 1, %s5
  %s8 = scalar_select 0, %s7, %s5
  loop: start=0, step=1, limit=4
  $region2: #{densenet_forward.134} parent=0 // loop_pre_header
    _
  $region3: #{densenet_forward.134} parent=0 // loop_header
    %s10 = sphi 0, %s14
    %p11 = scmp.ge.s32.totalorder %s10, 4
    %s17 = sphi 0, %s29
    %s18 = sphi 0, %s25
    %s19 = sphi 0, %s17
    %s20 = sphi 0, %s18
    %s21 = sphi 0, %s19
    %s22 = sphi 0, %s20
    %s32 = sphi 0, %s34
    %s35 = sphi 0, %s32
    %s36 = sphi 0, %s35
    %s52 = sphi 0, %s36
    %s56 = sphi 0, %s56
    %s58 = sphi 0, %s56
    %s59 = sphi 0, %s58
    %s73 = sphi 0, %s59
    %s77 = sphi 0, %s77
    %s79 = sphi 0, %s77
    %s80 = sphi 0, %s79
    %s94 = sphi 0, %s80
    %s100 = sphi 0, %s102
    %s103 = sphi 0, %s100
    %s104 = sphi 0, %s103
    %s120 = sphi 0, %s104
    %s128 = sphi 0, %s130
    %s131 = sphi 0, %s128
    %s132 = sphi 0, %s131
    %s148 = sphi 0, %s132
  $region4: #{densenet_forward.134} parent=0 // loop_header_branch
    %13 = sbr.rel (%p11) target = $region8
  $region5: #{densenet_forward.134} parent=0 // loop_body
    %s15 = ssub.s32 %s10, 1
    %s16 = ssub.s32 %s10, 2
    %s23 = sadd.s32 1, %s18
    %p24 = scmp.ge.s32.totalorder %s23, 1
    %s25 = scalar_select %p24, 0, %s23
    %s26 = sadd.s32 1, %s17
    %s27 = scalar_select %p24, %s26, %s17
    %p28 = scmp.ge.s32.totalorder %s27, 2
    %s29 = scalar_select %p28, 0, %s27
    %s30 = ssub.s32 %s17, %s29
    %p31 = scmp.eq.s32.totalorder %s30, 0
    %s33 = sadd.s32 %s32, 1
    %s34 = scalar_select %p31, %s32, %s33
    %p37 = pneg %p31
    %p38 = scmp.eq.s32.totalorder %s10, 1
    %p39 = por %p37, %p38
    %p40 = scmp.ne.s32.totalorder %s32, %s35
    %p41 = scmp.eq.s32.totalorder %s10, 0
    %p42 = por %p40, %p41
    %p43 = scmp.ne.s32.totalorder %s32, %s35
    %p44 = scmp.eq.s32.totalorder %s15, 1
    %p45 = por %p43, %p44
    %p46 = scmp.ne.s32.totalorder %s35, %s36
    %p47 = scmp.eq.s32.totalorder %s15, 0
    %p48 = por %p46, %p47
    %p49 = scmp.ne.s32.totalorder %s35, %s36
    %p50 = scmp.eq.s32.totalorder %s16, 1
    %p51 = por %p49, %p50
    %p53 = scmp.ne.s32.totalorder %s36, %s52
    %p54 = scmp.eq.s32.totalorder %s16, 0
    %p55 = por %p53, %p54
    %s57 = sadd.s32 %s56, 1
    %p60 = scmp.eq.s32.totalorder %s10, 1
    %p61 = scmp.ne.s32.totalorder %s56, %s58
    %p62 = scmp.eq.s32.totalorder %s10, 0
    %p63 = por %p61, %p62
    %p64 = scmp.ne.s32.totalorder %s56, %s58
    %p65 = scmp.eq.s32.totalorder %s15, 1
    %p66 = por %p64, %p65
    %p67 = scmp.ne.s32.totalorder %s58, %s59
    %p68 = scmp.eq.s32.totalorder %s15, 0
    %p69 = por %p67, %p68
    %p70 = scmp.ne.s32.totalorder %s58, %s59
    %p71 = scmp.eq.s32.totalorder %s16, 1
    %p72 = por %p70, %p71
    %p74 = scmp.ne.s32.totalorder %s59, %s73
    %p75 = scmp.eq.s32.totalorder %s16, 0
    %p76 = por %p74, %p75
    %s78 = sadd.s32 %s77, 1
    %p81 = scmp.eq.s32.totalorder %s10, 1
    %p82 = scmp.ne.s32.totalorder %s77, %s79
    %p83 = scmp.eq.s32.totalorder %s10, 0
    %p84 = por %p82, %p83
    %p85 = scmp.ne.s32.totalorder %s77, %s79
    %p86 = scmp.eq.s32.totalorder %s15, 1
    %p87 = por %p85, %p86
    %p88 = scmp.ne.s32.totalorder %s79, %s80
    %p89 = scmp.eq.s32.totalorder %s15, 0
    %p90 = por %p88, %p89
    %p91 = scmp.ne.s32.totalorder %s79, %s80
    %p92 = scmp.eq.s32.totalorder %s16, 1
    %p93 = por %p91, %p92
    %p95 = scmp.ne.s32.totalorder %s80, %s94
    %p96 = scmp.eq.s32.totalorder %s16, 0
    %p97 = por %p95, %p96
    %s98 = ssub.s32 %s18, %s25
    %p99 = scmp.eq.s32.totalorder %s98, 0
    %s101 = sadd.s32 %s100, 1
    %s102 = scalar_select %p99, %s100, %s101
    %p105 = pneg %p99
    %p106 = scmp.eq.s32.totalorder %s10, 1
    %p107 = por %p105, %p106
    %p108 = scmp.ne.s32.totalorder %s100, %s103
    %p109 = scmp.eq.s32.totalorder %s10, 0
    %p110 = por %p108, %p109
    %p111 = scmp.ne.s32.totalorder %s100, %s103
    %p112 = scmp.eq.s32.totalorder %s15, 1
    %p113 = por %p111, %p112
    %p114 = scmp.ne.s32.totalorder %s103, %s104
    %p115 = scmp.eq.s32.totalorder %s15, 0
    %p116 = por %p114, %p115
    %p117 = scmp.ne.s32.totalorder %s103, %s104
    %p118 = scmp.eq.s32.totalorder %s16, 1
    %p119 = por %p117, %p118
    %p121 = scmp.ne.s32.totalorder %s104, %s120
    %p122 = scmp.eq.s32.totalorder %s16, 0
    %p123 = por %p121, %p122
    %s124 = ssub.s32 %s17, %s29
    %s125 = ssub.s32 %s18, %s25
    %s126 = sor.u32 %s124, %s125
    %p127 = scmp.eq.s32.totalorder %s126, 0
    %s129 = sadd.s32 %s128, 1
    %s130 = scalar_select %p127, %s128, %s129
    %p133 = pneg %p127
    %p134 = scmp.eq.s32.totalorder %s10, 1
    %p135 = por %p133, %p134
    %p136 = scmp.ne.s32.totalorder %s128, %s131
    %p137 = scmp.eq.s32.totalorder %s10, 0
    %p138 = por %p136, %p137
    %p139 = scmp.ne.s32.totalorder %s128, %s131
    %p140 = scmp.eq.s32.totalorder %s15, 1
    %p141 = por %p139, %p140
    %p142 = scmp.ne.s32.totalorder %s131, %s132
    %p143 = scmp.eq.s32.totalorder %s15, 0
    %p144 = por %p142, %p143
    %p145 = scmp.ne.s32.totalorder %s131, %s132
    %p146 = scmp.eq.s32.totalorder %s16, 1
    %p147 = por %p145, %p146
    %p149 = scmp.ne.s32.totalorder %s132, %s148
    %p150 = scmp.eq.s32.totalorder %s16, 0
    %p151 = por %p149, %p150
    %p152 = scmp.le.s32.totalorder 1, %s10
    %p153 = scmp.lt.s32.totalorder %s10, 3
    %p154 = pnand %p152, %p153
    %p155 = pneg %p154
    // Predicated region
    $region9: #{densenet_forward.134} parent=5 // pred_check
      _
    $region10: #{densenet_forward.134} parent=5 // pred_check_branch
      %157 = sbr.rel (%p154) target = $region12
    $region11: #{densenet_forward.134} parent=5 // pred_region
      %s158 = ssub.s32 %s10, 1
      // Predicated region
      $region13: #{densenet_forward.134} parent=11 // pred_check
        %p159 = pneg %p69
      $region14: #{densenet_forward.134} parent=11 // pred_check_branch
        %161 = sbr.rel (%p159) target = $region16
      $region15: #{densenet_forward.134} parent=11 // pred_region
        _
      $region16: #{densenet_forward.134} parent=11 // pred_fallthru
        _
      // Predicated region
      $region17: #{densenet_forward.134} parent=11 // pred_check
        %p162 = pneg %p90
      $region18: #{densenet_forward.134} parent=11 // pred_check_branch
        %164 = sbr.rel (%p162) target = $region20
      $region19: #{densenet_forward.134} parent=11 // pred_region
        _
      $region20: #{densenet_forward.134} parent=11 // pred_fallthru
        _
      // Predicated region
      $region21: #{densenet_forward.134} parent=11 // pred_check
        %p165 = pneg %p116
      $region22: #{densenet_forward.134} parent=11 // pred_check_branch
        %167 = sbr.rel (%p165) target = $region24
      $region23: #{densenet_forward.134} parent=11 // pred_region
        %p168 = scmp.lt.s32.totalorder %s20, 0
        %s169 = scalar_select %p168, %s20, 0
        %s170 = smul.addr %s169, 4
        %s171 = scalar_lea.vmem %s3, %s170
      $region24: #{densenet_forward.134} parent=11 // pred_fallthru
        _
    $region12: #{densenet_forward.134} parent=5 // pred_fallthru
      _
    %p172 = scmp.lt.s32.totalorder %s10, 2
    // Predicated region
    $region25: #{densenet_forward.134} parent=5 // pred_check
      %p173 = pneg %p172
    $region26: #{densenet_forward.134} parent=5 // pred_check_branch
      %175 = sbr.rel (%p173) target = $region28
    $region27: #{densenet_forward.134} parent=5 // pred_region
      // Predicated region
      $region29: #{densenet_forward.134} parent=27 // pred_check
        %p176 = pneg %p42
      $region30: #{densenet_forward.134} parent=27 // pred_check_branch
        %178 = sbr.rel (%p176) target = $region32
      $region31: #{densenet_forward.134} parent=27 // pred_region
        %s179 = smul.u32 8, %s17
        %p180 = scmp.lt.s32.totalorder %s179, 15
        %s181 = scalar_select %p180, %s179, 15
        %s182 = smul.addr %s181, 2
        %s183 = smul.addr %s182, 4
        %s184 = scalar_lea.vmem %s0, %s183
        %s185 = smul.u32 8, %s17
      $region32: #{densenet_forward.134} parent=27 // pred_fallthru
        _
    $region28: #{densenet_forward.134} parent=5 // pred_fallthru
      _
    %p186 = scmp.le.s32.totalorder 1, %s10
    %p187 = scmp.lt.s32.totalorder %s10, 3
    %p188 = pnand %p186, %p187
    %p189 = pneg %p188
    // Predicated region
    $region33: #{densenet_forward.134} parent=5 // pred_check
      _
    $region34: #{densenet_forward.134} parent=5 // pred_check_branch
      %191 = sbr.rel (%p188) target = $region36
    $region35: #{densenet_forward.134} parent=5 // pred_region
      %s192 = ssub.s32 %s10, 1
      %s193 = smul.u32 8, %s19
      %p194 = scmp.lt.s32.totalorder %s193, 15
      %s195 = scalar_select %p194, %s193, 15
      %s196 = smul.addr %s195, 2
      %s197 = smul.addr %s196, 4
      %s198 = scalar_lea.vmem %s0, %s197
      %p199 = pneg %p48
      %p200 = pneg %p45
      %p201 = pneg %p69
      %p202 = pneg %p66
      %p203 = pneg %p90
      %p204 = pneg %p87
      %p205 = scmp.lt.s32.totalorder %s20, 0
      %s206 = scalar_select %p205, %s20, 0
      %s207 = smul.addr %s206, 4
      %s208 = scalar_lea.vmem %s3, %s207
      %p209 = pneg %p116
      %p210 = pneg %p113
      %p211 = pneg %p144
      %p212 = pneg %p141
      %s213 = smul.u32 8, %s19
      %p214 = scmp.lt.s32.totalorder %s213, 15
      %s215 = scalar_select %p214, %s213, 15
      %p216 = scmp.lt.s32.totalorder %s20, 0
      %s217 = scalar_select %p216, %s20, 0
      %s218 = sadd.s32 %s217, %s215
      %s219 = smul.addr %s218, 4
      %s220 = scalar_lea.vmem %s4, %s219
      %s221 = smul.u32 8, %s19
      %p222 = scmp.lt.s32.totalorder %s221, 15
      %s223 = scalar_select %p222, %s221, 15
      %s224 = smul.addr %s223, 2
      %s225 = smul.addr %s224, 4
      %s226 = scalar_lea.vmem %s0, %s225
      %s227 = smul.u32 8, %s19
      %p228 = scmp.lt.s32.totalorder %s20, 0
      %s229 = scalar_select %p228, %s20, 0
      %s230 = smul.addr %s229, 4
      %s231 = scalar_lea.vmem %s3, %s230
      %s232 = smul.u32 8, %s19
      %p233 = scmp.lt.s32.totalorder %s232, 15
      %s234 = scalar_select %p233, %s232, 15
      %p235 = scmp.lt.s32.totalorder %s20, 0
      %s236 = scalar_select %p235, %s20, 0
      %s237 = sadd.s32 %s236, %s234
      %s238 = smul.addr %s237, 4
      %s239 = scalar_lea.vmem %s4, %s238
      %s240 = smul.u32 8, %s19
      %v242 = vld [vmem:[%s226] sm:$0xff]
      %v243 = vld [vmem:[%s226 + $0x8] sm:$0xff]
      %v244 = vld [vmem:[%s226 + $0x10] sm:$0xff]
      %v245 = vld [vmem:[%s226 + $0x18] sm:$0xff]
      %v246 = vld [vmem:[%s226 + $0x20] sm:$0xff]
      %v247 = vld [vmem:[%s226 + $0x28] sm:$0xff]
      %v248 = vld [vmem:[%s226 + $0x30] sm:$0xff]
      %v249 = vld [vmem:[%s226 + $0x38] sm:$0xff]
      %v250 = vunpack.c.l.bf16 %v242
      %v251 = vunpack.c.h.bf16 %v242
      %v252 = vunpack.c.l.bf16 %v243
      %v253 = vunpack.c.h.bf16 %v243
      %v254 = vunpack.c.l.bf16 %v244
      %v255 = vunpack.c.h.bf16 %v244
      %v256 = vunpack.c.l.bf16 %v245
      %v257 = vunpack.c.h.bf16 %v245
      %v258 = vunpack.c.l.bf16 %v246
      %v259 = vunpack.c.h.bf16 %v246
      %v260 = vunpack.c.l.bf16 %v247
      %v261 = vunpack.c.h.bf16 %v247
      %v262 = vunpack.c.l.bf16 %v248
      %v263 = vunpack.c.h.bf16 %v248
      %v264 = vunpack.c.l.bf16 %v249
      %v265 = vunpack.c.h.bf16 %v249
      %v266 = vld [vmem:[%s1] sm:$0x3]
      %v268 = vlaneseq
      %v269 = vshrl.u32 %v268, 7
      %v270 = vsub.s32 0, %v269
      %v271 = vrot.slane %v266, %v270
      %v272 = vlaneseq
      %v273 = vshrl.u32 %v272, 7
      %v274 = vsub.s32 1, %v273
      %v275 = vrot.slane %v266, %v274
      %v278 = vmul.f32 %v250, %v271
      %v279 = vmul.f32 %v251, %v275
      %v280 = vmul.f32 %v252, %v271
      %v281 = vmul.f32 %v253, %v275
      %v282 = vmul.f32 %v254, %v271
      %v283 = vmul.f32 %v255, %v275
      %v284 = vmul.f32 %v256, %v271
      %v285 = vmul.f32 %v257, %v275
      %v286 = vmul.f32 %v258, %v271
      %v287 = vmul.f32 %v259, %v275
      %v288 = vmul.f32 %v260, %v271
      %v289 = vmul.f32 %v261, %v275
      %v290 = vmul.f32 %v262, %v271
      %v291 = vmul.f32 %v263, %v275
      %v292 = vmul.f32 %v264, %v271
      %v293 = vmul.f32 %v265, %v275
      %v294 = vld [vmem:[%s2] sm:$0x3]
      %v296 = vlaneseq
      %v297 = vshrl.u32 %v296, 7
      %v298 = vsub.s32 0, %v297
      %v299 = vrot.slane %v294, %v298
      %v300 = vlaneseq
      %v301 = vshrl.u32 %v300, 7
      %v302 = vsub.s32 1, %v301
      %v303 = vrot.slane %v294, %v302
      %v306 = vadd.f32 %v278, %v299
      %v307 = vadd.f32 %v279, %v303
      %v308 = vadd.f32 %v280, %v299
      %v309 = vadd.f32 %v281, %v303
      %v310 = vadd.f32 %v282, %v299
      %v311 = vadd.f32 %v283, %v303
      %v312 = vadd.f32 %v284, %v299
      %v313 = vadd.f32 %v285, %v303
      %v314 = vadd.f32 %v286, %v299
      %v315 = vadd.f32 %v287, %v303
      %v316 = vadd.f32 %v288, %v299
      %v317 = vadd.f32 %v289, %v303
      %v318 = vadd.f32 %v290, %v299
      %v319 = vadd.f32 %v291, %v303
      %v320 = vadd.f32 %v292, %v299
      %v321 = vadd.f32 %v293, %v303
      %v322 = vmax.f32 %v306, 0.0
      %v323 = vmax.f32 %v307, 0.0
      %v324 = vmax.f32 %v308, 0.0
      %v325 = vmax.f32 %v309, 0.0
      %v326 = vmax.f32 %v310, 0.0
      %v327 = vmax.f32 %v311, 0.0
      %v328 = vmax.f32 %v312, 0.0
      %v329 = vmax.f32 %v313, 0.0
      %v330 = vmax.f32 %v314, 0.0
      %v331 = vmax.f32 %v315, 0.0
      %v332 = vmax.f32 %v316, 0.0
      %v333 = vmax.f32 %v317, 0.0
      %v334 = vmax.f32 %v318, 0.0
      %v335 = vmax.f32 %v319, 0.0
      %v336 = vmax.f32 %v320, 0.0
      %v337 = vmax.f32 %v321, 0.0
      %v338 = vpack.c.bf16 %v324, %v322
      %v339 = vpack.c.bf16 %v325, %v323
      %v340 = vpack.c.bf16 %v328, %v326
      %v341 = vpack.c.bf16 %v329, %v327
      %v342 = vpack.c.bf16 %v332, %v330
      %v343 = vpack.c.bf16 %v333, %v331
      %v344 = vpack.c.bf16 %v336, %v334
      %v345 = vpack.c.bf16 %v337, %v335
      %v346 = vld [vmem:[%s231] sm:$0xf]
      %v347 = vld [vmem:[%s231 + $0x4] sm:$0xf]
      %v348 = vld [vmem:[%s231 + $0x8] sm:$0xf]
      %v349 = vld [vmem:[%s231 + $0xc] sm:$0xf]
      %v350 = vld [vmem:[%s231 + $0x10] sm:$0xf]
      %v351 = vld [vmem:[%s231 + $0x14] sm:$0xf]
      %v352 = vld [vmem:[%s231 + $0x18] sm:$0xf]
      %v353 = vld [vmem:[%s231 + $0x1c] sm:$0xf]
      %v354 = vld [vmem:[%s231 + $0x20] sm:$0xf]
      %v355 = vld [vmem:[%s231 + $0x24] sm:$0xf]
      %v356 = vld [vmem:[%s231 + $0x28] sm:$0xf]
      %v357 = vld [vmem:[%s231 + $0x2c] sm:$0xf]
      %v358 = vld [vmem:[%s231 + $0x30] sm:$0xf]
      %v359 = vld [vmem:[%s231 + $0x34] sm:$0xf]
      %v360 = vld [vmem:[%s231 + $0x38] sm:$0xf]
      %v361 = vld [vmem:[%s231 + $0x3c] sm:$0xf]
      %v362 = vld [vmem:[%s231 + $0x40] sm:$0xf]
      %v363 = vld [vmem:[%s231 + $0x44] sm:$0xf]
      %v364 = vld [vmem:[%s231 + $0x48] sm:$0xf]
      %v365 = vld [vmem:[%s231 + $0x4c] sm:$0xf]
      %v366 = vld [vmem:[%s231 + $0x50] sm:$0xf]
      %v367 = vld [vmem:[%s231 + $0x54] sm:$0xf]
      %v368 = vld [vmem:[%s231 + $0x58] sm:$0xf]
      %v369 = vld [vmem:[%s231 + $0x5c] sm:$0xf]
      %v370 = vld [vmem:[%s231 + $0x60] sm:$0xf]
      %v371 = vld [vmem:[%s231 + $0x64] sm:$0xf]
      %v372 = vld [vmem:[%s231 + $0x68] sm:$0xf]
      %v373 = vld [vmem:[%s231 + $0x6c] sm:$0xf]
      %v374 = vld [vmem:[%s231 + $0x70] sm:$0xf]
      %v375 = vld [vmem:[%s231 + $0x74] sm:$0xf]
      %v376 = vld [vmem:[%s231 + $0x78] sm:$0xf]
      %v377 = vld [vmem:[%s231 + $0x7c] sm:$0xf]
      %v410 = vunpack.c.l.b16 %v346
      %v411 = vunpack.c.l.b16 %v347
      %v412 = vunpack.c.l.b16 %v348
      %v413 = vunpack.c.l.b16 %v349
      %v414 = vunpack.c.l.b16 %v350
      %v415 = vunpack.c.l.b16 %v351
      %v416 = vunpack.c.l.b16 %v352
      %v417 = vunpack.c.l.b16 %v353
      %v418 = vunpack.c.l.b16 %v354
      %v419 = vunpack.c.l.b16 %v355
      %v420 = vunpack.c.l.b16 %v356
      %v421 = vunpack.c.l.b16 %v357
      %v422 = vunpack.c.l.b16 %v358
      %v423 = vunpack.c.l.b16 %v359
      %v424 = vunpack.c.l.b16 %v360
      %v425 = vunpack.c.l.b16 %v361
      %v426 = vunpack.c.l.b16 %v362
      %v427 = vunpack.c.l.b16 %v363
      %v428 = vunpack.c.l.b16 %v364
      %v429 = vunpack.c.l.b16 %v365
      %v430 = vunpack.c.l.b16 %v366
      %v431 = vunpack.c.l.b16 %v367
      %v432 = vunpack.c.l.b16 %v368
      %v433 = vunpack.c.l.b16 %v369
      %v434 = vunpack.c.l.b16 %v370
      %v435 = vunpack.c.l.b16 %v371
      %v436 = vunpack.c.l.b16 %v372
      %v437 = vunpack.c.l.b16 %v373
      %v438 = vunpack.c.l.b16 %v374
      %v439 = vunpack.c.l.b16 %v375
      %v440 = vunpack.c.l.b16 %v376
      %v441 = vunpack.c.l.b16 %v377
      %v442 = vpack.c.b16 %v411, %v410
      %v443 = vpack.c.b16 %v413, %v412
      %v444 = vpack.c.b16 %v415, %v414
      %v445 = vpack.c.b16 %v417, %v416
      %v446 = vpack.c.b16 %v419, %v418
      %v447 = vpack.c.b16 %v421, %v420
      %v448 = vpack.c.b16 %v423, %v422
      %v449 = vpack.c.b16 %v425, %v424
      %v450 = vpack.c.b16 %v427, %v426
      %v451 = vpack.c.b16 %v429, %v428
      %v452 = vpack.c.b16 %v431, %v430
      %v453 = vpack.c.b16 %v433, %v432
      %v454 = vpack.c.b16 %v435, %v434
      %v455 = vpack.c.b16 %v437, %v436
      %v456 = vpack.c.b16 %v439, %v438
      %v457 = vpack.c.b16 %v441, %v440
      %474 = vmatprep.subr.bf16.mxu0 0
      %475 = vmatpush1.bf16.msra.mxu0 %v442
      %476 = vmatprep.subr.bf16.mxu0 0
      %477 = vmatpush1.bf16.msra.mxu0 %v443
      %478 = vmatprep.subr.bf16.mxu0 0
      %479 = vmatpush1.bf16.msra.mxu0 %v444
      %480 = vmatprep.subr.bf16.mxu0 0
      %481 = vmatpush1.bf16.msra.mxu0 %v445
      %482 = vmatprep.subr.bf16.mxu0 0
      %483 = vmatpush1.bf16.msra.mxu0 %v446
      %484 = vmatprep.subr.bf16.mxu0 0
      %485 = vmatpush1.bf16.msra.mxu0 %v447
      %486 = vmatprep.subr.bf16.mxu0 0
      %487 = vmatpush1.bf16.msra.mxu0 %v448
      %488 = vmatprep.subr.bf16.mxu0 0
      %489 = vmatpush1.bf16.msra.mxu0 %v449
      %490 = vmatprep.subr.bf16.mxu0 0
      %491 = vmatpush1.bf16.msra.mxu0 %v450
      %492 = vmatprep.subr.bf16.mxu0 0
      %493 = vmatpush1.bf16.msra.mxu0 %v451
      %494 = vmatprep.subr.bf16.mxu0 0
      %495 = vmatpush1.bf16.msra.mxu0 %v452
      %496 = vmatprep.subr.bf16.mxu0 0
      %497 = vmatpush1.bf16.msra.mxu0 %v453
      %498 = vmatprep.subr.bf16.mxu0 0
      %499 = vmatpush1.bf16.msra.mxu0 %v454
      %500 = vmatprep.subr.bf16.mxu0 0
      %501 = vmatpush1.bf16.msra.mxu0 %v455
      %502 = vmatprep.subr.bf16.mxu0 0
      %503 = vmatpush1.bf16.msra.mxu0 %v456
      %504 = vmatprep.subr.bf16.mxu0 0
      %505 = vmatpush1.bf16.msra.mxu0 %v457
      %506 = vmatprep.mubr.bf16.mxu0 %v339
      %507 = vmatmul.mubr.bf16.gmra.mrb[0].mxu0 %v338
      %v508 = vpop.f32.mrb[0].mxu0
      %v509 = vadd.f32 0.0, %v508
      %v510 = vpop.f32.mrb[0].mxu0
      %v511 = vpop.f32.mrb[0].mxu0
      %v512 = vadd.f32 0.0, %v511
      %v513 = vpop.f32.mrb[0].mxu0
      %514 = vmatprep.mubr.bf16.mxu0 %v341
      %515 = vmatmul.mubr.bf16.gmra.mrb[0].mxu0 %v340
      %v516 = vpop.f32.mrb[0].mxu0
      %v517 = vadd.f32 0.0, %v516
      %v518 = vpop.f32.mrb[0].mxu0
      %v519 = vpop.f32.mrb[0].mxu0
      %v520 = vadd.f32 0.0, %v519
      %v521 = vpop.f32.mrb[0].mxu0
      %522 = vmatprep.mubr.bf16.mxu0 %v343
      %523 = vmatmul.mubr.bf16.gmra.mrb[0].mxu0 %v342
      %v524 = vpop.f32.mrb[0].mxu0
      %v525 = vadd.f32 0.0, %v524
      %v526 = vpop.f32.mrb[0].mxu0
      %v527 = vpop.f32.mrb[0].mxu0
      %v528 = vadd.f32 0.0, %v527
      %v529 = vpop.f32.mrb[0].mxu0
      %530 = vmatprep.mubr.bf16.mxu0 %v345
      %531 = vmatmul.mubr.bf16.gmra.mrb[0].mxu0 %v344
      %v532 = vpop.f32.mrb[0].mxu0
      %v533 = vadd.f32 0.0, %v532
      %v534 = vpop.f32.mrb[0].mxu0
      %v535 = vpop.f32.mrb[0].mxu0
      %v536 = vadd.f32 0.0, %v535
      %v537 = vpop.f32.mrb[0].mxu0
      %538 = vdwg.mxu0
      %v539 = vpack.c.bf16 %v512, %v509
      %v540 = vpack.c.bf16 %v520, %v517
      %v541 = vpack.c.bf16 %v528, %v525
      %v542 = vpack.c.bf16 %v536, %v533
      %v547 = vunpack.c.l.b16 %v539
      %v548 = vunpack.c.h.b16 %v539
      %v549 = vunpack.c.l.b16 %v540
      %v550 = vunpack.c.h.b16 %v540
      %v551 = vunpack.c.l.b16 %v541
      %v552 = vunpack.c.h.b16 %v541
      %v553 = vunpack.c.l.b16 %v542
      %v554 = vunpack.c.h.b16 %v542
      %v555 = vpack.c.b16 %v547, %v547
      %v556 = vpack.c.b16 %v548, %v548
      %v557 = vpack.c.b16 %v549, %v549
      %v558 = vpack.c.b16 %v550, %v550
      %v559 = vpack.c.b16 %v551, %v551
      %v560 = vpack.c.b16 %v552, %v552
      %v561 = vpack.c.b16 %v553, %v553
      %v562 = vpack.c.b16 %v554, %v554
      %571 = vst [vmem:[%s239] sm:$0xf] %v555
      %572 = vst [vmem:[%s239 + $0x4] sm:$0xf] %v556
      %573 = vst [vmem:[%s239 + $0x8] sm:$0xf] %v557
      %574 = vst [vmem:[%s239 + $0xc] sm:$0xf] %v558
      %575 = vst [vmem:[%s239 + $0x10] sm:$0xf] %v559
      %576 = vst [vmem:[%s239 + $0x14] sm:$0xf] %v560
      %577 = vst [vmem:[%s239 + $0x18] sm:$0xf] %v561
      %578 = vst [vmem:[%s239 + $0x1c] sm:$0xf] %v562
      %s579 = smul.u32 8, %s19
      %p580 = scmp.lt.s32.totalorder %s579, 15
      %s581 = scalar_select %p580, %s579, 15
      %p582 = scmp.lt.s32.totalorder %s20, 0
      %s583 = scalar_select %p582, %s20, 0
      %s584 = sadd.s32 %s583, %s581
      %s585 = smul.addr %s584, 4
      %s586 = scalar_lea.vmem %s4, %s585
      // Predicated region
      $region37: #{densenet_forward.134} parent=35 // pred_check
        %p587 = pneg %p141
      $region38: #{densenet_forward.134} parent=35 // pred_check_branch
        %589 = sbr.rel (%p587) target = $region40
      $region39: #{densenet_forward.134} parent=35 // pred_region
        %s590 = smul.u32 8, %s19
      $region40: #{densenet_forward.134} parent=35 // pred_fallthru
        _
    $region36: #{densenet_forward.134} parent=5 // pred_fallthru
      _
    %p591 = scmp.le.s32.totalorder 2, %s10
    // Predicated region
    $region41: #{densenet_forward.134} parent=5 // pred_check
      %p592 = pneg %p591
    $region42: #{densenet_forward.134} parent=5 // pred_check_branch
      %594 = sbr.rel (%p592) target = $region44
    $region43: #{densenet_forward.134} parent=5 // pred_region
      %s595 = ssub.s32 %s10, 2
      // Predicated region
      $region45: #{densenet_forward.134} parent=43 // pred_check
        %p596 = pneg %p147
      $region46: #{densenet_forward.134} parent=43 // pred_check_branch
        %598 = sbr.rel (%p596) target = $region48
      $region47: #{densenet_forward.134} parent=43 // pred_region
        %s599 = smul.u32 8, %s21
        %p600 = scmp.lt.s32.totalorder %s599, 15
        %s601 = scalar_select %p600, %s599, 15
        %p602 = scmp.lt.s32.totalorder %s22, 0
        %s603 = scalar_select %p602, %s22, 0
        %s604 = sadd.s32 %s603, %s601
        %s605 = smul.addr %s604, 4
        %s606 = scalar_lea.vmem %s4, %s605
      $region48: #{densenet_forward.134} parent=43 // pred_fallthru
        _
    $region44: #{densenet_forward.134} parent=5 // pred_fallthru
      _
  $region6: #{densenet_forward.134} parent=0 // loop_footer
    %s14 = sadd.s32 1, %s10
  $region7: #{densenet_forward.134} parent=0 // loop_footer_branch
    %9 = sbr.rel target = $region3
  $region8: #{densenet_forward.134} parent=0 // loop_exit
    _

// kernel: densenet_forward.135
$region0: #{densenet_forward.135}
  #allocation0 [shape = 'u32[]', space=smem, size = 0x4, offset = 0x4, fixed_abs, tag = 'smem constant byte address 0x4 - core index']
  #allocation1 [shape = 'u32[144,128]{1,0:T(1,128)}', space=vmem, size = 0x12000, scoped, tag = 'internal scratch']
  %s0 = inlined_call_operand.vmem [shape: bf16[32,512], index: 0, kind: input, shape index: {}]
  %s1 = inlined_call_operand.vmem [shape: f32[1,512], index: 1, kind: input, shape index: {}]
  %s2 = inlined_call_operand.vmem [shape: f32[1,512], index: 2, kind: input, shape index: {}]
  %s3 = inlined_call_operand.vmem [shape: f32[1,128], index: 3, kind: input, shape index: {}]
  %s4 = inlined_call_operand.vmem [shape: f32[1,128], index: 4, kind: input, shape index: {}]
  %s5 = inlined_call_operand.vmem [shape: bf16[512,128], index: 5, kind: input, shape index: {}]
  %s6 = inlined_call_operand.vmem [shape: bf16[32,128], index: 6, kind: output, shape index: {}]
  %s7 = sld [smem:[#allocation0]]
  $region34: #{densenet_forward.135} parent=0
    _
  %s9 = ssub.s32 1, %s7
  %s10 = scalar_select 0, %s9, %s7
  // Predicated region
  $region2: #{densenet_forward.135} parent=0 // pred_check
    _
  $region3: #{densenet_forward.135} parent=0 // pred_check_branch
    %12 = sbr.rel (0) target = $region5
  $region4: #{densenet_forward.135} parent=0 // pred_region
    _
  $region5: #{densenet_forward.135} parent=0 // pred_fallthru
    _
  // Predicated region
  $region6: #{densenet_forward.135} parent=0 // pred_check
    _
  $region7: #{densenet_forward.135} parent=0 // pred_check_branch
    %14 = sbr.rel (0) target = $region9
  $region8: #{densenet_forward.135} parent=0 // pred_region
    _
  $region9: #{densenet_forward.135} parent=0 // pred_fallthru
    _
  // Predicated region
  $region10: #{densenet_forward.135} parent=0 // pred_check
    _
  $region11: #{densenet_forward.135} parent=0 // pred_check_branch
    %16 = sbr.rel (0) target = $region13
  $region12: #{densenet_forward.135} parent=0 // pred_region
    _
  $region13: #{densenet_forward.135} parent=0 // pred_fallthru
    _
  // Predicated region
  $region14: #{densenet_forward.135} parent=0 // pred_check
    _
  $region15: #{densenet_forward.135} parent=0 // pred_check_branch
    %18 = sbr.rel (0) target = $region17
  $region16: #{densenet_forward.135} parent=0 // pred_region
    _
  $region17: #{densenet_forward.135} parent=0 // pred_fallthru
    _
  // Predicated region
  $region18: #{densenet_forward.135} parent=0 // pred_check
    _
  $region19: #{densenet_forward.135} parent=0 // pred_check_branch
    %20 = sbr.rel (0) target = $region21
  $region20: #{densenet_forward.135} parent=0 // pred_region
    _
  $region21: #{densenet_forward.135} parent=0 // pred_fallthru
    _
  // Predicated region
  $region22: #{densenet_forward.135} parent=0 // pred_check
    _
  $region23: #{densenet_forward.135} parent=0 // pred_check_branch
    %22 = sbr.rel (0) target = $region25
  $region24: #{densenet_forward.135} parent=0 // pred_region
    _
  $region25: #{densenet_forward.135} parent=0 // pred_fallthru
    _
  %v24 = vld [vmem:[%s0] sm:$0xff]
  %v25 = vld [vmem:[%s0 + $0x8] sm:$0xff]
  %v26 = vld [vmem:[%s0 + $0x10] sm:$0xff]
  %v27 = vld [vmem:[%s0 + $0x18] sm:$0xff]
  %v28 = vld [vmem:[%s0 + $0x20] sm:$0xff]
  %v29 = vld [vmem:[%s0 + $0x28] sm:$0xff]
  %v30 = vld [vmem:[%s0 + $0x30] sm:$0xff]
  %v31 = vld [vmem:[%s0 + $0x38] sm:$0xff]
  %v32 = vunpack.c.l.bf16 %v24
  %v33 = vunpack.c.h.bf16 %v24
  %v34 = vunpack.c.l.bf16 %v25
  %v35 = vunpack.c.h.bf16 %v25
  %v36 = vunpack.c.l.bf16 %v26
  %v37 = vunpack.c.h.bf16 %v26
  %v38 = vunpack.c.l.bf16 %v27
  %v39 = vunpack.c.h.bf16 %v27
  %v40 = vunpack.c.l.bf16 %v28
  %v41 = vunpack.c.h.bf16 %v28
  %v42 = vunpack.c.l.bf16 %v29
  %v43 = vunpack.c.h.bf16 %v29
  %v44 = vunpack.c.l.bf16 %v30
  %v45 = vunpack.c.h.bf16 %v30
  %v46 = vunpack.c.l.bf16 %v31
  %v47 = vunpack.c.h.bf16 %v31
  %v48 = vld [vmem:[%s1] sm:$0xf]
  %v50 = vlaneseq
  %v51 = vshrl.u32 %v50, 7
  %v52 = vsub.s32 0, %v51
  %v53 = vrot.slane %v48, %v52
  %v54 = vlaneseq
  %v55 = vshrl.u32 %v54, 7
  %v56 = vsub.s32 1, %v55
  %v57 = vrot.slane %v48, %v56
  %v58 = vlaneseq
  %v59 = vshrl.u32 %v58, 7
  %v60 = vsub.s32 2, %v59
  %v61 = vrot.slane %v48, %v60
  %v62 = vlaneseq
  %v63 = vshrl.u32 %v62, 7
  %v64 = vsub.s32 3, %v63
  %v65 = vrot.slane %v48, %v64
  %v70 = vmul.f32 %v32, %v53
  %v71 = vmul.f32 %v33, %v57
  %v72 = vmul.f32 %v34, %v61
  %v73 = vmul.f32 %v35, %v65
  %v74 = vmul.f32 %v36, %v53
  %v75 = vmul.f32 %v37, %v57
  %v76 = vmul.f32 %v38, %v61
  %v77 = vmul.f32 %v39, %v65
  %v78 = vmul.f32 %v40, %v53
  %v79 = vmul.f32 %v41, %v57
  %v80 = vmul.f32 %v42, %v61
  %v81 = vmul.f32 %v43, %v65
  %v82 = vmul.f32 %v44, %v53
  %v83 = vmul.f32 %v45, %v57
  %v84 = vmul.f32 %v46, %v61
  %v85 = vmul.f32 %v47, %v65
  %v86 = vld [vmem:[%s2] sm:$0xf]
  %v88 = vlaneseq
  %v89 = vshrl.u32 %v88, 7
  %v90 = vsub.s32 0, %v89
  %v91 = vrot.slane %v86, %v90
  %v92 = vlaneseq
  %v93 = vshrl.u32 %v92, 7
  %v94 = vsub.s32 1, %v93
  %v95 = vrot.slane %v86, %v94
  %v96 = vlaneseq
  %v97 = vshrl.u32 %v96, 7
  %v98 = vsub.s32 2, %v97
  %v99 = vrot.slane %v86, %v98
  %v100 = vlaneseq
  %v101 = vshrl.u32 %v100, 7
  %v102 = vsub.s32 3, %v101
  %v103 = vrot.slane %v86, %v102
  %v108 = vadd.f32 %v70, %v91
  %v109 = vadd.f32 %v71, %v95
  %v110 = vadd.f32 %v72, %v99
  %v111 = vadd.f32 %v73, %v103
  %v112 = vadd.f32 %v74, %v91
  %v113 = vadd.f32 %v75, %v95
  %v114 = vadd.f32 %v76, %v99
  %v115 = vadd.f32 %v77, %v103
  %v116 = vadd.f32 %v78, %v91
  %v117 = vadd.f32 %v79, %v95
  %v118 = vadd.f32 %v80, %v99
  %v119 = vadd.f32 %v81, %v103
  %v120 = vadd.f32 %v82, %v91
  %v121 = vadd.f32 %v83, %v95
  %v122 = vadd.f32 %v84, %v99
  %v123 = vadd.f32 %v85, %v103
  %v124 = vmax.f32 %v108, 0.0
  %v125 = vmax.f32 %v109, 0.0
  %v126 = vmax.f32 %v110, 0.0
  %v127 = vmax.f32 %v111, 0.0
  %v128 = vmax.f32 %v112, 0.0
  %v129 = vmax.f32 %v113, 0.0
  %v130 = vmax.f32 %v114, 0.0
  %v131 = vmax.f32 %v115, 0.0
  %v132 = vmax.f32 %v116, 0.0
  %v133 = vmax.f32 %v117, 0.0
  %v134 = vmax.f32 %v118, 0.0
  %v135 = vmax.f32 %v119, 0.0
  %v136 = vmax.f32 %v120, 0.0
  %v137 = vmax.f32 %v121, 0.0
  %v138 = vmax.f32 %v122, 0.0
  %v139 = vmax.f32 %v123, 0.0
  %v140 = vpack.c.bf16 %v128, %v124
  %v141 = vpack.c.bf16 %v129, %v125
  %v142 = vpack.c.bf16 %v130, %v126
  %v143 = vpack.c.bf16 %v131, %v127
  %v144 = vpack.c.bf16 %v136, %v132
  %v145 = vpack.c.bf16 %v137, %v133
  %v146 = vpack.c.bf16 %v138, %v134
  %v147 = vpack.c.bf16 %v139, %v135
  %v148 = vld [vmem:[%s5] sm:$0xf]
  %v149 = vld [vmem:[%s5 + $0x4] sm:$0xf]
  %v150 = vld [vmem:[%s5 + $0x8] sm:$0xf]
  %v151 = vld [vmem:[%s5 + $0xc] sm:$0xf]
  %v152 = vld [vmem:[%s5 + $0x10] sm:$0xf]
  %v153 = vld [vmem:[%s5 + $0x14] sm:$0xf]
  %v154 = vld [vmem:[%s5 + $0x18] sm:$0xf]
  %v155 = vld [vmem:[%s5 + $0x1c] sm:$0xf]
  %v156 = vld [vmem:[%s5 + $0x20] sm:$0xf]
  %v157 = vld [vmem:[%s5 + $0x24] sm:$0xf]
  %v158 = vld [vmem:[%s5 + $0x28] sm:$0xf]
  %v159 = vld [vmem:[%s5 + $0x2c] sm:$0xf]
  %v160 = vld [vmem:[%s5 + $0x30] sm:$0xf]
  %v161 = vld [vmem:[%s5 + $0x34] sm:$0xf]
  %v162 = vld [vmem:[%s5 + $0x38] sm:$0xf]
  %v163 = vld [vmem:[%s5 + $0x3c] sm:$0xf]
  %v164 = vld [vmem:[%s5 + $0x40] sm:$0xf]
  %v165 = vld [vmem:[%s5 + $0x44] sm:$0xf]
  %v166 = vld [vmem:[%s5 + $0x48] sm:$0xf]
  %v167 = vld [vmem:[%s5 + $0x4c] sm:$0xf]
  %v168 = vld [vmem:[%s5 + $0x50] sm:$0xf]
  %v169 = vld [vmem:[%s5 + $0x54] sm:$0xf]
  %v170 = vld [vmem:[%s5 + $0x58] sm:$0xf]
  %v171 = vld [vmem:[%s5 + $0x5c] sm:$0xf]
  %v172 = vld [vmem:[%s5 + $0x60] sm:$0xf]
  %v173 = vld [vmem:[%s5 + $0x64] sm:$0xf]
  %v174 = vld [vmem:[%s5 + $0x68] sm:$0xf]
  %v175 = vld [vmem:[%s5 + $0x6c] sm:$0xf]
  %v176 = vld [vmem:[%s5 + $0x70] sm:$0xf]
  %v177 = vld [vmem:[%s5 + $0x74] sm:$0xf]
  %v178 = vld [vmem:[%s5 + $0x78] sm:$0xf]
  %v179 = vld [vmem:[%s5 + $0x7c] sm:$0xf]
  %v180 = vld [vmem:[%s5 + $0x80] sm:$0xf]
  %v181 = vld [vmem:[%s5 + $0x84] sm:$0xf]
  %v182 = vld [vmem:[%s5 + $0x88] sm:$0xf]
  %v183 = vld [vmem:[%s5 + $0x8c] sm:$0xf]
  %v184 = vld [vmem:[%s5 + $0x90] sm:$0xf]
  %v185 = vld [vmem:[%s5 + $0x94] sm:$0xf]
  %v186 = vld [vmem:[%s5 + $0x98] sm:$0xf]
  %v187 = vld [vmem:[%s5 + $0x9c] sm:$0xf]
  %v188 = vld [vmem:[%s5 + $0xa0] sm:$0xf]
  %v189 = vld [vmem:[%s5 + $0xa4] sm:$0xf]
  %v190 = vld [vmem:[%s5 + $0xa8] sm:$0xf]
  %v191 = vld [vmem:[%s5 + $0xac] sm:$0xf]
  %v192 = vld [vmem:[%s5 + $0xb0] sm:$0xf]
  %v193 = vld [vmem:[%s5 + $0xb4] sm:$0xf]
  %v194 = vld [vmem:[%s5 + $0xb8] sm:$0xf]
  %v195 = vld [vmem:[%s5 + $0xbc] sm:$0xf]
  %v196 = vld [vmem:[%s5 + $0xc0] sm:$0xf]
  %v197 = vld [vmem:[%s5 + $0xc4] sm:$0xf]
  %v198 = vld [vmem:[%s5 + $0xc8] sm:$0xf]
  %v199 = vld [vmem:[%s5 + $0xcc] sm:$0xf]
  %v200 = vld [vmem:[%s5 + $0xd0] sm:$0xf]
  %v201 = vld [vmem:[%s5 + $0xd4] sm:$0xf]
  %v202 = vld [vmem:[%s5 + $0xd8] sm:$0xf]
  %v203 = vld [vmem:[%s5 + $0xdc] sm:$0xf]
  %v204 = vld [vmem:[%s5 + $0xe0] sm:$0xf]
  %v205 = vld [vmem:[%s5 + $0xe4] sm:$0xf]
  %v206 = vld [vmem:[%s5 + $0xe8] sm:$0xf]
  %v207 = vld [vmem:[%s5 + $0xec] sm:$0xf]
  %v208 = vld [vmem:[%s5 + $0xf0] sm:$0xf]
  %v209 = vld [vmem:[%s5 + $0xf4] sm:$0xf]
  %v210 = vld [vmem:[%s5 + $0xf8] sm:$0xf]
  %v211 = vld [vmem:[%s5 + $0xfc] sm:$0xf]
  %v276 = vunpack.c.l.b16 %v148
  %v277 = vunpack.c.l.b16 %v149
  %v278 = vunpack.c.l.b16 %v150
  %v279 = vunpack.c.l.b16 %v151
  %v280 = vunpack.c.l.b16 %v152
  %v281 = vunpack.c.l.b16 %v153
  %v282 = vunpack.c.l.b16 %v154
  %v283 = vunpack.c.l.b16 %v155
  %v284 = vunpack.c.l.b16 %v156
  %v285 = vunpack.c.l.b16 %v157
  %v286 = vunpack.c.l.b16 %v158
  %v287 = vunpack.c.l.b16 %v159
  %v288 = vunpack.c.l.b16 %v160
  %v289 = vunpack.c.l.b16 %v161
  %v290 = vunpack.c.l.b16 %v162
  %v291 = vunpack.c.l.b16 %v163
  %v292 = vunpack.c.l.b16 %v164
  %v293 = vunpack.c.l.b16 %v165
  %v294 = vunpack.c.l.b16 %v166
  %v295 = vunpack.c.l.b16 %v167
  %v296 = vunpack.c.l.b16 %v168
  %v297 = vunpack.c.l.b16 %v169
  %v298 = vunpack.c.l.b16 %v170
  %v299 = vunpack.c.l.b16 %v171
  %v300 = vunpack.c.l.b16 %v172
  %v301 = vunpack.c.l.b16 %v173
  %v302 = vunpack.c.l.b16 %v174
  %v303 = vunpack.c.l.b16 %v175
  %v304 = vunpack.c.l.b16 %v176
  %v305 = vunpack.c.l.b16 %v177
  %v306 = vunpack.c.l.b16 %v178
  %v307 = vunpack.c.l.b16 %v179
  %v308 = vunpack.c.l.b16 %v180
  %v309 = vunpack.c.l.b16 %v181
  %v310 = vunpack.c.l.b16 %v182
  %v311 = vunpack.c.l.b16 %v183
  %v312 = vunpack.c.l.b16 %v184
  %v313 = vunpack.c.l.b16 %v185
  %v314 = vunpack.c.l.b16 %v186
  %v315 = vunpack.c.l.b16 %v187
  %v316 = vunpack.c.l.b16 %v188
  %v317 = vunpack.c.l.b16 %v189
  %v318 = vunpack.c.l.b16 %v190
  %v319 = vunpack.c.l.b16 %v191
  %v320 = vunpack.c.l.b16 %v192
  %v321 = vunpack.c.l.b16 %v193
  %v322 = vunpack.c.l.b16 %v194
  %v323 = vunpack.c.l.b16 %v195
  %v324 = vunpack.c.l.b16 %v196
  %v325 = vunpack.c.l.b16 %v197
  %v326 = vunpack.c.l.b16 %v198
  %v327 = vunpack.c.l.b16 %v199
  %v328 = vunpack.c.l.b16 %v200
  %v329 = vunpack.c.l.b16 %v201
  %v330 = vunpack.c.l.b16 %v202
  %v331 = vunpack.c.l.b16 %v203
  %v332 = vunpack.c.l.b16 %v204
  %v333 = vunpack.c.l.b16 %v205
  %v334 = vunpack.c.l.b16 %v206
  %v335 = vunpack.c.l.b16 %v207
  %v336 = vunpack.c.l.b16 %v208
  %v337 = vunpack.c.l.b16 %v209
  %v338 = vunpack.c.l.b16 %v210
  %v339 = vunpack.c.l.b16 %v211
  %v340 = vpack.c.b16 %v277, %v276
  %v341 = vpack.c.b16 %v279, %v278
  %v342 = vpack.c.b16 %v281, %v280
  %v343 = vpack.c.b16 %v283, %v282
  %v344 = vpack.c.b16 %v285, %v284
  %v345 = vpack.c.b16 %v287, %v286
  %v346 = vpack.c.b16 %v289, %v288
  %v347 = vpack.c.b16 %v291, %v290
  %v348 = vpack.c.b16 %v293, %v292
  %v349 = vpack.c.b16 %v295, %v294
  %v350 = vpack.c.b16 %v297, %v296
  %v351 = vpack.c.b16 %v299, %v298
  %v352 = vpack.c.b16 %v301, %v300
  %v353 = vpack.c.b16 %v303, %v302
  %v354 = vpack.c.b16 %v305, %v304
  %v355 = vpack.c.b16 %v307, %v306
  %v356 = vpack.c.b16 %v309, %v308
  %v357 = vpack.c.b16 %v311, %v310
  %v358 = vpack.c.b16 %v313, %v312
  %v359 = vpack.c.b16 %v315, %v314
  %v360 = vpack.c.b16 %v317, %v316
  %v361 = vpack.c.b16 %v319, %v318
  %v362 = vpack.c.b16 %v321, %v320
  %v363 = vpack.c.b16 %v323, %v322
  %v364 = vpack.c.b16 %v325, %v324
  %v365 = vpack.c.b16 %v327, %v326
  %v366 = vpack.c.b16 %v329, %v328
  %v367 = vpack.c.b16 %v331, %v330
  %v368 = vpack.c.b16 %v333, %v332
  %v369 = vpack.c.b16 %v335, %v334
  %v370 = vpack.c.b16 %v337, %v336
  %v371 = vpack.c.b16 %v339, %v338
  %404 = vmatprep.subr.bf16.mxu0 0
  %405 = vmatpush1.bf16.msra.mxu0 %v340
  %406 = vmatprep.subr.bf16.mxu0 0
  %407 = vmatpush1.bf16.msra.mxu0 %v341
  %408 = vmatprep.subr.bf16.mxu0 0
  %409 = vmatpush1.bf16.msra.mxu0 %v342
  %410 = vmatprep.subr.bf16.mxu0 0
  %411 = vmatpush1.bf16.msra.mxu0 %v343
  %412 = vmatprep.subr.bf16.mxu0 0
  %413 = vmatpush1.bf16.msra.mxu0 %v344
  %414 = vmatprep.subr.bf16.mxu0 0
  %415 = vmatpush1.bf16.msra.mxu0 %v345
  %416 = vmatprep.subr.bf16.mxu0 0
  %417 = vmatpush1.bf16.msra.mxu0 %v346
  %418 = vmatprep.subr.bf16.mxu0 0
  %419 = vmatpush1.bf16.msra.mxu0 %v347
  %420 = vmatprep.subr.bf16.mxu0 0
  %421 = vmatpush1.bf16.msra.mxu0 %v348
  %422 = vmatprep.subr.bf16.mxu0 0
  %423 = vmatpush1.bf16.msra.mxu0 %v349
  %424 = vmatprep.subr.bf16.mxu0 0
  %425 = vmatpush1.bf16.msra.mxu0 %v350
  %426 = vmatprep.subr.bf16.mxu0 0
  %427 = vmatpush1.bf16.msra.mxu0 %v351
  %428 = vmatprep.subr.bf16.mxu0 0
  %429 = vmatpush1.bf16.msra.mxu0 %v352
  %430 = vmatprep.subr.bf16.mxu0 0
  %431 = vmatpush1.bf16.msra.mxu0 %v353
  %432 = vmatprep.subr.bf16.mxu0 0
  %433 = vmatpush1.bf16.msra.mxu0 %v354
  %434 = vmatprep.subr.bf16.mxu0 0
  %435 = vmatpush1.bf16.msra.mxu0 %v355
  %436 = vmatprep.mubr.bf16.mxu0 %v141
  %437 = vmatmul.mubr.bf16.gmra.mrb[0].mxu0 %v140
  %v438 = vpop.f32.mrb[0].mxu0
  %v439 = vadd.f32 0.0, %v438
  %v440 = vpop.f32.mrb[0].mxu0
  %v441 = vpop.f32.mrb[0].mxu0
  %v442 = vadd.f32 0.0, %v441
  %v443 = vpop.f32.mrb[0].mxu0
  %444 = vmatprep.mubr.bf16.mxu0 %v145
  %445 = vmatmul.mubr.bf16.gmra.mrb[0].mxu0 %v144
  %v446 = vpop.f32.mrb[0].mxu0
  %v447 = vadd.f32 0.0, %v446
  %v448 = vpop.f32.mrb[0].mxu0
  %v449 = vpop.f32.mrb[0].mxu0
  %v450 = vadd.f32 0.0, %v449
  %v451 = vpop.f32.mrb[0].mxu0
  %452 = vdwg.mxu0
  %453 = vmatprep.subr.bf16.mxu0 0
  %454 = vmatpush1.bf16.msra.mxu0 %v356
  %455 = vmatprep.subr.bf16.mxu0 0
  %456 = vmatpush1.bf16.msra.mxu0 %v357
  %457 = vmatprep.subr.bf16.mxu0 0
  %458 = vmatpush1.bf16.msra.mxu0 %v358
  %459 = vmatprep.subr.bf16.mxu0 0
  %460 = vmatpush1.bf16.msra.mxu0 %v359
  %461 = vmatprep.subr.bf16.mxu0 0
  %462 = vmatpush1.bf16.msra.mxu0 %v360
  %463 = vmatprep.subr.bf16.mxu0 0
  %464 = vmatpush1.bf16.msra.mxu0 %v361
  %465 = vmatprep.subr.bf16.mxu0 0
  %466 = vmatpush1.bf16.msra.mxu0 %v362
  %467 = vmatprep.subr.bf16.mxu0 0
  %468 = vmatpush1.bf16.msra.mxu0 %v363
  %469 = vmatprep.subr.bf16.mxu0 0
  %470 = vmatpush1.bf16.msra.mxu0 %v364
  %471 = vmatprep.subr.bf16.mxu0 0
  %472 = vmatpush1.bf16.msra.mxu0 %v365
  %473 = vmatprep.subr.bf16.mxu0 0
  %474 = vmatpush1.bf16.msra.mxu0 %v366
  %475 = vmatprep.subr.bf16.mxu0 0
  %476 = vmatpush1.bf16.msra.mxu0 %v367
  %477 = vmatprep.subr.bf16.mxu0 0
  %478 = vmatpush1.bf16.msra.mxu0 %v368
  %479 = vmatprep.subr.bf16.mxu0 0
  %480 = vmatpush1.bf16.msra.mxu0 %v369
  %481 = vmatprep.subr.bf16.mxu0 0
  %482 = vmatpush1.bf16.msra.mxu0 %v370
  %483 = vmatprep.subr.bf16.mxu0 0
  %484 = vmatpush1.bf16.msra.mxu0 %v371
  %485 = vmatprep.mubr.bf16.mxu0 %v143
  %486 = vmatmul.mubr.bf16.gmra.mrb[0].mxu0 %v142
  %v487 = vpop.f32.mrb[0].mxu0
  %v488 = vadd.f32 %v439, %v487
  %v489 = vpop.f32.mrb[0].mxu0
  %v490 = vpop.f32.mrb[0].mxu0
  %v491 = vadd.f32 %v442, %v490
  %v492 = vpop.f32.mrb[0].mxu0
  %493 = vmatprep.mubr.bf16.mxu0 %v147
  %494 = vmatmul.mubr.bf16.gmra.mrb[0].mxu0 %v146
  %v495 = vpop.f32.mrb[0].mxu0
  %v496 = vadd.f32 %v447, %v495
  %v497 = vpop.f32.mrb[0].mxu0
  %v498 = vpop.f32.mrb[0].mxu0
  %v499 = vadd.f32 %v450, %v498
  %v500 = vpop.f32.mrb[0].mxu0
  %501 = vdwg.mxu0
  %v502 = vld [vmem:[%s3] sm:$0x1]
  %v504 = vlaneseq
  %v505 = vshrl.u32 %v504, 7
  %v506 = vsub.s32 0, %v505
  %v507 = vrot.slane %v502, %v506
  %v509 = vmul.f32 %v488, %v507
  %v510 = vmul.f32 %v491, %v507
  %v511 = vmul.f32 %v496, %v507
  %v512 = vmul.f32 %v499, %v507
  %v513 = vld [vmem:[%s4] sm:$0x1]
  %v515 = vlaneseq
  %v516 = vshrl.u32 %v515, 7
  %v517 = vsub.s32 0, %v516
  %v518 = vrot.slane %v513, %v517
  %v520 = vadd.f32 %v509, %v518
  %v521 = vadd.f32 %v510, %v518
  %v522 = vadd.f32 %v511, %v518
  %v523 = vadd.f32 %v512, %v518
  %v524 = vmax.f32 %v520, 0.0
  %v525 = vmax.f32 %v521, 0.0
  %v526 = vmax.f32 %v522, 0.0
  %v527 = vmax.f32 %v523, 0.0
  %v528 = vpack.c.bf16 %v525, %v524
  %v529 = vpack.c.bf16 %v527, %v526
  %v532 = vunpack.c.l.b16 %v528
  %v533 = vunpack.c.h.b16 %v528
  %v534 = vunpack.c.l.b16 %v529
  %v535 = vunpack.c.h.b16 %v529
  %v536 = vpack.c.b16 %v532, %v532
  %v537 = vpack.c.b16 %v533, %v533
  %v538 = vpack.c.b16 %v534, %v534
  %v539 = vpack.c.b16 %v535, %v535
  %544 = vst [vmem:[%s6] sm:$0xf] %v536
  %545 = vst [vmem:[%s6 + $0x4] sm:$0xf] %v537
  %546 = vst [vmem:[%s6 + $0x8] sm:$0xf] %v538
  %547 = vst [vmem:[%s6 + $0xc] sm:$0xf] %v539
  // Predicated region
  $region26: #{densenet_forward.135} parent=0 // pred_check
    _
  $region27: #{densenet_forward.135} parent=0 // pred_check_branch
    %549 = sbr.rel (0) target = $region29
  $region28: #{densenet_forward.135} parent=0 // pred_region
    _
  $region29: #{densenet_forward.135} parent=0 // pred_fallthru
    _
  // Predicated region
  $region30: #{densenet_forward.135} parent=0 // pred_check
    _
  $region31: #{densenet_forward.135} parent=0 // pred_check_branch
    %551 = sbr.rel (0) target = $region33
  $region32: #{densenet_forward.135} parent=0 // pred_region
    _
  $region33: #{densenet_forward.135} parent=0 // pred_fallthru
    _

// kernel: densenet_forward.138
$region0: #{densenet_forward.138}
  #allocation0 [shape = 'u32[]', space=smem, size = 0x4, offset = 0x4, fixed_abs, tag = 'smem constant byte address 0x4 - core index']
  #allocation1 [shape = 'u32[144,128]{1,0:T(1,128)}', space=vmem, size = 0x12000, scoped, tag = 'internal scratch']
  %s0 = inlined_call_operand.hbm [shape: bf16[32,1152], index: 0, kind: input, shape index: {}]
  %s1 = inlined_call_operand.vmem [shape: bf16[1152,128], index: 1, kind: input, shape index: {}]
  %s2 = inlined_call_operand.vmem [shape: bf16[32,128], index: 2, kind: output, shape index: {}]
  %s3 = sld [smem:[#allocation0]]
  $region22: #{densenet_forward.138} parent=0
    _
  %s5 = ssub.s32 1, %s3
  %s6 = scalar_select 0, %s5, %s3
  $region1: #{densenet_forward.138} parent=0
    #allocation2 [shape = 'u8[73728]{0}', space=vmem, size = 0x12000, scoped, tag = 'input window, operand 0, single buffered']
    #allocation3 [shape = 's32[1]{0}', space=sflag, size = 0x4, scoped, tag = 'scoped memory for densenet_forward.138']
    %7 = vsyncpa [#allocation3], 0
    // Predicated region
    $region2: #{densenet_forward.138} parent=1 // pred_check
      _
    $region3: #{densenet_forward.138} parent=1 // pred_check_branch
      %9 = sbr.rel (0) target = $region5
    $region4: #{densenet_forward.138} parent=1 // pred_region
      %s11 = ssub.s32 2304, 2304
      %12 = vsyncadd [#allocation3], %s11
      %s13 = sshll.u32 [#allocation2], 4
      %s14 = int_to_ptr.vmem [resolvable:$true] %s13
      %19 = dma.hbm_to_vmem [thread:$0]  %s0, 2304, %s14, [#allocation3], 576, 576, 36
    $region5: #{densenet_forward.138} parent=1 // pred_fallthru
      _
    // Predicated region
    $region6: #{densenet_forward.138} parent=1 // pred_check
      _
    $region7: #{densenet_forward.138} parent=1 // pred_check_branch
      %21 = sbr.rel (0) target = $region9
    $region8: #{densenet_forward.138} parent=1 // pred_region
      _
    $region9: #{densenet_forward.138} parent=1 // pred_fallthru
      _
    // Predicated region
    $region10: #{densenet_forward.138} parent=1 // pred_check
      _
    $region11: #{densenet_forward.138} parent=1 // pred_check_branch
      %23 = sbr.rel (0) target = $region13
    $region12: #{densenet_forward.138} parent=1 // pred_region
      %24 = dma.done [#allocation3], 2304
    $region13: #{densenet_forward.138} parent=1 // pred_fallthru
      _
    %v26 = vld [vmem:[#allocation2] sm:$0xff]
    %v27 = vld [vmem:[#allocation2 + $0x8] sm:$0xff]
    %v28 = vld [vmem:[#allocation2 + $0x10] sm:$0xff]
    %v29 = vld [vmem:[#allocation2 + $0x18] sm:$0xff]
    %v30 = vld [vmem:[#allocation2 + $0x20] sm:$0xf]
    %v31 = vld [vmem:[#allocation2 + $0x24] sm:$0xff]
    %v32 = vld [vmem:[#allocation2 + $0x2c] sm:$0xff]
    %v33 = vld [vmem:[#allocation2 + $0x34] sm:$0xff]
    %v34 = vld [vmem:[#allocation2 + $0x3c] sm:$0xff]
    %v35 = vld [vmem:[#allocation2 + $0x44] sm:$0xf]
    %v36 = vld [vmem:[#allocation2 + $0x48] sm:$0xff]
    %v37 = vld [vmem:[#allocation2 + $0x50] sm:$0xff]
    %v38 = vld [vmem:[#allocation2 + $0x58] sm:$0xff]
    %v39 = vld [vmem:[#allocation2 + $0x60] sm:$0xff]
    %v40 = vld [vmem:[#allocation2 + $0x68] sm:$0xf]
    %v41 = vld [vmem:[#allocation2 + $0x6c] sm:$0xff]
    %v42 = vld [vmem:[#allocation2 + $0x74] sm:$0xff]
    %v43 = vld [vmem:[#allocation2 + $0x7c] sm:$0xff]
    %v44 = vld [vmem:[#allocation2 + $0x84] sm:$0xff]
    %v45 = vld [vmem:[#allocation2 + $0x8c] sm:$0xf]
    %v46 = vld [vmem:[%s1] sm:$0xf]
    %v47 = vld [vmem:[%s1 + $0x4] sm:$0xf]
    %v48 = vld [vmem:[%s1 + $0x8] sm:$0xf]
    %v49 = vld [vmem:[%s1 + $0xc] sm:$0xf]
    %v50 = vld [vmem:[%s1 + $0x10] sm:$0xf]
    %v51 = vld [vmem:[%s1 + $0x14] sm:$0xf]
    %v52 = vld [vmem:[%s1 + $0x18] sm:$0xf]
    %v53 = vld [vmem:[%s1 + $0x1c] sm:$0xf]
    %v54 = vld [vmem:[%s1 + $0x20] sm:$0xf]
    %v55 = vld [vmem:[%s1 + $0x24] sm:$0xf]
    %v56 = vld [vmem:[%s1 + $0x28] sm:$0xf]
    %v57 = vld [vmem:[%s1 + $0x2c] sm:$0xf]
    %v58 = vld [vmem:[%s1 + $0x30] sm:$0xf]
    %v59 = vld [vmem:[%s1 + $0x34] sm:$0xf]
    %v60 = vld [vmem:[%s1 + $0x38] sm:$0xf]
    %v61 = vld [vmem:[%s1 + $0x3c] sm:$0xf]
    %v62 = vld [vmem:[%s1 + $0x40] sm:$0xf]
    %v63 = vld [vmem:[%s1 + $0x44] sm:$0xf]
    %v64 = vld [vmem:[%s1 + $0x48] sm:$0xf]
    %v65 = vld [vmem:[%s1 + $0x4c] sm:$0xf]
    %v66 = vld [vmem:[%s1 + $0x50] sm:$0xf]
    %v67 = vld [vmem:[%s1 + $0x54] sm:$0xf]
    %v68 = vld [vmem:[%s1 + $0x58] sm:$0xf]
    %v69 = vld [vmem:[%s1 + $0x5c] sm:$0xf]
    %v70 = vld [vmem:[%s1 + $0x60] sm:$0xf]
    %v71 = vld [vmem:[%s1 + $0x64] sm:$0xf]
    %v72 = vld [vmem:[%s1 + $0x68] sm:$0xf]
    %v73 = vld [vmem:[%s1 + $0x6c] sm:$0xf]
    %v74 = vld [vmem:[%s1 + $0x70] sm:$0xf]
    %v75 = vld [vmem:[%s1 + $0x74] sm:$0xf]
    %v76 = vld [vmem:[%s1 + $0x78] sm:$0xf]
    %v77 = vld [vmem:[%s1 + $0x7c] sm:$0xf]
    %v78 = vld [vmem:[%s1 + $0x80] sm:$0xf]
    %v79 = vld [vmem:[%s1 + $0x84] sm:$0xf]
    %v80 = vld [vmem:[%s1 + $0x88] sm:$0xf]
    %v81 = vld [vmem:[%s1 + $0x8c] sm:$0xf]
    %v82 = vld [vmem:[%s1 + $0x90] sm:$0xf]
    %v83 = vld [vmem:[%s1 + $0x94] sm:$0xf]
    %v84 = vld [vmem:[%s1 + $0x98] sm:$0xf]
    %v85 = vld [vmem:[%s1 + $0x9c] sm:$0xf]
    %v86 = vld [vmem:[%s1 + $0xa0] sm:$0xf]
    %v87 = vld [vmem:[%s1 + $0xa4] sm:$0xf]
    %v88 = vld [vmem:[%s1 + $0xa8] sm:$0xf]
    %v89 = vld [vmem:[%s1 + $0xac] sm:$0xf]
    %v90 = vld [vmem:[%s1 + $0xb0] sm:$0xf]
    %v91 = vld [vmem:[%s1 + $0xb4] sm:$0xf]
    %v92 = vld [vmem:[%s1 + $0xb8] sm:$0xf]
    %v93 = vld [vmem:[%s1 + $0xbc] sm:$0xf]
    %v94 = vld [vmem:[%s1 + $0xc0] sm:$0xf]
    %v95 = vld [vmem:[%s1 + $0xc4] sm:$0xf]
    %v96 = vld [vmem:[%s1 + $0xc8] sm:$0xf]
    %v97 = vld [vmem:[%s1 + $0xcc] sm:$0xf]
    %v98 = vld [vmem:[%s1 + $0xd0] sm:$0xf]
    %v99 = vld [vmem:[%s1 + $0xd4] sm:$0xf]
    %v100 = vld [vmem:[%s1 + $0xd8] sm:$0xf]
    %v101 = vld [vmem:[%s1 + $0xdc] sm:$0xf]
    %v102 = vld [vmem:[%s1 + $0xe0] sm:$0xf]
    %v103 = vld [vmem:[%s1 + $0xe4] sm:$0xf]
    %v104 = vld [vmem:[%s1 + $0xe8] sm:$0xf]
    %v105 = vld [vmem:[%s1 + $0xec] sm:$0xf]
    %v106 = vld [vmem:[%s1 + $0xf0] sm:$0xf]
    %v107 = vld [vmem:[%s1 + $0xf4] sm:$0xf]
    %v108 = vld [vmem:[%s1 + $0xf8] sm:$0xf]
    %v109 = vld [vmem:[%s1 + $0xfc] sm:$0xf]
    %v110 = vld [vmem:[%s1 + $0x100] sm:$0xf]
    %v111 = vld [vmem:[%s1 + $0x104] sm:$0xf]
    %v112 = vld [vmem:[%s1 + $0x108] sm:$0xf]
    %v113 = vld [vmem:[%s1 + $0x10c] sm:$0xf]
    %v114 = vld [vmem:[%s1 + $0x110] sm:$0xf]
    %v115 = vld [vmem:[%s1 + $0x114] sm:$0xf]
    %v116 = vld [vmem:[%s1 + $0x118] sm:$0xf]
    %v117 = vld [vmem:[%s1 + $0x11c] sm:$0xf]
    %v118 = vld [vmem:[%s1 + $0x120] sm:$0xf]
    %v119 = vld [vmem:[%s1 + $0x124] sm:$0xf]
    %v120 = vld [vmem:[%s1 + $0x128] sm:$0xf]
    %v121 = vld [vmem:[%s1 + $0x12c] sm:$0xf]
    %v122 = vld [vmem:[%s1 + $0x130] sm:$0xf]
    %v123 = vld [vmem:[%s1 + $0x134] sm:$0xf]
    %v124 = vld [vmem:[%s1 + $0x138] sm:$0xf]
    %v125 = vld [vmem:[%s1 + $0x13c] sm:$0xf]
    %v126 = vld [vmem:[%s1 + $0x140] sm:$0xf]
    %v127 = vld [vmem:[%s1 + $0x144] sm:$0xf]
    %v128 = vld [vmem:[%s1 + $0x148] sm:$0xf]
    %v129 = vld [vmem:[%s1 + $0x14c] sm:$0xf]
    %v130 = vld [vmem:[%s1 + $0x150] sm:$0xf]
    %v131 = vld [vmem:[%s1 + $0x154] sm:$0xf]
    %v132 = vld [vmem:[%s1 + $0x158] sm:$0xf]
    %v133 = vld [vmem:[%s1 + $0x15c] sm:$0xf]
    %v134 = vld [vmem:[%s1 + $0x160] sm:$0xf]
    %v135 = vld [vmem:[%s1 + $0x164] sm:$0xf]
    %v136 = vld [vmem:[%s1 + $0x168] sm:$0xf]
    %v137 = vld [vmem:[%s1 + $0x16c] sm:$0xf]
    %v138 = vld [vmem:[%s1 + $0x170] sm:$0xf]
    %v139 = vld [vmem:[%s1 + $0x174] sm:$0xf]
    %v140 = vld [vmem:[%s1 + $0x178] sm:$0xf]
    %v141 = vld [vmem:[%s1 + $0x17c] sm:$0xf]
    %v142 = vld [vmem:[%s1 + $0x180] sm:$0xf]
    %v143 = vld [vmem:[%s1 + $0x184] sm:$0xf]
    %v144 = vld [vmem:[%s1 + $0x188] sm:$0xf]
    %v145 = vld [vmem:[%s1 + $0x18c] sm:$0xf]
    %v146 = vld [vmem:[%s1 + $0x190] sm:$0xf]
    %v147 = vld [vmem:[%s1 + $0x194] sm:$0xf]
    %v148 = vld [vmem:[%s1 + $0x198] sm:$0xf]
    %v149 = vld [vmem:[%s1 + $0x19c] sm:$0xf]
    %v150 = vld [vmem:[%s1 + $0x1a0] sm:$0xf]
    %v151 = vld [vmem:[%s1 + $0x1a4] sm:$0xf]
    %v152 = vld [vmem:[%s1 + $0x1a8] sm:$0xf]
    %v153 = vld [vmem:[%s1 + $0x1ac] sm:$0xf]
    %v154 = vld [vmem:[%s1 + $0x1b0] sm:$0xf]
    %v155 = vld [vmem:[%s1 + $0x1b4] sm:$0xf]
    %v156 = vld [vmem:[%s1 + $0x1b8] sm:$0xf]
    %v157 = vld [vmem:[%s1 + $0x1bc] sm:$0xf]
    %v158 = vld [vmem:[%s1 + $0x1c0] sm:$0xf]
    %v159 = vld [vmem:[%s1 + $0x1c4] sm:$0xf]
    %v160 = vld [vmem:[%s1 + $0x1c8] sm:$0xf]
    %v161 = vld [vmem:[%s1 + $0x1cc] sm:$0xf]
    %v162 = vld [vmem:[%s1 + $0x1d0] sm:$0xf]
    %v163 = vld [vmem:[%s1 + $0x1d4] sm:$0xf]
    %v164 = vld [vmem:[%s1 + $0x1d8] sm:$0xf]
    %v165 = vld [vmem:[%s1 + $0x1dc] sm:$0xf]
    %v166 = vld [vmem:[%s1 + $0x1e0] sm:$0xf]
    %v167 = vld [vmem:[%s1 + $0x1e4] sm:$0xf]
    %v168 = vld [vmem:[%s1 + $0x1e8] sm:$0xf]
    %v169 = vld [vmem:[%s1 + $0x1ec] sm:$0xf]
    %v170 = vld [vmem:[%s1 + $0x1f0] sm:$0xf]
    %v171 = vld [vmem:[%s1 + $0x1f4] sm:$0xf]
    %v172 = vld [vmem:[%s1 + $0x1f8] sm:$0xf]
    %v173 = vld [vmem:[%s1 + $0x1fc] sm:$0xf]
    %v174 = vld [vmem:[%s1 + $0x200] sm:$0xf]
    %v175 = vld [vmem:[%s1 + $0x204] sm:$0xf]
    %v176 = vld [vmem:[%s1 + $0x208] sm:$0xf]
    %v177 = vld [vmem:[%s1 + $0x20c] sm:$0xf]
    %v178 = vld [vmem:[%s1 + $0x210] sm:$0xf]
    %v179 = vld [vmem:[%s1 + $0x214] sm:$0xf]
    %v180 = vld [vmem:[%s1 + $0x218] sm:$0xf]
    %v181 = vld [vmem:[%s1 + $0x21c] sm:$0xf]
    %v182 = vld [vmem:[%s1 + $0x220] sm:$0xf]
    %v183 = vld [vmem:[%s1 + $0x224] sm:$0xf]
    %v184 = vld [vmem:[%s1 + $0x228] sm:$0xf]
    %v185 = vld [vmem:[%s1 + $0x22c] sm:$0xf]
    %v186 = vld [vmem:[%s1 + $0x230] sm:$0xf]
    %v187 = vld [vmem:[%s1 + $0x234] sm:$0xf]
    %v188 = vld [vmem:[%s1 + $0x238] sm:$0xf]
    %v189 = vld [vmem:[%s1 + $0x23c] sm:$0xf]
    %v210 = vunpack.c.l.b16 %v26
    %v211 = vunpack.c.h.b16 %v26
    %v212 = vunpack.c.l.b16 %v27
    %v213 = vunpack.c.h.b16 %v27
    %v214 = vunpack.c.l.b16 %v28
    %v215 = vunpack.c.h.b16 %v28
    %v216 = vunpack.c.l.b16 %v29
    %v217 = vunpack.c.h.b16 %v29
    %v218 = vunpack.c.l.b16 %v30
    %v219 = vunpack.c.l.b16 %v31
    %v220 = vunpack.c.h.b16 %v31
    %v221 = vunpack.c.l.b16 %v32
    %v222 = vunpack.c.h.b16 %v32
    %v223 = vunpack.c.l.b16 %v33
    %v224 = vunpack.c.h.b16 %v33
    %v225 = vunpack.c.l.b16 %v34
    %v226 = vunpack.c.h.b16 %v34
    %v227 = vunpack.c.l.b16 %v35
    %v228 = vunpack.c.l.b16 %v36
    %v229 = vunpack.c.h.b16 %v36
    %v230 = vunpack.c.l.b16 %v37
    %v231 = vunpack.c.h.b16 %v37
    %v232 = vunpack.c.l.b16 %v38
    %v233 = vunpack.c.h.b16 %v38
    %v234 = vunpack.c.l.b16 %v39
    %v235 = vunpack.c.h.b16 %v39
    %v236 = vunpack.c.l.b16 %v40
    %v237 = vunpack.c.l.b16 %v41
    %v238 = vunpack.c.h.b16 %v41
    %v239 = vunpack.c.l.b16 %v42
    %v240 = vunpack.c.h.b16 %v42
    %v241 = vunpack.c.l.b16 %v43
    %v242 = vunpack.c.h.b16 %v43
    %v243 = vunpack.c.l.b16 %v44
    %v244 = vunpack.c.h.b16 %v44
    %v245 = vunpack.c.l.b16 %v45
    %v246 = vpack.c.b16 %v219, %v210
    %v247 = vpack.c.b16 %v220, %v211
    %v248 = vpack.c.b16 %v221, %v212
    %v249 = vpack.c.b16 %v222, %v213
    %v250 = vpack.c.b16 %v223, %v214
    %v251 = vpack.c.b16 %v224, %v215
    %v252 = vpack.c.b16 %v225, %v216
    %v253 = vpack.c.b16 %v226, %v217
    %v254 = vpack.c.b16 %v227, %v218
    %v255 = vpack.c.b16 %v237, %v228
    %v256 = vpack.c.b16 %v238, %v229
    %v257 = vpack.c.b16 %v239, %v230
    %v258 = vpack.c.b16 %v240, %v231
    %v259 = vpack.c.b16 %v241, %v232
    %v260 = vpack.c.b16 %v242, %v233
    %v261 = vpack.c.b16 %v243, %v234
    %v262 = vpack.c.b16 %v244, %v235
    %v263 = vpack.c.b16 %v245, %v236
    %v426 = vunpack.c.l.b16 %v46
    %v427 = vunpack.c.l.b16 %v47
    %v428 = vunpack.c.l.b16 %v48
    %v429 = vunpack.c.l.b16 %v49
    %v430 = vunpack.c.l.b16 %v50
    %v431 = vunpack.c.l.b16 %v51
    %v432 = vunpack.c.l.b16 %v52
    %v433 = vunpack.c.l.b16 %v53
    %v434 = vunpack.c.l.b16 %v54
    %v435 = vunpack.c.l.b16 %v55
    %v436 = vunpack.c.l.b16 %v56
    %v437 = vunpack.c.l.b16 %v57
    %v438 = vunpack.c.l.b16 %v58
    %v439 = vunpack.c.l.b16 %v59
    %v440 = vunpack.c.l.b16 %v60
    %v441 = vunpack.c.l.b16 %v61
    %v442 = vunpack.c.l.b16 %v62
    %v443 = vunpack.c.l.b16 %v63
    %v444 = vunpack.c.l.b16 %v64
    %v445 = vunpack.c.l.b16 %v65
    %v446 = vunpack.c.l.b16 %v66
    %v447 = vunpack.c.l.b16 %v67
    %v448 = vunpack.c.l.b16 %v68
    %v449 = vunpack.c.l.b16 %v69
    %v450 = vunpack.c.l.b16 %v70
    %v451 = vunpack.c.l.b16 %v71
    %v452 = vunpack.c.l.b16 %v72
    %v453 = vunpack.c.l.b16 %v73
    %v454 = vunpack.c.l.b16 %v74
    %v455 = vunpack.c.l.b16 %v75
    %v456 = vunpack.c.l.b16 %v76
    %v457 = vunpack.c.l.b16 %v77
    %v458 = vunpack.c.l.b16 %v78
    %v459 = vunpack.c.l.b16 %v79
    %v460 = vunpack.c.l.b16 %v80
    %v461 = vunpack.c.l.b16 %v81
    %v462 = vunpack.c.l.b16 %v82
    %v463 = vunpack.c.l.b16 %v83
    %v464 = vunpack.c.l.b16 %v84
    %v465 = vunpack.c.l.b16 %v85
    %v466 = vunpack.c.l.b16 %v86
    %v467 = vunpack.c.l.b16 %v87
    %v468 = vunpack.c.l.b16 %v88
    %v469 = vunpack.c.l.b16 %v89
    %v470 = vunpack.c.l.b16 %v90
    %v471 = vunpack.c.l.b16 %v91
    %v472 = vunpack.c.l.b16 %v92
    %v473 = vunpack.c.l.b16 %v93
    %v474 = vunpack.c.l.b16 %v94
    %v475 = vunpack.c.l.b16 %v95
    %v476 = vunpack.c.l.b16 %v96
    %v477 = vunpack.c.l.b16 %v97
    %v478 = vunpack.c.l.b16 %v98
    %v479 = vunpack.c.l.b16 %v99
    %v480 = vunpack.c.l.b16 %v100
    %v481 = vunpack.c.l.b16 %v101
    %v482 = vunpack.c.l.b16 %v102
    %v483 = vunpack.c.l.b16 %v103
    %v484 = vunpack.c.l.b16 %v104
    %v485 = vunpack.c.l.b16 %v105
    %v486 = vunpack.c.l.b16 %v106
    %v487 = vunpack.c.l.b16 %v107
    %v488 = vunpack.c.l.b16 %v108
    %v489 = vunpack.c.l.b16 %v109
    %v490 = vunpack.c.l.b16 %v110
    %v491 = vunpack.c.l.b16 %v111
    %v492 = vunpack.c.l.b16 %v112
    %v493 = vunpack.c.l.b16 %v113
    %v494 = vunpack.c.l.b16 %v114
    %v495 = vunpack.c.l.b16 %v115
    %v496 = vunpack.c.l.b16 %v116
    %v497 = vunpack.c.l.b16 %v117
    %v498 = vunpack.c.l.b16 %v118
    %v499 = vunpack.c.l.b16 %v119
    %v500 = vunpack.c.l.b16 %v120
    %v501 = vunpack.c.l.b16 %v121
    %v502 = vunpack.c.l.b16 %v122
    %v503 = vunpack.c.l.b16 %v123
    %v504 = vunpack.c.l.b16 %v124
    %v505 = vunpack.c.l.b16 %v125
    %v506 = vunpack.c.l.b16 %v126
    %v507 = vunpack.c.l.b16 %v127
    %v508 = vunpack.c.l.b16 %v128
    %v509 = vunpack.c.l.b16 %v129
    %v510 = vunpack.c.l.b16 %v130
    %v511 = vunpack.c.l.b16 %v131
    %v512 = vunpack.c.l.b16 %v132
    %v513 = vunpack.c.l.b16 %v133
    %v514 = vunpack.c.l.b16 %v134
    %v515 = vunpack.c.l.b16 %v135
    %v516 = vunpack.c.l.b16 %v136
    %v517 = vunpack.c.l.b16 %v137
    %v518 = vunpack.c.l.b16 %v138
    %v519 = vunpack.c.l.b16 %v139
    %v520 = vunpack.c.l.b16 %v140
    %v521 = vunpack.c.l.b16 %v141
    %v522 = vunpack.c.l.b16 %v142
    %v523 = vunpack.c.l.b16 %v143
    %v524 = vunpack.c.l.b16 %v144
    %v525 = vunpack.c.l.b16 %v145
    %v526 = vunpack.c.l.b16 %v146
    %v527 = vunpack.c.l.b16 %v147
    %v528 = vunpack.c.l.b16 %v148
    %v529 = vunpack.c.l.b16 %v149
    %v530 = vunpack.c.l.b16 %v150
    %v531 = vunpack.c.l.b16 %v151
    %v532 = vunpack.c.l.b16 %v152
    %v533 = vunpack.c.l.b16 %v153
    %v534 = vunpack.c.l.b16 %v154
    %v535 = vunpack.c.l.b16 %v155
    %v536 = vunpack.c.l.b16 %v156
    %v537 = vunpack.c.l.b16 %v157
    %v538 = vunpack.c.l.b16 %v158
    %v539 = vunpack.c.l.b16 %v159
    %v540 = vunpack.c.l.b16 %v160
    %v541 = vunpack.c.l.b16 %v161
    %v542 = vunpack.c.l.b16 %v162
    %v543 = vunpack.c.l.b16 %v163
    %v544 = vunpack.c.l.b16 %v164
    %v545 = vunpack.c.l.b16 %v165
    %v546 = vunpack.c.l.b16 %v166
    %v547 = vunpack.c.l.b16 %v167
    %v548 = vunpack.c.l.b16 %v168
    %v549 = vunpack.c.l.b16 %v169
    %v550 = vunpack.c.l.b16 %v170
    %v551 = vunpack.c.l.b16 %v171
    %v552 = vunpack.c.l.b16 %v172
    %v553 = vunpack.c.l.b16 %v173
    %v554 = vunpack.c.l.b16 %v174
    %v555 = vunpack.c.l.b16 %v175
    %v556 = vunpack.c.l.b16 %v176
    %v557 = vunpack.c.l.b16 %v177
    %v558 = vunpack.c.l.b16 %v178
    %v559 = vunpack.c.l.b16 %v179
    %v560 = vunpack.c.l.b16 %v180
    %v561 = vunpack.c.l.b16 %v181
    %v562 = vunpack.c.l.b16 %v182
    %v563 = vunpack.c.l.b16 %v183
    %v564 = vunpack.c.l.b16 %v184
    %v565 = vunpack.c.l.b16 %v185
    %v566 = vunpack.c.l.b16 %v186
    %v567 = vunpack.c.l.b16 %v187
    %v568 = vunpack.c.l.b16 %v188
    %v569 = vunpack.c.l.b16 %v189
    %v570 = vpack.c.b16 %v427, %v426
    %v571 = vpack.c.b16 %v429, %v428
    %v572 = vpack.c.b16 %v431, %v430
    %v573 = vpack.c.b16 %v433, %v432
    %v574 = vpack.c.b16 %v435, %v434
    %v575 = vpack.c.b16 %v437, %v436
    %v576 = vpack.c.b16 %v439, %v438
    %v577 = vpack.c.b16 %v441, %v440
    %v578 = vpack.c.b16 %v443, %v442
    %v579 = vpack.c.b16 %v445, %v444
    %v580 = vpack.c.b16 %v447, %v446
    %v581 = vpack.c.b16 %v449, %v448
    %v582 = vpack.c.b16 %v451, %v450
    %v583 = vpack.c.b16 %v453, %v452
    %v584 = vpack.c.b16 %v455, %v454
    %v585 = vpack.c.b16 %v457, %v456
    %v586 = vpack.c.b16 %v459, %v458
    %v587 = vpack.c.b16 %v461, %v460
    %v588 = vpack.c.b16 %v463, %v462
    %v589 = vpack.c.b16 %v465, %v464
    %v590 = vpack.c.b16 %v467, %v466
    %v591 = vpack.c.b16 %v469, %v468
    %v592 = vpack.c.b16 %v471, %v470
    %v593 = vpack.c.b16 %v473, %v472
    %v594 = vpack.c.b16 %v475, %v474
    %v595 = vpack.c.b16 %v477, %v476
    %v596 = vpack.c.b16 %v479, %v478
    %v597 = vpack.c.b16 %v481, %v480
    %v598 = vpack.c.b16 %v483, %v482
    %v599 = vpack.c.b16 %v485, %v484
    %v600 = vpack.c.b16 %v487, %v486
    %v601 = vpack.c.b16 %v489, %v488
    %v602 = vpack.c.b16 %v491, %v490
    %v603 = vpack.c.b16 %v493, %v492
    %v604 = vpack.c.b16 %v495, %v494
    %v605 = vpack.c.b16 %v497, %v496
    %v606 = vpack.c.b16 %v499, %v498
    %v607 = vpack.c.b16 %v501, %v500
    %v608 = vpack.c.b16 %v503, %v502
    %v609 = vpack.c.b16 %v505, %v504
    %v610 = vpack.c.b16 %v507, %v506
    %v611 = vpack.c.b16 %v509, %v508
    %v612 = vpack.c.b16 %v511, %v510
    %v613 = vpack.c.b16 %v513, %v512
    %v614 = vpack.c.b16 %v515, %v514
    %v615 = vpack.c.b16 %v517, %v516
    %v616 = vpack.c.b16 %v519, %v518
    %v617 = vpack.c.b16 %v521, %v520
    %v618 = vpack.c.b16 %v523, %v522
    %v619 = vpack.c.b16 %v525, %v524
    %v620 = vpack.c.b16 %v527, %v526
    %v621 = vpack.c.b16 %v529, %v528
    %v622 = vpack.c.b16 %v531, %v530
    %v623 = vpack.c.b16 %v533, %v532
    %v624 = vpack.c.b16 %v535, %v534
    %v625 = vpack.c.b16 %v537, %v536
    %v626 = vpack.c.b16 %v539, %v538
    %v627 = vpack.c.b16 %v541, %v540
    %v628 = vpack.c.b16 %v543, %v542
    %v629 = vpack.c.b16 %v545, %v544
    %v630 = vpack.c.b16 %v547, %v546
    %v631 = vpack.c.b16 %v549, %v548
    %v632 = vpack.c.b16 %v551, %v550
    %v633 = vpack.c.b16 %v553, %v552
    %v634 = vpack.c.b16 %v555, %v554
    %v635 = vpack.c.b16 %v557, %v556
    %v636 = vpack.c.b16 %v559, %v558
    %v637 = vpack.c.b16 %v561, %v560
    %v638 = vpack.c.b16 %v563, %v562
    %v639 = vpack.c.b16 %v565, %v564
    %v640 = vpack.c.b16 %v567, %v566
    %v641 = vpack.c.b16 %v569, %v568
    %714 = vmatprep.subr.bf16.mxu0 0
    %715 = vmatpush1.bf16.msra.mxu0 %v570
    %716 = vmatprep.subr.bf16.mxu0 0
    %717 = vmatpush1.bf16.msra.mxu0 %v571
    %718 = vmatprep.subr.bf16.mxu0 0
    %719 = vmatpush1.bf16.msra.mxu0 %v572
    %720 = vmatprep.subr.bf16.mxu0 0
    %721 = vmatpush1.bf16.msra.mxu0 %v573
    %722 = vmatprep.subr.bf16.mxu0 0
    %723 = vmatpush1.bf16.msra.mxu0 %v574
    %724 = vmatprep.subr.bf16.mxu0 0
    %725 = vmatpush1.bf16.msra.mxu0 %v575
    %726 = vmatprep.subr.bf16.mxu0 0
    %727 = vmatpush1.bf16.msra.mxu0 %v576
    %728 = vmatprep.subr.bf16.mxu0 0
    %729 = vmatpush1.bf16.msra.mxu0 %v577
    %730 = vmatprep.subr.bf16.mxu0 0
    %731 = vmatpush1.bf16.msra.mxu0 %v578
    %732 = vmatprep.subr.bf16.mxu0 0
    %733 = vmatpush1.bf16.msra.mxu0 %v579
    %734 = vmatprep.subr.bf16.mxu0 0
    %735 = vmatpush1.bf16.msra.mxu0 %v580
    %736 = vmatprep.subr.bf16.mxu0 0
    %737 = vmatpush1.bf16.msra.mxu0 %v581
    %738 = vmatprep.subr.bf16.mxu0 0
    %739 = vmatpush1.bf16.msra.mxu0 %v582
    %740 = vmatprep.subr.bf16.mxu0 0
    %741 = vmatpush1.bf16.msra.mxu0 %v583
    %742 = vmatprep.subr.bf16.mxu0 0
    %743 = vmatpush1.bf16.msra.mxu0 %v584
    %744 = vmatprep.subr.bf16.mxu0 0
    %745 = vmatpush1.bf16.msra.mxu0 %v585
    %746 = vmatprep.mubr.bf16.mxu0 %v247
    %747 = vmatmul.mubr.bf16.gmra.mrb[0].mxu0 %v246
    %v748 = vpop.f32.mrb[0].mxu0
    %v749 = vadd.f32 0.0, %v748
    %v750 = vpop.f32.mrb[0].mxu0
    %v751 = vpop.f32.mrb[0].mxu0
    %v752 = vadd.f32 0.0, %v751
    %v753 = vpop.f32.mrb[0].mxu0
    %754 = vmatprep.mubr.bf16.mxu0 %v256
    %755 = vmatmul.mubr.bf16.gmra.mrb[0].mxu0 %v255
    %v756 = vpop.f32.mrb[0].mxu0
    %v757 = vadd.f32 0.0, %v756
    %v758 = vpop.f32.mrb[0].mxu0
    %v759 = vpop.f32.mrb[0].mxu0
    %v760 = vadd.f32 0.0, %v759
    %v761 = vpop.f32.mrb[0].mxu0
    %762 = vdwg.mxu0
    %763 = vmatprep.subr.bf16.mxu0 0
    %764 = vmatpush1.bf16.msra.mxu0 %v586
    %765 = vmatprep.subr.bf16.mxu0 0
    %766 = vmatpush1.bf16.msra.mxu0 %v587
    %767 = vmatprep.subr.bf16.mxu0 0
    %768 = vmatpush1.bf16.msra.mxu0 %v588
    %769 = vmatprep.subr.bf16.mxu0 0
    %770 = vmatpush1.bf16.msra.mxu0 %v589
    %771 = vmatprep.subr.bf16.mxu0 0
    %772 = vmatpush1.bf16.msra.mxu0 %v590
    %773 = vmatprep.subr.bf16.mxu0 0
    %774 = vmatpush1.bf16.msra.mxu0 %v591
    %775 = vmatprep.subr.bf16.mxu0 0
    %776 = vmatpush1.bf16.msra.mxu0 %v592
    %777 = vmatprep.subr.bf16.mxu0 0
    %778 = vmatpush1.bf16.msra.mxu0 %v593
    %779 = vmatprep.subr.bf16.mxu0 0
    %780 = vmatpush1.bf16.msra.mxu0 %v594
    %781 = vmatprep.subr.bf16.mxu0 0
    %782 = vmatpush1.bf16.msra.mxu0 %v595
    %783 = vmatprep.subr.bf16.mxu0 0
    %784 = vmatpush1.bf16.msra.mxu0 %v596
    %785 = vmatprep.subr.bf16.mxu0 0
    %786 = vmatpush1.bf16.msra.mxu0 %v597
    %787 = vmatprep.subr.bf16.mxu0 0
    %788 = vmatpush1.bf16.msra.mxu0 %v598
    %789 = vmatprep.subr.bf16.mxu0 0
    %790 = vmatpush1.bf16.msra.mxu0 %v599
    %791 = vmatprep.subr.bf16.mxu0 0
    %792 = vmatpush1.bf16.msra.mxu0 %v600
    %793 = vmatprep.subr.bf16.mxu0 0
    %794 = vmatpush1.bf16.msra.mxu0 %v601
    %795 = vmatprep.mubr.bf16.mxu0 %v249
    %796 = vmatmul.mubr.bf16.gmra.mrb[0].mxu0 %v248
    %v797 = vpop.f32.mrb[0].mxu0
    %v798 = vadd.f32 %v749, %v797
    %v799 = vpop.f32.mrb[0].mxu0
    %v800 = vpop.f32.mrb[0].mxu0
    %v801 = vadd.f32 %v752, %v800
    %v802 = vpop.f32.mrb[0].mxu0
    %803 = vmatprep.mubr.bf16.mxu0 %v258
    %804 = vmatmul.mubr.bf16.gmra.mrb[0].mxu0 %v257
    %v805 = vpop.f32.mrb[0].mxu0
    %v806 = vadd.f32 %v757, %v805
    %v807 = vpop.f32.mrb[0].mxu0
    %v808 = vpop.f32.mrb[0].mxu0
    %v809 = vadd.f32 %v760, %v808
    %v810 = vpop.f32.mrb[0].mxu0
    %811 = vdwg.mxu0
    %812 = vmatprep.subr.bf16.mxu0 0
    %813 = vmatpush1.bf16.msra.mxu0 %v602
    %814 = vmatprep.subr.bf16.mxu0 0
    %815 = vmatpush1.bf16.msra.mxu0 %v603
    %816 = vmatprep.subr.bf16.mxu0 0
    %817 = vmatpush1.bf16.msra.mxu0 %v604
    %818 = vmatprep.subr.bf16.mxu0 0
    %819 = vmatpush1.bf16.msra.mxu0 %v605
    %820 = vmatprep.subr.bf16.mxu0 0
    %821 = vmatpush1.bf16.msra.mxu0 %v606
    %822 = vmatprep.subr.bf16.mxu0 0
    %823 = vmatpush1.bf16.msra.mxu0 %v607
    %824 = vmatprep.subr.bf16.mxu0 0
    %825 = vmatpush1.bf16.msra.mxu0 %v608
    %826 = vmatprep.subr.bf16.mxu0 0
    %827 = vmatpush1.bf16.msra.mxu0 %v609
    %828 = vmatprep.subr.bf16.mxu0 0
    %829 = vmatpush1.bf16.msra.mxu0 %v610
    %830 = vmatprep.subr.bf16.mxu0 0
    %831 = vmatpush1.bf16.msra.mxu0 %v611
    %832 = vmatprep.subr.bf16.mxu0 0
    %833 = vmatpush1.bf16.msra.mxu0 %v612
    %834 = vmatprep.subr.bf16.mxu0 0
    %835 = vmatpush1.bf16.msra.mxu0 %v613
    %836 = vmatprep.subr.bf16.mxu0 0
    %837 = vmatpush1.bf16.msra.mxu0 %v614
    %838 = vmatprep.subr.bf16.mxu0 0
    %839 = vmatpush1.bf16.msra.mxu0 %v615
    %840 = vmatprep.subr.bf16.mxu0 0
    %841 = vmatpush1.bf16.msra.mxu0 %v616
    %842 = vmatprep.subr.bf16.mxu0 0
    %843 = vmatpush1.bf16.msra.mxu0 %v617
    %844 = vmatprep.mubr.bf16.mxu0 %v251
    %845 = vmatmul.mubr.bf16.gmra.mrb[0].mxu0 %v250
    %v846 = vpop.f32.mrb[0].mxu0
    %v847 = vadd.f32 %v798, %v846
    %v848 = vpop.f32.mrb[0].mxu0
    %v849 = vpop.f32.mrb[0].mxu0
    %v850 = vadd.f32 %v801, %v849
    %v851 = vpop.f32.mrb[0].mxu0
    %852 = vmatprep.mubr.bf16.mxu0 %v260
    %853 = vmatmul.mubr.bf16.gmra.mrb[0].mxu0 %v259
    %v854 = vpop.f32.mrb[0].mxu0
    %v855 = vadd.f32 %v806, %v854
    %v856 = vpop.f32.mrb[0].mxu0
    %v857 = vpop.f32.mrb[0].mxu0
    %v858 = vadd.f32 %v809, %v857
    %v859 = vpop.f32.mrb[0].mxu0
    %860 = vdwg.mxu0
    %861 = vmatprep.subr.bf16.mxu0 0
    %862 = vmatpush1.bf16.msra.mxu0 %v618
    %863 = vmatprep.subr.bf16.mxu0 0
    %864 = vmatpush1.bf16.msra.mxu0 %v619
    %865 = vmatprep.subr.bf16.mxu0 0
    %866 = vmatpush1.bf16.msra.mxu0 %v620
    %867 = vmatprep.subr.bf16.mxu0 0
    %868 = vmatpush1.bf16.msra.mxu0 %v621
    %869 = vmatprep.subr.bf16.mxu0 0
    %870 = vmatpush1.bf16.msra.mxu0 %v622
    %871 = vmatprep.subr.bf16.mxu0 0
    %872 = vmatpush1.bf16.msra.mxu0 %v623
    %873 = vmatprep.subr.bf16.mxu0 0
    %874 = vmatpush1.bf16.msra.mxu0 %v624
    %875 = vmatprep.subr.bf16.mxu0 0
    %876 = vmatpush1.bf16.msra.mxu0 %v625
    %877 = vmatprep.subr.bf16.mxu0 0
    %878 = vmatpush1.bf16.msra.mxu0 %v626
    %879 = vmatprep.subr.bf16.mxu0 0
    %880 = vmatpush1.bf16.msra.mxu0 %v627
    %881 = vmatprep.subr.bf16.mxu0 0
    %882 = vmatpush1.bf16.msra.mxu0 %v628
    %883 = vmatprep.subr.bf16.mxu0 0
    %884 = vmatpush1.bf16.msra.mxu0 %v629
    %885 = vmatprep.subr.bf16.mxu0 0
    %886 = vmatpush1.bf16.msra.mxu0 %v630
    %887 = vmatprep.subr.bf16.mxu0 0
    %888 = vmatpush1.bf16.msra.mxu0 %v631
    %889 = vmatprep.subr.bf16.mxu0 0
    %890 = vmatpush1.bf16.msra.mxu0 %v632
    %891 = vmatprep.subr.bf16.mxu0 0
    %892 = vmatpush1.bf16.msra.mxu0 %v633
    %893 = vmatprep.mubr.bf16.mxu0 %v253
    %894 = vmatmul.mubr.bf16.gmra.mrb[0].mxu0 %v252
    %v895 = vpop.f32.mrb[0].mxu0
    %v896 = vadd.f32 %v847, %v895
    %v897 = vpop.f32.mrb[0].mxu0
    %v898 = vpop.f32.mrb[0].mxu0
    %v899 = vadd.f32 %v850, %v898
    %v900 = vpop.f32.mrb[0].mxu0
    %901 = vmatprep.mubr.bf16.mxu0 %v262
    %902 = vmatmul.mubr.bf16.gmra.mrb[0].mxu0 %v261
    %v903 = vpop.f32.mrb[0].mxu0
    %v904 = vadd.f32 %v855, %v903
    %v905 = vpop.f32.mrb[0].mxu0
    %v906 = vpop.f32.mrb[0].mxu0
    %v907 = vadd.f32 %v858, %v906
    %v908 = vpop.f32.mrb[0].mxu0
    %909 = vdwg.mxu0
    %910 = vmatprep.subr.bf16.mxu0 0
    %911 = vmatpush1.bf16.msra.mxu0 %v634
    %912 = vmatprep.subr.bf16.mxu0 0
    %913 = vmatpush1.bf16.msra.mxu0 %v635
    %914 = vmatprep.subr.bf16.mxu0 0
    %915 = vmatpush1.bf16.msra.mxu0 %v636
    %916 = vmatprep.subr.bf16.mxu0 0
    %917 = vmatpush1.bf16.msra.mxu0 %v637
    %918 = vmatprep.subr.bf16.mxu0 0
    %919 = vmatpush1.bf16.msra.mxu0 %v638
    %920 = vmatprep.subr.bf16.mxu0 0
    %921 = vmatpush1.bf16.msra.mxu0 %v639
    %922 = vmatprep.subr.bf16.mxu0 0
    %923 = vmatpush1.bf16.msra.mxu0 %v640
    %924 = vmatprep.subr.bf16.mxu0 0
    %925 = vmatpush1.bf16.msra.mxu0 %v641
    %926 = vmatprep.subr.bf16.mxu0 0
    %927 = vmatpush1.bf16.msra.mxu0 0
    %928 = vmatprep.subr.bf16.mxu0 0
    %929 = vmatpush1.bf16.msra.mxu0 0
    %930 = vmatprep.subr.bf16.mxu0 0
    %931 = vmatpush1.bf16.msra.mxu0 0
    %932 = vmatprep.subr.bf16.mxu0 0
    %933 = vmatpush1.bf16.msra.mxu0 0
    %934 = vmatprep.subr.bf16.mxu0 0
    %935 = vmatpush1.bf16.msra.mxu0 0
    %936 = vmatprep.subr.bf16.mxu0 0
    %937 = vmatpush1.bf16.msra.mxu0 0
    %938 = vmatprep.subr.bf16.mxu0 0
    %939 = vmatpush1.bf16.msra.mxu0 0
    %940 = vmatprep.subr.bf16.mxu0 0
    %941 = vmatpush1.bf16.msra.mxu0 0
    %942 = vmatprep.mubr.bf16.mxu0 0
    %943 = vmatmul.mubr.bf16.gmra.mrb[0].mxu0 %v254
    %v944 = vpop.f32.mrb[0].mxu0
    %v945 = vadd.f32 %v896, %v944
    %v946 = vpop.f32.mrb[0].mxu0
    %v947 = vpop.f32.mrb[0].mxu0
    %v948 = vadd.f32 %v899, %v947
    %v949 = vpop.f32.mrb[0].mxu0
    %950 = vmatprep.mubr.bf16.mxu0 0
    %951 = vmatmul.mubr.bf16.gmra.mrb[0].mxu0 %v263
    %v952 = vpop.f32.mrb[0].mxu0
    %v953 = vadd.f32 %v904, %v952
    %v954 = vpop.f32.mrb[0].mxu0
    %v955 = vpop.f32.mrb[0].mxu0
    %v956 = vadd.f32 %v907, %v955
    %v957 = vpop.f32.mrb[0].mxu0
    %958 = vdwg.mxu0
    %v959 = vpack.c.bf16 %v948, %v945
    %v960 = vpack.c.bf16 %v956, %v953
    %v963 = vunpack.c.l.b16 %v959
    %v964 = vunpack.c.h.b16 %v959
    %v965 = vunpack.c.l.b16 %v960
    %v966 = vunpack.c.h.b16 %v960
    %v967 = vpack.c.b16 %v963, %v963
    %v968 = vpack.c.b16 %v964, %v964
    %v969 = vpack.c.b16 %v965, %v965
    %v970 = vpack.c.b16 %v966, %v966
    %975 = vst [vmem:[%s2] sm:$0xf] %v967
    %976 = vst [vmem:[%s2 + $0x4] sm:$0xf] %v968
    %977 = vst [vmem:[%s2 + $0x8] sm:$0xf] %v969
    %978 = vst [vmem:[%s2 + $0xc] sm:$0xf] %v970
    // Predicated region
    $region14: #{densenet_forward.138} parent=1 // pred_check
      _
    $region15: #{densenet_forward.138} parent=1 // pred_check_branch
      %980 = sbr.rel (0) target = $region17
    $region16: #{densenet_forward.138} parent=1 // pred_region
      _
    $region17: #{densenet_forward.138} parent=1 // pred_fallthru
      _
    // Predicated region
    $region18: #{densenet_forward.138} parent=1 // pred_check
      _
    $region19: #{densenet_forward.138} parent=1 // pred_check_branch
      %982 = sbr.rel (0) target = $region21
    $region20: #{densenet_forward.138} parent=1 // pred_region
      _
    $region21: #{densenet_forward.138} parent=1 // pred_fallthru
      _
    %983 = vsyncpa [#allocation3], 1

// kernel: densenet_forward.136
$region0: #{densenet_forward.136}
  #allocation0 [shape = 'u32[]', space=smem, size = 0x4, offset = 0x4, fixed_abs, tag = 'smem constant byte address 0x4 - core index']
  #allocation1 [shape = 'u32[144,128]{1,0:T(1,128)}', space=vmem, size = 0x12000, scoped, tag = 'internal scratch']
  %s0 = inlined_call_operand.vmem [shape: bf16[32,1152], index: 0, kind: input, shape index: {}]
  %s1 = inlined_call_operand.vmem [shape: bf16[1152,128], index: 1, kind: input, shape index: {}]
  %s2 = inlined_call_operand.vmem [shape: bf16[32,128], index: 2, kind: output, shape index: {}]
  %s3 = sld [smem:[#allocation0]]
  $region18: #{densenet_forward.136} parent=0
    _
  %s5 = ssub.s32 1, %s3
  %s6 = scalar_select 0, %s5, %s3
  // Predicated region
  $region2: #{densenet_forward.136} parent=0 // pred_check
    _
  $region3: #{densenet_forward.136} parent=0 // pred_check_branch
    %8 = sbr.rel (0) target = $region5
  $region4: #{densenet_forward.136} parent=0 // pred_region
    _
  $region5: #{densenet_forward.136} parent=0 // pred_fallthru
    _
  // Predicated region
  $region6: #{densenet_forward.136} parent=0 // pred_check
    _
  $region7: #{densenet_forward.136} parent=0 // pred_check_branch
    %10 = sbr.rel (0) target = $region9
  $region8: #{densenet_forward.136} parent=0 // pred_region
    _
  $region9: #{densenet_forward.136} parent=0 // pred_fallthru
    _
  %v12 = vld [vmem:[%s0] sm:$0xff]
  %v13 = vld [vmem:[%s0 + $0x8] sm:$0xff]
  %v14 = vld [vmem:[%s0 + $0x10] sm:$0xff]
  %v15 = vld [vmem:[%s0 + $0x18] sm:$0xff]
  %v16 = vld [vmem:[%s0 + $0x20] sm:$0xf]
  %v17 = vld [vmem:[%s0 + $0x24] sm:$0xff]
  %v18 = vld [vmem:[%s0 + $0x2c] sm:$0xff]
  %v19 = vld [vmem:[%s0 + $0x34] sm:$0xff]
  %v20 = vld [vmem:[%s0 + $0x3c] sm:$0xff]
  %v21 = vld [vmem:[%s0 + $0x44] sm:$0xf]
  %v22 = vld [vmem:[%s0 + $0x48] sm:$0xff]
  %v23 = vld [vmem:[%s0 + $0x50] sm:$0xff]
  %v24 = vld [vmem:[%s0 + $0x58] sm:$0xff]
  %v25 = vld [vmem:[%s0 + $0x60] sm:$0xff]
  %v26 = vld [vmem:[%s0 + $0x68] sm:$0xf]
  %v27 = vld [vmem:[%s0 + $0x6c] sm:$0xff]
  %v28 = vld [vmem:[%s0 + $0x74] sm:$0xff]
  %v29 = vld [vmem:[%s0 + $0x7c] sm:$0xff]
  %v30 = vld [vmem:[%s0 + $0x84] sm:$0xff]
  %v31 = vld [vmem:[%s0 + $0x8c] sm:$0xf]
  %v32 = vld [vmem:[%s1] sm:$0xf]
  %v33 = vld [vmem:[%s1 + $0x4] sm:$0xf]
  %v34 = vld [vmem:[%s1 + $0x8] sm:$0xf]
  %v35 = vld [vmem:[%s1 + $0xc] sm:$0xf]
  %v36 = vld [vmem:[%s1 + $0x10] sm:$0xf]
  %v37 = vld [vmem:[%s1 + $0x14] sm:$0xf]
  %v38 = vld [vmem:[%s1 + $0x18] sm:$0xf]
  %v39 = vld [vmem:[%s1 + $0x1c] sm:$0xf]
  %v40 = vld [vmem:[%s1 + $0x20] sm:$0xf]
  %v41 = vld [vmem:[%s1 + $0x24] sm:$0xf]
  %v42 = vld [vmem:[%s1 + $0x28] sm:$0xf]
  %v43 = vld [vmem:[%s1 + $0x2c] sm:$0xf]
  %v44 = vld [vmem:[%s1 + $0x30] sm:$0xf]
  %v45 = vld [vmem:[%s1 + $0x34] sm:$0xf]
  %v46 = vld [vmem:[%s1 + $0x38] sm:$0xf]
  %v47 = vld [vmem:[%s1 + $0x3c] sm:$0xf]
  %v48 = vld [vmem:[%s1 + $0x40] sm:$0xf]
  %v49 = vld [vmem:[%s1 + $0x44] sm:$0xf]
  %v50 = vld [vmem:[%s1 + $0x48] sm:$0xf]
  %v51 = vld [vmem:[%s1 + $0x4c] sm:$0xf]
  %v52 = vld [vmem:[%s1 + $0x50] sm:$0xf]
  %v53 = vld [vmem:[%s1 + $0x54] sm:$0xf]
  %v54 = vld [vmem:[%s1 + $0x58] sm:$0xf]
  %v55 = vld [vmem:[%s1 + $0x5c] sm:$0xf]
  %v56 = vld [vmem:[%s1 + $0x60] sm:$0xf]
  %v57 = vld [vmem:[%s1 + $0x64] sm:$0xf]
  %v58 = vld [vmem:[%s1 + $0x68] sm:$0xf]
  %v59 = vld [vmem:[%s1 + $0x6c] sm:$0xf]
  %v60 = vld [vmem:[%s1 + $0x70] sm:$0xf]
  %v61 = vld [vmem:[%s1 + $0x74] sm:$0xf]
  %v62 = vld [vmem:[%s1 + $0x78] sm:$0xf]
  %v63 = vld [vmem:[%s1 + $0x7c] sm:$0xf]
  %v64 = vld [vmem:[%s1 + $0x80] sm:$0xf]
  %v65 = vld [vmem:[%s1 + $0x84] sm:$0xf]
  %v66 = vld [vmem:[%s1 + $0x88] sm:$0xf]
  %v67 = vld [vmem:[%s1 + $0x8c] sm:$0xf]
  %v68 = vld [vmem:[%s1 + $0x90] sm:$0xf]
  %v69 = vld [vmem:[%s1 + $0x94] sm:$0xf]
  %v70 = vld [vmem:[%s1 + $0x98] sm:$0xf]
  %v71 = vld [vmem:[%s1 + $0x9c] sm:$0xf]
  %v72 = vld [vmem:[%s1 + $0xa0] sm:$0xf]
  %v73 = vld [vmem:[%s1 + $0xa4] sm:$0xf]
  %v74 = vld [vmem:[%s1 + $0xa8] sm:$0xf]
  %v75 = vld [vmem:[%s1 + $0xac] sm:$0xf]
  %v76 = vld [vmem:[%s1 + $0xb0] sm:$0xf]
  %v77 = vld [vmem:[%s1 + $0xb4] sm:$0xf]
  %v78 = vld [vmem:[%s1 + $0xb8] sm:$0xf]
  %v79 = vld [vmem:[%s1 + $0xbc] sm:$0xf]
  %v80 = vld [vmem:[%s1 + $0xc0] sm:$0xf]
  %v81 = vld [vmem:[%s1 + $0xc4] sm:$0xf]
  %v82 = vld [vmem:[%s1 + $0xc8] sm:$0xf]
  %v83 = vld [vmem:[%s1 + $0xcc] sm:$0xf]
  %v84 = vld [vmem:[%s1 + $0xd0] sm:$0xf]
  %v85 = vld [vmem:[%s1 + $0xd4] sm:$0xf]
  %v86 = vld [vmem:[%s1 + $0xd8] sm:$0xf]
  %v87 = vld [vmem:[%s1 + $0xdc] sm:$0xf]
  %v88 = vld [vmem:[%s1 + $0xe0] sm:$0xf]
  %v89 = vld [vmem:[%s1 + $0xe4] sm:$0xf]
  %v90 = vld [vmem:[%s1 + $0xe8] sm:$0xf]
  %v91 = vld [vmem:[%s1 + $0xec] sm:$0xf]
  %v92 = vld [vmem:[%s1 + $0xf0] sm:$0xf]
  %v93 = vld [vmem:[%s1 + $0xf4] sm:$0xf]
  %v94 = vld [vmem:[%s1 + $0xf8] sm:$0xf]
  %v95 = vld [vmem:[%s1 + $0xfc] sm:$0xf]
  %v96 = vld [vmem:[%s1 + $0x100] sm:$0xf]
  %v97 = vld [vmem:[%s1 + $0x104] sm:$0xf]
  %v98 = vld [vmem:[%s1 + $0x108] sm:$0xf]
  %v99 = vld [vmem:[%s1 + $0x10c] sm:$0xf]
  %v100 = vld [vmem:[%s1 + $0x110] sm:$0xf]
  %v101 = vld [vmem:[%s1 + $0x114] sm:$0xf]
  %v102 = vld [vmem:[%s1 + $0x118] sm:$0xf]
  %v103 = vld [vmem:[%s1 + $0x11c] sm:$0xf]
  %v104 = vld [vmem:[%s1 + $0x120] sm:$0xf]
  %v105 = vld [vmem:[%s1 + $0x124] sm:$0xf]
  %v106 = vld [vmem:[%s1 + $0x128] sm:$0xf]
  %v107 = vld [vmem:[%s1 + $0x12c] sm:$0xf]
  %v108 = vld [vmem:[%s1 + $0x130] sm:$0xf]
  %v109 = vld [vmem:[%s1 + $0x134] sm:$0xf]
  %v110 = vld [vmem:[%s1 + $0x138] sm:$0xf]
  %v111 = vld [vmem:[%s1 + $0x13c] sm:$0xf]
  %v112 = vld [vmem:[%s1 + $0x140] sm:$0xf]
  %v113 = vld [vmem:[%s1 + $0x144] sm:$0xf]
  %v114 = vld [vmem:[%s1 + $0x148] sm:$0xf]
  %v115 = vld [vmem:[%s1 + $0x14c] sm:$0xf]
  %v116 = vld [vmem:[%s1 + $0x150] sm:$0xf]
  %v117 = vld [vmem:[%s1 + $0x154] sm:$0xf]
  %v118 = vld [vmem:[%s1 + $0x158] sm:$0xf]
  %v119 = vld [vmem:[%s1 + $0x15c] sm:$0xf]
  %v120 = vld [vmem:[%s1 + $0x160] sm:$0xf]
  %v121 = vld [vmem:[%s1 + $0x164] sm:$0xf]
  %v122 = vld [vmem:[%s1 + $0x168] sm:$0xf]
  %v123 = vld [vmem:[%s1 + $0x16c] sm:$0xf]
  %v124 = vld [vmem:[%s1 + $0x170] sm:$0xf]
  %v125 = vld [vmem:[%s1 + $0x174] sm:$0xf]
  %v126 = vld [vmem:[%s1 + $0x178] sm:$0xf]
  %v127 = vld [vmem:[%s1 + $0x17c] sm:$0xf]
  %v128 = vld [vmem:[%s1 + $0x180] sm:$0xf]
  %v129 = vld [vmem:[%s1 + $0x184] sm:$0xf]
  %v130 = vld [vmem:[%s1 + $0x188] sm:$0xf]
  %v131 = vld [vmem:[%s1 + $0x18c] sm:$0xf]
  %v132 = vld [vmem:[%s1 + $0x190] sm:$0xf]
  %v133 = vld [vmem:[%s1 + $0x194] sm:$0xf]
  %v134 = vld [vmem:[%s1 + $0x198] sm:$0xf]
  %v135 = vld [vmem:[%s1 + $0x19c] sm:$0xf]
  %v136 = vld [vmem:[%s1 + $0x1a0] sm:$0xf]
  %v137 = vld [vmem:[%s1 + $0x1a4] sm:$0xf]
  %v138 = vld [vmem:[%s1 + $0x1a8] sm:$0xf]
  %v139 = vld [vmem:[%s1 + $0x1ac] sm:$0xf]
  %v140 = vld [vmem:[%s1 + $0x1b0] sm:$0xf]
  %v141 = vld [vmem:[%s1 + $0x1b4] sm:$0xf]
  %v142 = vld [vmem:[%s1 + $0x1b8] sm:$0xf]
  %v143 = vld [vmem:[%s1 + $0x1bc] sm:$0xf]
  %v144 = vld [vmem:[%s1 + $0x1c0] sm:$0xf]
  %v145 = vld [vmem:[%s1 + $0x1c4] sm:$0xf]
  %v146 = vld [vmem:[%s1 + $0x1c8] sm:$0xf]
  %v147 = vld [vmem:[%s1 + $0x1cc] sm:$0xf]
  %v148 = vld [vmem:[%s1 + $0x1d0] sm:$0xf]
  %v149 = vld [vmem:[%s1 + $0x1d4] sm:$0xf]
  %v150 = vld [vmem:[%s1 + $0x1d8] sm:$0xf]
  %v151 = vld [vmem:[%s1 + $0x1dc] sm:$0xf]
  %v152 = vld [vmem:[%s1 + $0x1e0] sm:$0xf]
  %v153 = vld [vmem:[%s1 + $0x1e4] sm:$0xf]
  %v154 = vld [vmem:[%s1 + $0x1e8] sm:$0xf]
  %v155 = vld [vmem:[%s1 + $0x1ec] sm:$0xf]
  %v156 = vld [vmem:[%s1 + $0x1f0] sm:$0xf]
  %v157 = vld [vmem:[%s1 + $0x1f4] sm:$0xf]
  %v158 = vld [vmem:[%s1 + $0x1f8] sm:$0xf]
  %v159 = vld [vmem:[%s1 + $0x1fc] sm:$0xf]
  %v160 = vld [vmem:[%s1 + $0x200] sm:$0xf]
  %v161 = vld [vmem:[%s1 + $0x204] sm:$0xf]
  %v162 = vld [vmem:[%s1 + $0x208] sm:$0xf]
  %v163 = vld [vmem:[%s1 + $0x20c] sm:$0xf]
  %v164 = vld [vmem:[%s1 + $0x210] sm:$0xf]
  %v165 = vld [vmem:[%s1 + $0x214] sm:$0xf]
  %v166 = vld [vmem:[%s1 + $0x218] sm:$0xf]
  %v167 = vld [vmem:[%s1 + $0x21c] sm:$0xf]
  %v168 = vld [vmem:[%s1 + $0x220] sm:$0xf]
  %v169 = vld [vmem:[%s1 + $0x224] sm:$0xf]
  %v170 = vld [vmem:[%s1 + $0x228] sm:$0xf]
  %v171 = vld [vmem:[%s1 + $0x22c] sm:$0xf]
  %v172 = vld [vmem:[%s1 + $0x230] sm:$0xf]
  %v173 = vld [vmem:[%s1 + $0x234] sm:$0xf]
  %v174 = vld [vmem:[%s1 + $0x238] sm:$0xf]
  %v175 = vld [vmem:[%s1 + $0x23c] sm:$0xf]
  %v196 = vunpack.c.l.b16 %v12
  %v197 = vunpack.c.h.b16 %v12
  %v198 = vunpack.c.l.b16 %v13
  %v199 = vunpack.c.h.b16 %v13
  %v200 = vunpack.c.l.b16 %v14
  %v201 = vunpack.c.h.b16 %v14
  %v202 = vunpack.c.l.b16 %v15
  %v203 = vunpack.c.h.b16 %v15
  %v204 = vunpack.c.l.b16 %v16
  %v205 = vunpack.c.l.b16 %v17
  %v206 = vunpack.c.h.b16 %v17
  %v207 = vunpack.c.l.b16 %v18
  %v208 = vunpack.c.h.b16 %v18
  %v209 = vunpack.c.l.b16 %v19
  %v210 = vunpack.c.h.b16 %v19
  %v211 = vunpack.c.l.b16 %v20
  %v212 = vunpack.c.h.b16 %v20
  %v213 = vunpack.c.l.b16 %v21
  %v214 = vunpack.c.l.b16 %v22
  %v215 = vunpack.c.h.b16 %v22
  %v216 = vunpack.c.l.b16 %v23
  %v217 = vunpack.c.h.b16 %v23
  %v218 = vunpack.c.l.b16 %v24
  %v219 = vunpack.c.h.b16 %v24
  %v220 = vunpack.c.l.b16 %v25
  %v221 = vunpack.c.h.b16 %v25
  %v222 = vunpack.c.l.b16 %v26
  %v223 = vunpack.c.l.b16 %v27
  %v224 = vunpack.c.h.b16 %v27
  %v225 = vunpack.c.l.b16 %v28
  %v226 = vunpack.c.h.b16 %v28
  %v227 = vunpack.c.l.b16 %v29
  %v228 = vunpack.c.h.b16 %v29
  %v229 = vunpack.c.l.b16 %v30
  %v230 = vunpack.c.h.b16 %v30
  %v231 = vunpack.c.l.b16 %v31
  %v232 = vpack.c.b16 %v205, %v196
  %v233 = vpack.c.b16 %v206, %v197
  %v234 = vpack.c.b16 %v207, %v198
  %v235 = vpack.c.b16 %v208, %v199
  %v236 = vpack.c.b16 %v209, %v200
  %v237 = vpack.c.b16 %v210, %v201
  %v238 = vpack.c.b16 %v211, %v202
  %v239 = vpack.c.b16 %v212, %v203
  %v240 = vpack.c.b16 %v213, %v204
  %v241 = vpack.c.b16 %v223, %v214
  %v242 = vpack.c.b16 %v224, %v215
  %v243 = vpack.c.b16 %v225, %v216
  %v244 = vpack.c.b16 %v226, %v217
  %v245 = vpack.c.b16 %v227, %v218
  %v246 = vpack.c.b16 %v228, %v219
  %v247 = vpack.c.b16 %v229, %v220
  %v248 = vpack.c.b16 %v230, %v221
  %v249 = vpack.c.b16 %v231, %v222
  %v412 = vunpack.c.l.b16 %v32
  %v413 = vunpack.c.l.b16 %v33
  %v414 = vunpack.c.l.b16 %v34
  %v415 = vunpack.c.l.b16 %v35
  %v416 = vunpack.c.l.b16 %v36
  %v417 = vunpack.c.l.b16 %v37
  %v418 = vunpack.c.l.b16 %v38
  %v419 = vunpack.c.l.b16 %v39
  %v420 = vunpack.c.l.b16 %v40
  %v421 = vunpack.c.l.b16 %v41
  %v422 = vunpack.c.l.b16 %v42
  %v423 = vunpack.c.l.b16 %v43
  %v424 = vunpack.c.l.b16 %v44
  %v425 = vunpack.c.l.b16 %v45
  %v426 = vunpack.c.l.b16 %v46
  %v427 = vunpack.c.l.b16 %v47
  %v428 = vunpack.c.l.b16 %v48
  %v429 = vunpack.c.l.b16 %v49
  %v430 = vunpack.c.l.b16 %v50
  %v431 = vunpack.c.l.b16 %v51
  %v432 = vunpack.c.l.b16 %v52
  %v433 = vunpack.c.l.b16 %v53
  %v434 = vunpack.c.l.b16 %v54
  %v435 = vunpack.c.l.b16 %v55
  %v436 = vunpack.c.l.b16 %v56
  %v437 = vunpack.c.l.b16 %v57
  %v438 = vunpack.c.l.b16 %v58
  %v439 = vunpack.c.l.b16 %v59
  %v440 = vunpack.c.l.b16 %v60
  %v441 = vunpack.c.l.b16 %v61
  %v442 = vunpack.c.l.b16 %v62
  %v443 = vunpack.c.l.b16 %v63
  %v444 = vunpack.c.l.b16 %v64
  %v445 = vunpack.c.l.b16 %v65
  %v446 = vunpack.c.l.b16 %v66
  %v447 = vunpack.c.l.b16 %v67
  %v448 = vunpack.c.l.b16 %v68
  %v449 = vunpack.c.l.b16 %v69
  %v450 = vunpack.c.l.b16 %v70
  %v451 = vunpack.c.l.b16 %v71
  %v452 = vunpack.c.l.b16 %v72
  %v453 = vunpack.c.l.b16 %v73
  %v454 = vunpack.c.l.b16 %v74
  %v455 = vunpack.c.l.b16 %v75
  %v456 = vunpack.c.l.b16 %v76
  %v457 = vunpack.c.l.b16 %v77
  %v458 = vunpack.c.l.b16 %v78
  %v459 = vunpack.c.l.b16 %v79
  %v460 = vunpack.c.l.b16 %v80
  %v461 = vunpack.c.l.b16 %v81
  %v462 = vunpack.c.l.b16 %v82
  %v463 = vunpack.c.l.b16 %v83
  %v464 = vunpack.c.l.b16 %v84
  %v465 = vunpack.c.l.b16 %v85
  %v466 = vunpack.c.l.b16 %v86
  %v467 = vunpack.c.l.b16 %v87
  %v468 = vunpack.c.l.b16 %v88
  %v469 = vunpack.c.l.b16 %v89
  %v470 = vunpack.c.l.b16 %v90
  %v471 = vunpack.c.l.b16 %v91
  %v472 = vunpack.c.l.b16 %v92
  %v473 = vunpack.c.l.b16 %v93
  %v474 = vunpack.c.l.b16 %v94
  %v475 = vunpack.c.l.b16 %v95
  %v476 = vunpack.c.l.b16 %v96
  %v477 = vunpack.c.l.b16 %v97
  %v478 = vunpack.c.l.b16 %v98
  %v479 = vunpack.c.l.b16 %v99
  %v480 = vunpack.c.l.b16 %v100
  %v481 = vunpack.c.l.b16 %v101
  %v482 = vunpack.c.l.b16 %v102
  %v483 = vunpack.c.l.b16 %v103
  %v484 = vunpack.c.l.b16 %v104
  %v485 = vunpack.c.l.b16 %v105
  %v486 = vunpack.c.l.b16 %v106
  %v487 = vunpack.c.l.b16 %v107
  %v488 = vunpack.c.l.b16 %v108
  %v489 = vunpack.c.l.b16 %v109
  %v490 = vunpack.c.l.b16 %v110
  %v491 = vunpack.c.l.b16 %v111
  %v492 = vunpack.c.l.b16 %v112
  %v493 = vunpack.c.l.b16 %v113
  %v494 = vunpack.c.l.b16 %v114
  %v495 = vunpack.c.l.b16 %v115
  %v496 = vunpack.c.l.b16 %v116
  %v497 = vunpack.c.l.b16 %v117
  %v498 = vunpack.c.l.b16 %v118
  %v499 = vunpack.c.l.b16 %v119
  %v500 = vunpack.c.l.b16 %v120
  %v501 = vunpack.c.l.b16 %v121
  %v502 = vunpack.c.l.b16 %v122
  %v503 = vunpack.c.l.b16 %v123
  %v504 = vunpack.c.l.b16 %v124
  %v505 = vunpack.c.l.b16 %v125
  %v506 = vunpack.c.l.b16 %v126
  %v507 = vunpack.c.l.b16 %v127
  %v508 = vunpack.c.l.b16 %v128
  %v509 = vunpack.c.l.b16 %v129
  %v510 = vunpack.c.l.b16 %v130
  %v511 = vunpack.c.l.b16 %v131
  %v512 = vunpack.c.l.b16 %v132
  %v513 = vunpack.c.l.b16 %v133
  %v514 = vunpack.c.l.b16 %v134
  %v515 = vunpack.c.l.b16 %v135
  %v516 = vunpack.c.l.b16 %v136
  %v517 = vunpack.c.l.b16 %v137
  %v518 = vunpack.c.l.b16 %v138
  %v519 = vunpack.c.l.b16 %v139
  %v520 = vunpack.c.l.b16 %v140
  %v521 = vunpack.c.l.b16 %v141
  %v522 = vunpack.c.l.b16 %v142
  %v523 = vunpack.c.l.b16 %v143
  %v524 = vunpack.c.l.b16 %v144
  %v525 = vunpack.c.l.b16 %v145
  %v526 = vunpack.c.l.b16 %v146
  %v527 = vunpack.c.l.b16 %v147
  %v528 = vunpack.c.l.b16 %v148
  %v529 = vunpack.c.l.b16 %v149
  %v530 = vunpack.c.l.b16 %v150
  %v531 = vunpack.c.l.b16 %v151
  %v532 = vunpack.c.l.b16 %v152
  %v533 = vunpack.c.l.b16 %v153
  %v534 = vunpack.c.l.b16 %v154
  %v535 = vunpack.c.l.b16 %v155
  %v536 = vunpack.c.l.b16 %v156
  %v537 = vunpack.c.l.b16 %v157
  %v538 = vunpack.c.l.b16 %v158
  %v539 = vunpack.c.l.b16 %v159
  %v540 = vunpack.c.l.b16 %v160
  %v541 = vunpack.c.l.b16 %v161
  %v542 = vunpack.c.l.b16 %v162
  %v543 = vunpack.c.l.b16 %v163
  %v544 = vunpack.c.l.b16 %v164
  %v545 = vunpack.c.l.b16 %v165
  %v546 = vunpack.c.l.b16 %v166
  %v547 = vunpack.c.l.b16 %v167
  %v548 = vunpack.c.l.b16 %v168
  %v549 = vunpack.c.l.b16 %v169
  %v550 = vunpack.c.l.b16 %v170
  %v551 = vunpack.c.l.b16 %v171
  %v552 = vunpack.c.l.b16 %v172
  %v553 = vunpack.c.l.b16 %v173
  %v554 = vunpack.c.l.b16 %v174
  %v555 = vunpack.c.l.b16 %v175
  %v556 = vpack.c.b16 %v413, %v412
  %v557 = vpack.c.b16 %v415, %v414
  %v558 = vpack.c.b16 %v417, %v416
  %v559 = vpack.c.b16 %v419, %v418
  %v560 = vpack.c.b16 %v421, %v420
  %v561 = vpack.c.b16 %v423, %v422
  %v562 = vpack.c.b16 %v425, %v424
  %v563 = vpack.c.b16 %v427, %v426
  %v564 = vpack.c.b16 %v429, %v428
  %v565 = vpack.c.b16 %v431, %v430
  %v566 = vpack.c.b16 %v433, %v432
  %v567 = vpack.c.b16 %v435, %v434
  %v568 = vpack.c.b16 %v437, %v436
  %v569 = vpack.c.b16 %v439, %v438
  %v570 = vpack.c.b16 %v441, %v440
  %v571 = vpack.c.b16 %v443, %v442
  %v572 = vpack.c.b16 %v445, %v444
  %v573 = vpack.c.b16 %v447, %v446
  %v574 = vpack.c.b16 %v449, %v448
  %v575 = vpack.c.b16 %v451, %v450
  %v576 = vpack.c.b16 %v453, %v452
  %v577 = vpack.c.b16 %v455, %v454
  %v578 = vpack.c.b16 %v457, %v456
  %v579 = vpack.c.b16 %v459, %v458
  %v580 = vpack.c.b16 %v461, %v460
  %v581 = vpack.c.b16 %v463, %v462
  %v582 = vpack.c.b16 %v465, %v464
  %v583 = vpack.c.b16 %v467, %v466
  %v584 = vpack.c.b16 %v469, %v468
  %v585 = vpack.c.b16 %v471, %v470
  %v586 = vpack.c.b16 %v473, %v472
  %v587 = vpack.c.b16 %v475, %v474
  %v588 = vpack.c.b16 %v477, %v476
  %v589 = vpack.c.b16 %v479, %v478
  %v590 = vpack.c.b16 %v481, %v480
  %v591 = vpack.c.b16 %v483, %v482
  %v592 = vpack.c.b16 %v485, %v484
  %v593 = vpack.c.b16 %v487, %v486
  %v594 = vpack.c.b16 %v489, %v488
  %v595 = vpack.c.b16 %v491, %v490
  %v596 = vpack.c.b16 %v493, %v492
  %v597 = vpack.c.b16 %v495, %v494
  %v598 = vpack.c.b16 %v497, %v496
  %v599 = vpack.c.b16 %v499, %v498
  %v600 = vpack.c.b16 %v501, %v500
  %v601 = vpack.c.b16 %v503, %v502
  %v602 = vpack.c.b16 %v505, %v504
  %v603 = vpack.c.b16 %v507, %v506
  %v604 = vpack.c.b16 %v509, %v508
  %v605 = vpack.c.b16 %v511, %v510
  %v606 = vpack.c.b16 %v513, %v512
  %v607 = vpack.c.b16 %v515, %v514
  %v608 = vpack.c.b16 %v517, %v516
  %v609 = vpack.c.b16 %v519, %v518
  %v610 = vpack.c.b16 %v521, %v520
  %v611 = vpack.c.b16 %v523, %v522
  %v612 = vpack.c.b16 %v525, %v524
  %v613 = vpack.c.b16 %v527, %v526
  %v614 = vpack.c.b16 %v529, %v528
  %v615 = vpack.c.b16 %v531, %v530
  %v616 = vpack.c.b16 %v533, %v532
  %v617 = vpack.c.b16 %v535, %v534
  %v618 = vpack.c.b16 %v537, %v536
  %v619 = vpack.c.b16 %v539, %v538
  %v620 = vpack.c.b16 %v541, %v540
  %v621 = vpack.c.b16 %v543, %v542
  %v622 = vpack.c.b16 %v545, %v544
  %v623 = vpack.c.b16 %v547, %v546
  %v624 = vpack.c.b16 %v549, %v548
  %v625 = vpack.c.b16 %v551, %v550
  %v626 = vpack.c.b16 %v553, %v552
  %v627 = vpack.c.b16 %v555, %v554
  %700 = vmatprep.subr.bf16.mxu0 0
  %701 = vmatpush1.bf16.msra.mxu0 %v556
  %702 = vmatprep.subr.bf16.mxu0 0
  %703 = vmatpush1.bf16.msra.mxu0 %v557
  %704 = vmatprep.subr.bf16.mxu0 0
  %705 = vmatpush1.bf16.msra.mxu0 %v558
  %706 = vmatprep.subr.bf16.mxu0 0
  %707 = vmatpush1.bf16.msra.mxu0 %v559
  %708 = vmatprep.subr.bf16.mxu0 0
  %709 = vmatpush1.bf16.msra.mxu0 %v560
  %710 = vmatprep.subr.bf16.mxu0 0
  %711 = vmatpush1.bf16.msra.mxu0 %v561
  %712 = vmatprep.subr.bf16.mxu0 0
  %713 = vmatpush1.bf16.msra.mxu0 %v562
  %714 = vmatprep.subr.bf16.mxu0 0
  %715 = vmatpush1.bf16.msra.mxu0 %v563
  %716 = vmatprep.subr.bf16.mxu0 0
  %717 = vmatpush1.bf16.msra.mxu0 %v564
  %718 = vmatprep.subr.bf16.mxu0 0
  %719 = vmatpush1.bf16.msra.mxu0 %v565
  %720 = vmatprep.subr.bf16.mxu0 0
  %721 = vmatpush1.bf16.msra.mxu0 %v566
  %722 = vmatprep.subr.bf16.mxu0 0
  %723 = vmatpush1.bf16.msra.mxu0 %v567
  %724 = vmatprep.subr.bf16.mxu0 0
  %725 = vmatpush1.bf16.msra.mxu0 %v568
  %726 = vmatprep.subr.bf16.mxu0 0
  %727 = vmatpush1.bf16.msra.mxu0 %v569
  %728 = vmatprep.subr.bf16.mxu0 0
  %729 = vmatpush1.bf16.msra.mxu0 %v570
  %730 = vmatprep.subr.bf16.mxu0 0
  %731 = vmatpush1.bf16.msra.mxu0 %v571
  %732 = vmatprep.mubr.bf16.mxu0 %v233
  %733 = vmatmul.mubr.bf16.gmra.mrb[0].mxu0 %v232
  %v734 = vpop.f32.mrb[0].mxu0
  %v735 = vadd.f32 0.0, %v734
  %v736 = vpop.f32.mrb[0].mxu0
  %v737 = vpop.f32.mrb[0].mxu0
  %v738 = vadd.f32 0.0, %v737
  %v739 = vpop.f32.mrb[0].mxu0
  %740 = vmatprep.mubr.bf16.mxu0 %v242
  %741 = vmatmul.mubr.bf16.gmra.mrb[0].mxu0 %v241
  %v742 = vpop.f32.mrb[0].mxu0
  %v743 = vadd.f32 0.0, %v742
  %v744 = vpop.f32.mrb[0].mxu0
  %v745 = vpop.f32.mrb[0].mxu0
  %v746 = vadd.f32 0.0, %v745
  %v747 = vpop.f32.mrb[0].mxu0
  %748 = vdwg.mxu0
  %749 = vmatprep.subr.bf16.mxu0 0
  %750 = vmatpush1.bf16.msra.mxu0 %v572
  %751 = vmatprep.subr.bf16.mxu0 0
  %752 = vmatpush1.bf16.msra.mxu0 %v573
  %753 = vmatprep.subr.bf16.mxu0 0
  %754 = vmatpush1.bf16.msra.mxu0 %v574
  %755 = vmatprep.subr.bf16.mxu0 0
  %756 = vmatpush1.bf16.msra.mxu0 %v575
  %757 = vmatprep.subr.bf16.mxu0 0
  %758 = vmatpush1.bf16.msra.mxu0 %v576
  %759 = vmatprep.subr.bf16.mxu0 0
  %760 = vmatpush1.bf16.msra.mxu0 %v577
  %761 = vmatprep.subr.bf16.mxu0 0
  %762 = vmatpush1.bf16.msra.mxu0 %v578
  %763 = vmatprep.subr.bf16.mxu0 0
  %764 = vmatpush1.bf16.msra.mxu0 %v579
  %765 = vmatprep.subr.bf16.mxu0 0
  %766 = vmatpush1.bf16.msra.mxu0 %v580
  %767 = vmatprep.subr.bf16.mxu0 0
  %768 = vmatpush1.bf16.msra.mxu0 %v581
  %769 = vmatprep.subr.bf16.mxu0 0
  %770 = vmatpush1.bf16.msra.mxu0 %v582
  %771 = vmatprep.subr.bf16.mxu0 0
  %772 = vmatpush1.bf16.msra.mxu0 %v583
  %773 = vmatprep.subr.bf16.mxu0 0
  %774 = vmatpush1.bf16.msra.mxu0 %v584
  %775 = vmatprep.subr.bf16.mxu0 0
  %776 = vmatpush1.bf16.msra.mxu0 %v585
  %777 = vmatprep.subr.bf16.mxu0 0
  %778 = vmatpush1.bf16.msra.mxu0 %v586
  %779 = vmatprep.subr.bf16.mxu0 0
  %780 = vmatpush1.bf16.msra.mxu0 %v587
  %781 = vmatprep.mubr.bf16.mxu0 %v235
  %782 = vmatmul.mubr.bf16.gmra.mrb[0].mxu0 %v234
  %v783 = vpop.f32.mrb[0].mxu0
  %v784 = vadd.f32 %v735, %v783
  %v785 = vpop.f32.mrb[0].mxu0
  %v786 = vpop.f32.mrb[0].mxu0
  %v787 = vadd.f32 %v738, %v786
  %v788 = vpop.f32.mrb[0].mxu0
  %789 = vmatprep.mubr.bf16.mxu0 %v244
  %790 = vmatmul.mubr.bf16.gmra.mrb[0].mxu0 %v243
  %v791 = vpop.f32.mrb[0].mxu0
  %v792 = vadd.f32 %v743, %v791
  %v793 = vpop.f32.mrb[0].mxu0
  %v794 = vpop.f32.mrb[0].mxu0
  %v795 = vadd.f32 %v746, %v794
  %v796 = vpop.f32.mrb[0].mxu0
  %797 = vdwg.mxu0
  %798 = vmatprep.subr.bf16.mxu0 0
  %799 = vmatpush1.bf16.msra.mxu0 %v588
  %800 = vmatprep.subr.bf16.mxu0 0
  %801 = vmatpush1.bf16.msra.mxu0 %v589
  %802 = vmatprep.subr.bf16.mxu0 0
  %803 = vmatpush1.bf16.msra.mxu0 %v590
  %804 = vmatprep.subr.bf16.mxu0 0
  %805 = vmatpush1.bf16.msra.mxu0 %v591
  %806 = vmatprep.subr.bf16.mxu0 0
  %807 = vmatpush1.bf16.msra.mxu0 %v592
  %808 = vmatprep.subr.bf16.mxu0 0
  %809 = vmatpush1.bf16.msra.mxu0 %v593
  %810 = vmatprep.subr.bf16.mxu0 0
  %811 = vmatpush1.bf16.msra.mxu0 %v594
  %812 = vmatprep.subr.bf16.mxu0 0
  %813 = vmatpush1.bf16.msra.mxu0 %v595
  %814 = vmatprep.subr.bf16.mxu0 0
  %815 = vmatpush1.bf16.msra.mxu0 %v596
  %816 = vmatprep.subr.bf16.mxu0 0
  %817 = vmatpush1.bf16.msra.mxu0 %v597
  %818 = vmatprep.subr.bf16.mxu0 0
  %819 = vmatpush1.bf16.msra.mxu0 %v598
  %820 = vmatprep.subr.bf16.mxu0 0
  %821 = vmatpush1.bf16.msra.mxu0 %v599
  %822 = vmatprep.subr.bf16.mxu0 0
  %823 = vmatpush1.bf16.msra.mxu0 %v600
  %824 = vmatprep.subr.bf16.mxu0 0
  %825 = vmatpush1.bf16.msra.mxu0 %v601
  %826 = vmatprep.subr.bf16.mxu0 0
  %827 = vmatpush1.bf16.msra.mxu0 %v602
  %828 = vmatprep.subr.bf16.mxu0 0
  %829 = vmatpush1.bf16.msra.mxu0 %v603
  %830 = vmatprep.mubr.bf16.mxu0 %v237
  %831 = vmatmul.mubr.bf16.gmra.mrb[0].mxu0 %v236
  %v832 = vpop.f32.mrb[0].mxu0
  %v833 = vadd.f32 %v784, %v832
  %v834 = vpop.f32.mrb[0].mxu0
  %v835 = vpop.f32.mrb[0].mxu0
  %v836 = vadd.f32 %v787, %v835
  %v837 = vpop.f32.mrb[0].mxu0
  %838 = vmatprep.mubr.bf16.mxu0 %v246
  %839 = vmatmul.mubr.bf16.gmra.mrb[0].mxu0 %v245
  %v840 = vpop.f32.mrb[0].mxu0
  %v841 = vadd.f32 %v792, %v840
  %v842 = vpop.f32.mrb[0].mxu0
  %v843 = vpop.f32.mrb[0].mxu0
  %v844 = vadd.f32 %v795, %v843
  %v845 = vpop.f32.mrb[0].mxu0
  %846 = vdwg.mxu0
  %847 = vmatprep.subr.bf16.mxu0 0
  %848 = vmatpush1.bf16.msra.mxu0 %v604
  %849 = vmatprep.subr.bf16.mxu0 0
  %850 = vmatpush1.bf16.msra.mxu0 %v605
  %851 = vmatprep.subr.bf16.mxu0 0
  %852 = vmatpush1.bf16.msra.mxu0 %v606
  %853 = vmatprep.subr.bf16.mxu0 0
  %854 = vmatpush1.bf16.msra.mxu0 %v607
  %855 = vmatprep.subr.bf16.mxu0 0
  %856 = vmatpush1.bf16.msra.mxu0 %v608
  %857 = vmatprep.subr.bf16.mxu0 0
  %858 = vmatpush1.bf16.msra.mxu0 %v609
  %859 = vmatprep.subr.bf16.mxu0 0
  %860 = vmatpush1.bf16.msra.mxu0 %v610
  %861 = vmatprep.subr.bf16.mxu0 0
  %862 = vmatpush1.bf16.msra.mxu0 %v611
  %863 = vmatprep.subr.bf16.mxu0 0
  %864 = vmatpush1.bf16.msra.mxu0 %v612
  %865 = vmatprep.subr.bf16.mxu0 0
  %866 = vmatpush1.bf16.msra.mxu0 %v613
  %867 = vmatprep.subr.bf16.mxu0 0
  %868 = vmatpush1.bf16.msra.mxu0 %v614
  %869 = vmatprep.subr.bf16.mxu0 0
  %870 = vmatpush1.bf16.msra.mxu0 %v615
  %871 = vmatprep.subr.bf16.mxu0 0
  %872 = vmatpush1.bf16.msra.mxu0 %v616
  %873 = vmatprep.subr.bf16.mxu0 0
  %874 = vmatpush1.bf16.msra.mxu0 %v617
  %875 = vmatprep.subr.bf16.mxu0 0
  %876 = vmatpush1.bf16.msra.mxu0 %v618
  %877 = vmatprep.subr.bf16.mxu0 0
  %878 = vmatpush1.bf16.msra.mxu0 %v619
  %879 = vmatprep.mubr.bf16.mxu0 %v239
  %880 = vmatmul.mubr.bf16.gmra.mrb[0].mxu0 %v238
  %v881 = vpop.f32.mrb[0].mxu0
  %v882 = vadd.f32 %v833, %v881
  %v883 = vpop.f32.mrb[0].mxu0
  %v884 = vpop.f32.mrb[0].mxu0
  %v885 = vadd.f32 %v836, %v884
  %v886 = vpop.f32.mrb[0].mxu0
  %887 = vmatprep.mubr.bf16.mxu0 %v248
  %888 = vmatmul.mubr.bf16.gmra.mrb[0].mxu0 %v247
  %v889 = vpop.f32.mrb[0].mxu0
  %v890 = vadd.f32 %v841, %v889
  %v891 = vpop.f32.mrb[0].mxu0
  %v892 = vpop.f32.mrb[0].mxu0
  %v893 = vadd.f32 %v844, %v892
  %v894 = vpop.f32.mrb[0].mxu0
  %895 = vdwg.mxu0
  %896 = vmatprep.subr.bf16.mxu0 0
  %897 = vmatpush1.bf16.msra.mxu0 %v620
  %898 = vmatprep.subr.bf16.mxu0 0
  %899 = vmatpush1.bf16.msra.mxu0 %v621
  %900 = vmatprep.subr.bf16.mxu0 0
  %901 = vmatpush1.bf16.msra.mxu0 %v622
  %902 = vmatprep.subr.bf16.mxu0 0
  %903 = vmatpush1.bf16.msra.mxu0 %v623
  %904 = vmatprep.subr.bf16.mxu0 0
  %905 = vmatpush1.bf16.msra.mxu0 %v624
  %906 = vmatprep.subr.bf16.mxu0 0
  %907 = vmatpush1.bf16.msra.mxu0 %v625
  %908 = vmatprep.subr.bf16.mxu0 0
  %909 = vmatpush1.bf16.msra.mxu0 %v626
  %910 = vmatprep.subr.bf16.mxu0 0
  %911 = vmatpush1.bf16.msra.mxu0 %v627
  %912 = vmatprep.subr.bf16.mxu0 0
  %913 = vmatpush1.bf16.msra.mxu0 0
  %914 = vmatprep.subr.bf16.mxu0 0
  %915 = vmatpush1.bf16.msra.mxu0 0
  %916 = vmatprep.subr.bf16.mxu0 0
  %917 = vmatpush1.bf16.msra.mxu0 0
  %918 = vmatprep.subr.bf16.mxu0 0
  %919 = vmatpush1.bf16.msra.mxu0 0
  %920 = vmatprep.subr.bf16.mxu0 0
  %921 = vmatpush1.bf16.msra.mxu0 0
  %922 = vmatprep.subr.bf16.mxu0 0
  %923 = vmatpush1.bf16.msra.mxu0 0
  %924 = vmatprep.subr.bf16.mxu0 0
  %925 = vmatpush1.bf16.msra.mxu0 0
  %926 = vmatprep.subr.bf16.mxu0 0
  %927 = vmatpush1.bf16.msra.mxu0 0
  %928 = vmatprep.mubr.bf16.mxu0 0
  %929 = vmatmul.mubr.bf16.gmra.mrb[0].mxu0 %v240
  %v930 = vpop.f32.mrb[0].mxu0
  %v931 = vadd.f32 %v882, %v930
  %v932 = vpop.f32.mrb[0].mxu0
  %v933 = vpop.f32.mrb[0].mxu0
  %v934 = vadd.f32 %v885, %v933
  %v935 = vpop.f32.mrb[0].mxu0
  %936 = vmatprep.mubr.bf16.mxu0 0
  %937 = vmatmul.mubr.bf16.gmra.mrb[0].mxu0 %v249
  %v938 = vpop.f32.mrb[0].mxu0
  %v939 = vadd.f32 %v890, %v938
  %v940 = vpop.f32.mrb[0].mxu0
  %v941 = vpop.f32.mrb[0].mxu0
  %v942 = vadd.f32 %v893, %v941
  %v943 = vpop.f32.mrb[0].mxu0
  %944 = vdwg.mxu0
  %v945 = vpack.c.bf16 %v934, %v931
  %v946 = vpack.c.bf16 %v942, %v939
  %v949 = vunpack.c.l.b16 %v945
  %v950 = vunpack.c.h.b16 %v945
  %v951 = vunpack.c.l.b16 %v946
  %v952 = vunpack.c.h.b16 %v946
  %v953 = vpack.c.b16 %v949, %v949
  %v954 = vpack.c.b16 %v950, %v950
  %v955 = vpack.c.b16 %v951, %v951
  %v956 = vpack.c.b16 %v952, %v952
  %961 = vst [vmem:[%s2] sm:$0xf] %v953
  %962 = vst [vmem:[%s2 + $0x4] sm:$0xf] %v954
  %963 = vst [vmem:[%s2 + $0x8] sm:$0xf] %v955
  %964 = vst [vmem:[%s2 + $0xc] sm:$0xf] %v956
  // Predicated region
  $region10: #{densenet_forward.136} parent=0 // pred_check
    _
  $region11: #{densenet_forward.136} parent=0 // pred_check_branch
    %966 = sbr.rel (0) target = $region13
  $region12: #{densenet_forward.136} parent=0 // pred_region
    _
  $region13: #{densenet_forward.136} parent=0 // pred_fallthru
    _
  // Predicated region
  $region14: #{densenet_forward.136} parent=0 // pred_check
    _
  $region15: #{densenet_forward.136} parent=0 // pred_check_branch
    %968 = sbr.rel (0) target = $region17
  $region16: #{densenet_forward.136} parent=0 // pred_region
    _
  $region17: #{densenet_forward.136} parent=0 // pred_fallthru
    _

// kernel: densenet_forward.159
$region0: #{densenet_forward.159}
  #allocation0 [shape = 'u32[]', space=smem, size = 0x4, offset = 0x4, fixed_abs, tag = 'smem constant byte address 0x4 - core index']
  #allocation1 [shape = 'u32[144,128]{1,0:T(1,128)}', space=vmem, size = 0x12000, scoped, tag = 'internal scratch']
  %s0 = inlined_call_operand.vmem [shape: bf16[32,512], index: 0, kind: input, shape index: {}]
  %s1 = inlined_call_operand.vmem [shape: f32[1,512], index: 1, kind: input, shape index: {}]
  %s2 = inlined_call_operand.vmem [shape: f32[1,512], index: 2, kind: input, shape index: {}]
  %s3 = inlined_call_operand.vmem [shape: bf16[512,256], index: 3, kind: input, shape index: {}]
  %s4 = inlined_call_operand.vmem [shape: bf16[32,256], index: 4, kind: output, shape index: {}]
  %s5 = sld [smem:[#allocation0]]
  $region127: #{densenet_forward.159} parent=0
    _
  %s7 = ssub.s32 1, %s5
  %s8 = scalar_select 0, %s7, %s5
  $region1: #{densenet_forward.159} parent=0
    #allocation2 [shape = 'u8[262144]{0}', space=vmem, size = 0x40000, scoped, tag = 'input window, operand 3']
    #allocation3 [shape = 'u8[16384]{0}', space=vmem, size = 0x4000, scoped, tag = 'output window, operand 0']
    loop: start=0, step=1, limit=4
    $region2: #{densenet_forward.159} parent=1 // loop_pre_header
      _
    $region3: #{densenet_forward.159} parent=1 // loop_header
      %s10 = sphi 0, %s14
      %p11 = scmp.ge.s32.totalorder %s10, 4
      %s17 = sphi 0, %s29
      %s18 = sphi 0, %s25
      %s19 = sphi 0, %s17
      %s20 = sphi 0, %s18
      %s21 = sphi 0, %s19
      %s22 = sphi 0, %s20
      %s32 = sphi 0, %s34
      %s35 = sphi 0, %s32
      %s36 = sphi 0, %s35
      %s52 = sphi 0, %s36
      %s56 = sphi 0, %s56
      %s58 = sphi 0, %s56
      %s59 = sphi 0, %s58
      %s73 = sphi 0, %s59
      %s77 = sphi 0, %s77
      %s79 = sphi 0, %s77
      %s80 = sphi 0, %s79
      %s94 = sphi 0, %s80
      %s100 = sphi 0, %s102
      %s103 = sphi 0, %s100
      %s104 = sphi 0, %s103
      %s120 = sphi 0, %s104
      %s128 = sphi 0, %s130
      %s131 = sphi 0, %s128
      %s132 = sphi 0, %s131
      %s148 = sphi 0, %s132
    $region4: #{densenet_forward.159} parent=1 // loop_header_branch
      %13 = sbr.rel (%p11) target = $region8
    $region5: #{densenet_forward.159} parent=1 // loop_body
      %s15 = ssub.s32 %s10, 1
      %s16 = ssub.s32 %s10, 2
      %s23 = sadd.s32 1, %s18
      %p24 = scmp.ge.s32.totalorder %s23, 2
      %s25 = scalar_select %p24, 0, %s23
      %s26 = sadd.s32 1, %s17
      %s27 = scalar_select %p24, %s26, %s17
      %p28 = scmp.ge.s32.totalorder %s27, 1
      %s29 = scalar_select %p28, 0, %s27
      %s30 = ssub.s32 %s17, %s29
      %p31 = scmp.eq.s32.totalorder %s30, 0
      %s33 = sadd.s32 %s32, 1
      %s34 = scalar_select %p31, %s32, %s33
      %p37 = pneg %p31
      %p38 = scmp.eq.s32.totalorder %s10, 1
      %p39 = por %p37, %p38
      %p40 = scmp.ne.s32.totalorder %s32, %s35
      %p41 = scmp.eq.s32.totalorder %s10, 0
      %p42 = por %p40, %p41
      %p43 = scmp.ne.s32.totalorder %s32, %s35
      %p44 = scmp.eq.s32.totalorder %s15, 1
      %p45 = por %p43, %p44
      %p46 = scmp.ne.s32.totalorder %s35, %s36
      %p47 = scmp.eq.s32.totalorder %s15, 0
      %p48 = por %p46, %p47
      %p49 = scmp.ne.s32.totalorder %s35, %s36
      %p50 = scmp.eq.s32.totalorder %s16, 1
      %p51 = por %p49, %p50
      %p53 = scmp.ne.s32.totalorder %s36, %s52
      %p54 = scmp.eq.s32.totalorder %s16, 0
      %p55 = por %p53, %p54
      %s57 = sadd.s32 %s56, 1
      %p60 = scmp.eq.s32.totalorder %s10, 1
      %p61 = scmp.ne.s32.totalorder %s56, %s58
      %p62 = scmp.eq.s32.totalorder %s10, 0
      %p63 = por %p61, %p62
      %p64 = scmp.ne.s32.totalorder %s56, %s58
      %p65 = scmp.eq.s32.totalorder %s15, 1
      %p66 = por %p64, %p65
      %p67 = scmp.ne.s32.totalorder %s58, %s59
      %p68 = scmp.eq.s32.totalorder %s15, 0
      %p69 = por %p67, %p68
      %p70 = scmp.ne.s32.totalorder %s58, %s59
      %p71 = scmp.eq.s32.totalorder %s16, 1
      %p72 = por %p70, %p71
      %p74 = scmp.ne.s32.totalorder %s59, %s73
      %p75 = scmp.eq.s32.totalorder %s16, 0
      %p76 = por %p74, %p75
      %s78 = sadd.s32 %s77, 1
      %p81 = scmp.eq.s32.totalorder %s10, 1
      %p82 = scmp.ne.s32.totalorder %s77, %s79
      %p83 = scmp.eq.s32.totalorder %s10, 0
      %p84 = por %p82, %p83
      %p85 = scmp.ne.s32.totalorder %s77, %s79
      %p86 = scmp.eq.s32.totalorder %s15, 1
      %p87 = por %p85, %p86
      %p88 = scmp.ne.s32.totalorder %s79, %s80
      %p89 = scmp.eq.s32.totalorder %s15, 0
      %p90 = por %p88, %p89
      %p91 = scmp.ne.s32.totalorder %s79, %s80
      %p92 = scmp.eq.s32.totalorder %s16, 1
      %p93 = por %p91, %p92
      %p95 = scmp.ne.s32.totalorder %s80, %s94
      %p96 = scmp.eq.s32.totalorder %s16, 0
      %p97 = por %p95, %p96
      %s98 = ssub.s32 %s18, %s25
      %p99 = scmp.eq.s32.totalorder %s98, 0
      %s101 = sadd.s32 %s100, 1
      %s102 = scalar_select %p99, %s100, %s101
      %p105 = pneg %p99
      %p106 = scmp.eq.s32.totalorder %s10, 1
      %p107 = por %p105, %p106
      %p108 = scmp.ne.s32.totalorder %s100, %s103
      %p109 = scmp.eq.s32.totalorder %s10, 0
      %p110 = por %p108, %p109
      %p111 = scmp.ne.s32.totalorder %s100, %s103
      %p112 = scmp.eq.s32.totalorder %s15, 1
      %p113 = por %p111, %p112
      %p114 = scmp.ne.s32.totalorder %s103, %s104
      %p115 = scmp.eq.s32.totalorder %s15, 0
      %p116 = por %p114, %p115
      %p117 = scmp.ne.s32.totalorder %s103, %s104
      %p118 = scmp.eq.s32.totalorder %s16, 1
      %p119 = por %p117, %p118
      %p121 = scmp.ne.s32.totalorder %s104, %s120
      %p122 = scmp.eq.s32.totalorder %s16, 0
      %p123 = por %p121, %p122
      %s124 = ssub.s32 %s17, %s29
      %s125 = ssub.s32 %s18, %s25
      %s126 = sor.u32 %s124, %s125
      %p127 = scmp.eq.s32.totalorder %s126, 0
      %s129 = sadd.s32 %s128, 1
      %s130 = scalar_select %p127, %s128, %s129
      %p133 = pneg %p127
      %p134 = scmp.eq.s32.totalorder %s10, 1
      %p135 = por %p133, %p134
      %p136 = scmp.ne.s32.totalorder %s128, %s131
      %p137 = scmp.eq.s32.totalorder %s10, 0
      %p138 = por %p136, %p137
      %p139 = scmp.ne.s32.totalorder %s128, %s131
      %p140 = scmp.eq.s32.totalorder %s15, 1
      %p141 = por %p139, %p140
      %p142 = scmp.ne.s32.totalorder %s131, %s132
      %p143 = scmp.eq.s32.totalorder %s15, 0
      %p144 = por %p142, %p143
      %p145 = scmp.ne.s32.totalorder %s131, %s132
      %p146 = scmp.eq.s32.totalorder %s16, 1
      %p147 = por %p145, %p146
      %p149 = scmp.ne.s32.totalorder %s132, %s148
      %p150 = scmp.eq.s32.totalorder %s16, 0
      %p151 = por %p149, %p150
      %p152 = scmp.le.s32.totalorder 1, %s10
      %p153 = scmp.lt.s32.totalorder %s10, 3
      %p154 = pnand %p152, %p153
      %p155 = pneg %p154
      // Predicated region
      $region9: #{densenet_forward.159} parent=5 // pred_check
        _
      $region10: #{densenet_forward.159} parent=5 // pred_check_branch
        %157 = sbr.rel (%p154) target = $region12
      $region11: #{densenet_forward.159} parent=5 // pred_region
        %s158 = ssub.s32 %s10, 1
        // Predicated region
        $region13: #{densenet_forward.159} parent=11 // pred_check
          %p159 = pneg %p48
        $region14: #{densenet_forward.159} parent=11 // pred_check_branch
          %161 = sbr.rel (%p159) target = $region16
        $region15: #{densenet_forward.159} parent=11 // pred_region
          %s162 = smul.u32 4, %s19
          %p163 = scmp.lt.s32.totalorder %s162, 3
          %s164 = scalar_select %p163, %s162, 3
          %s165 = smul.addr %s164, 4
          %s166 = smul.addr %s165, 4
          %s167 = scalar_lea.vmem %s0, %s166
          %s168 = smul.u32 4, %s19
        $region16: #{densenet_forward.159} parent=11 // pred_fallthru
          _
        // Predicated region
        $region17: #{densenet_forward.159} parent=11 // pred_check
          %p169 = pneg %p69
        $region18: #{densenet_forward.159} parent=11 // pred_check_branch
          %171 = sbr.rel (%p169) target = $region20
        $region19: #{densenet_forward.159} parent=11 // pred_region
          _
        $region20: #{densenet_forward.159} parent=11 // pred_fallthru
          _
        // Predicated region
        $region21: #{densenet_forward.159} parent=11 // pred_check
          %p172 = pneg %p90
        $region22: #{densenet_forward.159} parent=11 // pred_check_branch
          %174 = sbr.rel (%p172) target = $region24
        $region23: #{densenet_forward.159} parent=11 // pred_region
          _
        $region24: #{densenet_forward.159} parent=11 // pred_fallthru
          _
      $region12: #{densenet_forward.159} parent=5 // pred_fallthru
        _
      %p175 = scmp.lt.s32.totalorder %s10, 2
      // Predicated region
      $region25: #{densenet_forward.159} parent=5 // pred_check
        %p176 = pneg %p175
      $region26: #{densenet_forward.159} parent=5 // pred_check_branch
        %178 = sbr.rel (%p176) target = $region28
      $region27: #{densenet_forward.159} parent=5 // pred_region
        // Predicated region
        $region29: #{densenet_forward.159} parent=27 // pred_check
          %p179 = pneg %p110
        $region30: #{densenet_forward.159} parent=27 // pred_check_branch
          %181 = sbr.rel (%p179) target = $region32
        $region31: #{densenet_forward.159} parent=27 // pred_region
          %s182 = sand.u32 %s100, 1
          %s183 = sand.u32 %s100, 1
          %s184 = smul.addr %s183, 256
          %s185 = scalar_lea.vmem [#allocation2], %s184
          %s186 = smul.addr %s18, 4
          %s187 = scalar_lea.vmem %s3, %s186
          // Predicated region
          $region33: #{densenet_forward.159} parent=31 // pred_check
            _
          $region34: #{densenet_forward.159} parent=31 // pred_check_branch
            %189 = sbr.rel (0) target = $region36
          $region35: #{densenet_forward.159} parent=31 // pred_region
            // Predicated region
            $region37: #{densenet_forward.159} parent=35 // pred_check
              _
            $region38: #{densenet_forward.159} parent=35 // pred_check_branch
              %191 = sbr.rel target = $region40
            $region39: #{densenet_forward.159} parent=35 // pred_region
              // Predicated region
              $region52: #{densenet_forward.159} parent=39 // pred_check
                _
              $region53: #{densenet_forward.159} parent=39 // pred_check_branch
                %332 = sbr.rel (0) target = $region55
              $region54: #{densenet_forward.159} parent=39 // pred_region
                loop: start=0, step=1, limit=1
                $region56: #{densenet_forward.159} parent=54 // loop_pre_header
                  _
                $region57: #{densenet_forward.159} parent=54 // loop_header
                  %s334 = sphi 0, %s338
                  %p335 = scmp.ge.s32.totalorder %s334, 1
                  %s339 = sphi %s187, %s187
                  %s340 = sphi %s185, %s185
                $region58: #{densenet_forward.159} parent=54 // loop_header_branch
                  %337 = sbr.rel (%p335) target = $region62
                $region59: #{densenet_forward.159} parent=54 // loop_body
                  _
                $region60: #{densenet_forward.159} parent=54 // loop_footer
                  %s338 = sadd.s32 1, %s334
                $region61: #{densenet_forward.159} parent=54 // loop_footer_branch
                  %333 = sbr.rel target = $region57
                $region62: #{densenet_forward.159} parent=54 // loop_exit
                  _
                loop: start=0, step=1, limit=1
                $region63: #{densenet_forward.159} parent=54 // loop_pre_header
                  _
                $region64: #{densenet_forward.159} parent=54 // loop_header
                  %s343 = sphi 0, %s347
                  %p344 = scmp.ge.s32.totalorder %s343, 1
                  %s348 = sphi %s187, %s187
                  %s349 = sphi %s185, %s185
                $region65: #{densenet_forward.159} parent=54 // loop_header_branch
                  %346 = sbr.rel (%p344) target = $region69
                $region66: #{densenet_forward.159} parent=54 // loop_body
                  %v350 = vld [vmem:[%s348] sm:$0xf]
                  %351 = vst [vmem:[%s349] sm:$0xf] %v350
                  %v352 = vld [vmem:[%s348 + $0x8] sm:$0xf]
                  %353 = vst [vmem:[%s349 + $0x4] sm:$0xf] %v352
                  %v354 = vld [vmem:[%s348 + $0x10] sm:$0xf]
                  %355 = vst [vmem:[%s349 + $0x8] sm:$0xf] %v354
                  %v356 = vld [vmem:[%s348 + $0x18] sm:$0xf]
                  %357 = vst [vmem:[%s349 + $0xc] sm:$0xf] %v356
                  %v358 = vld [vmem:[%s348 + $0x20] sm:$0xf]
                  %359 = vst [vmem:[%s349 + $0x10] sm:$0xf] %v358
                  %v360 = vld [vmem:[%s348 + $0x28] sm:$0xf]
                  %361 = vst [vmem:[%s349 + $0x14] sm:$0xf] %v360
                  %v362 = vld [vmem:[%s348 + $0x30] sm:$0xf]
                  %363 = vst [vmem:[%s349 + $0x18] sm:$0xf] %v362
                  %v364 = vld [vmem:[%s348 + $0x38] sm:$0xf]
                  %365 = vst [vmem:[%s349 + $0x1c] sm:$0xf] %v364
                  %v366 = vld [vmem:[%s348 + $0x40] sm:$0xf]
                  %367 = vst [vmem:[%s349 + $0x20] sm:$0xf] %v366
                  %v368 = vld [vmem:[%s348 + $0x48] sm:$0xf]
                  %369 = vst [vmem:[%s349 + $0x24] sm:$0xf] %v368
                  %v370 = vld [vmem:[%s348 + $0x50] sm:$0xf]
                  %371 = vst [vmem:[%s349 + $0x28] sm:$0xf] %v370
                  %v372 = vld [vmem:[%s348 + $0x58] sm:$0xf]
                  %373 = vst [vmem:[%s349 + $0x2c] sm:$0xf] %v372
                  %v374 = vld [vmem:[%s348 + $0x60] sm:$0xf]
                  %375 = vst [vmem:[%s349 + $0x30] sm:$0xf] %v374
                  %v376 = vld [vmem:[%s348 + $0x68] sm:$0xf]
                  %377 = vst [vmem:[%s349 + $0x34] sm:$0xf] %v376
                  %v378 = vld [vmem:[%s348 + $0x70] sm:$0xf]
                  %379 = vst [vmem:[%s349 + $0x38] sm:$0xf] %v378
                  %v380 = vld [vmem:[%s348 + $0x78] sm:$0xf]
                  %381 = vst [vmem:[%s349 + $0x3c] sm:$0xf] %v380
                  %v382 = vld [vmem:[%s348 + $0x80] sm:$0xf]
                  %383 = vst [vmem:[%s349 + $0x40] sm:$0xf] %v382
                  %v384 = vld [vmem:[%s348 + $0x88] sm:$0xf]
                  %385 = vst [vmem:[%s349 + $0x44] sm:$0xf] %v384
                  %v386 = vld [vmem:[%s348 + $0x90] sm:$0xf]
                  %387 = vst [vmem:[%s349 + $0x48] sm:$0xf] %v386
                  %v388 = vld [vmem:[%s348 + $0x98] sm:$0xf]
                  %389 = vst [vmem:[%s349 + $0x4c] sm:$0xf] %v388
                  %v390 = vld [vmem:[%s348 + $0xa0] sm:$0xf]
                  %391 = vst [vmem:[%s349 + $0x50] sm:$0xf] %v390
                  %v392 = vld [vmem:[%s348 + $0xa8] sm:$0xf]
                  %393 = vst [vmem:[%s349 + $0x54] sm:$0xf] %v392
                  %v394 = vld [vmem:[%s348 + $0xb0] sm:$0xf]
                  %395 = vst [vmem:[%s349 + $0x58] sm:$0xf] %v394
                  %v396 = vld [vmem:[%s348 + $0xb8] sm:$0xf]
                  %397 = vst [vmem:[%s349 + $0x5c] sm:$0xf] %v396
                  %v398 = vld [vmem:[%s348 + $0xc0] sm:$0xf]
                  %399 = vst [vmem:[%s349 + $0x60] sm:$0xf] %v398
                  %v400 = vld [vmem:[%s348 + $0xc8] sm:$0xf]
                  %401 = vst [vmem:[%s349 + $0x64] sm:$0xf] %v400
                  %v402 = vld [vmem:[%s348 + $0xd0] sm:$0xf]
                  %403 = vst [vmem:[%s349 + $0x68] sm:$0xf] %v402
                  %v404 = vld [vmem:[%s348 + $0xd8] sm:$0xf]
                  %405 = vst [vmem:[%s349 + $0x6c] sm:$0xf] %v404
                  %v406 = vld [vmem:[%s348 + $0xe0] sm:$0xf]
                  %407 = vst [vmem:[%s349 + $0x70] sm:$0xf] %v406
                  %v408 = vld [vmem:[%s348 + $0xe8] sm:$0xf]
                  %409 = vst [vmem:[%s349 + $0x74] sm:$0xf] %v408
                  %v410 = vld [vmem:[%s348 + $0xf0] sm:$0xf]
                  %411 = vst [vmem:[%s349 + $0x78] sm:$0xf] %v410
                  %v412 = vld [vmem:[%s348 + $0xf8] sm:$0xf]
                  %413 = vst [vmem:[%s349 + $0x7c] sm:$0xf] %v412
                  %v414 = vld [vmem:[%s348 + $0x100] sm:$0xf]
                  %415 = vst [vmem:[%s349 + $0x80] sm:$0xf] %v414
                  %v416 = vld [vmem:[%s348 + $0x108] sm:$0xf]
                  %417 = vst [vmem:[%s349 + $0x84] sm:$0xf] %v416
                  %v418 = vld [vmem:[%s348 + $0x110] sm:$0xf]
                  %419 = vst [vmem:[%s349 + $0x88] sm:$0xf] %v418
                  %v420 = vld [vmem:[%s348 + $0x118] sm:$0xf]
                  %421 = vst [vmem:[%s349 + $0x8c] sm:$0xf] %v420
                  %v422 = vld [vmem:[%s348 + $0x120] sm:$0xf]
                  %423 = vst [vmem:[%s349 + $0x90] sm:$0xf] %v422
                  %v424 = vld [vmem:[%s348 + $0x128] sm:$0xf]
                  %425 = vst [vmem:[%s349 + $0x94] sm:$0xf] %v424
                  %v426 = vld [vmem:[%s348 + $0x130] sm:$0xf]
                  %427 = vst [vmem:[%s349 + $0x98] sm:$0xf] %v426
                  %v428 = vld [vmem:[%s348 + $0x138] sm:$0xf]
                  %429 = vst [vmem:[%s349 + $0x9c] sm:$0xf] %v428
                  %v430 = vld [vmem:[%s348 + $0x140] sm:$0xf]
                  %431 = vst [vmem:[%s349 + $0xa0] sm:$0xf] %v430
                  %v432 = vld [vmem:[%s348 + $0x148] sm:$0xf]
                  %433 = vst [vmem:[%s349 + $0xa4] sm:$0xf] %v432
                  %v434 = vld [vmem:[%s348 + $0x150] sm:$0xf]
                  %435 = vst [vmem:[%s349 + $0xa8] sm:$0xf] %v434
                  %v436 = vld [vmem:[%s348 + $0x158] sm:$0xf]
                  %437 = vst [vmem:[%s349 + $0xac] sm:$0xf] %v436
                  %v438 = vld [vmem:[%s348 + $0x160] sm:$0xf]
                  %439 = vst [vmem:[%s349 + $0xb0] sm:$0xf] %v438
                  %v440 = vld [vmem:[%s348 + $0x168] sm:$0xf]
                  %441 = vst [vmem:[%s349 + $0xb4] sm:$0xf] %v440
                  %v442 = vld [vmem:[%s348 + $0x170] sm:$0xf]
                  %443 = vst [vmem:[%s349 + $0xb8] sm:$0xf] %v442
                  %v444 = vld [vmem:[%s348 + $0x178] sm:$0xf]
                  %445 = vst [vmem:[%s349 + $0xbc] sm:$0xf] %v444
                  %v446 = vld [vmem:[%s348 + $0x180] sm:$0xf]
                  %447 = vst [vmem:[%s349 + $0xc0] sm:$0xf] %v446
                  %v448 = vld [vmem:[%s348 + $0x188] sm:$0xf]
                  %449 = vst [vmem:[%s349 + $0xc4] sm:$0xf] %v448
                  %v450 = vld [vmem:[%s348 + $0x190] sm:$0xf]
                  %451 = vst [vmem:[%s349 + $0xc8] sm:$0xf] %v450
                  %v452 = vld [vmem:[%s348 + $0x198] sm:$0xf]
                  %453 = vst [vmem:[%s349 + $0xcc] sm:$0xf] %v452
                  %v454 = vld [vmem:[%s348 + $0x1a0] sm:$0xf]
                  %455 = vst [vmem:[%s349 + $0xd0] sm:$0xf] %v454
                  %v456 = vld [vmem:[%s348 + $0x1a8] sm:$0xf]
                  %457 = vst [vmem:[%s349 + $0xd4] sm:$0xf] %v456
                  %v458 = vld [vmem:[%s348 + $0x1b0] sm:$0xf]
                  %459 = vst [vmem:[%s349 + $0xd8] sm:$0xf] %v458
                  %v460 = vld [vmem:[%s348 + $0x1b8] sm:$0xf]
                  %461 = vst [vmem:[%s349 + $0xdc] sm:$0xf] %v460
                  %v462 = vld [vmem:[%s348 + $0x1c0] sm:$0xf]
                  %463 = vst [vmem:[%s349 + $0xe0] sm:$0xf] %v462
                  %v464 = vld [vmem:[%s348 + $0x1c8] sm:$0xf]
                  %465 = vst [vmem:[%s349 + $0xe4] sm:$0xf] %v464
                  %v466 = vld [vmem:[%s348 + $0x1d0] sm:$0xf]
                  %467 = vst [vmem:[%s349 + $0xe8] sm:$0xf] %v466
                  %v468 = vld [vmem:[%s348 + $0x1d8] sm:$0xf]
                  %469 = vst [vmem:[%s349 + $0xec] sm:$0xf] %v468
                  %v470 = vld [vmem:[%s348 + $0x1e0] sm:$0xf]
                  %471 = vst [vmem:[%s349 + $0xf0] sm:$0xf] %v470
                  %v472 = vld [vmem:[%s348 + $0x1e8] sm:$0xf]
                  %473 = vst [vmem:[%s349 + $0xf4] sm:$0xf] %v472
                  %v474 = vld [vmem:[%s348 + $0x1f0] sm:$0xf]
                  %475 = vst [vmem:[%s349 + $0xf8] sm:$0xf] %v474
                  %v476 = vld [vmem:[%s348 + $0x1f8] sm:$0xf]
                  %477 = vst [vmem:[%s349 + $0xfc] sm:$0xf] %v476
                $region67: #{densenet_forward.159} parent=54 // loop_footer
                  %s347 = sadd.s32 1, %s343
                $region68: #{densenet_forward.159} parent=54 // loop_footer_branch
                  %342 = sbr.rel target = $region64
                $region69: #{densenet_forward.159} parent=54 // loop_exit
                  _
              $region55: #{densenet_forward.159} parent=39 // pred_fallthru
                _
            $region40: #{densenet_forward.159} parent=35 // pred_fallthru
              _
            // Predicated region
            $region41: #{densenet_forward.159} parent=35 // pred_check
              _
            $region42: #{densenet_forward.159} parent=35 // pred_check_branch
              %193 = sbr.rel (0) target = $region44
            $region43: #{densenet_forward.159} parent=35 // pred_region
              loop: start=0, step=1, limit=1
              $region45: #{densenet_forward.159} parent=43 // loop_pre_header
                _
              $region46: #{densenet_forward.159} parent=43 // loop_header
                %s196 = sphi 0, %s200
                %p197 = scmp.ge.s32.totalorder %s196, 1
                %s201 = sphi %s187, %s187
                %s202 = sphi %s185, %s185
              $region47: #{densenet_forward.159} parent=43 // loop_header_branch
                %199 = sbr.rel (%p197) target = $region51
              $region48: #{densenet_forward.159} parent=43 // loop_body
                %v203 = vld [vmem:[%s201] sm:$0xf]
                %204 = vst [vmem:[%s202] sm:$0xf] %v203
                %v205 = vld [vmem:[%s201 + $0x8] sm:$0xf]
                %206 = vst [vmem:[%s202 + $0x4] sm:$0xf] %v205
                %v207 = vld [vmem:[%s201 + $0x10] sm:$0xf]
                %208 = vst [vmem:[%s202 + $0x8] sm:$0xf] %v207
                %v209 = vld [vmem:[%s201 + $0x18] sm:$0xf]
                %210 = vst [vmem:[%s202 + $0xc] sm:$0xf] %v209
                %v211 = vld [vmem:[%s201 + $0x20] sm:$0xf]
                %212 = vst [vmem:[%s202 + $0x10] sm:$0xf] %v211
                %v213 = vld [vmem:[%s201 + $0x28] sm:$0xf]
                %214 = vst [vmem:[%s202 + $0x14] sm:$0xf] %v213
                %v215 = vld [vmem:[%s201 + $0x30] sm:$0xf]
                %216 = vst [vmem:[%s202 + $0x18] sm:$0xf] %v215
                %v217 = vld [vmem:[%s201 + $0x38] sm:$0xf]
                %218 = vst [vmem:[%s202 + $0x1c] sm:$0xf] %v217
                %v219 = vld [vmem:[%s201 + $0x40] sm:$0xf]
                %220 = vst [vmem:[%s202 + $0x20] sm:$0xf] %v219
                %v221 = vld [vmem:[%s201 + $0x48] sm:$0xf]
                %222 = vst [vmem:[%s202 + $0x24] sm:$0xf] %v221
                %v223 = vld [vmem:[%s201 + $0x50] sm:$0xf]
                %224 = vst [vmem:[%s202 + $0x28] sm:$0xf] %v223
                %v225 = vld [vmem:[%s201 + $0x58] sm:$0xf]
                %226 = vst [vmem:[%s202 + $0x2c] sm:$0xf] %v225
                %v227 = vld [vmem:[%s201 + $0x60] sm:$0xf]
                %228 = vst [vmem:[%s202 + $0x30] sm:$0xf] %v227
                %v229 = vld [vmem:[%s201 + $0x68] sm:$0xf]
                %230 = vst [vmem:[%s202 + $0x34] sm:$0xf] %v229
                %v231 = vld [vmem:[%s201 + $0x70] sm:$0xf]
                %232 = vst [vmem:[%s202 + $0x38] sm:$0xf] %v231
                %v233 = vld [vmem:[%s201 + $0x78] sm:$0xf]
                %234 = vst [vmem:[%s202 + $0x3c] sm:$0xf] %v233
                %v235 = vld [vmem:[%s201 + $0x80] sm:$0xf]
                %236 = vst [vmem:[%s202 + $0x40] sm:$0xf] %v235
                %v237 = vld [vmem:[%s201 + $0x88] sm:$0xf]
                %238 = vst [vmem:[%s202 + $0x44] sm:$0xf] %v237
                %v239 = vld [vmem:[%s201 + $0x90] sm:$0xf]
                %240 = vst [vmem:[%s202 + $0x48] sm:$0xf] %v239
                %v241 = vld [vmem:[%s201 + $0x98] sm:$0xf]
                %242 = vst [vmem:[%s202 + $0x4c] sm:$0xf] %v241
                %v243 = vld [vmem:[%s201 + $0xa0] sm:$0xf]
                %244 = vst [vmem:[%s202 + $0x50] sm:$0xf] %v243
                %v245 = vld [vmem:[%s201 + $0xa8] sm:$0xf]
                %246 = vst [vmem:[%s202 + $0x54] sm:$0xf] %v245
                %v247 = vld [vmem:[%s201 + $0xb0] sm:$0xf]
                %248 = vst [vmem:[%s202 + $0x58] sm:$0xf] %v247
                %v249 = vld [vmem:[%s201 + $0xb8] sm:$0xf]
                %250 = vst [vmem:[%s202 + $0x5c] sm:$0xf] %v249
                %v251 = vld [vmem:[%s201 + $0xc0] sm:$0xf]
                %252 = vst [vmem:[%s202 + $0x60] sm:$0xf] %v251
                %v253 = vld [vmem:[%s201 + $0xc8] sm:$0xf]
                %254 = vst [vmem:[%s202 + $0x64] sm:$0xf] %v253
                %v255 = vld [vmem:[%s201 + $0xd0] sm:$0xf]
                %256 = vst [vmem:[%s202 + $0x68] sm:$0xf] %v255
                %v257 = vld [vmem:[%s201 + $0xd8] sm:$0xf]
                %258 = vst [vmem:[%s202 + $0x6c] sm:$0xf] %v257
                %v259 = vld [vmem:[%s201 + $0xe0] sm:$0xf]
                %260 = vst [vmem:[%s202 + $0x70] sm:$0xf] %v259
                %v261 = vld [vmem:[%s201 + $0xe8] sm:$0xf]
                %262 = vst [vmem:[%s202 + $0x74] sm:$0xf] %v261
                %v263 = vld [vmem:[%s201 + $0xf0] sm:$0xf]
                %264 = vst [vmem:[%s202 + $0x78] sm:$0xf] %v263
                %v265 = vld [vmem:[%s201 + $0xf8] sm:$0xf]
                %266 = vst [vmem:[%s202 + $0x7c] sm:$0xf] %v265
                %v267 = vld [vmem:[%s201 + $0x100] sm:$0xf]
                %268 = vst [vmem:[%s202 + $0x80] sm:$0xf] %v267
                %v269 = vld [vmem:[%s201 + $0x108] sm:$0xf]
                %270 = vst [vmem:[%s202 + $0x84] sm:$0xf] %v269
                %v271 = vld [vmem:[%s201 + $0x110] sm:$0xf]
                %272 = vst [vmem:[%s202 + $0x88] sm:$0xf] %v271
                %v273 = vld [vmem:[%s201 + $0x118] sm:$0xf]
                %274 = vst [vmem:[%s202 + $0x8c] sm:$0xf] %v273
                %v275 = vld [vmem:[%s201 + $0x120] sm:$0xf]
                %276 = vst [vmem:[%s202 + $0x90] sm:$0xf] %v275
                %v277 = vld [vmem:[%s201 + $0x128] sm:$0xf]
                %278 = vst [vmem:[%s202 + $0x94] sm:$0xf] %v277
                %v279 = vld [vmem:[%s201 + $0x130] sm:$0xf]
                %280 = vst [vmem:[%s202 + $0x98] sm:$0xf] %v279
                %v281 = vld [vmem:[%s201 + $0x138] sm:$0xf]
                %282 = vst [vmem:[%s202 + $0x9c] sm:$0xf] %v281
                %v283 = vld [vmem:[%s201 + $0x140] sm:$0xf]
                %284 = vst [vmem:[%s202 + $0xa0] sm:$0xf] %v283
                %v285 = vld [vmem:[%s201 + $0x148] sm:$0xf]
                %286 = vst [vmem:[%s202 + $0xa4] sm:$0xf] %v285
                %v287 = vld [vmem:[%s201 + $0x150] sm:$0xf]
                %288 = vst [vmem:[%s202 + $0xa8] sm:$0xf] %v287
                %v289 = vld [vmem:[%s201 + $0x158] sm:$0xf]
                %290 = vst [vmem:[%s202 + $0xac] sm:$0xf] %v289
                %v291 = vld [vmem:[%s201 + $0x160] sm:$0xf]
                %292 = vst [vmem:[%s202 + $0xb0] sm:$0xf] %v291
                %v293 = vld [vmem:[%s201 + $0x168] sm:$0xf]
                %294 = vst [vmem:[%s202 + $0xb4] sm:$0xf] %v293
                %v295 = vld [vmem:[%s201 + $0x170] sm:$0xf]
                %296 = vst [vmem:[%s202 + $0xb8] sm:$0xf] %v295
                %v297 = vld [vmem:[%s201 + $0x178] sm:$0xf]
                %298 = vst [vmem:[%s202 + $0xbc] sm:$0xf] %v297
                %v299 = vld [vmem:[%s201 + $0x180] sm:$0xf]
                %300 = vst [vmem:[%s202 + $0xc0] sm:$0xf] %v299
                %v301 = vld [vmem:[%s201 + $0x188] sm:$0xf]
                %302 = vst [vmem:[%s202 + $0xc4] sm:$0xf] %v301
                %v303 = vld [vmem:[%s201 + $0x190] sm:$0xf]
                %304 = vst [vmem:[%s202 + $0xc8] sm:$0xf] %v303
                %v305 = vld [vmem:[%s201 + $0x198] sm:$0xf]
                %306 = vst [vmem:[%s202 + $0xcc] sm:$0xf] %v305
                %v307 = vld [vmem:[%s201 + $0x1a0] sm:$0xf]
                %308 = vst [vmem:[%s202 + $0xd0] sm:$0xf] %v307
                %v309 = vld [vmem:[%s201 + $0x1a8] sm:$0xf]
                %310 = vst [vmem:[%s202 + $0xd4] sm:$0xf] %v309
                %v311 = vld [vmem:[%s201 + $0x1b0] sm:$0xf]
                %312 = vst [vmem:[%s202 + $0xd8] sm:$0xf] %v311
                %v313 = vld [vmem:[%s201 + $0x1b8] sm:$0xf]
                %314 = vst [vmem:[%s202 + $0xdc] sm:$0xf] %v313
                %v315 = vld [vmem:[%s201 + $0x1c0] sm:$0xf]
                %316 = vst [vmem:[%s202 + $0xe0] sm:$0xf] %v315
                %v317 = vld [vmem:[%s201 + $0x1c8] sm:$0xf]
                %318 = vst [vmem:[%s202 + $0xe4] sm:$0xf] %v317
                %v319 = vld [vmem:[%s201 + $0x1d0] sm:$0xf]
                %320 = vst [vmem:[%s202 + $0xe8] sm:$0xf] %v319
                %v321 = vld [vmem:[%s201 + $0x1d8] sm:$0xf]
                %322 = vst [vmem:[%s202 + $0xec] sm:$0xf] %v321
                %v323 = vld [vmem:[%s201 + $0x1e0] sm:$0xf]
                %324 = vst [vmem:[%s202 + $0xf0] sm:$0xf] %v323
                %v325 = vld [vmem:[%s201 + $0x1e8] sm:$0xf]
                %326 = vst [vmem:[%s202 + $0xf4] sm:$0xf] %v325
                %v327 = vld [vmem:[%s201 + $0x1f0] sm:$0xf]
                %328 = vst [vmem:[%s202 + $0xf8] sm:$0xf] %v327
                %v329 = vld [vmem:[%s201 + $0x1f8] sm:$0xf]
                %330 = vst [vmem:[%s202 + $0xfc] sm:$0xf] %v329
              $region49: #{densenet_forward.159} parent=43 // loop_footer
                %s200 = sadd.s32 1, %s196
              $region50: #{densenet_forward.159} parent=43 // loop_footer_branch
                %195 = sbr.rel target = $region46
              $region51: #{densenet_forward.159} parent=43 // loop_exit
                _
            $region44: #{densenet_forward.159} parent=35 // pred_fallthru
              _
          $region36: #{densenet_forward.159} parent=31 // pred_fallthru
            _
          %478 = vnop
        $region32: #{densenet_forward.159} parent=27 // pred_fallthru
          _
      $region28: #{densenet_forward.159} parent=5 // pred_fallthru
        _
      %p479 = scmp.le.s32.totalorder 1, %s10
      %p480 = scmp.lt.s32.totalorder %s10, 3
      %p481 = pnand %p479, %p480
      %p482 = pneg %p481
      // Predicated region
      $region70: #{densenet_forward.159} parent=5 // pred_check
        _
      $region71: #{densenet_forward.159} parent=5 // pred_check_branch
        %484 = sbr.rel (%p481) target = $region73
      $region72: #{densenet_forward.159} parent=5 // pred_region
        %s485 = ssub.s32 %s10, 1
        %s486 = sand.u32 %s103, 1
        %s487 = sand.u32 %s103, 1
        %s488 = smul.addr %s487, 256
        %s489 = scalar_lea.vmem [#allocation2], %s488
        // Predicated region
        $region74: #{densenet_forward.159} parent=72 // pred_check
          %p490 = pneg %p116
        $region75: #{densenet_forward.159} parent=72 // pred_check_branch
          %492 = sbr.rel (%p490) target = $region77
        $region76: #{densenet_forward.159} parent=72 // pred_region
          _
        $region77: #{densenet_forward.159} parent=72 // pred_fallthru
          _
        %s493 = smul.u32 4, %s19
        %p494 = scmp.lt.s32.totalorder %s493, 3
        %s495 = scalar_select %p494, %s493, 3
        %s496 = smul.addr %s495, 4
        %s497 = smul.addr %s496, 4
        %s498 = scalar_lea.vmem %s0, %s497
        %p499 = pneg %p48
        %p500 = pneg %p45
        %p501 = pneg %p69
        %p502 = pneg %p66
        %p503 = pneg %p90
        %p504 = pneg %p87
        %s505 = sand.u32 %s103, 1
        %s506 = sand.u32 %s103, 1
        %s507 = smul.addr %s506, 256
        %s508 = scalar_lea.vmem [#allocation2], %s507
        %p509 = pneg %p116
        %p510 = pneg %p113
        %p511 = pneg %p144
        %p512 = pneg %p141
        %s513 = sand.u32 %s131, 1
        %s514 = sand.u32 %s131, 1
        %s515 = smul.addr %s514, 16
        %s516 = scalar_lea.vmem [#allocation3], %s515
        %s517 = smul.u32 4, %s19
        %p518 = scmp.lt.s32.totalorder %s517, 3
        %s519 = scalar_select %p518, %s517, 3
        %s520 = smul.addr %s519, 4
        %s521 = smul.addr %s520, 4
        %s522 = scalar_lea.vmem %s0, %s521
        %s523 = smul.u32 4, %s19
        %s524 = smul.u32 4, %s19
        %v526 = vld [vmem:[%s522] sm:$0xff]
        %v527 = vld [vmem:[%s522 + $0x8] sm:$0xff]
        %v528 = vld [vmem:[%s522 + $0x10] sm:$0xff]
        %v529 = vld [vmem:[%s522 + $0x18] sm:$0xff]
        %v530 = vld [vmem:[%s522 + $0x20] sm:$0xff]
        %v531 = vld [vmem:[%s522 + $0x28] sm:$0xff]
        %v532 = vld [vmem:[%s522 + $0x30] sm:$0xff]
        %v533 = vld [vmem:[%s522 + $0x38] sm:$0xff]
        %v534 = vunpack.c.l.bf16 %v526
        %v535 = vunpack.c.h.bf16 %v526
        %v536 = vunpack.c.l.bf16 %v527
        %v537 = vunpack.c.h.bf16 %v527
        %v538 = vunpack.c.l.bf16 %v528
        %v539 = vunpack.c.h.bf16 %v528
        %v540 = vunpack.c.l.bf16 %v529
        %v541 = vunpack.c.h.bf16 %v529
        %v542 = vunpack.c.l.bf16 %v530
        %v543 = vunpack.c.h.bf16 %v530
        %v544 = vunpack.c.l.bf16 %v531
        %v545 = vunpack.c.h.bf16 %v531
        %v546 = vunpack.c.l.bf16 %v532
        %v547 = vunpack.c.h.bf16 %v532
        %v548 = vunpack.c.l.bf16 %v533
        %v549 = vunpack.c.h.bf16 %v533
        %v550 = vld [vmem:[%s1] sm:$0xf]
        %v552 = vlaneseq
        %v553 = vshrl.u32 %v552, 7
        %v554 = vsub.s32 0, %v553
        %v555 = vrot.slane %v550, %v554
        %v556 = vlaneseq
        %v557 = vshrl.u32 %v556, 7
        %v558 = vsub.s32 1, %v557
        %v559 = vrot.slane %v550, %v558
        %v560 = vlaneseq
        %v561 = vshrl.u32 %v560, 7
        %v562 = vsub.s32 2, %v561
        %v563 = vrot.slane %v550, %v562
        %v564 = vlaneseq
        %v565 = vshrl.u32 %v564, 7
        %v566 = vsub.s32 3, %v565
        %v567 = vrot.slane %v550, %v566
        %v572 = vmul.f32 %v534, %v555
        %v573 = vmul.f32 %v535, %v559
        %v574 = vmul.f32 %v536, %v563
        %v575 = vmul.f32 %v537, %v567
        %v576 = vmul.f32 %v538, %v555
        %v577 = vmul.f32 %v539, %v559
        %v578 = vmul.f32 %v540, %v563
        %v579 = vmul.f32 %v541, %v567
        %v580 = vmul.f32 %v542, %v555
        %v581 = vmul.f32 %v543, %v559
        %v582 = vmul.f32 %v544, %v563
        %v583 = vmul.f32 %v545, %v567
        %v584 = vmul.f32 %v546, %v555
        %v585 = vmul.f32 %v547, %v559
        %v586 = vmul.f32 %v548, %v563
        %v587 = vmul.f32 %v549, %v567
        %v588 = vld [vmem:[%s2] sm:$0xf]
        %v590 = vlaneseq
        %v591 = vshrl.u32 %v590, 7
        %v592 = vsub.s32 0, %v591
        %v593 = vrot.slane %v588, %v592
        %v594 = vlaneseq
        %v595 = vshrl.u32 %v594, 7
        %v596 = vsub.s32 1, %v595
        %v597 = vrot.slane %v588, %v596
        %v598 = vlaneseq
        %v599 = vshrl.u32 %v598, 7
        %v600 = vsub.s32 2, %v599
        %v601 = vrot.slane %v588, %v600
        %v602 = vlaneseq
        %v603 = vshrl.u32 %v602, 7
        %v604 = vsub.s32 3, %v603
        %v605 = vrot.slane %v588, %v604
        %v610 = vadd.f32 %v572, %v593
        %v611 = vadd.f32 %v573, %v597
        %v612 = vadd.f32 %v574, %v601
        %v613 = vadd.f32 %v575, %v605
        %v614 = vadd.f32 %v576, %v593
        %v615 = vadd.f32 %v577, %v597
        %v616 = vadd.f32 %v578, %v601
        %v617 = vadd.f32 %v579, %v605
        %v618 = vadd.f32 %v580, %v593
        %v619 = vadd.f32 %v581, %v597
        %v620 = vadd.f32 %v582, %v601
        %v621 = vadd.f32 %v583, %v605
        %v622 = vadd.f32 %v584, %v593
        %v623 = vadd.f32 %v585, %v597
        %v624 = vadd.f32 %v586, %v601
        %v625 = vadd.f32 %v587, %v605
        %v626 = vmax.f32 %v610, 0.0
        %v627 = vmax.f32 %v611, 0.0
        %v628 = vmax.f32 %v612, 0.0
        %v629 = vmax.f32 %v613, 0.0
        %v630 = vmax.f32 %v614, 0.0
        %v631 = vmax.f32 %v615, 0.0
        %v632 = vmax.f32 %v616, 0.0
        %v633 = vmax.f32 %v617, 0.0
        %v634 = vmax.f32 %v618, 0.0
        %v635 = vmax.f32 %v619, 0.0
        %v636 = vmax.f32 %v620, 0.0
        %v637 = vmax.f32 %v621, 0.0
        %v638 = vmax.f32 %v622, 0.0
        %v639 = vmax.f32 %v623, 0.0
        %v640 = vmax.f32 %v624, 0.0
        %v641 = vmax.f32 %v625, 0.0
        %v642 = vpack.c.bf16 %v630, %v626
        %v643 = vpack.c.bf16 %v631, %v627
        %v644 = vpack.c.bf16 %v632, %v628
        %v645 = vpack.c.bf16 %v633, %v629
        %v646 = vpack.c.bf16 %v638, %v634
        %v647 = vpack.c.bf16 %v639, %v635
        %v648 = vpack.c.bf16 %v640, %v636
        %v649 = vpack.c.bf16 %v641, %v637
        %v650 = vld [vmem:[%s489] sm:$0xf]
        %v651 = vld [vmem:[%s489 + $0x4] sm:$0xf]
        %v652 = vld [vmem:[%s489 + $0x8] sm:$0xf]
        %v653 = vld [vmem:[%s489 + $0xc] sm:$0xf]
        %v654 = vld [vmem:[%s489 + $0x10] sm:$0xf]
        %v655 = vld [vmem:[%s489 + $0x14] sm:$0xf]
        %v656 = vld [vmem:[%s489 + $0x18] sm:$0xf]
        %v657 = vld [vmem:[%s489 + $0x1c] sm:$0xf]
        %v658 = vld [vmem:[%s489 + $0x20] sm:$0xf]
        %v659 = vld [vmem:[%s489 + $0x24] sm:$0xf]
        %v660 = vld [vmem:[%s489 + $0x28] sm:$0xf]
        %v661 = vld [vmem:[%s489 + $0x2c] sm:$0xf]
        %v662 = vld [vmem:[%s489 + $0x30] sm:$0xf]
        %v663 = vld [vmem:[%s489 + $0x34] sm:$0xf]
        %v664 = vld [vmem:[%s489 + $0x38] sm:$0xf]
        %v665 = vld [vmem:[%s489 + $0x3c] sm:$0xf]
        %v666 = vld [vmem:[%s489 + $0x40] sm:$0xf]
        %v667 = vld [vmem:[%s489 + $0x44] sm:$0xf]
        %v668 = vld [vmem:[%s489 + $0x48] sm:$0xf]
        %v669 = vld [vmem:[%s489 + $0x4c] sm:$0xf]
        %v670 = vld [vmem:[%s489 + $0x50] sm:$0xf]
        %v671 = vld [vmem:[%s489 + $0x54] sm:$0xf]
        %v672 = vld [vmem:[%s489 + $0x58] sm:$0xf]
        %v673 = vld [vmem:[%s489 + $0x5c] sm:$0xf]
        %v674 = vld [vmem:[%s489 + $0x60] sm:$0xf]
        %v675 = vld [vmem:[%s489 + $0x64] sm:$0xf]
        %v676 = vld [vmem:[%s489 + $0x68] sm:$0xf]
        %v677 = vld [vmem:[%s489 + $0x6c] sm:$0xf]
        %v678 = vld [vmem:[%s489 + $0x70] sm:$0xf]
        %v679 = vld [vmem:[%s489 + $0x74] sm:$0xf]
        %v680 = vld [vmem:[%s489 + $0x78] sm:$0xf]
        %v681 = vld [vmem:[%s489 + $0x7c] sm:$0xf]
        %v682 = vld [vmem:[%s489 + $0x80] sm:$0xf]
        %v683 = vld [vmem:[%s489 + $0x84] sm:$0xf]
        %v684 = vld [vmem:[%s489 + $0x88] sm:$0xf]
        %v685 = vld [vmem:[%s489 + $0x8c] sm:$0xf]
        %v686 = vld [vmem:[%s489 + $0x90] sm:$0xf]
        %v687 = vld [vmem:[%s489 + $0x94] sm:$0xf]
        %v688 = vld [vmem:[%s489 + $0x98] sm:$0xf]
        %v689 = vld [vmem:[%s489 + $0x9c] sm:$0xf]
        %v690 = vld [vmem:[%s489 + $0xa0] sm:$0xf]
        %v691 = vld [vmem:[%s489 + $0xa4] sm:$0xf]
        %v692 = vld [vmem:[%s489 + $0xa8] sm:$0xf]
        %v693 = vld [vmem:[%s489 + $0xac] sm:$0xf]
        %v694 = vld [vmem:[%s489 + $0xb0] sm:$0xf]
        %v695 = vld [vmem:[%s489 + $0xb4] sm:$0xf]
        %v696 = vld [vmem:[%s489 + $0xb8] sm:$0xf]
        %v697 = vld [vmem:[%s489 + $0xbc] sm:$0xf]
        %v698 = vld [vmem:[%s489 + $0xc0] sm:$0xf]
        %v699 = vld [vmem:[%s489 + $0xc4] sm:$0xf]
        %v700 = vld [vmem:[%s489 + $0xc8] sm:$0xf]
        %v701 = vld [vmem:[%s489 + $0xcc] sm:$0xf]
        %v702 = vld [vmem:[%s489 + $0xd0] sm:$0xf]
        %v703 = vld [vmem:[%s489 + $0xd4] sm:$0xf]
        %v704 = vld [vmem:[%s489 + $0xd8] sm:$0xf]
        %v705 = vld [vmem:[%s489 + $0xdc] sm:$0xf]
        %v706 = vld [vmem:[%s489 + $0xe0] sm:$0xf]
        %v707 = vld [vmem:[%s489 + $0xe4] sm:$0xf]
        %v708 = vld [vmem:[%s489 + $0xe8] sm:$0xf]
        %v709 = vld [vmem:[%s489 + $0xec] sm:$0xf]
        %v710 = vld [vmem:[%s489 + $0xf0] sm:$0xf]
        %v711 = vld [vmem:[%s489 + $0xf4] sm:$0xf]
        %v712 = vld [vmem:[%s489 + $0xf8] sm:$0xf]
        %v713 = vld [vmem:[%s489 + $0xfc] sm:$0xf]
        %v778 = vunpack.c.l.b16 %v650
        %v779 = vunpack.c.l.b16 %v651
        %v780 = vunpack.c.l.b16 %v652
        %v781 = vunpack.c.l.b16 %v653
        %v782 = vunpack.c.l.b16 %v654
        %v783 = vunpack.c.l.b16 %v655
        %v784 = vunpack.c.l.b16 %v656
        %v785 = vunpack.c.l.b16 %v657
        %v786 = vunpack.c.l.b16 %v658
        %v787 = vunpack.c.l.b16 %v659
        %v788 = vunpack.c.l.b16 %v660
        %v789 = vunpack.c.l.b16 %v661
        %v790 = vunpack.c.l.b16 %v662
        %v791 = vunpack.c.l.b16 %v663
        %v792 = vunpack.c.l.b16 %v664
        %v793 = vunpack.c.l.b16 %v665
        %v794 = vunpack.c.l.b16 %v666
        %v795 = vunpack.c.l.b16 %v667
        %v796 = vunpack.c.l.b16 %v668
        %v797 = vunpack.c.l.b16 %v669
        %v798 = vunpack.c.l.b16 %v670
        %v799 = vunpack.c.l.b16 %v671
        %v800 = vunpack.c.l.b16 %v672
        %v801 = vunpack.c.l.b16 %v673
        %v802 = vunpack.c.l.b16 %v674
        %v803 = vunpack.c.l.b16 %v675
        %v804 = vunpack.c.l.b16 %v676
        %v805 = vunpack.c.l.b16 %v677
        %v806 = vunpack.c.l.b16 %v678
        %v807 = vunpack.c.l.b16 %v679
        %v808 = vunpack.c.l.b16 %v680
        %v809 = vunpack.c.l.b16 %v681
        %v810 = vunpack.c.l.b16 %v682
        %v811 = vunpack.c.l.b16 %v683
        %v812 = vunpack.c.l.b16 %v684
        %v813 = vunpack.c.l.b16 %v685
        %v814 = vunpack.c.l.b16 %v686
        %v815 = vunpack.c.l.b16 %v687
        %v816 = vunpack.c.l.b16 %v688
        %v817 = vunpack.c.l.b16 %v689
        %v818 = vunpack.c.l.b16 %v690
        %v819 = vunpack.c.l.b16 %v691
        %v820 = vunpack.c.l.b16 %v692
        %v821 = vunpack.c.l.b16 %v693
        %v822 = vunpack.c.l.b16 %v694
        %v823 = vunpack.c.l.b16 %v695
        %v824 = vunpack.c.l.b16 %v696
        %v825 = vunpack.c.l.b16 %v697
        %v826 = vunpack.c.l.b16 %v698
        %v827 = vunpack.c.l.b16 %v699
        %v828 = vunpack.c.l.b16 %v700
        %v829 = vunpack.c.l.b16 %v701
        %v830 = vunpack.c.l.b16 %v702
        %v831 = vunpack.c.l.b16 %v703
        %v832 = vunpack.c.l.b16 %v704
        %v833 = vunpack.c.l.b16 %v705
        %v834 = vunpack.c.l.b16 %v706
        %v835 = vunpack.c.l.b16 %v707
        %v836 = vunpack.c.l.b16 %v708
        %v837 = vunpack.c.l.b16 %v709
        %v838 = vunpack.c.l.b16 %v710
        %v839 = vunpack.c.l.b16 %v711
        %v840 = vunpack.c.l.b16 %v712
        %v841 = vunpack.c.l.b16 %v713
        %v842 = vpack.c.b16 %v779, %v778
        %v843 = vpack.c.b16 %v781, %v780
        %v844 = vpack.c.b16 %v783, %v782
        %v845 = vpack.c.b16 %v785, %v784
        %v846 = vpack.c.b16 %v787, %v786
        %v847 = vpack.c.b16 %v789, %v788
        %v848 = vpack.c.b16 %v791, %v790
        %v849 = vpack.c.b16 %v793, %v792
        %v850 = vpack.c.b16 %v795, %v794
        %v851 = vpack.c.b16 %v797, %v796
        %v852 = vpack.c.b16 %v799, %v798
        %v853 = vpack.c.b16 %v801, %v800
        %v854 = vpack.c.b16 %v803, %v802
        %v855 = vpack.c.b16 %v805, %v804
        %v856 = vpack.c.b16 %v807, %v806
        %v857 = vpack.c.b16 %v809, %v808
        %v858 = vpack.c.b16 %v811, %v810
        %v859 = vpack.c.b16 %v813, %v812
        %v860 = vpack.c.b16 %v815, %v814
        %v861 = vpack.c.b16 %v817, %v816
        %v862 = vpack.c.b16 %v819, %v818
        %v863 = vpack.c.b16 %v821, %v820
        %v864 = vpack.c.b16 %v823, %v822
        %v865 = vpack.c.b16 %v825, %v824
        %v866 = vpack.c.b16 %v827, %v826
        %v867 = vpack.c.b16 %v829, %v828
        %v868 = vpack.c.b16 %v831, %v830
        %v869 = vpack.c.b16 %v833, %v832
        %v870 = vpack.c.b16 %v835, %v834
        %v871 = vpack.c.b16 %v837, %v836
        %v872 = vpack.c.b16 %v839, %v838
        %v873 = vpack.c.b16 %v841, %v840
        %906 = vmatprep.subr.bf16.mxu0 0
        %907 = vmatpush1.bf16.msra.mxu0 %v842
        %908 = vmatprep.subr.bf16.mxu0 0
        %909 = vmatpush1.bf16.msra.mxu0 %v843
        %910 = vmatprep.subr.bf16.mxu0 0
        %911 = vmatpush1.bf16.msra.mxu0 %v844
        %912 = vmatprep.subr.bf16.mxu0 0
        %913 = vmatpush1.bf16.msra.mxu0 %v845
        %914 = vmatprep.subr.bf16.mxu0 0
        %915 = vmatpush1.bf16.msra.mxu0 %v846
        %916 = vmatprep.subr.bf16.mxu0 0
        %917 = vmatpush1.bf16.msra.mxu0 %v847
        %918 = vmatprep.subr.bf16.mxu0 0
        %919 = vmatpush1.bf16.msra.mxu0 %v848
        %920 = vmatprep.subr.bf16.mxu0 0
        %921 = vmatpush1.bf16.msra.mxu0 %v849
        %922 = vmatprep.subr.bf16.mxu0 0
        %923 = vmatpush1.bf16.msra.mxu0 %v850
        %924 = vmatprep.subr.bf16.mxu0 0
        %925 = vmatpush1.bf16.msra.mxu0 %v851
        %926 = vmatprep.subr.bf16.mxu0 0
        %927 = vmatpush1.bf16.msra.mxu0 %v852
        %928 = vmatprep.subr.bf16.mxu0 0
        %929 = vmatpush1.bf16.msra.mxu0 %v853
        %930 = vmatprep.subr.bf16.mxu0 0
        %931 = vmatpush1.bf16.msra.mxu0 %v854
        %932 = vmatprep.subr.bf16.mxu0 0
        %933 = vmatpush1.bf16.msra.mxu0 %v855
        %934 = vmatprep.subr.bf16.mxu0 0
        %935 = vmatpush1.bf16.msra.mxu0 %v856
        %936 = vmatprep.subr.bf16.mxu0 0
        %937 = vmatpush1.bf16.msra.mxu0 %v857
        %938 = vmatprep.mubr.bf16.mxu0 %v643
        %939 = vmatmul.mubr.bf16.gmra.mrb[0].mxu0 %v642
        %v940 = vpop.f32.mrb[0].mxu0
        %v941 = vadd.f32 0.0, %v940
        %v942 = vpop.f32.mrb[0].mxu0
        %v943 = vpop.f32.mrb[0].mxu0
        %v944 = vadd.f32 0.0, %v943
        %v945 = vpop.f32.mrb[0].mxu0
        %946 = vmatprep.mubr.bf16.mxu0 %v647
        %947 = vmatmul.mubr.bf16.gmra.mrb[0].mxu0 %v646
        %v948 = vpop.f32.mrb[0].mxu0
        %v949 = vadd.f32 0.0, %v948
        %v950 = vpop.f32.mrb[0].mxu0
        %v951 = vpop.f32.mrb[0].mxu0
        %v952 = vadd.f32 0.0, %v951
        %v953 = vpop.f32.mrb[0].mxu0
        %954 = vdwg.mxu0
        %955 = vmatprep.subr.bf16.mxu0 0
        %956 = vmatpush1.bf16.msra.mxu0 %v858
        %957 = vmatprep.subr.bf16.mxu0 0
        %958 = vmatpush1.bf16.msra.mxu0 %v859
        %959 = vmatprep.subr.bf16.mxu0 0
        %960 = vmatpush1.bf16.msra.mxu0 %v860
        %961 = vmatprep.subr.bf16.mxu0 0
        %962 = vmatpush1.bf16.msra.mxu0 %v861
        %963 = vmatprep.subr.bf16.mxu0 0
        %964 = vmatpush1.bf16.msra.mxu0 %v862
        %965 = vmatprep.subr.bf16.mxu0 0
        %966 = vmatpush1.bf16.msra.mxu0 %v863
        %967 = vmatprep.subr.bf16.mxu0 0
        %968 = vmatpush1.bf16.msra.mxu0 %v864
        %969 = vmatprep.subr.bf16.mxu0 0
        %970 = vmatpush1.bf16.msra.mxu0 %v865
        %971 = vmatprep.subr.bf16.mxu0 0
        %972 = vmatpush1.bf16.msra.mxu0 %v866
        %973 = vmatprep.subr.bf16.mxu0 0
        %974 = vmatpush1.bf16.msra.mxu0 %v867
        %975 = vmatprep.subr.bf16.mxu0 0
        %976 = vmatpush1.bf16.msra.mxu0 %v868
        %977 = vmatprep.subr.bf16.mxu0 0
        %978 = vmatpush1.bf16.msra.mxu0 %v869
        %979 = vmatprep.subr.bf16.mxu0 0
        %980 = vmatpush1.bf16.msra.mxu0 %v870
        %981 = vmatprep.subr.bf16.mxu0 0
        %982 = vmatpush1.bf16.msra.mxu0 %v871
        %983 = vmatprep.subr.bf16.mxu0 0
        %984 = vmatpush1.bf16.msra.mxu0 %v872
        %985 = vmatprep.subr.bf16.mxu0 0
        %986 = vmatpush1.bf16.msra.mxu0 %v873
        %987 = vmatprep.mubr.bf16.mxu0 %v645
        %988 = vmatmul.mubr.bf16.gmra.mrb[0].mxu0 %v644
        %v989 = vpop.f32.mrb[0].mxu0
        %v990 = vadd.f32 %v941, %v989
        %v991 = vpop.f32.mrb[0].mxu0
        %v992 = vpop.f32.mrb[0].mxu0
        %v993 = vadd.f32 %v944, %v992
        %v994 = vpop.f32.mrb[0].mxu0
        %995 = vmatprep.mubr.bf16.mxu0 %v649
        %996 = vmatmul.mubr.bf16.gmra.mrb[0].mxu0 %v648
        %v997 = vpop.f32.mrb[0].mxu0
        %v998 = vadd.f32 %v949, %v997
        %v999 = vpop.f32.mrb[0].mxu0
        %v1000 = vpop.f32.mrb[0].mxu0
        %v1001 = vadd.f32 %v952, %v1000
        %v1002 = vpop.f32.mrb[0].mxu0
        %1003 = vdwg.mxu0
        %v1004 = vpack.c.bf16 %v993, %v990
        %v1005 = vpack.c.bf16 %v1001, %v998
        %v1008 = vunpack.c.l.b16 %v1004
        %v1009 = vunpack.c.h.b16 %v1004
        %v1010 = vunpack.c.l.b16 %v1005
        %v1011 = vunpack.c.h.b16 %v1005
        %v1012 = vpack.c.b16 %v1008, %v1008
        %v1013 = vpack.c.b16 %v1009, %v1009
        %v1014 = vpack.c.b16 %v1010, %v1010
        %v1015 = vpack.c.b16 %v1011, %v1011
        %1020 = vst [vmem:[%s516] sm:$0xf] %v1012
        %1021 = vst [vmem:[%s516 + $0x4] sm:$0xf] %v1013
        %1022 = vst [vmem:[%s516 + $0x8] sm:$0xf] %v1014
        %1023 = vst [vmem:[%s516 + $0xc] sm:$0xf] %v1015
        %s1024 = sand.u32 %s131, 1
        %s1025 = sand.u32 %s131, 1
        %s1026 = smul.addr %s1025, 16
        %s1027 = scalar_lea.vmem [#allocation3], %s1026
        // Predicated region
        $region78: #{densenet_forward.159} parent=72 // pred_check
          %p1028 = pneg %p141
        $region79: #{densenet_forward.159} parent=72 // pred_check_branch
          %1030 = sbr.rel (%p1028) target = $region81
        $region80: #{densenet_forward.159} parent=72 // pred_region
          %s1031 = smul.u32 4, %s19
          %s1032 = smul.addr %s1031, 2
          %s1033 = sadd.s32 %s20, %s1032
          %s1034 = smul.addr %s1033, 4
          %s1035 = scalar_lea.vmem %s4, %s1034
          // Predicated region
          $region82: #{densenet_forward.159} parent=80 // pred_check
            _
          $region83: #{densenet_forward.159} parent=80 // pred_check_branch
            %1037 = sbr.rel (0) target = $region85
          $region84: #{densenet_forward.159} parent=80 // pred_region
            // Predicated region
            $region86: #{densenet_forward.159} parent=84 // pred_check
              _
            $region87: #{densenet_forward.159} parent=84 // pred_check_branch
              %1039 = sbr.rel target = $region89
            $region88: #{densenet_forward.159} parent=84 // pred_region
              // Predicated region
              $region101: #{densenet_forward.159} parent=88 // pred_check
                _
              $region102: #{densenet_forward.159} parent=88 // pred_check_branch
                %1060 = sbr.rel (0) target = $region104
              $region103: #{densenet_forward.159} parent=88 // pred_region
                loop: start=0, step=1, limit=1
                $region105: #{densenet_forward.159} parent=103 // loop_pre_header
                  _
                $region106: #{densenet_forward.159} parent=103 // loop_header
                  %s1062 = sphi 0, %s1066
                  %p1063 = scmp.ge.s32.totalorder %s1062, 1
                  %s1067 = sphi %s1027, %s1027
                  %s1068 = sphi %s1035, %s1035
                $region107: #{densenet_forward.159} parent=103 // loop_header_branch
                  %1065 = sbr.rel (%p1063) target = $region111
                $region108: #{densenet_forward.159} parent=103 // loop_body
                  _
                $region109: #{densenet_forward.159} parent=103 // loop_footer
                  %s1066 = sadd.s32 1, %s1062
                $region110: #{densenet_forward.159} parent=103 // loop_footer_branch
                  %1061 = sbr.rel target = $region106
                $region111: #{densenet_forward.159} parent=103 // loop_exit
                  _
                loop: start=0, step=1, limit=1
                $region112: #{densenet_forward.159} parent=103 // loop_pre_header
                  _
                $region113: #{densenet_forward.159} parent=103 // loop_header
                  %s1071 = sphi 0, %s1075
                  %p1072 = scmp.ge.s32.totalorder %s1071, 1
                  %s1076 = sphi %s1027, %s1027
                  %s1077 = sphi %s1035, %s1035
                $region114: #{densenet_forward.159} parent=103 // loop_header_branch
                  %1074 = sbr.rel (%p1072) target = $region118
                $region115: #{densenet_forward.159} parent=103 // loop_body
                  %v1078 = vld [vmem:[%s1076] sm:$0xf]
                  %1079 = vst [vmem:[%s1077] sm:$0xf] %v1078
                  %v1080 = vld [vmem:[%s1076 + $0x4] sm:$0xf]
                  %1081 = vst [vmem:[%s1077 + $0x8] sm:$0xf] %v1080
                  %v1082 = vld [vmem:[%s1076 + $0x8] sm:$0xf]
                  %1083 = vst [vmem:[%s1077 + $0x10] sm:$0xf] %v1082
                  %v1084 = vld [vmem:[%s1076 + $0xc] sm:$0xf]
                  %1085 = vst [vmem:[%s1077 + $0x18] sm:$0xf] %v1084
                $region116: #{densenet_forward.159} parent=103 // loop_footer
                  %s1075 = sadd.s32 1, %s1071
                $region117: #{densenet_forward.159} parent=103 // loop_footer_branch
                  %1070 = sbr.rel target = $region113
                $region118: #{densenet_forward.159} parent=103 // loop_exit
                  _
              $region104: #{densenet_forward.159} parent=88 // pred_fallthru
                _
            $region89: #{densenet_forward.159} parent=84 // pred_fallthru
              _
            // Predicated region
            $region90: #{densenet_forward.159} parent=84 // pred_check
              _
            $region91: #{densenet_forward.159} parent=84 // pred_check_branch
              %1041 = sbr.rel (0) target = $region93
            $region92: #{densenet_forward.159} parent=84 // pred_region
              loop: start=0, step=1, limit=1
              $region94: #{densenet_forward.159} parent=92 // loop_pre_header
                _
              $region95: #{densenet_forward.159} parent=92 // loop_header
                %s1044 = sphi 0, %s1048
                %p1045 = scmp.ge.s32.totalorder %s1044, 1
                %s1049 = sphi %s1027, %s1027
                %s1050 = sphi %s1035, %s1035
              $region96: #{densenet_forward.159} parent=92 // loop_header_branch
                %1047 = sbr.rel (%p1045) target = $region100
              $region97: #{densenet_forward.159} parent=92 // loop_body
                %v1051 = vld [vmem:[%s1049] sm:$0xf]
                %1052 = vst [vmem:[%s1050] sm:$0xf] %v1051
                %v1053 = vld [vmem:[%s1049 + $0x4] sm:$0xf]
                %1054 = vst [vmem:[%s1050 + $0x8] sm:$0xf] %v1053
                %v1055 = vld [vmem:[%s1049 + $0x8] sm:$0xf]
                %1056 = vst [vmem:[%s1050 + $0x10] sm:$0xf] %v1055
                %v1057 = vld [vmem:[%s1049 + $0xc] sm:$0xf]
                %1058 = vst [vmem:[%s1050 + $0x18] sm:$0xf] %v1057
              $region98: #{densenet_forward.159} parent=92 // loop_footer
                %s1048 = sadd.s32 1, %s1044
              $region99: #{densenet_forward.159} parent=92 // loop_footer_branch
                %1043 = sbr.rel target = $region95
              $region100: #{densenet_forward.159} parent=92 // loop_exit
                _
            $region93: #{densenet_forward.159} parent=84 // pred_fallthru
              _
          $region85: #{densenet_forward.159} parent=80 // pred_fallthru
            _
          %1086 = vnop
        $region81: #{densenet_forward.159} parent=72 // pred_fallthru
          _
      $region73: #{densenet_forward.159} parent=5 // pred_fallthru
        _
      %p1087 = scmp.le.s32.totalorder 2, %s10
      // Predicated region
      $region119: #{densenet_forward.159} parent=5 // pred_check
        %p1088 = pneg %p1087
      $region120: #{densenet_forward.159} parent=5 // pred_check_branch
        %1090 = sbr.rel (%p1088) target = $region122
      $region121: #{densenet_forward.159} parent=5 // pred_region
        %s1091 = ssub.s32 %s10, 2
        // Predicated region
        $region123: #{densenet_forward.159} parent=121 // pred_check
          %p1092 = pneg %p147
        $region124: #{densenet_forward.159} parent=121 // pred_check_branch
          %1094 = sbr.rel (%p1092) target = $region126
        $region125: #{densenet_forward.159} parent=121 // pred_region
          %s1095 = sand.u32 %s132, 1
          %s1096 = sand.u32 %s132, 1
          %s1097 = smul.addr %s1096, 16
          %s1098 = scalar_lea.vmem [#allocation3], %s1097
        $region126: #{densenet_forward.159} parent=121 // pred_fallthru
          _
      $region122: #{densenet_forward.159} parent=5 // pred_fallthru
        _
    $region6: #{densenet_forward.159} parent=1 // loop_footer
      %s14 = sadd.s32 1, %s10
    $region7: #{densenet_forward.159} parent=1 // loop_footer_branch
      %9 = sbr.rel target = $region3
    $region8: #{densenet_forward.159} parent=1 // loop_exit
      _

// kernel: densenet_forward.161
$region0: #{densenet_forward.161}
  #allocation0 [shape = 'u32[]', space=smem, size = 0x4, offset = 0x4, fixed_abs, tag = 'smem constant byte address 0x4 - core index']
  #allocation1 [shape = 'u32[144,128]{1,0:T(1,128)}', space=vmem, size = 0x12000, scoped, tag = 'internal scratch']
  %s0 = inlined_call_operand.vmem [shape: bf16[16,1152], index: 0, kind: input, shape index: {}]
  %s1 = inlined_call_operand.vmem [shape: bf16[1152,128], index: 1, kind: input, shape index: {}]
  %s2 = inlined_call_operand.vmem [shape: bf16[16,128], index: 2, kind: output, shape index: {}]
  %s3 = sld [smem:[#allocation0]]
  $region18: #{densenet_forward.161} parent=0
    _
  %s5 = ssub.s32 1, %s3
  %s6 = scalar_select 0, %s5, %s3
  // Predicated region
  $region2: #{densenet_forward.161} parent=0 // pred_check
    _
  $region3: #{densenet_forward.161} parent=0 // pred_check_branch
    %8 = sbr.rel (0) target = $region5
  $region4: #{densenet_forward.161} parent=0 // pred_region
    _
  $region5: #{densenet_forward.161} parent=0 // pred_fallthru
    _
  // Predicated region
  $region6: #{densenet_forward.161} parent=0 // pred_check
    _
  $region7: #{densenet_forward.161} parent=0 // pred_check_branch
    %10 = sbr.rel (0) target = $region9
  $region8: #{densenet_forward.161} parent=0 // pred_region
    _
  $region9: #{densenet_forward.161} parent=0 // pred_fallthru
    _
  %v12 = vld [vmem:[%s0] sm:$0xff]
  %v13 = vld [vmem:[%s0 + $0x8] sm:$0xff]
  %v14 = vld [vmem:[%s0 + $0x10] sm:$0xff]
  %v15 = vld [vmem:[%s0 + $0x18] sm:$0xff]
  %v16 = vld [vmem:[%s0 + $0x20] sm:$0xf]
  %v17 = vld [vmem:[%s0 + $0x24] sm:$0xff]
  %v18 = vld [vmem:[%s0 + $0x2c] sm:$0xff]
  %v19 = vld [vmem:[%s0 + $0x34] sm:$0xff]
  %v20 = vld [vmem:[%s0 + $0x3c] sm:$0xff]
  %v21 = vld [vmem:[%s0 + $0x44] sm:$0xf]
  %v22 = vld [vmem:[%s1] sm:$0xf]
  %v23 = vld [vmem:[%s1 + $0x4] sm:$0xf]
  %v24 = vld [vmem:[%s1 + $0x8] sm:$0xf]
  %v25 = vld [vmem:[%s1 + $0xc] sm:$0xf]
  %v26 = vld [vmem:[%s1 + $0x10] sm:$0xf]
  %v27 = vld [vmem:[%s1 + $0x14] sm:$0xf]
  %v28 = vld [vmem:[%s1 + $0x18] sm:$0xf]
  %v29 = vld [vmem:[%s1 + $0x1c] sm:$0xf]
  %v30 = vld [vmem:[%s1 + $0x20] sm:$0xf]
  %v31 = vld [vmem:[%s1 + $0x24] sm:$0xf]
  %v32 = vld [vmem:[%s1 + $0x28] sm:$0xf]
  %v33 = vld [vmem:[%s1 + $0x2c] sm:$0xf]
  %v34 = vld [vmem:[%s1 + $0x30] sm:$0xf]
  %v35 = vld [vmem:[%s1 + $0x34] sm:$0xf]
  %v36 = vld [vmem:[%s1 + $0x38] sm:$0xf]
  %v37 = vld [vmem:[%s1 + $0x3c] sm:$0xf]
  %v38 = vld [vmem:[%s1 + $0x40] sm:$0xf]
  %v39 = vld [vmem:[%s1 + $0x44] sm:$0xf]
  %v40 = vld [vmem:[%s1 + $0x48] sm:$0xf]
  %v41 = vld [vmem:[%s1 + $0x4c] sm:$0xf]
  %v42 = vld [vmem:[%s1 + $0x50] sm:$0xf]
  %v43 = vld [vmem:[%s1 + $0x54] sm:$0xf]
  %v44 = vld [vmem:[%s1 + $0x58] sm:$0xf]
  %v45 = vld [vmem:[%s1 + $0x5c] sm:$0xf]
  %v46 = vld [vmem:[%s1 + $0x60] sm:$0xf]
  %v47 = vld [vmem:[%s1 + $0x64] sm:$0xf]
  %v48 = vld [vmem:[%s1 + $0x68] sm:$0xf]
  %v49 = vld [vmem:[%s1 + $0x6c] sm:$0xf]
  %v50 = vld [vmem:[%s1 + $0x70] sm:$0xf]
  %v51 = vld [vmem:[%s1 + $0x74] sm:$0xf]
  %v52 = vld [vmem:[%s1 + $0x78] sm:$0xf]
  %v53 = vld [vmem:[%s1 + $0x7c] sm:$0xf]
  %v54 = vld [vmem:[%s1 + $0x80] sm:$0xf]
  %v55 = vld [vmem:[%s1 + $0x84] sm:$0xf]
  %v56 = vld [vmem:[%s1 + $0x88] sm:$0xf]
  %v57 = vld [vmem:[%s1 + $0x8c] sm:$0xf]
  %v58 = vld [vmem:[%s1 + $0x90] sm:$0xf]
  %v59 = vld [vmem:[%s1 + $0x94] sm:$0xf]
  %v60 = vld [vmem:[%s1 + $0x98] sm:$0xf]
  %v61 = vld [vmem:[%s1 + $0x9c] sm:$0xf]
  %v62 = vld [vmem:[%s1 + $0xa0] sm:$0xf]
  %v63 = vld [vmem:[%s1 + $0xa4] sm:$0xf]
  %v64 = vld [vmem:[%s1 + $0xa8] sm:$0xf]
  %v65 = vld [vmem:[%s1 + $0xac] sm:$0xf]
  %v66 = vld [vmem:[%s1 + $0xb0] sm:$0xf]
  %v67 = vld [vmem:[%s1 + $0xb4] sm:$0xf]
  %v68 = vld [vmem:[%s1 + $0xb8] sm:$0xf]
  %v69 = vld [vmem:[%s1 + $0xbc] sm:$0xf]
  %v70 = vld [vmem:[%s1 + $0xc0] sm:$0xf]
  %v71 = vld [vmem:[%s1 + $0xc4] sm:$0xf]
  %v72 = vld [vmem:[%s1 + $0xc8] sm:$0xf]
  %v73 = vld [vmem:[%s1 + $0xcc] sm:$0xf]
  %v74 = vld [vmem:[%s1 + $0xd0] sm:$0xf]
  %v75 = vld [vmem:[%s1 + $0xd4] sm:$0xf]
  %v76 = vld [vmem:[%s1 + $0xd8] sm:$0xf]
  %v77 = vld [vmem:[%s1 + $0xdc] sm:$0xf]
  %v78 = vld [vmem:[%s1 + $0xe0] sm:$0xf]
  %v79 = vld [vmem:[%s1 + $0xe4] sm:$0xf]
  %v80 = vld [vmem:[%s1 + $0xe8] sm:$0xf]
  %v81 = vld [vmem:[%s1 + $0xec] sm:$0xf]
  %v82 = vld [vmem:[%s1 + $0xf0] sm:$0xf]
  %v83 = vld [vmem:[%s1 + $0xf4] sm:$0xf]
  %v84 = vld [vmem:[%s1 + $0xf8] sm:$0xf]
  %v85 = vld [vmem:[%s1 + $0xfc] sm:$0xf]
  %v86 = vld [vmem:[%s1 + $0x100] sm:$0xf]
  %v87 = vld [vmem:[%s1 + $0x104] sm:$0xf]
  %v88 = vld [vmem:[%s1 + $0x108] sm:$0xf]
  %v89 = vld [vmem:[%s1 + $0x10c] sm:$0xf]
  %v90 = vld [vmem:[%s1 + $0x110] sm:$0xf]
  %v91 = vld [vmem:[%s1 + $0x114] sm:$0xf]
  %v92 = vld [vmem:[%s1 + $0x118] sm:$0xf]
  %v93 = vld [vmem:[%s1 + $0x11c] sm:$0xf]
  %v94 = vld [vmem:[%s1 + $0x120] sm:$0xf]
  %v95 = vld [vmem:[%s1 + $0x124] sm:$0xf]
  %v96 = vld [vmem:[%s1 + $0x128] sm:$0xf]
  %v97 = vld [vmem:[%s1 + $0x12c] sm:$0xf]
  %v98 = vld [vmem:[%s1 + $0x130] sm:$0xf]
  %v99 = vld [vmem:[%s1 + $0x134] sm:$0xf]
  %v100 = vld [vmem:[%s1 + $0x138] sm:$0xf]
  %v101 = vld [vmem:[%s1 + $0x13c] sm:$0xf]
  %v102 = vld [vmem:[%s1 + $0x140] sm:$0xf]
  %v103 = vld [vmem:[%s1 + $0x144] sm:$0xf]
  %v104 = vld [vmem:[%s1 + $0x148] sm:$0xf]
  %v105 = vld [vmem:[%s1 + $0x14c] sm:$0xf]
  %v106 = vld [vmem:[%s1 + $0x150] sm:$0xf]
  %v107 = vld [vmem:[%s1 + $0x154] sm:$0xf]
  %v108 = vld [vmem:[%s1 + $0x158] sm:$0xf]
  %v109 = vld [vmem:[%s1 + $0x15c] sm:$0xf]
  %v110 = vld [vmem:[%s1 + $0x160] sm:$0xf]
  %v111 = vld [vmem:[%s1 + $0x164] sm:$0xf]
  %v112 = vld [vmem:[%s1 + $0x168] sm:$0xf]
  %v113 = vld [vmem:[%s1 + $0x16c] sm:$0xf]
  %v114 = vld [vmem:[%s1 + $0x170] sm:$0xf]
  %v115 = vld [vmem:[%s1 + $0x174] sm:$0xf]
  %v116 = vld [vmem:[%s1 + $0x178] sm:$0xf]
  %v117 = vld [vmem:[%s1 + $0x17c] sm:$0xf]
  %v118 = vld [vmem:[%s1 + $0x180] sm:$0xf]
  %v119 = vld [vmem:[%s1 + $0x184] sm:$0xf]
  %v120 = vld [vmem:[%s1 + $0x188] sm:$0xf]
  %v121 = vld [vmem:[%s1 + $0x18c] sm:$0xf]
  %v122 = vld [vmem:[%s1 + $0x190] sm:$0xf]
  %v123 = vld [vmem:[%s1 + $0x194] sm:$0xf]
  %v124 = vld [vmem:[%s1 + $0x198] sm:$0xf]
  %v125 = vld [vmem:[%s1 + $0x19c] sm:$0xf]
  %v126 = vld [vmem:[%s1 + $0x1a0] sm:$0xf]
  %v127 = vld [vmem:[%s1 + $0x1a4] sm:$0xf]
  %v128 = vld [vmem:[%s1 + $0x1a8] sm:$0xf]
  %v129 = vld [vmem:[%s1 + $0x1ac] sm:$0xf]
  %v130 = vld [vmem:[%s1 + $0x1b0] sm:$0xf]
  %v131 = vld [vmem:[%s1 + $0x1b4] sm:$0xf]
  %v132 = vld [vmem:[%s1 + $0x1b8] sm:$0xf]
  %v133 = vld [vmem:[%s1 + $0x1bc] sm:$0xf]
  %v134 = vld [vmem:[%s1 + $0x1c0] sm:$0xf]
  %v135 = vld [vmem:[%s1 + $0x1c4] sm:$0xf]
  %v136 = vld [vmem:[%s1 + $0x1c8] sm:$0xf]
  %v137 = vld [vmem:[%s1 + $0x1cc] sm:$0xf]
  %v138 = vld [vmem:[%s1 + $0x1d0] sm:$0xf]
  %v139 = vld [vmem:[%s1 + $0x1d4] sm:$0xf]
  %v140 = vld [vmem:[%s1 + $0x1d8] sm:$0xf]
  %v141 = vld [vmem:[%s1 + $0x1dc] sm:$0xf]
  %v142 = vld [vmem:[%s1 + $0x1e0] sm:$0xf]
  %v143 = vld [vmem:[%s1 + $0x1e4] sm:$0xf]
  %v144 = vld [vmem:[%s1 + $0x1e8] sm:$0xf]
  %v145 = vld [vmem:[%s1 + $0x1ec] sm:$0xf]
  %v146 = vld [vmem:[%s1 + $0x1f0] sm:$0xf]
  %v147 = vld [vmem:[%s1 + $0x1f4] sm:$0xf]
  %v148 = vld [vmem:[%s1 + $0x1f8] sm:$0xf]
  %v149 = vld [vmem:[%s1 + $0x1fc] sm:$0xf]
  %v150 = vld [vmem:[%s1 + $0x200] sm:$0xf]
  %v151 = vld [vmem:[%s1 + $0x204] sm:$0xf]
  %v152 = vld [vmem:[%s1 + $0x208] sm:$0xf]
  %v153 = vld [vmem:[%s1 + $0x20c] sm:$0xf]
  %v154 = vld [vmem:[%s1 + $0x210] sm:$0xf]
  %v155 = vld [vmem:[%s1 + $0x214] sm:$0xf]
  %v156 = vld [vmem:[%s1 + $0x218] sm:$0xf]
  %v157 = vld [vmem:[%s1 + $0x21c] sm:$0xf]
  %v158 = vld [vmem:[%s1 + $0x220] sm:$0xf]
  %v159 = vld [vmem:[%s1 + $0x224] sm:$0xf]
  %v160 = vld [vmem:[%s1 + $0x228] sm:$0xf]
  %v161 = vld [vmem:[%s1 + $0x22c] sm:$0xf]
  %v162 = vld [vmem:[%s1 + $0x230] sm:$0xf]
  %v163 = vld [vmem:[%s1 + $0x234] sm:$0xf]
  %v164 = vld [vmem:[%s1 + $0x238] sm:$0xf]
  %v165 = vld [vmem:[%s1 + $0x23c] sm:$0xf]
  %v176 = vunpack.c.l.b16 %v12
  %v177 = vunpack.c.h.b16 %v12
  %v178 = vunpack.c.l.b16 %v13
  %v179 = vunpack.c.h.b16 %v13
  %v180 = vunpack.c.l.b16 %v14
  %v181 = vunpack.c.h.b16 %v14
  %v182 = vunpack.c.l.b16 %v15
  %v183 = vunpack.c.h.b16 %v15
  %v184 = vunpack.c.l.b16 %v16
  %v185 = vunpack.c.l.b16 %v17
  %v186 = vunpack.c.h.b16 %v17
  %v187 = vunpack.c.l.b16 %v18
  %v188 = vunpack.c.h.b16 %v18
  %v189 = vunpack.c.l.b16 %v19
  %v190 = vunpack.c.h.b16 %v19
  %v191 = vunpack.c.l.b16 %v20
  %v192 = vunpack.c.h.b16 %v20
  %v193 = vunpack.c.l.b16 %v21
  %v194 = vpack.c.b16 %v185, %v176
  %v195 = vpack.c.b16 %v186, %v177
  %v196 = vpack.c.b16 %v187, %v178
  %v197 = vpack.c.b16 %v188, %v179
  %v198 = vpack.c.b16 %v189, %v180
  %v199 = vpack.c.b16 %v190, %v181
  %v200 = vpack.c.b16 %v191, %v182
  %v201 = vpack.c.b16 %v192, %v183
  %v202 = vpack.c.b16 %v193, %v184
  %v356 = vunpack.c.l.b16 %v22
  %v357 = vunpack.c.l.b16 %v23
  %v358 = vunpack.c.l.b16 %v24
  %v359 = vunpack.c.l.b16 %v25
  %v360 = vunpack.c.l.b16 %v26
  %v361 = vunpack.c.l.b16 %v27
  %v362 = vunpack.c.l.b16 %v28
  %v363 = vunpack.c.l.b16 %v29
  %v364 = vunpack.c.l.b16 %v30
  %v365 = vunpack.c.l.b16 %v31
  %v366 = vunpack.c.l.b16 %v32
  %v367 = vunpack.c.l.b16 %v33
  %v368 = vunpack.c.l.b16 %v34
  %v369 = vunpack.c.l.b16 %v35
  %v370 = vunpack.c.l.b16 %v36
  %v371 = vunpack.c.l.b16 %v37
  %v372 = vunpack.c.l.b16 %v38
  %v373 = vunpack.c.l.b16 %v39
  %v374 = vunpack.c.l.b16 %v40
  %v375 = vunpack.c.l.b16 %v41
  %v376 = vunpack.c.l.b16 %v42
  %v377 = vunpack.c.l.b16 %v43
  %v378 = vunpack.c.l.b16 %v44
  %v379 = vunpack.c.l.b16 %v45
  %v380 = vunpack.c.l.b16 %v46
  %v381 = vunpack.c.l.b16 %v47
  %v382 = vunpack.c.l.b16 %v48
  %v383 = vunpack.c.l.b16 %v49
  %v384 = vunpack.c.l.b16 %v50
  %v385 = vunpack.c.l.b16 %v51
  %v386 = vunpack.c.l.b16 %v52
  %v387 = vunpack.c.l.b16 %v53
  %v388 = vunpack.c.l.b16 %v54
  %v389 = vunpack.c.l.b16 %v55
  %v390 = vunpack.c.l.b16 %v56
  %v391 = vunpack.c.l.b16 %v57
  %v392 = vunpack.c.l.b16 %v58
  %v393 = vunpack.c.l.b16 %v59
  %v394 = vunpack.c.l.b16 %v60
  %v395 = vunpack.c.l.b16 %v61
  %v396 = vunpack.c.l.b16 %v62
  %v397 = vunpack.c.l.b16 %v63
  %v398 = vunpack.c.l.b16 %v64
  %v399 = vunpack.c.l.b16 %v65
  %v400 = vunpack.c.l.b16 %v66
  %v401 = vunpack.c.l.b16 %v67
  %v402 = vunpack.c.l.b16 %v68
  %v403 = vunpack.c.l.b16 %v69
  %v404 = vunpack.c.l.b16 %v70
  %v405 = vunpack.c.l.b16 %v71
  %v406 = vunpack.c.l.b16 %v72
  %v407 = vunpack.c.l.b16 %v73
  %v408 = vunpack.c.l.b16 %v74
  %v409 = vunpack.c.l.b16 %v75
  %v410 = vunpack.c.l.b16 %v76
  %v411 = vunpack.c.l.b16 %v77
  %v412 = vunpack.c.l.b16 %v78
  %v413 = vunpack.c.l.b16 %v79
  %v414 = vunpack.c.l.b16 %v80
  %v415 = vunpack.c.l.b16 %v81
  %v416 = vunpack.c.l.b16 %v82
  %v417 = vunpack.c.l.b16 %v83
  %v418 = vunpack.c.l.b16 %v84
  %v419 = vunpack.c.l.b16 %v85
  %v420 = vunpack.c.l.b16 %v86
  %v421 = vunpack.c.l.b16 %v87
  %v422 = vunpack.c.l.b16 %v88
  %v423 = vunpack.c.l.b16 %v89
  %v424 = vunpack.c.l.b16 %v90
  %v425 = vunpack.c.l.b16 %v91
  %v426 = vunpack.c.l.b16 %v92
  %v427 = vunpack.c.l.b16 %v93
  %v428 = vunpack.c.l.b16 %v94
  %v429 = vunpack.c.l.b16 %v95
  %v430 = vunpack.c.l.b16 %v96
  %v431 = vunpack.c.l.b16 %v97
  %v432 = vunpack.c.l.b16 %v98
  %v433 = vunpack.c.l.b16 %v99
  %v434 = vunpack.c.l.b16 %v100
  %v435 = vunpack.c.l.b16 %v101
  %v436 = vunpack.c.l.b16 %v102
  %v437 = vunpack.c.l.b16 %v103
  %v438 = vunpack.c.l.b16 %v104
  %v439 = vunpack.c.l.b16 %v105
  %v440 = vunpack.c.l.b16 %v106
  %v441 = vunpack.c.l.b16 %v107
  %v442 = vunpack.c.l.b16 %v108
  %v443 = vunpack.c.l.b16 %v109
  %v444 = vunpack.c.l.b16 %v110
  %v445 = vunpack.c.l.b16 %v111
  %v446 = vunpack.c.l.b16 %v112
  %v447 = vunpack.c.l.b16 %v113
  %v448 = vunpack.c.l.b16 %v114
  %v449 = vunpack.c.l.b16 %v115
  %v450 = vunpack.c.l.b16 %v116
  %v451 = vunpack.c.l.b16 %v117
  %v452 = vunpack.c.l.b16 %v118
  %v453 = vunpack.c.l.b16 %v119
  %v454 = vunpack.c.l.b16 %v120
  %v455 = vunpack.c.l.b16 %v121
  %v456 = vunpack.c.l.b16 %v122
  %v457 = vunpack.c.l.b16 %v123
  %v458 = vunpack.c.l.b16 %v124
  %v459 = vunpack.c.l.b16 %v125
  %v460 = vunpack.c.l.b16 %v126
  %v461 = vunpack.c.l.b16 %v127
  %v462 = vunpack.c.l.b16 %v128
  %v463 = vunpack.c.l.b16 %v129
  %v464 = vunpack.c.l.b16 %v130
  %v465 = vunpack.c.l.b16 %v131
  %v466 = vunpack.c.l.b16 %v132
  %v467 = vunpack.c.l.b16 %v133
  %v468 = vunpack.c.l.b16 %v134
  %v469 = vunpack.c.l.b16 %v135
  %v470 = vunpack.c.l.b16 %v136
  %v471 = vunpack.c.l.b16 %v137
  %v472 = vunpack.c.l.b16 %v138
  %v473 = vunpack.c.l.b16 %v139
  %v474 = vunpack.c.l.b16 %v140
  %v475 = vunpack.c.l.b16 %v141
  %v476 = vunpack.c.l.b16 %v142
  %v477 = vunpack.c.l.b16 %v143
  %v478 = vunpack.c.l.b16 %v144
  %v479 = vunpack.c.l.b16 %v145
  %v480 = vunpack.c.l.b16 %v146
  %v481 = vunpack.c.l.b16 %v147
  %v482 = vunpack.c.l.b16 %v148
  %v483 = vunpack.c.l.b16 %v149
  %v484 = vunpack.c.l.b16 %v150
  %v485 = vunpack.c.l.b16 %v151
  %v486 = vunpack.c.l.b16 %v152
  %v487 = vunpack.c.l.b16 %v153
  %v488 = vunpack.c.l.b16 %v154
  %v489 = vunpack.c.l.b16 %v155
  %v490 = vunpack.c.l.b16 %v156
  %v491 = vunpack.c.l.b16 %v157
  %v492 = vunpack.c.l.b16 %v158
  %v493 = vunpack.c.l.b16 %v159
  %v494 = vunpack.c.l.b16 %v160
  %v495 = vunpack.c.l.b16 %v161
  %v496 = vunpack.c.l.b16 %v162
  %v497 = vunpack.c.l.b16 %v163
  %v498 = vunpack.c.l.b16 %v164
  %v499 = vunpack.c.l.b16 %v165
  %v500 = vpack.c.b16 %v357, %v356
  %v501 = vpack.c.b16 %v359, %v358
  %v502 = vpack.c.b16 %v361, %v360
  %v503 = vpack.c.b16 %v363, %v362
  %v504 = vpack.c.b16 %v365, %v364
  %v505 = vpack.c.b16 %v367, %v366
  %v506 = vpack.c.b16 %v369, %v368
  %v507 = vpack.c.b16 %v371, %v370
  %v508 = vpack.c.b16 %v373, %v372
  %v509 = vpack.c.b16 %v375, %v374
  %v510 = vpack.c.b16 %v377, %v376
  %v511 = vpack.c.b16 %v379, %v378
  %v512 = vpack.c.b16 %v381, %v380
  %v513 = vpack.c.b16 %v383, %v382
  %v514 = vpack.c.b16 %v385, %v384
  %v515 = vpack.c.b16 %v387, %v386
  %v516 = vpack.c.b16 %v389, %v388
  %v517 = vpack.c.b16 %v391, %v390
  %v518 = vpack.c.b16 %v393, %v392
  %v519 = vpack.c.b16 %v395, %v394
  %v520 = vpack.c.b16 %v397, %v396
  %v521 = vpack.c.b16 %v399, %v398
  %v522 = vpack.c.b16 %v401, %v400
  %v523 = vpack.c.b16 %v403, %v402
  %v524 = vpack.c.b16 %v405, %v404
  %v525 = vpack.c.b16 %v407, %v406
  %v526 = vpack.c.b16 %v409, %v408
  %v527 = vpack.c.b16 %v411, %v410
  %v528 = vpack.c.b16 %v413, %v412
  %v529 = vpack.c.b16 %v415, %v414
  %v530 = vpack.c.b16 %v417, %v416
  %v531 = vpack.c.b16 %v419, %v418
  %v532 = vpack.c.b16 %v421, %v420
  %v533 = vpack.c.b16 %v423, %v422
  %v534 = vpack.c.b16 %v425, %v424
  %v535 = vpack.c.b16 %v427, %v426
  %v536 = vpack.c.b16 %v429, %v428
  %v537 = vpack.c.b16 %v431, %v430
  %v538 = vpack.c.b16 %v433, %v432
  %v539 = vpack.c.b16 %v435, %v434
  %v540 = vpack.c.b16 %v437, %v436
  %v541 = vpack.c.b16 %v439, %v438
  %v542 = vpack.c.b16 %v441, %v440
  %v543 = vpack.c.b16 %v443, %v442
  %v544 = vpack.c.b16 %v445, %v444
  %v545 = vpack.c.b16 %v447, %v446
  %v546 = vpack.c.b16 %v449, %v448
  %v547 = vpack.c.b16 %v451, %v450
  %v548 = vpack.c.b16 %v453, %v452
  %v549 = vpack.c.b16 %v455, %v454
  %v550 = vpack.c.b16 %v457, %v456
  %v551 = vpack.c.b16 %v459, %v458
  %v552 = vpack.c.b16 %v461, %v460
  %v553 = vpack.c.b16 %v463, %v462
  %v554 = vpack.c.b16 %v465, %v464
  %v555 = vpack.c.b16 %v467, %v466
  %v556 = vpack.c.b16 %v469, %v468
  %v557 = vpack.c.b16 %v471, %v470
  %v558 = vpack.c.b16 %v473, %v472
  %v559 = vpack.c.b16 %v475, %v474
  %v560 = vpack.c.b16 %v477, %v476
  %v561 = vpack.c.b16 %v479, %v478
  %v562 = vpack.c.b16 %v481, %v480
  %v563 = vpack.c.b16 %v483, %v482
  %v564 = vpack.c.b16 %v485, %v484
  %v565 = vpack.c.b16 %v487, %v486
  %v566 = vpack.c.b16 %v489, %v488
  %v567 = vpack.c.b16 %v491, %v490
  %v568 = vpack.c.b16 %v493, %v492
  %v569 = vpack.c.b16 %v495, %v494
  %v570 = vpack.c.b16 %v497, %v496
  %v571 = vpack.c.b16 %v499, %v498
  %644 = vmatprep.subr.bf16.mxu0 0
  %645 = vmatpush1.bf16.msra.mxu0 %v500
  %646 = vmatprep.subr.bf16.mxu0 0
  %647 = vmatpush1.bf16.msra.mxu0 %v501
  %648 = vmatprep.subr.bf16.mxu0 0
  %649 = vmatpush1.bf16.msra.mxu0 %v502
  %650 = vmatprep.subr.bf16.mxu0 0
  %651 = vmatpush1.bf16.msra.mxu0 %v503
  %652 = vmatprep.subr.bf16.mxu0 0
  %653 = vmatpush1.bf16.msra.mxu0 %v504
  %654 = vmatprep.subr.bf16.mxu0 0
  %655 = vmatpush1.bf16.msra.mxu0 %v505
  %656 = vmatprep.subr.bf16.mxu0 0
  %657 = vmatpush1.bf16.msra.mxu0 %v506
  %658 = vmatprep.subr.bf16.mxu0 0
  %659 = vmatpush1.bf16.msra.mxu0 %v507
  %660 = vmatprep.subr.bf16.mxu0 0
  %661 = vmatpush1.bf16.msra.mxu0 %v508
  %662 = vmatprep.subr.bf16.mxu0 0
  %663 = vmatpush1.bf16.msra.mxu0 %v509
  %664 = vmatprep.subr.bf16.mxu0 0
  %665 = vmatpush1.bf16.msra.mxu0 %v510
  %666 = vmatprep.subr.bf16.mxu0 0
  %667 = vmatpush1.bf16.msra.mxu0 %v511
  %668 = vmatprep.subr.bf16.mxu0 0
  %669 = vmatpush1.bf16.msra.mxu0 %v512
  %670 = vmatprep.subr.bf16.mxu0 0
  %671 = vmatpush1.bf16.msra.mxu0 %v513
  %672 = vmatprep.subr.bf16.mxu0 0
  %673 = vmatpush1.bf16.msra.mxu0 %v514
  %674 = vmatprep.subr.bf16.mxu0 0
  %675 = vmatpush1.bf16.msra.mxu0 %v515
  %676 = vmatprep.mubr.bf16.mxu0 %v195
  %677 = vmatmul.mubr.bf16.gmra.mrb[0].mxu0 %v194
  %v678 = vpop.f32.mrb[0].mxu0
  %v679 = vadd.f32 0.0, %v678
  %v680 = vpop.f32.mrb[0].mxu0
  %v681 = vpop.f32.mrb[0].mxu0
  %v682 = vadd.f32 0.0, %v681
  %v683 = vpop.f32.mrb[0].mxu0
  %684 = vdwg.mxu0
  %685 = vmatprep.subr.bf16.mxu0 0
  %686 = vmatpush1.bf16.msra.mxu0 %v516
  %687 = vmatprep.subr.bf16.mxu0 0
  %688 = vmatpush1.bf16.msra.mxu0 %v517
  %689 = vmatprep.subr.bf16.mxu0 0
  %690 = vmatpush1.bf16.msra.mxu0 %v518
  %691 = vmatprep.subr.bf16.mxu0 0
  %692 = vmatpush1.bf16.msra.mxu0 %v519
  %693 = vmatprep.subr.bf16.mxu0 0
  %694 = vmatpush1.bf16.msra.mxu0 %v520
  %695 = vmatprep.subr.bf16.mxu0 0
  %696 = vmatpush1.bf16.msra.mxu0 %v521
  %697 = vmatprep.subr.bf16.mxu0 0
  %698 = vmatpush1.bf16.msra.mxu0 %v522
  %699 = vmatprep.subr.bf16.mxu0 0
  %700 = vmatpush1.bf16.msra.mxu0 %v523
  %701 = vmatprep.subr.bf16.mxu0 0
  %702 = vmatpush1.bf16.msra.mxu0 %v524
  %703 = vmatprep.subr.bf16.mxu0 0
  %704 = vmatpush1.bf16.msra.mxu0 %v525
  %705 = vmatprep.subr.bf16.mxu0 0
  %706 = vmatpush1.bf16.msra.mxu0 %v526
  %707 = vmatprep.subr.bf16.mxu0 0
  %708 = vmatpush1.bf16.msra.mxu0 %v527
  %709 = vmatprep.subr.bf16.mxu0 0
  %710 = vmatpush1.bf16.msra.mxu0 %v528
  %711 = vmatprep.subr.bf16.mxu0 0
  %712 = vmatpush1.bf16.msra.mxu0 %v529
  %713 = vmatprep.subr.bf16.mxu0 0
  %714 = vmatpush1.bf16.msra.mxu0 %v530
  %715 = vmatprep.subr.bf16.mxu0 0
  %716 = vmatpush1.bf16.msra.mxu0 %v531
  %717 = vmatprep.mubr.bf16.mxu0 %v197
  %718 = vmatmul.mubr.bf16.gmra.mrb[0].mxu0 %v196
  %v719 = vpop.f32.mrb[0].mxu0
  %v720 = vadd.f32 %v679, %v719
  %v721 = vpop.f32.mrb[0].mxu0
  %v722 = vpop.f32.mrb[0].mxu0
  %v723 = vadd.f32 %v682, %v722
  %v724 = vpop.f32.mrb[0].mxu0
  %725 = vdwg.mxu0
  %726 = vmatprep.subr.bf16.mxu0 0
  %727 = vmatpush1.bf16.msra.mxu0 %v532
  %728 = vmatprep.subr.bf16.mxu0 0
  %729 = vmatpush1.bf16.msra.mxu0 %v533
  %730 = vmatprep.subr.bf16.mxu0 0
  %731 = vmatpush1.bf16.msra.mxu0 %v534
  %732 = vmatprep.subr.bf16.mxu0 0
  %733 = vmatpush1.bf16.msra.mxu0 %v535
  %734 = vmatprep.subr.bf16.mxu0 0
  %735 = vmatpush1.bf16.msra.mxu0 %v536
  %736 = vmatprep.subr.bf16.mxu0 0
  %737 = vmatpush1.bf16.msra.mxu0 %v537
  %738 = vmatprep.subr.bf16.mxu0 0
  %739 = vmatpush1.bf16.msra.mxu0 %v538
  %740 = vmatprep.subr.bf16.mxu0 0
  %741 = vmatpush1.bf16.msra.mxu0 %v539
  %742 = vmatprep.subr.bf16.mxu0 0
  %743 = vmatpush1.bf16.msra.mxu0 %v540
  %744 = vmatprep.subr.bf16.mxu0 0
  %745 = vmatpush1.bf16.msra.mxu0 %v541
  %746 = vmatprep.subr.bf16.mxu0 0
  %747 = vmatpush1.bf16.msra.mxu0 %v542
  %748 = vmatprep.subr.bf16.mxu0 0
  %749 = vmatpush1.bf16.msra.mxu0 %v543
  %750 = vmatprep.subr.bf16.mxu0 0
  %751 = vmatpush1.bf16.msra.mxu0 %v544
  %752 = vmatprep.subr.bf16.mxu0 0
  %753 = vmatpush1.bf16.msra.mxu0 %v545
  %754 = vmatprep.subr.bf16.mxu0 0
  %755 = vmatpush1.bf16.msra.mxu0 %v546
  %756 = vmatprep.subr.bf16.mxu0 0
  %757 = vmatpush1.bf16.msra.mxu0 %v547
  %758 = vmatprep.mubr.bf16.mxu0 %v199
  %759 = vmatmul.mubr.bf16.gmra.mrb[0].mxu0 %v198
  %v760 = vpop.f32.mrb[0].mxu0
  %v761 = vadd.f32 %v720, %v760
  %v762 = vpop.f32.mrb[0].mxu0
  %v763 = vpop.f32.mrb[0].mxu0
  %v764 = vadd.f32 %v723, %v763
  %v765 = vpop.f32.mrb[0].mxu0
  %766 = vdwg.mxu0
  %767 = vmatprep.subr.bf16.mxu0 0
  %768 = vmatpush1.bf16.msra.mxu0 %v548
  %769 = vmatprep.subr.bf16.mxu0 0
  %770 = vmatpush1.bf16.msra.mxu0 %v549
  %771 = vmatprep.subr.bf16.mxu0 0
  %772 = vmatpush1.bf16.msra.mxu0 %v550
  %773 = vmatprep.subr.bf16.mxu0 0
  %774 = vmatpush1.bf16.msra.mxu0 %v551
  %775 = vmatprep.subr.bf16.mxu0 0
  %776 = vmatpush1.bf16.msra.mxu0 %v552
  %777 = vmatprep.subr.bf16.mxu0 0
  %778 = vmatpush1.bf16.msra.mxu0 %v553
  %779 = vmatprep.subr.bf16.mxu0 0
  %780 = vmatpush1.bf16.msra.mxu0 %v554
  %781 = vmatprep.subr.bf16.mxu0 0
  %782 = vmatpush1.bf16.msra.mxu0 %v555
  %783 = vmatprep.subr.bf16.mxu0 0
  %784 = vmatpush1.bf16.msra.mxu0 %v556
  %785 = vmatprep.subr.bf16.mxu0 0
  %786 = vmatpush1.bf16.msra.mxu0 %v557
  %787 = vmatprep.subr.bf16.mxu0 0
  %788 = vmatpush1.bf16.msra.mxu0 %v558
  %789 = vmatprep.subr.bf16.mxu0 0
  %790 = vmatpush1.bf16.msra.mxu0 %v559
  %791 = vmatprep.subr.bf16.mxu0 0
  %792 = vmatpush1.bf16.msra.mxu0 %v560
  %793 = vmatprep.subr.bf16.mxu0 0
  %794 = vmatpush1.bf16.msra.mxu0 %v561
  %795 = vmatprep.subr.bf16.mxu0 0
  %796 = vmatpush1.bf16.msra.mxu0 %v562
  %797 = vmatprep.subr.bf16.mxu0 0
  %798 = vmatpush1.bf16.msra.mxu0 %v563
  %799 = vmatprep.mubr.bf16.mxu0 %v201
  %800 = vmatmul.mubr.bf16.gmra.mrb[0].mxu0 %v200
  %v801 = vpop.f32.mrb[0].mxu0
  %v802 = vadd.f32 %v761, %v801
  %v803 = vpop.f32.mrb[0].mxu0
  %v804 = vpop.f32.mrb[0].mxu0
  %v805 = vadd.f32 %v764, %v804
  %v806 = vpop.f32.mrb[0].mxu0
  %807 = vdwg.mxu0
  %808 = vmatprep.subr.bf16.mxu0 0
  %809 = vmatpush1.bf16.msra.mxu0 %v564
  %810 = vmatprep.subr.bf16.mxu0 0
  %811 = vmatpush1.bf16.msra.mxu0 %v565
  %812 = vmatprep.subr.bf16.mxu0 0
  %813 = vmatpush1.bf16.msra.mxu0 %v566
  %814 = vmatprep.subr.bf16.mxu0 0
  %815 = vmatpush1.bf16.msra.mxu0 %v567
  %816 = vmatprep.subr.bf16.mxu0 0
  %817 = vmatpush1.bf16.msra.mxu0 %v568
  %818 = vmatprep.subr.bf16.mxu0 0
  %819 = vmatpush1.bf16.msra.mxu0 %v569
  %820 = vmatprep.subr.bf16.mxu0 0
  %821 = vmatpush1.bf16.msra.mxu0 %v570
  %822 = vmatprep.subr.bf16.mxu0 0
  %823 = vmatpush1.bf16.msra.mxu0 %v571
  %824 = vmatprep.subr.bf16.mxu0 0
  %825 = vmatpush1.bf16.msra.mxu0 0
  %826 = vmatprep.subr.bf16.mxu0 0
  %827 = vmatpush1.bf16.msra.mxu0 0
  %828 = vmatprep.subr.bf16.mxu0 0
  %829 = vmatpush1.bf16.msra.mxu0 0
  %830 = vmatprep.subr.bf16.mxu0 0
  %831 = vmatpush1.bf16.msra.mxu0 0
  %832 = vmatprep.subr.bf16.mxu0 0
  %833 = vmatpush1.bf16.msra.mxu0 0
  %834 = vmatprep.subr.bf16.mxu0 0
  %835 = vmatpush1.bf16.msra.mxu0 0
  %836 = vmatprep.subr.bf16.mxu0 0
  %837 = vmatpush1.bf16.msra.mxu0 0
  %838 = vmatprep.subr.bf16.mxu0 0
  %839 = vmatpush1.bf16.msra.mxu0 0
  %840 = vmatprep.mubr.bf16.mxu0 0
  %841 = vmatmul.mubr.bf16.gmra.mrb[0].mxu0 %v202
  %v842 = vpop.f32.mrb[0].mxu0
  %v843 = vadd.f32 %v802, %v842
  %v844 = vpop.f32.mrb[0].mxu0
  %v845 = vpop.f32.mrb[0].mxu0
  %v846 = vadd.f32 %v805, %v845
  %v847 = vpop.f32.mrb[0].mxu0
  %848 = vdwg.mxu0
  %v849 = vpack.c.bf16 %v846, %v843
  %v851 = vunpack.c.l.b16 %v849
  %v852 = vunpack.c.h.b16 %v849
  %v853 = vpack.c.b16 %v851, %v851
  %v854 = vpack.c.b16 %v852, %v852
  %857 = vst [vmem:[%s2] sm:$0xf] %v853
  %858 = vst [vmem:[%s2 + $0x4] sm:$0xf] %v854
  // Predicated region
  $region10: #{densenet_forward.161} parent=0 // pred_check
    _
  $region11: #{densenet_forward.161} parent=0 // pred_check_branch
    %860 = sbr.rel (0) target = $region13
  $region12: #{densenet_forward.161} parent=0 // pred_region
    _
  $region13: #{densenet_forward.161} parent=0 // pred_fallthru
    _
  // Predicated region
  $region14: #{densenet_forward.161} parent=0 // pred_check
    _
  $region15: #{densenet_forward.161} parent=0 // pred_check_branch
    %862 = sbr.rel (0) target = $region17
  $region16: #{densenet_forward.161} parent=0 // pred_region
    _
  $region17: #{densenet_forward.161} parent=0 // pred_fallthru
    _

// kernel: densenet_forward.160
$region0: #{densenet_forward.160}
  #allocation0 [shape = 'u32[]', space=smem, size = 0x4, offset = 0x4, fixed_abs, tag = 'smem constant byte address 0x4 - core index']
  #allocation1 [shape = 'u32[144,128]{1,0:T(1,128)}', space=vmem, size = 0x12000, scoped, tag = 'internal scratch']
  %s0 = inlined_call_operand.vmem [shape: bf16[16,1024], index: 0, kind: input, shape index: {}]
  %s1 = inlined_call_operand.vmem [shape: f32[1,1024], index: 1, kind: input, shape index: {}]
  %s2 = inlined_call_operand.vmem [shape: f32[1,1024], index: 2, kind: input, shape index: {}]
  %s3 = inlined_call_operand.vmem [shape: f32[1,128], index: 3, kind: input, shape index: {}]
  %s4 = inlined_call_operand.vmem [shape: f32[1,128], index: 4, kind: input, shape index: {}]
  %s5 = inlined_call_operand.vmem [shape: bf16[1024,128], index: 5, kind: input, shape index: {}]
  %s6 = inlined_call_operand.vmem [shape: bf16[16,128], index: 6, kind: output, shape index: {}]
  %s7 = sld [smem:[#allocation0]]
  $region34: #{densenet_forward.160} parent=0
    _
  %s9 = ssub.s32 1, %s7
  %s10 = scalar_select 0, %s9, %s7
  // Predicated region
  $region2: #{densenet_forward.160} parent=0 // pred_check
    _
  $region3: #{densenet_forward.160} parent=0 // pred_check_branch
    %12 = sbr.rel (0) target = $region5
  $region4: #{densenet_forward.160} parent=0 // pred_region
    _
  $region5: #{densenet_forward.160} parent=0 // pred_fallthru
    _
  // Predicated region
  $region6: #{densenet_forward.160} parent=0 // pred_check
    _
  $region7: #{densenet_forward.160} parent=0 // pred_check_branch
    %14 = sbr.rel (0) target = $region9
  $region8: #{densenet_forward.160} parent=0 // pred_region
    _
  $region9: #{densenet_forward.160} parent=0 // pred_fallthru
    _
  // Predicated region
  $region10: #{densenet_forward.160} parent=0 // pred_check
    _
  $region11: #{densenet_forward.160} parent=0 // pred_check_branch
    %16 = sbr.rel (0) target = $region13
  $region12: #{densenet_forward.160} parent=0 // pred_region
    _
  $region13: #{densenet_forward.160} parent=0 // pred_fallthru
    _
  // Predicated region
  $region14: #{densenet_forward.160} parent=0 // pred_check
    _
  $region15: #{densenet_forward.160} parent=0 // pred_check_branch
    %18 = sbr.rel (0) target = $region17
  $region16: #{densenet_forward.160} parent=0 // pred_region
    _
  $region17: #{densenet_forward.160} parent=0 // pred_fallthru
    _
  // Predicated region
  $region18: #{densenet_forward.160} parent=0 // pred_check
    _
  $region19: #{densenet_forward.160} parent=0 // pred_check_branch
    %20 = sbr.rel (0) target = $region21
  $region20: #{densenet_forward.160} parent=0 // pred_region
    _
  $region21: #{densenet_forward.160} parent=0 // pred_fallthru
    _
  // Predicated region
  $region22: #{densenet_forward.160} parent=0 // pred_check
    _
  $region23: #{densenet_forward.160} parent=0 // pred_check_branch
    %22 = sbr.rel (0) target = $region25
  $region24: #{densenet_forward.160} parent=0 // pred_region
    _
  $region25: #{densenet_forward.160} parent=0 // pred_fallthru
    _
  %v24 = vld [vmem:[%s0] sm:$0xff]
  %v25 = vld [vmem:[%s0 + $0x8] sm:$0xff]
  %v26 = vld [vmem:[%s0 + $0x10] sm:$0xff]
  %v27 = vld [vmem:[%s0 + $0x18] sm:$0xff]
  %v28 = vld [vmem:[%s0 + $0x20] sm:$0xff]
  %v29 = vld [vmem:[%s0 + $0x28] sm:$0xff]
  %v30 = vld [vmem:[%s0 + $0x30] sm:$0xff]
  %v31 = vld [vmem:[%s0 + $0x38] sm:$0xff]
  %v32 = vunpack.c.l.bf16 %v24
  %v33 = vunpack.c.h.bf16 %v24
  %v34 = vunpack.c.l.bf16 %v25
  %v35 = vunpack.c.h.bf16 %v25
  %v36 = vunpack.c.l.bf16 %v26
  %v37 = vunpack.c.h.bf16 %v26
  %v38 = vunpack.c.l.bf16 %v27
  %v39 = vunpack.c.h.bf16 %v27
  %v40 = vunpack.c.l.bf16 %v28
  %v41 = vunpack.c.h.bf16 %v28
  %v42 = vunpack.c.l.bf16 %v29
  %v43 = vunpack.c.h.bf16 %v29
  %v44 = vunpack.c.l.bf16 %v30
  %v45 = vunpack.c.h.bf16 %v30
  %v46 = vunpack.c.l.bf16 %v31
  %v47 = vunpack.c.h.bf16 %v31
  %v48 = vld [vmem:[%s1] sm:$0xff]
  %v50 = vlaneseq
  %v51 = vshrl.u32 %v50, 7
  %v52 = vsub.s32 0, %v51
  %v53 = vrot.slane %v48, %v52
  %v54 = vlaneseq
  %v55 = vshrl.u32 %v54, 7
  %v56 = vsub.s32 1, %v55
  %v57 = vrot.slane %v48, %v56
  %v58 = vlaneseq
  %v59 = vshrl.u32 %v58, 7
  %v60 = vsub.s32 2, %v59
  %v61 = vrot.slane %v48, %v60
  %v62 = vlaneseq
  %v63 = vshrl.u32 %v62, 7
  %v64 = vsub.s32 3, %v63
  %v65 = vrot.slane %v48, %v64
  %v66 = vlaneseq
  %v67 = vshrl.u32 %v66, 7
  %v68 = vsub.s32 4, %v67
  %v69 = vrot.slane %v48, %v68
  %v70 = vlaneseq
  %v71 = vshrl.u32 %v70, 7
  %v72 = vsub.s32 5, %v71
  %v73 = vrot.slane %v48, %v72
  %v74 = vlaneseq
  %v75 = vshrl.u32 %v74, 7
  %v76 = vsub.s32 6, %v75
  %v77 = vrot.slane %v48, %v76
  %v78 = vlaneseq
  %v79 = vshrl.u32 %v78, 7
  %v80 = vsub.s32 7, %v79
  %v81 = vrot.slane %v48, %v80
  %v90 = vmul.f32 %v32, %v53
  %v91 = vmul.f32 %v33, %v57
  %v92 = vmul.f32 %v34, %v61
  %v93 = vmul.f32 %v35, %v65
  %v94 = vmul.f32 %v36, %v69
  %v95 = vmul.f32 %v37, %v73
  %v96 = vmul.f32 %v38, %v77
  %v97 = vmul.f32 %v39, %v81
  %v98 = vmul.f32 %v40, %v53
  %v99 = vmul.f32 %v41, %v57
  %v100 = vmul.f32 %v42, %v61
  %v101 = vmul.f32 %v43, %v65
  %v102 = vmul.f32 %v44, %v69
  %v103 = vmul.f32 %v45, %v73
  %v104 = vmul.f32 %v46, %v77
  %v105 = vmul.f32 %v47, %v81
  %v106 = vld [vmem:[%s2] sm:$0xff]
  %v108 = vlaneseq
  %v109 = vshrl.u32 %v108, 7
  %v110 = vsub.s32 0, %v109
  %v111 = vrot.slane %v106, %v110
  %v112 = vlaneseq
  %v113 = vshrl.u32 %v112, 7
  %v114 = vsub.s32 1, %v113
  %v115 = vrot.slane %v106, %v114
  %v116 = vlaneseq
  %v117 = vshrl.u32 %v116, 7
  %v118 = vsub.s32 2, %v117
  %v119 = vrot.slane %v106, %v118
  %v120 = vlaneseq
  %v121 = vshrl.u32 %v120, 7
  %v122 = vsub.s32 3, %v121
  %v123 = vrot.slane %v106, %v122
  %v124 = vlaneseq
  %v125 = vshrl.u32 %v124, 7
  %v126 = vsub.s32 4, %v125
  %v127 = vrot.slane %v106, %v126
  %v128 = vlaneseq
  %v129 = vshrl.u32 %v128, 7
  %v130 = vsub.s32 5, %v129
  %v131 = vrot.slane %v106, %v130
  %v132 = vlaneseq
  %v133 = vshrl.u32 %v132, 7
  %v134 = vsub.s32 6, %v133
  %v135 = vrot.slane %v106, %v134
  %v136 = vlaneseq
  %v137 = vshrl.u32 %v136, 7
  %v138 = vsub.s32 7, %v137
  %v139 = vrot.slane %v106, %v138
  %v148 = vadd.f32 %v90, %v111
  %v149 = vadd.f32 %v91, %v115
  %v150 = vadd.f32 %v92, %v119
  %v151 = vadd.f32 %v93, %v123
  %v152 = vadd.f32 %v94, %v127
  %v153 = vadd.f32 %v95, %v131
  %v154 = vadd.f32 %v96, %v135
  %v155 = vadd.f32 %v97, %v139
  %v156 = vadd.f32 %v98, %v111
  %v157 = vadd.f32 %v99, %v115
  %v158 = vadd.f32 %v100, %v119
  %v159 = vadd.f32 %v101, %v123
  %v160 = vadd.f32 %v102, %v127
  %v161 = vadd.f32 %v103, %v131
  %v162 = vadd.f32 %v104, %v135
  %v163 = vadd.f32 %v105, %v139
  %v164 = vmax.f32 %v148, 0.0
  %v165 = vmax.f32 %v149, 0.0
  %v166 = vmax.f32 %v150, 0.0
  %v167 = vmax.f32 %v151, 0.0
  %v168 = vmax.f32 %v152, 0.0
  %v169 = vmax.f32 %v153, 0.0
  %v170 = vmax.f32 %v154, 0.0
  %v171 = vmax.f32 %v155, 0.0
  %v172 = vmax.f32 %v156, 0.0
  %v173 = vmax.f32 %v157, 0.0
  %v174 = vmax.f32 %v158, 0.0
  %v175 = vmax.f32 %v159, 0.0
  %v176 = vmax.f32 %v160, 0.0
  %v177 = vmax.f32 %v161, 0.0
  %v178 = vmax.f32 %v162, 0.0
  %v179 = vmax.f32 %v163, 0.0
  %v180 = vpack.c.bf16 %v172, %v164
  %v181 = vpack.c.bf16 %v173, %v165
  %v182 = vpack.c.bf16 %v174, %v166
  %v183 = vpack.c.bf16 %v175, %v167
  %v184 = vpack.c.bf16 %v176, %v168
  %v185 = vpack.c.bf16 %v177, %v169
  %v186 = vpack.c.bf16 %v178, %v170
  %v187 = vpack.c.bf16 %v179, %v171
  %v188 = vld [vmem:[%s5] sm:$0xf]
  %v189 = vld [vmem:[%s5 + $0x4] sm:$0xf]
  %v190 = vld [vmem:[%s5 + $0x8] sm:$0xf]
  %v191 = vld [vmem:[%s5 + $0xc] sm:$0xf]
  %v192 = vld [vmem:[%s5 + $0x10] sm:$0xf]
  %v193 = vld [vmem:[%s5 + $0x14] sm:$0xf]
  %v194 = vld [vmem:[%s5 + $0x18] sm:$0xf]
  %v195 = vld [vmem:[%s5 + $0x1c] sm:$0xf]
  %v196 = vld [vmem:[%s5 + $0x20] sm:$0xf]
  %v197 = vld [vmem:[%s5 + $0x24] sm:$0xf]
  %v198 = vld [vmem:[%s5 + $0x28] sm:$0xf]
  %v199 = vld [vmem:[%s5 + $0x2c] sm:$0xf]
  %v200 = vld [vmem:[%s5 + $0x30] sm:$0xf]
  %v201 = vld [vmem:[%s5 + $0x34] sm:$0xf]
  %v202 = vld [vmem:[%s5 + $0x38] sm:$0xf]
  %v203 = vld [vmem:[%s5 + $0x3c] sm:$0xf]
  %v204 = vld [vmem:[%s5 + $0x40] sm:$0xf]
  %v205 = vld [vmem:[%s5 + $0x44] sm:$0xf]
  %v206 = vld [vmem:[%s5 + $0x48] sm:$0xf]
  %v207 = vld [vmem:[%s5 + $0x4c] sm:$0xf]
  %v208 = vld [vmem:[%s5 + $0x50] sm:$0xf]
  %v209 = vld [vmem:[%s5 + $0x54] sm:$0xf]
  %v210 = vld [vmem:[%s5 + $0x58] sm:$0xf]
  %v211 = vld [vmem:[%s5 + $0x5c] sm:$0xf]
  %v212 = vld [vmem:[%s5 + $0x60] sm:$0xf]
  %v213 = vld [vmem:[%s5 + $0x64] sm:$0xf]
  %v214 = vld [vmem:[%s5 + $0x68] sm:$0xf]
  %v215 = vld [vmem:[%s5 + $0x6c] sm:$0xf]
  %v216 = vld [vmem:[%s5 + $0x70] sm:$0xf]
  %v217 = vld [vmem:[%s5 + $0x74] sm:$0xf]
  %v218 = vld [vmem:[%s5 + $0x78] sm:$0xf]
  %v219 = vld [vmem:[%s5 + $0x7c] sm:$0xf]
  %v220 = vld [vmem:[%s5 + $0x80] sm:$0xf]
  %v221 = vld [vmem:[%s5 + $0x84] sm:$0xf]
  %v222 = vld [vmem:[%s5 + $0x88] sm:$0xf]
  %v223 = vld [vmem:[%s5 + $0x8c] sm:$0xf]
  %v224 = vld [vmem:[%s5 + $0x90] sm:$0xf]
  %v225 = vld [vmem:[%s5 + $0x94] sm:$0xf]
  %v226 = vld [vmem:[%s5 + $0x98] sm:$0xf]
  %v227 = vld [vmem:[%s5 + $0x9c] sm:$0xf]
  %v228 = vld [vmem:[%s5 + $0xa0] sm:$0xf]
  %v229 = vld [vmem:[%s5 + $0xa4] sm:$0xf]
  %v230 = vld [vmem:[%s5 + $0xa8] sm:$0xf]
  %v231 = vld [vmem:[%s5 + $0xac] sm:$0xf]
  %v232 = vld [vmem:[%s5 + $0xb0] sm:$0xf]
  %v233 = vld [vmem:[%s5 + $0xb4] sm:$0xf]
  %v234 = vld [vmem:[%s5 + $0xb8] sm:$0xf]
  %v235 = vld [vmem:[%s5 + $0xbc] sm:$0xf]
  %v236 = vld [vmem:[%s5 + $0xc0] sm:$0xf]
  %v237 = vld [vmem:[%s5 + $0xc4] sm:$0xf]
  %v238 = vld [vmem:[%s5 + $0xc8] sm:$0xf]
  %v239 = vld [vmem:[%s5 + $0xcc] sm:$0xf]
  %v240 = vld [vmem:[%s5 + $0xd0] sm:$0xf]
  %v241 = vld [vmem:[%s5 + $0xd4] sm:$0xf]
  %v242 = vld [vmem:[%s5 + $0xd8] sm:$0xf]
  %v243 = vld [vmem:[%s5 + $0xdc] sm:$0xf]
  %v244 = vld [vmem:[%s5 + $0xe0] sm:$0xf]
  %v245 = vld [vmem:[%s5 + $0xe4] sm:$0xf]
  %v246 = vld [vmem:[%s5 + $0xe8] sm:$0xf]
  %v247 = vld [vmem:[%s5 + $0xec] sm:$0xf]
  %v248 = vld [vmem:[%s5 + $0xf0] sm:$0xf]
  %v249 = vld [vmem:[%s5 + $0xf4] sm:$0xf]
  %v250 = vld [vmem:[%s5 + $0xf8] sm:$0xf]
  %v251 = vld [vmem:[%s5 + $0xfc] sm:$0xf]
  %v252 = vld [vmem:[%s5 + $0x100] sm:$0xf]
  %v253 = vld [vmem:[%s5 + $0x104] sm:$0xf]
  %v254 = vld [vmem:[%s5 + $0x108] sm:$0xf]
  %v255 = vld [vmem:[%s5 + $0x10c] sm:$0xf]
  %v256 = vld [vmem:[%s5 + $0x110] sm:$0xf]
  %v257 = vld [vmem:[%s5 + $0x114] sm:$0xf]
  %v258 = vld [vmem:[%s5 + $0x118] sm:$0xf]
  %v259 = vld [vmem:[%s5 + $0x11c] sm:$0xf]
  %v260 = vld [vmem:[%s5 + $0x120] sm:$0xf]
  %v261 = vld [vmem:[%s5 + $0x124] sm:$0xf]
  %v262 = vld [vmem:[%s5 + $0x128] sm:$0xf]
  %v263 = vld [vmem:[%s5 + $0x12c] sm:$0xf]
  %v264 = vld [vmem:[%s5 + $0x130] sm:$0xf]
  %v265 = vld [vmem:[%s5 + $0x134] sm:$0xf]
  %v266 = vld [vmem:[%s5 + $0x138] sm:$0xf]
  %v267 = vld [vmem:[%s5 + $0x13c] sm:$0xf]
  %v268 = vld [vmem:[%s5 + $0x140] sm:$0xf]
  %v269 = vld [vmem:[%s5 + $0x144] sm:$0xf]
  %v270 = vld [vmem:[%s5 + $0x148] sm:$0xf]
  %v271 = vld [vmem:[%s5 + $0x14c] sm:$0xf]
  %v272 = vld [vmem:[%s5 + $0x150] sm:$0xf]
  %v273 = vld [vmem:[%s5 + $0x154] sm:$0xf]
  %v274 = vld [vmem:[%s5 + $0x158] sm:$0xf]
  %v275 = vld [vmem:[%s5 + $0x15c] sm:$0xf]
  %v276 = vld [vmem:[%s5 + $0x160] sm:$0xf]
  %v277 = vld [vmem:[%s5 + $0x164] sm:$0xf]
  %v278 = vld [vmem:[%s5 + $0x168] sm:$0xf]
  %v279 = vld [vmem:[%s5 + $0x16c] sm:$0xf]
  %v280 = vld [vmem:[%s5 + $0x170] sm:$0xf]
  %v281 = vld [vmem:[%s5 + $0x174] sm:$0xf]
  %v282 = vld [vmem:[%s5 + $0x178] sm:$0xf]
  %v283 = vld [vmem:[%s5 + $0x17c] sm:$0xf]
  %v284 = vld [vmem:[%s5 + $0x180] sm:$0xf]
  %v285 = vld [vmem:[%s5 + $0x184] sm:$0xf]
  %v286 = vld [vmem:[%s5 + $0x188] sm:$0xf]
  %v287 = vld [vmem:[%s5 + $0x18c] sm:$0xf]
  %v288 = vld [vmem:[%s5 + $0x190] sm:$0xf]
  %v289 = vld [vmem:[%s5 + $0x194] sm:$0xf]
  %v290 = vld [vmem:[%s5 + $0x198] sm:$0xf]
  %v291 = vld [vmem:[%s5 + $0x19c] sm:$0xf]
  %v292 = vld [vmem:[%s5 + $0x1a0] sm:$0xf]
  %v293 = vld [vmem:[%s5 + $0x1a4] sm:$0xf]
  %v294 = vld [vmem:[%s5 + $0x1a8] sm:$0xf]
  %v295 = vld [vmem:[%s5 + $0x1ac] sm:$0xf]
  %v296 = vld [vmem:[%s5 + $0x1b0] sm:$0xf]
  %v297 = vld [vmem:[%s5 + $0x1b4] sm:$0xf]
  %v298 = vld [vmem:[%s5 + $0x1b8] sm:$0xf]
  %v299 = vld [vmem:[%s5 + $0x1bc] sm:$0xf]
  %v300 = vld [vmem:[%s5 + $0x1c0] sm:$0xf]
  %v301 = vld [vmem:[%s5 + $0x1c4] sm:$0xf]
  %v302 = vld [vmem:[%s5 + $0x1c8] sm:$0xf]
  %v303 = vld [vmem:[%s5 + $0x1cc] sm:$0xf]
  %v304 = vld [vmem:[%s5 + $0x1d0] sm:$0xf]
  %v305 = vld [vmem:[%s5 + $0x1d4] sm:$0xf]
  %v306 = vld [vmem:[%s5 + $0x1d8] sm:$0xf]
  %v307 = vld [vmem:[%s5 + $0x1dc] sm:$0xf]
  %v308 = vld [vmem:[%s5 + $0x1e0] sm:$0xf]
  %v309 = vld [vmem:[%s5 + $0x1e4] sm:$0xf]
  %v310 = vld [vmem:[%s5 + $0x1e8] sm:$0xf]
  %v311 = vld [vmem:[%s5 + $0x1ec] sm:$0xf]
  %v312 = vld [vmem:[%s5 + $0x1f0] sm:$0xf]
  %v313 = vld [vmem:[%s5 + $0x1f4] sm:$0xf]
  %v314 = vld [vmem:[%s5 + $0x1f8] sm:$0xf]
  %v315 = vld [vmem:[%s5 + $0x1fc] sm:$0xf]
  %v444 = vunpack.c.l.b16 %v188
  %v445 = vunpack.c.l.b16 %v189
  %v446 = vunpack.c.l.b16 %v190
  %v447 = vunpack.c.l.b16 %v191
  %v448 = vunpack.c.l.b16 %v192
  %v449 = vunpack.c.l.b16 %v193
  %v450 = vunpack.c.l.b16 %v194
  %v451 = vunpack.c.l.b16 %v195
  %v452 = vunpack.c.l.b16 %v196
  %v453 = vunpack.c.l.b16 %v197
  %v454 = vunpack.c.l.b16 %v198
  %v455 = vunpack.c.l.b16 %v199
  %v456 = vunpack.c.l.b16 %v200
  %v457 = vunpack.c.l.b16 %v201
  %v458 = vunpack.c.l.b16 %v202
  %v459 = vunpack.c.l.b16 %v203
  %v460 = vunpack.c.l.b16 %v204
  %v461 = vunpack.c.l.b16 %v205
  %v462 = vunpack.c.l.b16 %v206
  %v463 = vunpack.c.l.b16 %v207
  %v464 = vunpack.c.l.b16 %v208
  %v465 = vunpack.c.l.b16 %v209
  %v466 = vunpack.c.l.b16 %v210
  %v467 = vunpack.c.l.b16 %v211
  %v468 = vunpack.c.l.b16 %v212
  %v469 = vunpack.c.l.b16 %v213
  %v470 = vunpack.c.l.b16 %v214
  %v471 = vunpack.c.l.b16 %v215
  %v472 = vunpack.c.l.b16 %v216
  %v473 = vunpack.c.l.b16 %v217
  %v474 = vunpack.c.l.b16 %v218
  %v475 = vunpack.c.l.b16 %v219
  %v476 = vunpack.c.l.b16 %v220
  %v477 = vunpack.c.l.b16 %v221
  %v478 = vunpack.c.l.b16 %v222
  %v479 = vunpack.c.l.b16 %v223
  %v480 = vunpack.c.l.b16 %v224
  %v481 = vunpack.c.l.b16 %v225
  %v482 = vunpack.c.l.b16 %v226
  %v483 = vunpack.c.l.b16 %v227
  %v484 = vunpack.c.l.b16 %v228
  %v485 = vunpack.c.l.b16 %v229
  %v486 = vunpack.c.l.b16 %v230
  %v487 = vunpack.c.l.b16 %v231
  %v488 = vunpack.c.l.b16 %v232
  %v489 = vunpack.c.l.b16 %v233
  %v490 = vunpack.c.l.b16 %v234
  %v491 = vunpack.c.l.b16 %v235
  %v492 = vunpack.c.l.b16 %v236
  %v493 = vunpack.c.l.b16 %v237
  %v494 = vunpack.c.l.b16 %v238
  %v495 = vunpack.c.l.b16 %v239
  %v496 = vunpack.c.l.b16 %v240
  %v497 = vunpack.c.l.b16 %v241
  %v498 = vunpack.c.l.b16 %v242
  %v499 = vunpack.c.l.b16 %v243
  %v500 = vunpack.c.l.b16 %v244
  %v501 = vunpack.c.l.b16 %v245
  %v502 = vunpack.c.l.b16 %v246
  %v503 = vunpack.c.l.b16 %v247
  %v504 = vunpack.c.l.b16 %v248
  %v505 = vunpack.c.l.b16 %v249
  %v506 = vunpack.c.l.b16 %v250
  %v507 = vunpack.c.l.b16 %v251
  %v508 = vunpack.c.l.b16 %v252
  %v509 = vunpack.c.l.b16 %v253
  %v510 = vunpack.c.l.b16 %v254
  %v511 = vunpack.c.l.b16 %v255
  %v512 = vunpack.c.l.b16 %v256
  %v513 = vunpack.c.l.b16 %v257
  %v514 = vunpack.c.l.b16 %v258
  %v515 = vunpack.c.l.b16 %v259
  %v516 = vunpack.c.l.b16 %v260
  %v517 = vunpack.c.l.b16 %v261
  %v518 = vunpack.c.l.b16 %v262
  %v519 = vunpack.c.l.b16 %v263
  %v520 = vunpack.c.l.b16 %v264
  %v521 = vunpack.c.l.b16 %v265
  %v522 = vunpack.c.l.b16 %v266
  %v523 = vunpack.c.l.b16 %v267
  %v524 = vunpack.c.l.b16 %v268
  %v525 = vunpack.c.l.b16 %v269
  %v526 = vunpack.c.l.b16 %v270
  %v527 = vunpack.c.l.b16 %v271
  %v528 = vunpack.c.l.b16 %v272
  %v529 = vunpack.c.l.b16 %v273
  %v530 = vunpack.c.l.b16 %v274
  %v531 = vunpack.c.l.b16 %v275
  %v532 = vunpack.c.l.b16 %v276
  %v533 = vunpack.c.l.b16 %v277
  %v534 = vunpack.c.l.b16 %v278
  %v535 = vunpack.c.l.b16 %v279
  %v536 = vunpack.c.l.b16 %v280
  %v537 = vunpack.c.l.b16 %v281
  %v538 = vunpack.c.l.b16 %v282
  %v539 = vunpack.c.l.b16 %v283
  %v540 = vunpack.c.l.b16 %v284
  %v541 = vunpack.c.l.b16 %v285
  %v542 = vunpack.c.l.b16 %v286
  %v543 = vunpack.c.l.b16 %v287
  %v544 = vunpack.c.l.b16 %v288
  %v545 = vunpack.c.l.b16 %v289
  %v546 = vunpack.c.l.b16 %v290
  %v547 = vunpack.c.l.b16 %v291
  %v548 = vunpack.c.l.b16 %v292
  %v549 = vunpack.c.l.b16 %v293
  %v550 = vunpack.c.l.b16 %v294
  %v551 = vunpack.c.l.b16 %v295
  %v552 = vunpack.c.l.b16 %v296
  %v553 = vunpack.c.l.b16 %v297
  %v554 = vunpack.c.l.b16 %v298
  %v555 = vunpack.c.l.b16 %v299
  %v556 = vunpack.c.l.b16 %v300
  %v557 = vunpack.c.l.b16 %v301
  %v558 = vunpack.c.l.b16 %v302
  %v559 = vunpack.c.l.b16 %v303
  %v560 = vunpack.c.l.b16 %v304
  %v561 = vunpack.c.l.b16 %v305
  %v562 = vunpack.c.l.b16 %v306
  %v563 = vunpack.c.l.b16 %v307
  %v564 = vunpack.c.l.b16 %v308
  %v565 = vunpack.c.l.b16 %v309
  %v566 = vunpack.c.l.b16 %v310
  %v567 = vunpack.c.l.b16 %v311
  %v568 = vunpack.c.l.b16 %v312
  %v569 = vunpack.c.l.b16 %v313
  %v570 = vunpack.c.l.b16 %v314
  %v571 = vunpack.c.l.b16 %v315
  %v572 = vpack.c.b16 %v445, %v444
  %v573 = vpack.c.b16 %v447, %v446
  %v574 = vpack.c.b16 %v449, %v448
  %v575 = vpack.c.b16 %v451, %v450
  %v576 = vpack.c.b16 %v453, %v452
  %v577 = vpack.c.b16 %v455, %v454
  %v578 = vpack.c.b16 %v457, %v456
  %v579 = vpack.c.b16 %v459, %v458
  %v580 = vpack.c.b16 %v461, %v460
  %v581 = vpack.c.b16 %v463, %v462
  %v582 = vpack.c.b16 %v465, %v464
  %v583 = vpack.c.b16 %v467, %v466
  %v584 = vpack.c.b16 %v469, %v468
  %v585 = vpack.c.b16 %v471, %v470
  %v586 = vpack.c.b16 %v473, %v472
  %v587 = vpack.c.b16 %v475, %v474
  %v588 = vpack.c.b16 %v477, %v476
  %v589 = vpack.c.b16 %v479, %v478
  %v590 = vpack.c.b16 %v481, %v480
  %v591 = vpack.c.b16 %v483, %v482
  %v592 = vpack.c.b16 %v485, %v484
  %v593 = vpack.c.b16 %v487, %v486
  %v594 = vpack.c.b16 %v489, %v488
  %v595 = vpack.c.b16 %v491, %v490
  %v596 = vpack.c.b16 %v493, %v492
  %v597 = vpack.c.b16 %v495, %v494
  %v598 = vpack.c.b16 %v497, %v496
  %v599 = vpack.c.b16 %v499, %v498
  %v600 = vpack.c.b16 %v501, %v500
  %v601 = vpack.c.b16 %v503, %v502
  %v602 = vpack.c.b16 %v505, %v504
  %v603 = vpack.c.b16 %v507, %v506
  %v604 = vpack.c.b16 %v509, %v508
  %v605 = vpack.c.b16 %v511, %v510
  %v606 = vpack.c.b16 %v513, %v512
  %v607 = vpack.c.b16 %v515, %v514
  %v608 = vpack.c.b16 %v517, %v516
  %v609 = vpack.c.b16 %v519, %v518
  %v610 = vpack.c.b16 %v521, %v520
  %v611 = vpack.c.b16 %v523, %v522
  %v612 = vpack.c.b16 %v525, %v524
  %v613 = vpack.c.b16 %v527, %v526
  %v614 = vpack.c.b16 %v529, %v528
  %v615 = vpack.c.b16 %v531, %v530
  %v616 = vpack.c.b16 %v533, %v532
  %v617 = vpack.c.b16 %v535, %v534
  %v618 = vpack.c.b16 %v537, %v536
  %v619 = vpack.c.b16 %v539, %v538
  %v620 = vpack.c.b16 %v541, %v540
  %v621 = vpack.c.b16 %v543, %v542
  %v622 = vpack.c.b16 %v545, %v544
  %v623 = vpack.c.b16 %v547, %v546
  %v624 = vpack.c.b16 %v549, %v548
  %v625 = vpack.c.b16 %v551, %v550
  %v626 = vpack.c.b16 %v553, %v552
  %v627 = vpack.c.b16 %v555, %v554
  %v628 = vpack.c.b16 %v557, %v556
  %v629 = vpack.c.b16 %v559, %v558
  %v630 = vpack.c.b16 %v561, %v560
  %v631 = vpack.c.b16 %v563, %v562
  %v632 = vpack.c.b16 %v565, %v564
  %v633 = vpack.c.b16 %v567, %v566
  %v634 = vpack.c.b16 %v569, %v568
  %v635 = vpack.c.b16 %v571, %v570
  %700 = vmatprep.subr.bf16.mxu0 0
  %701 = vmatpush1.bf16.msra.mxu0 %v572
  %702 = vmatprep.subr.bf16.mxu0 0
  %703 = vmatpush1.bf16.msra.mxu0 %v573
  %704 = vmatprep.subr.bf16.mxu0 0
  %705 = vmatpush1.bf16.msra.mxu0 %v574
  %706 = vmatprep.subr.bf16.mxu0 0
  %707 = vmatpush1.bf16.msra.mxu0 %v575
  %708 = vmatprep.subr.bf16.mxu0 0
  %709 = vmatpush1.bf16.msra.mxu0 %v576
  %710 = vmatprep.subr.bf16.mxu0 0
  %711 = vmatpush1.bf16.msra.mxu0 %v577
  %712 = vmatprep.subr.bf16.mxu0 0
  %713 = vmatpush1.bf16.msra.mxu0 %v578
  %714 = vmatprep.subr.bf16.mxu0 0
  %715 = vmatpush1.bf16.msra.mxu0 %v579
  %716 = vmatprep.subr.bf16.mxu0 0
  %717 = vmatpush1.bf16.msra.mxu0 %v580
  %718 = vmatprep.subr.bf16.mxu0 0
  %719 = vmatpush1.bf16.msra.mxu0 %v581
  %720 = vmatprep.subr.bf16.mxu0 0
  %721 = vmatpush1.bf16.msra.mxu0 %v582
  %722 = vmatprep.subr.bf16.mxu0 0
  %723 = vmatpush1.bf16.msra.mxu0 %v583
  %724 = vmatprep.subr.bf16.mxu0 0
  %725 = vmatpush1.bf16.msra.mxu0 %v584
  %726 = vmatprep.subr.bf16.mxu0 0
  %727 = vmatpush1.bf16.msra.mxu0 %v585
  %728 = vmatprep.subr.bf16.mxu0 0
  %729 = vmatpush1.bf16.msra.mxu0 %v586
  %730 = vmatprep.subr.bf16.mxu0 0
  %731 = vmatpush1.bf16.msra.mxu0 %v587
  %732 = vmatprep.mubr.bf16.mxu0 %v181
  %733 = vmatmul.mubr.bf16.gmra.mrb[0].mxu0 %v180
  %v734 = vpop.f32.mrb[0].mxu0
  %v735 = vadd.f32 0.0, %v734
  %v736 = vpop.f32.mrb[0].mxu0
  %v737 = vpop.f32.mrb[0].mxu0
  %v738 = vadd.f32 0.0, %v737
  %v739 = vpop.f32.mrb[0].mxu0
  %740 = vdwg.mxu0
  %741 = vmatprep.subr.bf16.mxu0 0
  %742 = vmatpush1.bf16.msra.mxu0 %v588
  %743 = vmatprep.subr.bf16.mxu0 0
  %744 = vmatpush1.bf16.msra.mxu0 %v589
  %745 = vmatprep.subr.bf16.mxu0 0
  %746 = vmatpush1.bf16.msra.mxu0 %v590
  %747 = vmatprep.subr.bf16.mxu0 0
  %748 = vmatpush1.bf16.msra.mxu0 %v591
  %749 = vmatprep.subr.bf16.mxu0 0
  %750 = vmatpush1.bf16.msra.mxu0 %v592
  %751 = vmatprep.subr.bf16.mxu0 0
  %752 = vmatpush1.bf16.msra.mxu0 %v593
  %753 = vmatprep.subr.bf16.mxu0 0
  %754 = vmatpush1.bf16.msra.mxu0 %v594
  %755 = vmatprep.subr.bf16.mxu0 0
  %756 = vmatpush1.bf16.msra.mxu0 %v595
  %757 = vmatprep.subr.bf16.mxu0 0
  %758 = vmatpush1.bf16.msra.mxu0 %v596
  %759 = vmatprep.subr.bf16.mxu0 0
  %760 = vmatpush1.bf16.msra.mxu0 %v597
  %761 = vmatprep.subr.bf16.mxu0 0
  %762 = vmatpush1.bf16.msra.mxu0 %v598
  %763 = vmatprep.subr.bf16.mxu0 0
  %764 = vmatpush1.bf16.msra.mxu0 %v599
  %765 = vmatprep.subr.bf16.mxu0 0
  %766 = vmatpush1.bf16.msra.mxu0 %v600
  %767 = vmatprep.subr.bf16.mxu0 0
  %768 = vmatpush1.bf16.msra.mxu0 %v601
  %769 = vmatprep.subr.bf16.mxu0 0
  %770 = vmatpush1.bf16.msra.mxu0 %v602
  %771 = vmatprep.subr.bf16.mxu0 0
  %772 = vmatpush1.bf16.msra.mxu0 %v603
  %773 = vmatprep.mubr.bf16.mxu0 %v183
  %774 = vmatmul.mubr.bf16.gmra.mrb[0].mxu0 %v182
  %v775 = vpop.f32.mrb[0].mxu0
  %v776 = vadd.f32 %v735, %v775
  %v777 = vpop.f32.mrb[0].mxu0
  %v778 = vpop.f32.mrb[0].mxu0
  %v779 = vadd.f32 %v738, %v778
  %v780 = vpop.f32.mrb[0].mxu0
  %781 = vdwg.mxu0
  %782 = vmatprep.subr.bf16.mxu0 0
  %783 = vmatpush1.bf16.msra.mxu0 %v604
  %784 = vmatprep.subr.bf16.mxu0 0
  %785 = vmatpush1.bf16.msra.mxu0 %v605
  %786 = vmatprep.subr.bf16.mxu0 0
  %787 = vmatpush1.bf16.msra.mxu0 %v606
  %788 = vmatprep.subr.bf16.mxu0 0
  %789 = vmatpush1.bf16.msra.mxu0 %v607
  %790 = vmatprep.subr.bf16.mxu0 0
  %791 = vmatpush1.bf16.msra.mxu0 %v608
  %792 = vmatprep.subr.bf16.mxu0 0
  %793 = vmatpush1.bf16.msra.mxu0 %v609
  %794 = vmatprep.subr.bf16.mxu0 0
  %795 = vmatpush1.bf16.msra.mxu0 %v610
  %796 = vmatprep.subr.bf16.mxu0 0
  %797 = vmatpush1.bf16.msra.mxu0 %v611
  %798 = vmatprep.subr.bf16.mxu0 0
  %799 = vmatpush1.bf16.msra.mxu0 %v612
  %800 = vmatprep.subr.bf16.mxu0 0
  %801 = vmatpush1.bf16.msra.mxu0 %v613
  %802 = vmatprep.subr.bf16.mxu0 0
  %803 = vmatpush1.bf16.msra.mxu0 %v614
  %804 = vmatprep.subr.bf16.mxu0 0
  %805 = vmatpush1.bf16.msra.mxu0 %v615
  %806 = vmatprep.subr.bf16.mxu0 0
  %807 = vmatpush1.bf16.msra.mxu0 %v616
  %808 = vmatprep.subr.bf16.mxu0 0
  %809 = vmatpush1.bf16.msra.mxu0 %v617
  %810 = vmatprep.subr.bf16.mxu0 0
  %811 = vmatpush1.bf16.msra.mxu0 %v618
  %812 = vmatprep.subr.bf16.mxu0 0
  %813 = vmatpush1.bf16.msra.mxu0 %v619
  %814 = vmatprep.mubr.bf16.mxu0 %v185
  %815 = vmatmul.mubr.bf16.gmra.mrb[0].mxu0 %v184
  %v816 = vpop.f32.mrb[0].mxu0
  %v817 = vadd.f32 %v776, %v816
  %v818 = vpop.f32.mrb[0].mxu0
  %v819 = vpop.f32.mrb[0].mxu0
  %v820 = vadd.f32 %v779, %v819
  %v821 = vpop.f32.mrb[0].mxu0
  %822 = vdwg.mxu0
  %823 = vmatprep.subr.bf16.mxu0 0
  %824 = vmatpush1.bf16.msra.mxu0 %v620
  %825 = vmatprep.subr.bf16.mxu0 0
  %826 = vmatpush1.bf16.msra.mxu0 %v621
  %827 = vmatprep.subr.bf16.mxu0 0
  %828 = vmatpush1.bf16.msra.mxu0 %v622
  %829 = vmatprep.subr.bf16.mxu0 0
  %830 = vmatpush1.bf16.msra.mxu0 %v623
  %831 = vmatprep.subr.bf16.mxu0 0
  %832 = vmatpush1.bf16.msra.mxu0 %v624
  %833 = vmatprep.subr.bf16.mxu0 0
  %834 = vmatpush1.bf16.msra.mxu0 %v625
  %835 = vmatprep.subr.bf16.mxu0 0
  %836 = vmatpush1.bf16.msra.mxu0 %v626
  %837 = vmatprep.subr.bf16.mxu0 0
  %838 = vmatpush1.bf16.msra.mxu0 %v627
  %839 = vmatprep.subr.bf16.mxu0 0
  %840 = vmatpush1.bf16.msra.mxu0 %v628
  %841 = vmatprep.subr.bf16.mxu0 0
  %842 = vmatpush1.bf16.msra.mxu0 %v629
  %843 = vmatprep.subr.bf16.mxu0 0
  %844 = vmatpush1.bf16.msra.mxu0 %v630
  %845 = vmatprep.subr.bf16.mxu0 0
  %846 = vmatpush1.bf16.msra.mxu0 %v631
  %847 = vmatprep.subr.bf16.mxu0 0
  %848 = vmatpush1.bf16.msra.mxu0 %v632
  %849 = vmatprep.subr.bf16.mxu0 0
  %850 = vmatpush1.bf16.msra.mxu0 %v633
  %851 = vmatprep.subr.bf16.mxu0 0
  %852 = vmatpush1.bf16.msra.mxu0 %v634
  %853 = vmatprep.subr.bf16.mxu0 0
  %854 = vmatpush1.bf16.msra.mxu0 %v635
  %855 = vmatprep.mubr.bf16.mxu0 %v187
  %856 = vmatmul.mubr.bf16.gmra.mrb[0].mxu0 %v186
  %v857 = vpop.f32.mrb[0].mxu0
  %v858 = vadd.f32 %v817, %v857
  %v859 = vpop.f32.mrb[0].mxu0
  %v860 = vpop.f32.mrb[0].mxu0
  %v861 = vadd.f32 %v820, %v860
  %v862 = vpop.f32.mrb[0].mxu0
  %863 = vdwg.mxu0
  %v864 = vld [vmem:[%s3] sm:$0x1]
  %v866 = vlaneseq
  %v867 = vshrl.u32 %v866, 7
  %v868 = vsub.s32 0, %v867
  %v869 = vrot.slane %v864, %v868
  %v871 = vmul.f32 %v858, %v869
  %v872 = vmul.f32 %v861, %v869
  %v873 = vld [vmem:[%s4] sm:$0x1]
  %v875 = vlaneseq
  %v876 = vshrl.u32 %v875, 7
  %v877 = vsub.s32 0, %v876
  %v878 = vrot.slane %v873, %v877
  %v880 = vadd.f32 %v871, %v878
  %v881 = vadd.f32 %v872, %v878
  %v882 = vmax.f32 %v880, 0.0
  %v883 = vmax.f32 %v881, 0.0
  %v884 = vpack.c.bf16 %v883, %v882
  %v886 = vunpack.c.l.b16 %v884
  %v887 = vunpack.c.h.b16 %v884
  %v888 = vpack.c.b16 %v886, %v886
  %v889 = vpack.c.b16 %v887, %v887
  %892 = vst [vmem:[%s6] sm:$0xf] %v888
  %893 = vst [vmem:[%s6 + $0x4] sm:$0xf] %v889
  // Predicated region
  $region26: #{densenet_forward.160} parent=0 // pred_check
    _
  $region27: #{densenet_forward.160} parent=0 // pred_check_branch
    %895 = sbr.rel (0) target = $region29
  $region28: #{densenet_forward.160} parent=0 // pred_region
    _
  $region29: #{densenet_forward.160} parent=0 // pred_fallthru
    _
  // Predicated region
  $region30: #{densenet_forward.160} parent=0 // pred_check
    _
  $region31: #{densenet_forward.160} parent=0 // pred_check_branch
    %897 = sbr.rel (0) target = $region33
  $region32: #{densenet_forward.160} parent=0 // pred_region
    _
  $region33: #{densenet_forward.160} parent=0 // pred_fallthru
    _

// kernel: densenet_forward.208
$region0: #{densenet_forward.208}
  #allocation0 [shape = 'u32[]', space=smem, size = 0x4, offset = 0x4, fixed_abs, tag = 'smem constant byte address 0x4 - core index']
  #allocation1 [shape = 'u32[144,128]{1,0:T(1,128)}', space=vmem, size = 0x12000, scoped, tag = 'internal scratch']
  %s0 = inlined_call_operand.vmem [shape: bf16[16,1024], index: 0, kind: input, shape index: {}]
  %s1 = inlined_call_operand.vmem [shape: f32[1,1024], index: 1, kind: input, shape index: {}]
  %s2 = inlined_call_operand.vmem [shape: f32[1,1024], index: 2, kind: input, shape index: {}]
  %s3 = inlined_call_operand.vmem [shape: bf16[1024,512], index: 3, kind: input, shape index: {}]
  %s4 = inlined_call_operand.vmem [shape: bf16[16,512], index: 4, kind: output, shape index: {}]
  %s5 = sld [smem:[#allocation0]]
  $region127: #{densenet_forward.208} parent=0
    _
  %s7 = ssub.s32 1, %s5
  %s8 = scalar_select 0, %s7, %s5
  $region1: #{densenet_forward.208} parent=0
    #allocation2 [shape = 'u8[524288]{0}', space=vmem, size = 0x80000, scoped, tag = 'input window, operand 3']
    #allocation3 [shape = 'u8[8192]{0}', space=vmem, size = 0x2000, scoped, tag = 'output window, operand 0']
    loop: start=0, step=1, limit=6
    $region2: #{densenet_forward.208} parent=1 // loop_pre_header
      _
    $region3: #{densenet_forward.208} parent=1 // loop_header
      %s10 = sphi 0, %s14
      %p11 = scmp.ge.s32.totalorder %s10, 6
      %s17 = sphi 0, %s29
      %s18 = sphi 0, %s25
      %s19 = sphi 0, %s17
      %s20 = sphi 0, %s18
      %s21 = sphi 0, %s19
      %s22 = sphi 0, %s20
      %s32 = sphi 0, %s34
      %s35 = sphi 0, %s32
      %s36 = sphi 0, %s35
      %s52 = sphi 0, %s36
      %s56 = sphi 0, %s56
      %s58 = sphi 0, %s56
      %s59 = sphi 0, %s58
      %s73 = sphi 0, %s59
      %s77 = sphi 0, %s77
      %s79 = sphi 0, %s77
      %s80 = sphi 0, %s79
      %s94 = sphi 0, %s80
      %s100 = sphi 0, %s102
      %s103 = sphi 0, %s100
      %s104 = sphi 0, %s103
      %s120 = sphi 0, %s104
      %s128 = sphi 0, %s130
      %s131 = sphi 0, %s128
      %s132 = sphi 0, %s131
      %s148 = sphi 0, %s132
    $region4: #{densenet_forward.208} parent=1 // loop_header_branch
      %13 = sbr.rel (%p11) target = $region8
    $region5: #{densenet_forward.208} parent=1 // loop_body
      %s15 = ssub.s32 %s10, 1
      %s16 = ssub.s32 %s10, 2
      %s23 = sadd.s32 1, %s18
      %p24 = scmp.ge.s32.totalorder %s23, 4
      %s25 = scalar_select %p24, 0, %s23
      %s26 = sadd.s32 1, %s17
      %s27 = scalar_select %p24, %s26, %s17
      %p28 = scmp.ge.s32.totalorder %s27, 1
      %s29 = scalar_select %p28, 0, %s27
      %s30 = ssub.s32 %s17, %s29
      %p31 = scmp.eq.s32.totalorder %s30, 0
      %s33 = sadd.s32 %s32, 1
      %s34 = scalar_select %p31, %s32, %s33
      %p37 = pneg %p31
      %p38 = scmp.eq.s32.totalorder %s10, 3
      %p39 = por %p37, %p38
      %p40 = scmp.ne.s32.totalorder %s32, %s35
      %p41 = scmp.eq.s32.totalorder %s10, 0
      %p42 = por %p40, %p41
      %p43 = scmp.ne.s32.totalorder %s32, %s35
      %p44 = scmp.eq.s32.totalorder %s15, 3
      %p45 = por %p43, %p44
      %p46 = scmp.ne.s32.totalorder %s35, %s36
      %p47 = scmp.eq.s32.totalorder %s15, 0
      %p48 = por %p46, %p47
      %p49 = scmp.ne.s32.totalorder %s35, %s36
      %p50 = scmp.eq.s32.totalorder %s16, 3
      %p51 = por %p49, %p50
      %p53 = scmp.ne.s32.totalorder %s36, %s52
      %p54 = scmp.eq.s32.totalorder %s16, 0
      %p55 = por %p53, %p54
      %s57 = sadd.s32 %s56, 1
      %p60 = scmp.eq.s32.totalorder %s10, 3
      %p61 = scmp.ne.s32.totalorder %s56, %s58
      %p62 = scmp.eq.s32.totalorder %s10, 0
      %p63 = por %p61, %p62
      %p64 = scmp.ne.s32.totalorder %s56, %s58
      %p65 = scmp.eq.s32.totalorder %s15, 3
      %p66 = por %p64, %p65
      %p67 = scmp.ne.s32.totalorder %s58, %s59
      %p68 = scmp.eq.s32.totalorder %s15, 0
      %p69 = por %p67, %p68
      %p70 = scmp.ne.s32.totalorder %s58, %s59
      %p71 = scmp.eq.s32.totalorder %s16, 3
      %p72 = por %p70, %p71
      %p74 = scmp.ne.s32.totalorder %s59, %s73
      %p75 = scmp.eq.s32.totalorder %s16, 0
      %p76 = por %p74, %p75
      %s78 = sadd.s32 %s77, 1
      %p81 = scmp.eq.s32.totalorder %s10, 3
      %p82 = scmp.ne.s32.totalorder %s77, %s79
      %p83 = scmp.eq.s32.totalorder %s10, 0
      %p84 = por %p82, %p83
      %p85 = scmp.ne.s32.totalorder %s77, %s79
      %p86 = scmp.eq.s32.totalorder %s15, 3
      %p87 = por %p85, %p86
      %p88 = scmp.ne.s32.totalorder %s79, %s80
      %p89 = scmp.eq.s32.totalorder %s15, 0
      %p90 = por %p88, %p89
      %p91 = scmp.ne.s32.totalorder %s79, %s80
      %p92 = scmp.eq.s32.totalorder %s16, 3
      %p93 = por %p91, %p92
      %p95 = scmp.ne.s32.totalorder %s80, %s94
      %p96 = scmp.eq.s32.totalorder %s16, 0
      %p97 = por %p95, %p96
      %s98 = ssub.s32 %s18, %s25
      %p99 = scmp.eq.s32.totalorder %s98, 0
      %s101 = sadd.s32 %s100, 1
      %s102 = scalar_select %p99, %s100, %s101
      %p105 = pneg %p99
      %p106 = scmp.eq.s32.totalorder %s10, 3
      %p107 = por %p105, %p106
      %p108 = scmp.ne.s32.totalorder %s100, %s103
      %p109 = scmp.eq.s32.totalorder %s10, 0
      %p110 = por %p108, %p109
      %p111 = scmp.ne.s32.totalorder %s100, %s103
      %p112 = scmp.eq.s32.totalorder %s15, 3
      %p113 = por %p111, %p112
      %p114 = scmp.ne.s32.totalorder %s103, %s104
      %p115 = scmp.eq.s32.totalorder %s15, 0
      %p116 = por %p114, %p115
      %p117 = scmp.ne.s32.totalorder %s103, %s104
      %p118 = scmp.eq.s32.totalorder %s16, 3
      %p119 = por %p117, %p118
      %p121 = scmp.ne.s32.totalorder %s104, %s120
      %p122 = scmp.eq.s32.totalorder %s16, 0
      %p123 = por %p121, %p122
      %s124 = ssub.s32 %s17, %s29
      %s125 = ssub.s32 %s18, %s25
      %s126 = sor.u32 %s124, %s125
      %p127 = scmp.eq.s32.totalorder %s126, 0
      %s129 = sadd.s32 %s128, 1
      %s130 = scalar_select %p127, %s128, %s129
      %p133 = pneg %p127
      %p134 = scmp.eq.s32.totalorder %s10, 3
      %p135 = por %p133, %p134
      %p136 = scmp.ne.s32.totalorder %s128, %s131
      %p137 = scmp.eq.s32.totalorder %s10, 0
      %p138 = por %p136, %p137
      %p139 = scmp.ne.s32.totalorder %s128, %s131
      %p140 = scmp.eq.s32.totalorder %s15, 3
      %p141 = por %p139, %p140
      %p142 = scmp.ne.s32.totalorder %s131, %s132
      %p143 = scmp.eq.s32.totalorder %s15, 0
      %p144 = por %p142, %p143
      %p145 = scmp.ne.s32.totalorder %s131, %s132
      %p146 = scmp.eq.s32.totalorder %s16, 3
      %p147 = por %p145, %p146
      %p149 = scmp.ne.s32.totalorder %s132, %s148
      %p150 = scmp.eq.s32.totalorder %s16, 0
      %p151 = por %p149, %p150
      %p152 = scmp.le.s32.totalorder 1, %s10
      %p153 = scmp.lt.s32.totalorder %s10, 5
      %p154 = pnand %p152, %p153
      %p155 = pneg %p154
      // Predicated region
      $region9: #{densenet_forward.208} parent=5 // pred_check
        _
      $region10: #{densenet_forward.208} parent=5 // pred_check_branch
        %157 = sbr.rel (%p154) target = $region12
      $region11: #{densenet_forward.208} parent=5 // pred_region
        %s158 = ssub.s32 %s10, 1
        // Predicated region
        $region13: #{densenet_forward.208} parent=11 // pred_check
          %p159 = pneg %p48
        $region14: #{densenet_forward.208} parent=11 // pred_check_branch
          %161 = sbr.rel (%p159) target = $region16
        $region15: #{densenet_forward.208} parent=11 // pred_region
          %s162 = smul.u32 2, %s19
          %p163 = scmp.lt.s32.totalorder %s162, 1
          %s164 = scalar_select %p163, %s162, 1
          %s165 = smul.addr %s164, 8
          %s166 = smul.addr %s165, 4
          %s167 = scalar_lea.vmem %s0, %s166
          %s168 = smul.u32 2, %s19
        $region16: #{densenet_forward.208} parent=11 // pred_fallthru
          _
        // Predicated region
        $region17: #{densenet_forward.208} parent=11 // pred_check
          %p169 = pneg %p69
        $region18: #{densenet_forward.208} parent=11 // pred_check_branch
          %171 = sbr.rel (%p169) target = $region20
        $region19: #{densenet_forward.208} parent=11 // pred_region
          _
        $region20: #{densenet_forward.208} parent=11 // pred_fallthru
          _
        // Predicated region
        $region21: #{densenet_forward.208} parent=11 // pred_check
          %p172 = pneg %p90
        $region22: #{densenet_forward.208} parent=11 // pred_check_branch
          %174 = sbr.rel (%p172) target = $region24
        $region23: #{densenet_forward.208} parent=11 // pred_region
          _
        $region24: #{densenet_forward.208} parent=11 // pred_fallthru
          _
      $region12: #{densenet_forward.208} parent=5 // pred_fallthru
        _
      %p175 = scmp.lt.s32.totalorder %s10, 4
      // Predicated region
      $region25: #{densenet_forward.208} parent=5 // pred_check
        %p176 = pneg %p175
      $region26: #{densenet_forward.208} parent=5 // pred_check_branch
        %178 = sbr.rel (%p176) target = $region28
      $region27: #{densenet_forward.208} parent=5 // pred_region
        // Predicated region
        $region29: #{densenet_forward.208} parent=27 // pred_check
          %p179 = pneg %p110
        $region30: #{densenet_forward.208} parent=27 // pred_check_branch
          %181 = sbr.rel (%p179) target = $region32
        $region31: #{densenet_forward.208} parent=27 // pred_region
          %s182 = sand.u32 %s100, 1
          %s183 = sand.u32 %s100, 1
          %s184 = smul.addr %s183, 512
          %s185 = scalar_lea.vmem [#allocation2], %s184
          %s186 = smul.addr %s18, 4
          %s187 = scalar_lea.vmem %s3, %s186
          // Predicated region
          $region33: #{densenet_forward.208} parent=31 // pred_check
            _
          $region34: #{densenet_forward.208} parent=31 // pred_check_branch
            %189 = sbr.rel (0) target = $region36
          $region35: #{densenet_forward.208} parent=31 // pred_region
            // Predicated region
            $region37: #{densenet_forward.208} parent=35 // pred_check
              _
            $region38: #{densenet_forward.208} parent=35 // pred_check_branch
              %191 = sbr.rel target = $region40
            $region39: #{densenet_forward.208} parent=35 // pred_region
              // Predicated region
              $region52: #{densenet_forward.208} parent=39 // pred_check
                _
              $region53: #{densenet_forward.208} parent=39 // pred_check_branch
                %460 = sbr.rel (0) target = $region55
              $region54: #{densenet_forward.208} parent=39 // pred_region
                loop: start=0, step=1, limit=1
                $region56: #{densenet_forward.208} parent=54 // loop_pre_header
                  _
                $region57: #{densenet_forward.208} parent=54 // loop_header
                  %s462 = sphi 0, %s466
                  %p463 = scmp.ge.s32.totalorder %s462, 1
                  %s467 = sphi %s187, %s187
                  %s468 = sphi %s185, %s185
                $region58: #{densenet_forward.208} parent=54 // loop_header_branch
                  %465 = sbr.rel (%p463) target = $region62
                $region59: #{densenet_forward.208} parent=54 // loop_body
                  _
                $region60: #{densenet_forward.208} parent=54 // loop_footer
                  %s466 = sadd.s32 1, %s462
                $region61: #{densenet_forward.208} parent=54 // loop_footer_branch
                  %461 = sbr.rel target = $region57
                $region62: #{densenet_forward.208} parent=54 // loop_exit
                  _
                loop: start=0, step=1, limit=1
                $region63: #{densenet_forward.208} parent=54 // loop_pre_header
                  _
                $region64: #{densenet_forward.208} parent=54 // loop_header
                  %s471 = sphi 0, %s475
                  %p472 = scmp.ge.s32.totalorder %s471, 1
                  %s476 = sphi %s187, %s187
                  %s477 = sphi %s185, %s185
                $region65: #{densenet_forward.208} parent=54 // loop_header_branch
                  %474 = sbr.rel (%p472) target = $region69
                $region66: #{densenet_forward.208} parent=54 // loop_body
                  %v478 = vld [vmem:[%s476] sm:$0xf]
                  %479 = vst [vmem:[%s477] sm:$0xf] %v478
                  %v480 = vld [vmem:[%s476 + $0x10] sm:$0xf]
                  %481 = vst [vmem:[%s477 + $0x4] sm:$0xf] %v480
                  %v482 = vld [vmem:[%s476 + $0x20] sm:$0xf]
                  %483 = vst [vmem:[%s477 + $0x8] sm:$0xf] %v482
                  %v484 = vld [vmem:[%s476 + $0x30] sm:$0xf]
                  %485 = vst [vmem:[%s477 + $0xc] sm:$0xf] %v484
                  %v486 = vld [vmem:[%s476 + $0x40] sm:$0xf]
                  %487 = vst [vmem:[%s477 + $0x10] sm:$0xf] %v486
                  %v488 = vld [vmem:[%s476 + $0x50] sm:$0xf]
                  %489 = vst [vmem:[%s477 + $0x14] sm:$0xf] %v488
                  %v490 = vld [vmem:[%s476 + $0x60] sm:$0xf]
                  %491 = vst [vmem:[%s477 + $0x18] sm:$0xf] %v490
                  %v492 = vld [vmem:[%s476 + $0x70] sm:$0xf]
                  %493 = vst [vmem:[%s477 + $0x1c] sm:$0xf] %v492
                  %v494 = vld [vmem:[%s476 + $0x80] sm:$0xf]
                  %495 = vst [vmem:[%s477 + $0x20] sm:$0xf] %v494
                  %v496 = vld [vmem:[%s476 + $0x90] sm:$0xf]
                  %497 = vst [vmem:[%s477 + $0x24] sm:$0xf] %v496
                  %v498 = vld [vmem:[%s476 + $0xa0] sm:$0xf]
                  %499 = vst [vmem:[%s477 + $0x28] sm:$0xf] %v498
                  %v500 = vld [vmem:[%s476 + $0xb0] sm:$0xf]
                  %501 = vst [vmem:[%s477 + $0x2c] sm:$0xf] %v500
                  %v502 = vld [vmem:[%s476 + $0xc0] sm:$0xf]
                  %503 = vst [vmem:[%s477 + $0x30] sm:$0xf] %v502
                  %v504 = vld [vmem:[%s476 + $0xd0] sm:$0xf]
                  %505 = vst [vmem:[%s477 + $0x34] sm:$0xf] %v504
                  %v506 = vld [vmem:[%s476 + $0xe0] sm:$0xf]
                  %507 = vst [vmem:[%s477 + $0x38] sm:$0xf] %v506
                  %v508 = vld [vmem:[%s476 + $0xf0] sm:$0xf]
                  %509 = vst [vmem:[%s477 + $0x3c] sm:$0xf] %v508
                  %v510 = vld [vmem:[%s476 + $0x100] sm:$0xf]
                  %511 = vst [vmem:[%s477 + $0x40] sm:$0xf] %v510
                  %v512 = vld [vmem:[%s476 + $0x110] sm:$0xf]
                  %513 = vst [vmem:[%s477 + $0x44] sm:$0xf] %v512
                  %v514 = vld [vmem:[%s476 + $0x120] sm:$0xf]
                  %515 = vst [vmem:[%s477 + $0x48] sm:$0xf] %v514
                  %v516 = vld [vmem:[%s476 + $0x130] sm:$0xf]
                  %517 = vst [vmem:[%s477 + $0x4c] sm:$0xf] %v516
                  %v518 = vld [vmem:[%s476 + $0x140] sm:$0xf]
                  %519 = vst [vmem:[%s477 + $0x50] sm:$0xf] %v518
                  %v520 = vld [vmem:[%s476 + $0x150] sm:$0xf]
                  %521 = vst [vmem:[%s477 + $0x54] sm:$0xf] %v520
                  %v522 = vld [vmem:[%s476 + $0x160] sm:$0xf]
                  %523 = vst [vmem:[%s477 + $0x58] sm:$0xf] %v522
                  %v524 = vld [vmem:[%s476 + $0x170] sm:$0xf]
                  %525 = vst [vmem:[%s477 + $0x5c] sm:$0xf] %v524
                  %v526 = vld [vmem:[%s476 + $0x180] sm:$0xf]
                  %527 = vst [vmem:[%s477 + $0x60] sm:$0xf] %v526
                  %v528 = vld [vmem:[%s476 + $0x190] sm:$0xf]
                  %529 = vst [vmem:[%s477 + $0x64] sm:$0xf] %v528
                  %v530 = vld [vmem:[%s476 + $0x1a0] sm:$0xf]
                  %531 = vst [vmem:[%s477 + $0x68] sm:$0xf] %v530
                  %v532 = vld [vmem:[%s476 + $0x1b0] sm:$0xf]
                  %533 = vst [vmem:[%s477 + $0x6c] sm:$0xf] %v532
                  %v534 = vld [vmem:[%s476 + $0x1c0] sm:$0xf]
                  %535 = vst [vmem:[%s477 + $0x70] sm:$0xf] %v534
                  %v536 = vld [vmem:[%s476 + $0x1d0] sm:$0xf]
                  %537 = vst [vmem:[%s477 + $0x74] sm:$0xf] %v536
                  %v538 = vld [vmem:[%s476 + $0x1e0] sm:$0xf]
                  %539 = vst [vmem:[%s477 + $0x78] sm:$0xf] %v538
                  %v540 = vld [vmem:[%s476 + $0x1f0] sm:$0xf]
                  %541 = vst [vmem:[%s477 + $0x7c] sm:$0xf] %v540
                  %v542 = vld [vmem:[%s476 + $0x200] sm:$0xf]
                  %543 = vst [vmem:[%s477 + $0x80] sm:$0xf] %v542
                  %v544 = vld [vmem:[%s476 + $0x210] sm:$0xf]
                  %545 = vst [vmem:[%s477 + $0x84] sm:$0xf] %v544
                  %v546 = vld [vmem:[%s476 + $0x220] sm:$0xf]
                  %547 = vst [vmem:[%s477 + $0x88] sm:$0xf] %v546
                  %v548 = vld [vmem:[%s476 + $0x230] sm:$0xf]
                  %549 = vst [vmem:[%s477 + $0x8c] sm:$0xf] %v548
                  %v550 = vld [vmem:[%s476 + $0x240] sm:$0xf]
                  %551 = vst [vmem:[%s477 + $0x90] sm:$0xf] %v550
                  %v552 = vld [vmem:[%s476 + $0x250] sm:$0xf]
                  %553 = vst [vmem:[%s477 + $0x94] sm:$0xf] %v552
                  %v554 = vld [vmem:[%s476 + $0x260] sm:$0xf]
                  %555 = vst [vmem:[%s477 + $0x98] sm:$0xf] %v554
                  %v556 = vld [vmem:[%s476 + $0x270] sm:$0xf]
                  %557 = vst [vmem:[%s477 + $0x9c] sm:$0xf] %v556
                  %v558 = vld [vmem:[%s476 + $0x280] sm:$0xf]
                  %559 = vst [vmem:[%s477 + $0xa0] sm:$0xf] %v558
                  %v560 = vld [vmem:[%s476 + $0x290] sm:$0xf]
                  %561 = vst [vmem:[%s477 + $0xa4] sm:$0xf] %v560
                  %v562 = vld [vmem:[%s476 + $0x2a0] sm:$0xf]
                  %563 = vst [vmem:[%s477 + $0xa8] sm:$0xf] %v562
                  %v564 = vld [vmem:[%s476 + $0x2b0] sm:$0xf]
                  %565 = vst [vmem:[%s477 + $0xac] sm:$0xf] %v564
                  %v566 = vld [vmem:[%s476 + $0x2c0] sm:$0xf]
                  %567 = vst [vmem:[%s477 + $0xb0] sm:$0xf] %v566
                  %v568 = vld [vmem:[%s476 + $0x2d0] sm:$0xf]
                  %569 = vst [vmem:[%s477 + $0xb4] sm:$0xf] %v568
                  %v570 = vld [vmem:[%s476 + $0x2e0] sm:$0xf]
                  %571 = vst [vmem:[%s477 + $0xb8] sm:$0xf] %v570
                  %v572 = vld [vmem:[%s476 + $0x2f0] sm:$0xf]
                  %573 = vst [vmem:[%s477 + $0xbc] sm:$0xf] %v572
                  %v574 = vld [vmem:[%s476 + $0x300] sm:$0xf]
                  %575 = vst [vmem:[%s477 + $0xc0] sm:$0xf] %v574
                  %v576 = vld [vmem:[%s476 + $0x310] sm:$0xf]
                  %577 = vst [vmem:[%s477 + $0xc4] sm:$0xf] %v576
                  %v578 = vld [vmem:[%s476 + $0x320] sm:$0xf]
                  %579 = vst [vmem:[%s477 + $0xc8] sm:$0xf] %v578
                  %v580 = vld [vmem:[%s476 + $0x330] sm:$0xf]
                  %581 = vst [vmem:[%s477 + $0xcc] sm:$0xf] %v580
                  %v582 = vld [vmem:[%s476 + $0x340] sm:$0xf]
                  %583 = vst [vmem:[%s477 + $0xd0] sm:$0xf] %v582
                  %v584 = vld [vmem:[%s476 + $0x350] sm:$0xf]
                  %585 = vst [vmem:[%s477 + $0xd4] sm:$0xf] %v584
                  %v586 = vld [vmem:[%s476 + $0x360] sm:$0xf]
                  %587 = vst [vmem:[%s477 + $0xd8] sm:$0xf] %v586
                  %v588 = vld [vmem:[%s476 + $0x370] sm:$0xf]
                  %589 = vst [vmem:[%s477 + $0xdc] sm:$0xf] %v588
                  %v590 = vld [vmem:[%s476 + $0x380] sm:$0xf]
                  %591 = vst [vmem:[%s477 + $0xe0] sm:$0xf] %v590
                  %v592 = vld [vmem:[%s476 + $0x390] sm:$0xf]
                  %593 = vst [vmem:[%s477 + $0xe4] sm:$0xf] %v592
                  %v594 = vld [vmem:[%s476 + $0x3a0] sm:$0xf]
                  %595 = vst [vmem:[%s477 + $0xe8] sm:$0xf] %v594
                  %v596 = vld [vmem:[%s476 + $0x3b0] sm:$0xf]
                  %597 = vst [vmem:[%s477 + $0xec] sm:$0xf] %v596
                  %v598 = vld [vmem:[%s476 + $0x3c0] sm:$0xf]
                  %599 = vst [vmem:[%s477 + $0xf0] sm:$0xf] %v598
                  %v600 = vld [vmem:[%s476 + $0x3d0] sm:$0xf]
                  %601 = vst [vmem:[%s477 + $0xf4] sm:$0xf] %v600
                  %v602 = vld [vmem:[%s476 + $0x3e0] sm:$0xf]
                  %603 = vst [vmem:[%s477 + $0xf8] sm:$0xf] %v602
                  %v604 = vld [vmem:[%s476 + $0x3f0] sm:$0xf]
                  %605 = vst [vmem:[%s477 + $0xfc] sm:$0xf] %v604
                  %v606 = vld [vmem:[%s476 + $0x400] sm:$0xf]
                  %607 = vst [vmem:[%s477 + $0x100] sm:$0xf] %v606
                  %v608 = vld [vmem:[%s476 + $0x410] sm:$0xf]
                  %609 = vst [vmem:[%s477 + $0x104] sm:$0xf] %v608
                  %v610 = vld [vmem:[%s476 + $0x420] sm:$0xf]
                  %611 = vst [vmem:[%s477 + $0x108] sm:$0xf] %v610
                  %v612 = vld [vmem:[%s476 + $0x430] sm:$0xf]
                  %613 = vst [vmem:[%s477 + $0x10c] sm:$0xf] %v612
                  %v614 = vld [vmem:[%s476 + $0x440] sm:$0xf]
                  %615 = vst [vmem:[%s477 + $0x110] sm:$0xf] %v614
                  %v616 = vld [vmem:[%s476 + $0x450] sm:$0xf]
                  %617 = vst [vmem:[%s477 + $0x114] sm:$0xf] %v616
                  %v618 = vld [vmem:[%s476 + $0x460] sm:$0xf]
                  %619 = vst [vmem:[%s477 + $0x118] sm:$0xf] %v618
                  %v620 = vld [vmem:[%s476 + $0x470] sm:$0xf]
                  %621 = vst [vmem:[%s477 + $0x11c] sm:$0xf] %v620
                  %v622 = vld [vmem:[%s476 + $0x480] sm:$0xf]
                  %623 = vst [vmem:[%s477 + $0x120] sm:$0xf] %v622
                  %v624 = vld [vmem:[%s476 + $0x490] sm:$0xf]
                  %625 = vst [vmem:[%s477 + $0x124] sm:$0xf] %v624
                  %v626 = vld [vmem:[%s476 + $0x4a0] sm:$0xf]
                  %627 = vst [vmem:[%s477 + $0x128] sm:$0xf] %v626
                  %v628 = vld [vmem:[%s476 + $0x4b0] sm:$0xf]
                  %629 = vst [vmem:[%s477 + $0x12c] sm:$0xf] %v628
                  %v630 = vld [vmem:[%s476 + $0x4c0] sm:$0xf]
                  %631 = vst [vmem:[%s477 + $0x130] sm:$0xf] %v630
                  %v632 = vld [vmem:[%s476 + $0x4d0] sm:$0xf]
                  %633 = vst [vmem:[%s477 + $0x134] sm:$0xf] %v632
                  %v634 = vld [vmem:[%s476 + $0x4e0] sm:$0xf]
                  %635 = vst [vmem:[%s477 + $0x138] sm:$0xf] %v634
                  %v636 = vld [vmem:[%s476 + $0x4f0] sm:$0xf]
                  %637 = vst [vmem:[%s477 + $0x13c] sm:$0xf] %v636
                  %v638 = vld [vmem:[%s476 + $0x500] sm:$0xf]
                  %639 = vst [vmem:[%s477 + $0x140] sm:$0xf] %v638
                  %v640 = vld [vmem:[%s476 + $0x510] sm:$0xf]
                  %641 = vst [vmem:[%s477 + $0x144] sm:$0xf] %v640
                  %v642 = vld [vmem:[%s476 + $0x520] sm:$0xf]
                  %643 = vst [vmem:[%s477 + $0x148] sm:$0xf] %v642
                  %v644 = vld [vmem:[%s476 + $0x530] sm:$0xf]
                  %645 = vst [vmem:[%s477 + $0x14c] sm:$0xf] %v644
                  %v646 = vld [vmem:[%s476 + $0x540] sm:$0xf]
                  %647 = vst [vmem:[%s477 + $0x150] sm:$0xf] %v646
                  %v648 = vld [vmem:[%s476 + $0x550] sm:$0xf]
                  %649 = vst [vmem:[%s477 + $0x154] sm:$0xf] %v648
                  %v650 = vld [vmem:[%s476 + $0x560] sm:$0xf]
                  %651 = vst [vmem:[%s477 + $0x158] sm:$0xf] %v650
                  %v652 = vld [vmem:[%s476 + $0x570] sm:$0xf]
                  %653 = vst [vmem:[%s477 + $0x15c] sm:$0xf] %v652
                  %v654 = vld [vmem:[%s476 + $0x580] sm:$0xf]
                  %655 = vst [vmem:[%s477 + $0x160] sm:$0xf] %v654
                  %v656 = vld [vmem:[%s476 + $0x590] sm:$0xf]
                  %657 = vst [vmem:[%s477 + $0x164] sm:$0xf] %v656
                  %v658 = vld [vmem:[%s476 + $0x5a0] sm:$0xf]
                  %659 = vst [vmem:[%s477 + $0x168] sm:$0xf] %v658
                  %v660 = vld [vmem:[%s476 + $0x5b0] sm:$0xf]
                  %661 = vst [vmem:[%s477 + $0x16c] sm:$0xf] %v660
                  %v662 = vld [vmem:[%s476 + $0x5c0] sm:$0xf]
                  %663 = vst [vmem:[%s477 + $0x170] sm:$0xf] %v662
                  %v664 = vld [vmem:[%s476 + $0x5d0] sm:$0xf]
                  %665 = vst [vmem:[%s477 + $0x174] sm:$0xf] %v664
                  %v666 = vld [vmem:[%s476 + $0x5e0] sm:$0xf]
                  %667 = vst [vmem:[%s477 + $0x178] sm:$0xf] %v666
                  %v668 = vld [vmem:[%s476 + $0x5f0] sm:$0xf]
                  %669 = vst [vmem:[%s477 + $0x17c] sm:$0xf] %v668
                  %v670 = vld [vmem:[%s476 + $0x600] sm:$0xf]
                  %671 = vst [vmem:[%s477 + $0x180] sm:$0xf] %v670
                  %v672 = vld [vmem:[%s476 + $0x610] sm:$0xf]
                  %673 = vst [vmem:[%s477 + $0x184] sm:$0xf] %v672
                  %v674 = vld [vmem:[%s476 + $0x620] sm:$0xf]
                  %675 = vst [vmem:[%s477 + $0x188] sm:$0xf] %v674
                  %v676 = vld [vmem:[%s476 + $0x630] sm:$0xf]
                  %677 = vst [vmem:[%s477 + $0x18c] sm:$0xf] %v676
                  %v678 = vld [vmem:[%s476 + $0x640] sm:$0xf]
                  %679 = vst [vmem:[%s477 + $0x190] sm:$0xf] %v678
                  %v680 = vld [vmem:[%s476 + $0x650] sm:$0xf]
                  %681 = vst [vmem:[%s477 + $0x194] sm:$0xf] %v680
                  %v682 = vld [vmem:[%s476 + $0x660] sm:$0xf]
                  %683 = vst [vmem:[%s477 + $0x198] sm:$0xf] %v682
                  %v684 = vld [vmem:[%s476 + $0x670] sm:$0xf]
                  %685 = vst [vmem:[%s477 + $0x19c] sm:$0xf] %v684
                  %v686 = vld [vmem:[%s476 + $0x680] sm:$0xf]
                  %687 = vst [vmem:[%s477 + $0x1a0] sm:$0xf] %v686
                  %v688 = vld [vmem:[%s476 + $0x690] sm:$0xf]
                  %689 = vst [vmem:[%s477 + $0x1a4] sm:$0xf] %v688
                  %v690 = vld [vmem:[%s476 + $0x6a0] sm:$0xf]
                  %691 = vst [vmem:[%s477 + $0x1a8] sm:$0xf] %v690
                  %v692 = vld [vmem:[%s476 + $0x6b0] sm:$0xf]
                  %693 = vst [vmem:[%s477 + $0x1ac] sm:$0xf] %v692
                  %v694 = vld [vmem:[%s476 + $0x6c0] sm:$0xf]
                  %695 = vst [vmem:[%s477 + $0x1b0] sm:$0xf] %v694
                  %v696 = vld [vmem:[%s476 + $0x6d0] sm:$0xf]
                  %697 = vst [vmem:[%s477 + $0x1b4] sm:$0xf] %v696
                  %v698 = vld [vmem:[%s476 + $0x6e0] sm:$0xf]
                  %699 = vst [vmem:[%s477 + $0x1b8] sm:$0xf] %v698
                  %v700 = vld [vmem:[%s476 + $0x6f0] sm:$0xf]
                  %701 = vst [vmem:[%s477 + $0x1bc] sm:$0xf] %v700
                  %v702 = vld [vmem:[%s476 + $0x700] sm:$0xf]
                  %703 = vst [vmem:[%s477 + $0x1c0] sm:$0xf] %v702
                  %v704 = vld [vmem:[%s476 + $0x710] sm:$0xf]
                  %705 = vst [vmem:[%s477 + $0x1c4] sm:$0xf] %v704
                  %v706 = vld [vmem:[%s476 + $0x720] sm:$0xf]
                  %707 = vst [vmem:[%s477 + $0x1c8] sm:$0xf] %v706
                  %v708 = vld [vmem:[%s476 + $0x730] sm:$0xf]
                  %709 = vst [vmem:[%s477 + $0x1cc] sm:$0xf] %v708
                  %v710 = vld [vmem:[%s476 + $0x740] sm:$0xf]
                  %711 = vst [vmem:[%s477 + $0x1d0] sm:$0xf] %v710
                  %v712 = vld [vmem:[%s476 + $0x750] sm:$0xf]
                  %713 = vst [vmem:[%s477 + $0x1d4] sm:$0xf] %v712
                  %v714 = vld [vmem:[%s476 + $0x760] sm:$0xf]
                  %715 = vst [vmem:[%s477 + $0x1d8] sm:$0xf] %v714
                  %v716 = vld [vmem:[%s476 + $0x770] sm:$0xf]
                  %717 = vst [vmem:[%s477 + $0x1dc] sm:$0xf] %v716
                  %v718 = vld [vmem:[%s476 + $0x780] sm:$0xf]
                  %719 = vst [vmem:[%s477 + $0x1e0] sm:$0xf] %v718
                  %v720 = vld [vmem:[%s476 + $0x790] sm:$0xf]
                  %721 = vst [vmem:[%s477 + $0x1e4] sm:$0xf] %v720
                  %v722 = vld [vmem:[%s476 + $0x7a0] sm:$0xf]
                  %723 = vst [vmem:[%s477 + $0x1e8] sm:$0xf] %v722
                  %v724 = vld [vmem:[%s476 + $0x7b0] sm:$0xf]
                  %725 = vst [vmem:[%s477 + $0x1ec] sm:$0xf] %v724
                  %v726 = vld [vmem:[%s476 + $0x7c0] sm:$0xf]
                  %727 = vst [vmem:[%s477 + $0x1f0] sm:$0xf] %v726
                  %v728 = vld [vmem:[%s476 + $0x7d0] sm:$0xf]
                  %729 = vst [vmem:[%s477 + $0x1f4] sm:$0xf] %v728
                  %v730 = vld [vmem:[%s476 + $0x7e0] sm:$0xf]
                  %731 = vst [vmem:[%s477 + $0x1f8] sm:$0xf] %v730
                  %v732 = vld [vmem:[%s476 + $0x7f0] sm:$0xf]
                  %733 = vst [vmem:[%s477 + $0x1fc] sm:$0xf] %v732
                $region67: #{densenet_forward.208} parent=54 // loop_footer
                  %s475 = sadd.s32 1, %s471
                $region68: #{densenet_forward.208} parent=54 // loop_footer_branch
                  %470 = sbr.rel target = $region64
                $region69: #{densenet_forward.208} parent=54 // loop_exit
                  _
              $region55: #{densenet_forward.208} parent=39 // pred_fallthru
                _
            $region40: #{densenet_forward.208} parent=35 // pred_fallthru
              _
            // Predicated region
            $region41: #{densenet_forward.208} parent=35 // pred_check
              _
            $region42: #{densenet_forward.208} parent=35 // pred_check_branch
              %193 = sbr.rel (0) target = $region44
            $region43: #{densenet_forward.208} parent=35 // pred_region
              loop: start=0, step=1, limit=1
              $region45: #{densenet_forward.208} parent=43 // loop_pre_header
                _
              $region46: #{densenet_forward.208} parent=43 // loop_header
                %s196 = sphi 0, %s200
                %p197 = scmp.ge.s32.totalorder %s196, 1
                %s201 = sphi %s187, %s187
                %s202 = sphi %s185, %s185
              $region47: #{densenet_forward.208} parent=43 // loop_header_branch
                %199 = sbr.rel (%p197) target = $region51
              $region48: #{densenet_forward.208} parent=43 // loop_body
                %v203 = vld [vmem:[%s201] sm:$0xf]
                %204 = vst [vmem:[%s202] sm:$0xf] %v203
                %v205 = vld [vmem:[%s201 + $0x10] sm:$0xf]
                %206 = vst [vmem:[%s202 + $0x4] sm:$0xf] %v205
                %v207 = vld [vmem:[%s201 + $0x20] sm:$0xf]
                %208 = vst [vmem:[%s202 + $0x8] sm:$0xf] %v207
                %v209 = vld [vmem:[%s201 + $0x30] sm:$0xf]
                %210 = vst [vmem:[%s202 + $0xc] sm:$0xf] %v209
                %v211 = vld [vmem:[%s201 + $0x40] sm:$0xf]
                %212 = vst [vmem:[%s202 + $0x10] sm:$0xf] %v211
                %v213 = vld [vmem:[%s201 + $0x50] sm:$0xf]
                %214 = vst [vmem:[%s202 + $0x14] sm:$0xf] %v213
                %v215 = vld [vmem:[%s201 + $0x60] sm:$0xf]
                %216 = vst [vmem:[%s202 + $0x18] sm:$0xf] %v215
                %v217 = vld [vmem:[%s201 + $0x70] sm:$0xf]
                %218 = vst [vmem:[%s202 + $0x1c] sm:$0xf] %v217
                %v219 = vld [vmem:[%s201 + $0x80] sm:$0xf]
                %220 = vst [vmem:[%s202 + $0x20] sm:$0xf] %v219
                %v221 = vld [vmem:[%s201 + $0x90] sm:$0xf]
                %222 = vst [vmem:[%s202 + $0x24] sm:$0xf] %v221
                %v223 = vld [vmem:[%s201 + $0xa0] sm:$0xf]
                %224 = vst [vmem:[%s202 + $0x28] sm:$0xf] %v223
                %v225 = vld [vmem:[%s201 + $0xb0] sm:$0xf]
                %226 = vst [vmem:[%s202 + $0x2c] sm:$0xf] %v225
                %v227 = vld [vmem:[%s201 + $0xc0] sm:$0xf]
                %228 = vst [vmem:[%s202 + $0x30] sm:$0xf] %v227
                %v229 = vld [vmem:[%s201 + $0xd0] sm:$0xf]
                %230 = vst [vmem:[%s202 + $0x34] sm:$0xf] %v229
                %v231 = vld [vmem:[%s201 + $0xe0] sm:$0xf]
                %232 = vst [vmem:[%s202 + $0x38] sm:$0xf] %v231
                %v233 = vld [vmem:[%s201 + $0xf0] sm:$0xf]
                %234 = vst [vmem:[%s202 + $0x3c] sm:$0xf] %v233
                %v235 = vld [vmem:[%s201 + $0x100] sm:$0xf]
                %236 = vst [vmem:[%s202 + $0x40] sm:$0xf] %v235
                %v237 = vld [vmem:[%s201 + $0x110] sm:$0xf]
                %238 = vst [vmem:[%s202 + $0x44] sm:$0xf] %v237
                %v239 = vld [vmem:[%s201 + $0x120] sm:$0xf]
                %240 = vst [vmem:[%s202 + $0x48] sm:$0xf] %v239
                %v241 = vld [vmem:[%s201 + $0x130] sm:$0xf]
                %242 = vst [vmem:[%s202 + $0x4c] sm:$0xf] %v241
                %v243 = vld [vmem:[%s201 + $0x140] sm:$0xf]
                %244 = vst [vmem:[%s202 + $0x50] sm:$0xf] %v243
                %v245 = vld [vmem:[%s201 + $0x150] sm:$0xf]
                %246 = vst [vmem:[%s202 + $0x54] sm:$0xf] %v245
                %v247 = vld [vmem:[%s201 + $0x160] sm:$0xf]
                %248 = vst [vmem:[%s202 + $0x58] sm:$0xf] %v247
                %v249 = vld [vmem:[%s201 + $0x170] sm:$0xf]
                %250 = vst [vmem:[%s202 + $0x5c] sm:$0xf] %v249
                %v251 = vld [vmem:[%s201 + $0x180] sm:$0xf]
                %252 = vst [vmem:[%s202 + $0x60] sm:$0xf] %v251
                %v253 = vld [vmem:[%s201 + $0x190] sm:$0xf]
                %254 = vst [vmem:[%s202 + $0x64] sm:$0xf] %v253
                %v255 = vld [vmem:[%s201 + $0x1a0] sm:$0xf]
                %256 = vst [vmem:[%s202 + $0x68] sm:$0xf] %v255
                %v257 = vld [vmem:[%s201 + $0x1b0] sm:$0xf]
                %258 = vst [vmem:[%s202 + $0x6c] sm:$0xf] %v257
                %v259 = vld [vmem:[%s201 + $0x1c0] sm:$0xf]
                %260 = vst [vmem:[%s202 + $0x70] sm:$0xf] %v259
                %v261 = vld [vmem:[%s201 + $0x1d0] sm:$0xf]
                %262 = vst [vmem:[%s202 + $0x74] sm:$0xf] %v261
                %v263 = vld [vmem:[%s201 + $0x1e0] sm:$0xf]
                %264 = vst [vmem:[%s202 + $0x78] sm:$0xf] %v263
                %v265 = vld [vmem:[%s201 + $0x1f0] sm:$0xf]
                %266 = vst [vmem:[%s202 + $0x7c] sm:$0xf] %v265
                %v267 = vld [vmem:[%s201 + $0x200] sm:$0xf]
                %268 = vst [vmem:[%s202 + $0x80] sm:$0xf] %v267
                %v269 = vld [vmem:[%s201 + $0x210] sm:$0xf]
                %270 = vst [vmem:[%s202 + $0x84] sm:$0xf] %v269
                %v271 = vld [vmem:[%s201 + $0x220] sm:$0xf]
                %272 = vst [vmem:[%s202 + $0x88] sm:$0xf] %v271
                %v273 = vld [vmem:[%s201 + $0x230] sm:$0xf]
                %274 = vst [vmem:[%s202 + $0x8c] sm:$0xf] %v273
                %v275 = vld [vmem:[%s201 + $0x240] sm:$0xf]
                %276 = vst [vmem:[%s202 + $0x90] sm:$0xf] %v275
                %v277 = vld [vmem:[%s201 + $0x250] sm:$0xf]
                %278 = vst [vmem:[%s202 + $0x94] sm:$0xf] %v277
                %v279 = vld [vmem:[%s201 + $0x260] sm:$0xf]
                %280 = vst [vmem:[%s202 + $0x98] sm:$0xf] %v279
                %v281 = vld [vmem:[%s201 + $0x270] sm:$0xf]
                %282 = vst [vmem:[%s202 + $0x9c] sm:$0xf] %v281
                %v283 = vld [vmem:[%s201 + $0x280] sm:$0xf]
                %284 = vst [vmem:[%s202 + $0xa0] sm:$0xf] %v283
                %v285 = vld [vmem:[%s201 + $0x290] sm:$0xf]
                %286 = vst [vmem:[%s202 + $0xa4] sm:$0xf] %v285
                %v287 = vld [vmem:[%s201 + $0x2a0] sm:$0xf]
                %288 = vst [vmem:[%s202 + $0xa8] sm:$0xf] %v287
                %v289 = vld [vmem:[%s201 + $0x2b0] sm:$0xf]
                %290 = vst [vmem:[%s202 + $0xac] sm:$0xf] %v289
                %v291 = vld [vmem:[%s201 + $0x2c0] sm:$0xf]
                %292 = vst [vmem:[%s202 + $0xb0] sm:$0xf] %v291
                %v293 = vld [vmem:[%s201 + $0x2d0] sm:$0xf]
                %294 = vst [vmem:[%s202 + $0xb4] sm:$0xf] %v293
                %v295 = vld [vmem:[%s201 + $0x2e0] sm:$0xf]
                %296 = vst [vmem:[%s202 + $0xb8] sm:$0xf] %v295
                %v297 = vld [vmem:[%s201 + $0x2f0] sm:$0xf]
                %298 = vst [vmem:[%s202 + $0xbc] sm:$0xf] %v297
                %v299 = vld [vmem:[%s201 + $0x300] sm:$0xf]
                %300 = vst [vmem:[%s202 + $0xc0] sm:$0xf] %v299
                %v301 = vld [vmem:[%s201 + $0x310] sm:$0xf]
                %302 = vst [vmem:[%s202 + $0xc4] sm:$0xf] %v301
                %v303 = vld [vmem:[%s201 + $0x320] sm:$0xf]
                %304 = vst [vmem:[%s202 + $0xc8] sm:$0xf] %v303
                %v305 = vld [vmem:[%s201 + $0x330] sm:$0xf]
                %306 = vst [vmem:[%s202 + $0xcc] sm:$0xf] %v305
                %v307 = vld [vmem:[%s201 + $0x340] sm:$0xf]
                %308 = vst [vmem:[%s202 + $0xd0] sm:$0xf] %v307
                %v309 = vld [vmem:[%s201 + $0x350] sm:$0xf]
                %310 = vst [vmem:[%s202 + $0xd4] sm:$0xf] %v309
                %v311 = vld [vmem:[%s201 + $0x360] sm:$0xf]
                %312 = vst [vmem:[%s202 + $0xd8] sm:$0xf] %v311
                %v313 = vld [vmem:[%s201 + $0x370] sm:$0xf]
                %314 = vst [vmem:[%s202 + $0xdc] sm:$0xf] %v313
                %v315 = vld [vmem:[%s201 + $0x380] sm:$0xf]
                %316 = vst [vmem:[%s202 + $0xe0] sm:$0xf] %v315
                %v317 = vld [vmem:[%s201 + $0x390] sm:$0xf]
                %318 = vst [vmem:[%s202 + $0xe4] sm:$0xf] %v317
                %v319 = vld [vmem:[%s201 + $0x3a0] sm:$0xf]
                %320 = vst [vmem:[%s202 + $0xe8] sm:$0xf] %v319
                %v321 = vld [vmem:[%s201 + $0x3b0] sm:$0xf]
                %322 = vst [vmem:[%s202 + $0xec] sm:$0xf] %v321
                %v323 = vld [vmem:[%s201 + $0x3c0] sm:$0xf]
                %324 = vst [vmem:[%s202 + $0xf0] sm:$0xf] %v323
                %v325 = vld [vmem:[%s201 + $0x3d0] sm:$0xf]
                %326 = vst [vmem:[%s202 + $0xf4] sm:$0xf] %v325
                %v327 = vld [vmem:[%s201 + $0x3e0] sm:$0xf]
                %328 = vst [vmem:[%s202 + $0xf8] sm:$0xf] %v327
                %v329 = vld [vmem:[%s201 + $0x3f0] sm:$0xf]
                %330 = vst [vmem:[%s202 + $0xfc] sm:$0xf] %v329
                %v331 = vld [vmem:[%s201 + $0x400] sm:$0xf]
                %332 = vst [vmem:[%s202 + $0x100] sm:$0xf] %v331
                %v333 = vld [vmem:[%s201 + $0x410] sm:$0xf]
                %334 = vst [vmem:[%s202 + $0x104] sm:$0xf] %v333
                %v335 = vld [vmem:[%s201 + $0x420] sm:$0xf]
                %336 = vst [vmem:[%s202 + $0x108] sm:$0xf] %v335
                %v337 = vld [vmem:[%s201 + $0x430] sm:$0xf]
                %338 = vst [vmem:[%s202 + $0x10c] sm:$0xf] %v337
                %v339 = vld [vmem:[%s201 + $0x440] sm:$0xf]
                %340 = vst [vmem:[%s202 + $0x110] sm:$0xf] %v339
                %v341 = vld [vmem:[%s201 + $0x450] sm:$0xf]
                %342 = vst [vmem:[%s202 + $0x114] sm:$0xf] %v341
                %v343 = vld [vmem:[%s201 + $0x460] sm:$0xf]
                %344 = vst [vmem:[%s202 + $0x118] sm:$0xf] %v343
                %v345 = vld [vmem:[%s201 + $0x470] sm:$0xf]
                %346 = vst [vmem:[%s202 + $0x11c] sm:$0xf] %v345
                %v347 = vld [vmem:[%s201 + $0x480] sm:$0xf]
                %348 = vst [vmem:[%s202 + $0x120] sm:$0xf] %v347
                %v349 = vld [vmem:[%s201 + $0x490] sm:$0xf]
                %350 = vst [vmem:[%s202 + $0x124] sm:$0xf] %v349
                %v351 = vld [vmem:[%s201 + $0x4a0] sm:$0xf]
                %352 = vst [vmem:[%s202 + $0x128] sm:$0xf] %v351
                %v353 = vld [vmem:[%s201 + $0x4b0] sm:$0xf]
                %354 = vst [vmem:[%s202 + $0x12c] sm:$0xf] %v353
                %v355 = vld [vmem:[%s201 + $0x4c0] sm:$0xf]
                %356 = vst [vmem:[%s202 + $0x130] sm:$0xf] %v355
                %v357 = vld [vmem:[%s201 + $0x4d0] sm:$0xf]
                %358 = vst [vmem:[%s202 + $0x134] sm:$0xf] %v357
                %v359 = vld [vmem:[%s201 + $0x4e0] sm:$0xf]
                %360 = vst [vmem:[%s202 + $0x138] sm:$0xf] %v359
                %v361 = vld [vmem:[%s201 + $0x4f0] sm:$0xf]
                %362 = vst [vmem:[%s202 + $0x13c] sm:$0xf] %v361
                %v363 = vld [vmem:[%s201 + $0x500] sm:$0xf]
                %364 = vst [vmem:[%s202 + $0x140] sm:$0xf] %v363
                %v365 = vld [vmem:[%s201 + $0x510] sm:$0xf]
                %366 = vst [vmem:[%s202 + $0x144] sm:$0xf] %v365
                %v367 = vld [vmem:[%s201 + $0x520] sm:$0xf]
                %368 = vst [vmem:[%s202 + $0x148] sm:$0xf] %v367
                %v369 = vld [vmem:[%s201 + $0x530] sm:$0xf]
                %370 = vst [vmem:[%s202 + $0x14c] sm:$0xf] %v369
                %v371 = vld [vmem:[%s201 + $0x540] sm:$0xf]
                %372 = vst [vmem:[%s202 + $0x150] sm:$0xf] %v371
                %v373 = vld [vmem:[%s201 + $0x550] sm:$0xf]
                %374 = vst [vmem:[%s202 + $0x154] sm:$0xf] %v373
                %v375 = vld [vmem:[%s201 + $0x560] sm:$0xf]
                %376 = vst [vmem:[%s202 + $0x158] sm:$0xf] %v375
                %v377 = vld [vmem:[%s201 + $0x570] sm:$0xf]
                %378 = vst [vmem:[%s202 + $0x15c] sm:$0xf] %v377
                %v379 = vld [vmem:[%s201 + $0x580] sm:$0xf]
                %380 = vst [vmem:[%s202 + $0x160] sm:$0xf] %v379
                %v381 = vld [vmem:[%s201 + $0x590] sm:$0xf]
                %382 = vst [vmem:[%s202 + $0x164] sm:$0xf] %v381
                %v383 = vld [vmem:[%s201 + $0x5a0] sm:$0xf]
                %384 = vst [vmem:[%s202 + $0x168] sm:$0xf] %v383
                %v385 = vld [vmem:[%s201 + $0x5b0] sm:$0xf]
                %386 = vst [vmem:[%s202 + $0x16c] sm:$0xf] %v385
                %v387 = vld [vmem:[%s201 + $0x5c0] sm:$0xf]
                %388 = vst [vmem:[%s202 + $0x170] sm:$0xf] %v387
                %v389 = vld [vmem:[%s201 + $0x5d0] sm:$0xf]
                %390 = vst [vmem:[%s202 + $0x174] sm:$0xf] %v389
                %v391 = vld [vmem:[%s201 + $0x5e0] sm:$0xf]
                %392 = vst [vmem:[%s202 + $0x178] sm:$0xf] %v391
                %v393 = vld [vmem:[%s201 + $0x5f0] sm:$0xf]
                %394 = vst [vmem:[%s202 + $0x17c] sm:$0xf] %v393
                %v395 = vld [vmem:[%s201 + $0x600] sm:$0xf]
                %396 = vst [vmem:[%s202 + $0x180] sm:$0xf] %v395
                %v397 = vld [vmem:[%s201 + $0x610] sm:$0xf]
                %398 = vst [vmem:[%s202 + $0x184] sm:$0xf] %v397
                %v399 = vld [vmem:[%s201 + $0x620] sm:$0xf]
                %400 = vst [vmem:[%s202 + $0x188] sm:$0xf] %v399
                %v401 = vld [vmem:[%s201 + $0x630] sm:$0xf]
                %402 = vst [vmem:[%s202 + $0x18c] sm:$0xf] %v401
                %v403 = vld [vmem:[%s201 + $0x640] sm:$0xf]
                %404 = vst [vmem:[%s202 + $0x190] sm:$0xf] %v403
                %v405 = vld [vmem:[%s201 + $0x650] sm:$0xf]
                %406 = vst [vmem:[%s202 + $0x194] sm:$0xf] %v405
                %v407 = vld [vmem:[%s201 + $0x660] sm:$0xf]
                %408 = vst [vmem:[%s202 + $0x198] sm:$0xf] %v407
                %v409 = vld [vmem:[%s201 + $0x670] sm:$0xf]
                %410 = vst [vmem:[%s202 + $0x19c] sm:$0xf] %v409
                %v411 = vld [vmem:[%s201 + $0x680] sm:$0xf]
                %412 = vst [vmem:[%s202 + $0x1a0] sm:$0xf] %v411
                %v413 = vld [vmem:[%s201 + $0x690] sm:$0xf]
                %414 = vst [vmem:[%s202 + $0x1a4] sm:$0xf] %v413
                %v415 = vld [vmem:[%s201 + $0x6a0] sm:$0xf]
                %416 = vst [vmem:[%s202 + $0x1a8] sm:$0xf] %v415
                %v417 = vld [vmem:[%s201 + $0x6b0] sm:$0xf]
                %418 = vst [vmem:[%s202 + $0x1ac] sm:$0xf] %v417
                %v419 = vld [vmem:[%s201 + $0x6c0] sm:$0xf]
                %420 = vst [vmem:[%s202 + $0x1b0] sm:$0xf] %v419
                %v421 = vld [vmem:[%s201 + $0x6d0] sm:$0xf]
                %422 = vst [vmem:[%s202 + $0x1b4] sm:$0xf] %v421
                %v423 = vld [vmem:[%s201 + $0x6e0] sm:$0xf]
                %424 = vst [vmem:[%s202 + $0x1b8] sm:$0xf] %v423
                %v425 = vld [vmem:[%s201 + $0x6f0] sm:$0xf]
                %426 = vst [vmem:[%s202 + $0x1bc] sm:$0xf] %v425
                %v427 = vld [vmem:[%s201 + $0x700] sm:$0xf]
                %428 = vst [vmem:[%s202 + $0x1c0] sm:$0xf] %v427
                %v429 = vld [vmem:[%s201 + $0x710] sm:$0xf]
                %430 = vst [vmem:[%s202 + $0x1c4] sm:$0xf] %v429
                %v431 = vld [vmem:[%s201 + $0x720] sm:$0xf]
                %432 = vst [vmem:[%s202 + $0x1c8] sm:$0xf] %v431
                %v433 = vld [vmem:[%s201 + $0x730] sm:$0xf]
                %434 = vst [vmem:[%s202 + $0x1cc] sm:$0xf] %v433
                %v435 = vld [vmem:[%s201 + $0x740] sm:$0xf]
                %436 = vst [vmem:[%s202 + $0x1d0] sm:$0xf] %v435
                %v437 = vld [vmem:[%s201 + $0x750] sm:$0xf]
                %438 = vst [vmem:[%s202 + $0x1d4] sm:$0xf] %v437
                %v439 = vld [vmem:[%s201 + $0x760] sm:$0xf]
                %440 = vst [vmem:[%s202 + $0x1d8] sm:$0xf] %v439
                %v441 = vld [vmem:[%s201 + $0x770] sm:$0xf]
                %442 = vst [vmem:[%s202 + $0x1dc] sm:$0xf] %v441
                %v443 = vld [vmem:[%s201 + $0x780] sm:$0xf]
                %444 = vst [vmem:[%s202 + $0x1e0] sm:$0xf] %v443
                %v445 = vld [vmem:[%s201 + $0x790] sm:$0xf]
                %446 = vst [vmem:[%s202 + $0x1e4] sm:$0xf] %v445
                %v447 = vld [vmem:[%s201 + $0x7a0] sm:$0xf]
                %448 = vst [vmem:[%s202 + $0x1e8] sm:$0xf] %v447
                %v449 = vld [vmem:[%s201 + $0x7b0] sm:$0xf]
                %450 = vst [vmem:[%s202 + $0x1ec] sm:$0xf] %v449
                %v451 = vld [vmem:[%s201 + $0x7c0] sm:$0xf]
                %452 = vst [vmem:[%s202 + $0x1f0] sm:$0xf] %v451
                %v453 = vld [vmem:[%s201 + $0x7d0] sm:$0xf]
                %454 = vst [vmem:[%s202 + $0x1f4] sm:$0xf] %v453
                %v455 = vld [vmem:[%s201 + $0x7e0] sm:$0xf]
                %456 = vst [vmem:[%s202 + $0x1f8] sm:$0xf] %v455
                %v457 = vld [vmem:[%s201 + $0x7f0] sm:$0xf]
                %458 = vst [vmem:[%s202 + $0x1fc] sm:$0xf] %v457
              $region49: #{densenet_forward.208} parent=43 // loop_footer
                %s200 = sadd.s32 1, %s196
              $region50: #{densenet_forward.208} parent=43 // loop_footer_branch
                %195 = sbr.rel target = $region46
              $region51: #{densenet_forward.208} parent=43 // loop_exit
                _
            $region44: #{densenet_forward.208} parent=35 // pred_fallthru
              _
          $region36: #{densenet_forward.208} parent=31 // pred_fallthru
            _
          %734 = vnop
        $region32: #{densenet_forward.208} parent=27 // pred_fallthru
          _
      $region28: #{densenet_forward.208} parent=5 // pred_fallthru
        _
      %p735 = scmp.le.s32.totalorder 1, %s10
      %p736 = scmp.lt.s32.totalorder %s10, 5
      %p737 = pnand %p735, %p736
      %p738 = pneg %p737
      // Predicated region
      $region70: #{densenet_forward.208} parent=5 // pred_check
        _
      $region71: #{densenet_forward.208} parent=5 // pred_check_branch
        %740 = sbr.rel (%p737) target = $region73
      $region72: #{densenet_forward.208} parent=5 // pred_region
        %s741 = ssub.s32 %s10, 1
        %s742 = sand.u32 %s103, 1
        %s743 = sand.u32 %s103, 1
        %s744 = smul.addr %s743, 512
        %s745 = scalar_lea.vmem [#allocation2], %s744
        // Predicated region
        $region74: #{densenet_forward.208} parent=72 // pred_check
          %p746 = pneg %p116
        $region75: #{densenet_forward.208} parent=72 // pred_check_branch
          %748 = sbr.rel (%p746) target = $region77
        $region76: #{densenet_forward.208} parent=72 // pred_region
          _
        $region77: #{densenet_forward.208} parent=72 // pred_fallthru
          _
        %s749 = smul.u32 2, %s19
        %p750 = scmp.lt.s32.totalorder %s749, 1
        %s751 = scalar_select %p750, %s749, 1
        %s752 = smul.addr %s751, 8
        %s753 = smul.addr %s752, 4
        %s754 = scalar_lea.vmem %s0, %s753
        %p755 = pneg %p48
        %p756 = pneg %p45
        %p757 = pneg %p69
        %p758 = pneg %p66
        %p759 = pneg %p90
        %p760 = pneg %p87
        %s761 = sand.u32 %s103, 1
        %s762 = sand.u32 %s103, 1
        %s763 = smul.addr %s762, 512
        %s764 = scalar_lea.vmem [#allocation2], %s763
        %p765 = pneg %p116
        %p766 = pneg %p113
        %p767 = pneg %p144
        %p768 = pneg %p141
        %s769 = sand.u32 %s131, 1
        %s770 = sand.u32 %s131, 1
        %s771 = smul.addr %s770, 8
        %s772 = scalar_lea.vmem [#allocation3], %s771
        %s773 = smul.u32 2, %s19
        %p774 = scmp.lt.s32.totalorder %s773, 1
        %s775 = scalar_select %p774, %s773, 1
        %s776 = smul.addr %s775, 8
        %s777 = smul.addr %s776, 4
        %s778 = scalar_lea.vmem %s0, %s777
        %s779 = smul.u32 2, %s19
        %s780 = smul.u32 2, %s19
        %v782 = vld [vmem:[%s778] sm:$0xff]
        %v783 = vld [vmem:[%s778 + $0x8] sm:$0xff]
        %v784 = vld [vmem:[%s778 + $0x10] sm:$0xff]
        %v785 = vld [vmem:[%s778 + $0x18] sm:$0xff]
        %v786 = vld [vmem:[%s778 + $0x20] sm:$0xff]
        %v787 = vld [vmem:[%s778 + $0x28] sm:$0xff]
        %v788 = vld [vmem:[%s778 + $0x30] sm:$0xff]
        %v789 = vld [vmem:[%s778 + $0x38] sm:$0xff]
        %v790 = vunpack.c.l.bf16 %v782
        %v791 = vunpack.c.h.bf16 %v782
        %v792 = vunpack.c.l.bf16 %v783
        %v793 = vunpack.c.h.bf16 %v783
        %v794 = vunpack.c.l.bf16 %v784
        %v795 = vunpack.c.h.bf16 %v784
        %v796 = vunpack.c.l.bf16 %v785
        %v797 = vunpack.c.h.bf16 %v785
        %v798 = vunpack.c.l.bf16 %v786
        %v799 = vunpack.c.h.bf16 %v786
        %v800 = vunpack.c.l.bf16 %v787
        %v801 = vunpack.c.h.bf16 %v787
        %v802 = vunpack.c.l.bf16 %v788
        %v803 = vunpack.c.h.bf16 %v788
        %v804 = vunpack.c.l.bf16 %v789
        %v805 = vunpack.c.h.bf16 %v789
        %v806 = vld [vmem:[%s1] sm:$0xff]
        %v808 = vlaneseq
        %v809 = vshrl.u32 %v808, 7
        %v810 = vsub.s32 0, %v809
        %v811 = vrot.slane %v806, %v810
        %v812 = vlaneseq
        %v813 = vshrl.u32 %v812, 7
        %v814 = vsub.s32 1, %v813
        %v815 = vrot.slane %v806, %v814
        %v816 = vlaneseq
        %v817 = vshrl.u32 %v816, 7
        %v818 = vsub.s32 2, %v817
        %v819 = vrot.slane %v806, %v818
        %v820 = vlaneseq
        %v821 = vshrl.u32 %v820, 7
        %v822 = vsub.s32 3, %v821
        %v823 = vrot.slane %v806, %v822
        %v824 = vlaneseq
        %v825 = vshrl.u32 %v824, 7
        %v826 = vsub.s32 4, %v825
        %v827 = vrot.slane %v806, %v826
        %v828 = vlaneseq
        %v829 = vshrl.u32 %v828, 7
        %v830 = vsub.s32 5, %v829
        %v831 = vrot.slane %v806, %v830
        %v832 = vlaneseq
        %v833 = vshrl.u32 %v832, 7
        %v834 = vsub.s32 6, %v833
        %v835 = vrot.slane %v806, %v834
        %v836 = vlaneseq
        %v837 = vshrl.u32 %v836, 7
        %v838 = vsub.s32 7, %v837
        %v839 = vrot.slane %v806, %v838
        %v848 = vmul.f32 %v790, %v811
        %v849 = vmul.f32 %v791, %v815
        %v850 = vmul.f32 %v792, %v819
        %v851 = vmul.f32 %v793, %v823
        %v852 = vmul.f32 %v794, %v827
        %v853 = vmul.f32 %v795, %v831
        %v854 = vmul.f32 %v796, %v835
        %v855 = vmul.f32 %v797, %v839
        %v856 = vmul.f32 %v798, %v811
        %v857 = vmul.f32 %v799, %v815
        %v858 = vmul.f32 %v800, %v819
        %v859 = vmul.f32 %v801, %v823
        %v860 = vmul.f32 %v802, %v827
        %v861 = vmul.f32 %v803, %v831
        %v862 = vmul.f32 %v804, %v835
        %v863 = vmul.f32 %v805, %v839
        %v864 = vld [vmem:[%s2] sm:$0xff]
        %v866 = vlaneseq
        %v867 = vshrl.u32 %v866, 7
        %v868 = vsub.s32 0, %v867
        %v869 = vrot.slane %v864, %v868
        %v870 = vlaneseq
        %v871 = vshrl.u32 %v870, 7
        %v872 = vsub.s32 1, %v871
        %v873 = vrot.slane %v864, %v872
        %v874 = vlaneseq
        %v875 = vshrl.u32 %v874, 7
        %v876 = vsub.s32 2, %v875
        %v877 = vrot.slane %v864, %v876
        %v878 = vlaneseq
        %v879 = vshrl.u32 %v878, 7
        %v880 = vsub.s32 3, %v879
        %v881 = vrot.slane %v864, %v880
        %v882 = vlaneseq
        %v883 = vshrl.u32 %v882, 7
        %v884 = vsub.s32 4, %v883
        %v885 = vrot.slane %v864, %v884
        %v886 = vlaneseq
        %v887 = vshrl.u32 %v886, 7
        %v888 = vsub.s32 5, %v887
        %v889 = vrot.slane %v864, %v888
        %v890 = vlaneseq
        %v891 = vshrl.u32 %v890, 7
        %v892 = vsub.s32 6, %v891
        %v893 = vrot.slane %v864, %v892
        %v894 = vlaneseq
        %v895 = vshrl.u32 %v894, 7
        %v896 = vsub.s32 7, %v895
        %v897 = vrot.slane %v864, %v896
        %v906 = vadd.f32 %v848, %v869
        %v907 = vadd.f32 %v849, %v873
        %v908 = vadd.f32 %v850, %v877
        %v909 = vadd.f32 %v851, %v881
        %v910 = vadd.f32 %v852, %v885
        %v911 = vadd.f32 %v853, %v889
        %v912 = vadd.f32 %v854, %v893
        %v913 = vadd.f32 %v855, %v897
        %v914 = vadd.f32 %v856, %v869
        %v915 = vadd.f32 %v857, %v873
        %v916 = vadd.f32 %v858, %v877
        %v917 = vadd.f32 %v859, %v881
        %v918 = vadd.f32 %v860, %v885
        %v919 = vadd.f32 %v861, %v889
        %v920 = vadd.f32 %v862, %v893
        %v921 = vadd.f32 %v863, %v897
        %v922 = vmax.f32 %v906, 0.0
        %v923 = vmax.f32 %v907, 0.0
        %v924 = vmax.f32 %v908, 0.0
        %v925 = vmax.f32 %v909, 0.0
        %v926 = vmax.f32 %v910, 0.0
        %v927 = vmax.f32 %v911, 0.0
        %v928 = vmax.f32 %v912, 0.0
        %v929 = vmax.f32 %v913, 0.0
        %v930 = vmax.f32 %v914, 0.0
        %v931 = vmax.f32 %v915, 0.0
        %v932 = vmax.f32 %v916, 0.0
        %v933 = vmax.f32 %v917, 0.0
        %v934 = vmax.f32 %v918, 0.0
        %v935 = vmax.f32 %v919, 0.0
        %v936 = vmax.f32 %v920, 0.0
        %v937 = vmax.f32 %v921, 0.0
        %v938 = vpack.c.bf16 %v930, %v922
        %v939 = vpack.c.bf16 %v931, %v923
        %v940 = vpack.c.bf16 %v932, %v924
        %v941 = vpack.c.bf16 %v933, %v925
        %v942 = vpack.c.bf16 %v934, %v926
        %v943 = vpack.c.bf16 %v935, %v927
        %v944 = vpack.c.bf16 %v936, %v928
        %v945 = vpack.c.bf16 %v937, %v929
        %v946 = vld [vmem:[%s745] sm:$0xf]
        %v947 = vld [vmem:[%s745 + $0x4] sm:$0xf]
        %v948 = vld [vmem:[%s745 + $0x8] sm:$0xf]
        %v949 = vld [vmem:[%s745 + $0xc] sm:$0xf]
        %v950 = vld [vmem:[%s745 + $0x10] sm:$0xf]
        %v951 = vld [vmem:[%s745 + $0x14] sm:$0xf]
        %v952 = vld [vmem:[%s745 + $0x18] sm:$0xf]
        %v953 = vld [vmem:[%s745 + $0x1c] sm:$0xf]
        %v954 = vld [vmem:[%s745 + $0x20] sm:$0xf]
        %v955 = vld [vmem:[%s745 + $0x24] sm:$0xf]
        %v956 = vld [vmem:[%s745 + $0x28] sm:$0xf]
        %v957 = vld [vmem:[%s745 + $0x2c] sm:$0xf]
        %v958 = vld [vmem:[%s745 + $0x30] sm:$0xf]
        %v959 = vld [vmem:[%s745 + $0x34] sm:$0xf]
        %v960 = vld [vmem:[%s745 + $0x38] sm:$0xf]
        %v961 = vld [vmem:[%s745 + $0x3c] sm:$0xf]
        %v962 = vld [vmem:[%s745 + $0x40] sm:$0xf]
        %v963 = vld [vmem:[%s745 + $0x44] sm:$0xf]
        %v964 = vld [vmem:[%s745 + $0x48] sm:$0xf]
        %v965 = vld [vmem:[%s745 + $0x4c] sm:$0xf]
        %v966 = vld [vmem:[%s745 + $0x50] sm:$0xf]
        %v967 = vld [vmem:[%s745 + $0x54] sm:$0xf]
        %v968 = vld [vmem:[%s745 + $0x58] sm:$0xf]
        %v969 = vld [vmem:[%s745 + $0x5c] sm:$0xf]
        %v970 = vld [vmem:[%s745 + $0x60] sm:$0xf]
        %v971 = vld [vmem:[%s745 + $0x64] sm:$0xf]
        %v972 = vld [vmem:[%s745 + $0x68] sm:$0xf]
        %v973 = vld [vmem:[%s745 + $0x6c] sm:$0xf]
        %v974 = vld [vmem:[%s745 + $0x70] sm:$0xf]
        %v975 = vld [vmem:[%s745 + $0x74] sm:$0xf]
        %v976 = vld [vmem:[%s745 + $0x78] sm:$0xf]
        %v977 = vld [vmem:[%s745 + $0x7c] sm:$0xf]
        %v978 = vld [vmem:[%s745 + $0x80] sm:$0xf]
        %v979 = vld [vmem:[%s745 + $0x84] sm:$0xf]
        %v980 = vld [vmem:[%s745 + $0x88] sm:$0xf]
        %v981 = vld [vmem:[%s745 + $0x8c] sm:$0xf]
        %v982 = vld [vmem:[%s745 + $0x90] sm:$0xf]
        %v983 = vld [vmem:[%s745 + $0x94] sm:$0xf]
        %v984 = vld [vmem:[%s745 + $0x98] sm:$0xf]
        %v985 = vld [vmem:[%s745 + $0x9c] sm:$0xf]
        %v986 = vld [vmem:[%s745 + $0xa0] sm:$0xf]
        %v987 = vld [vmem:[%s745 + $0xa4] sm:$0xf]
        %v988 = vld [vmem:[%s745 + $0xa8] sm:$0xf]
        %v989 = vld [vmem:[%s745 + $0xac] sm:$0xf]
        %v990 = vld [vmem:[%s745 + $0xb0] sm:$0xf]
        %v991 = vld [vmem:[%s745 + $0xb4] sm:$0xf]
        %v992 = vld [vmem:[%s745 + $0xb8] sm:$0xf]
        %v993 = vld [vmem:[%s745 + $0xbc] sm:$0xf]
        %v994 = vld [vmem:[%s745 + $0xc0] sm:$0xf]
        %v995 = vld [vmem:[%s745 + $0xc4] sm:$0xf]
        %v996 = vld [vmem:[%s745 + $0xc8] sm:$0xf]
        %v997 = vld [vmem:[%s745 + $0xcc] sm:$0xf]
        %v998 = vld [vmem:[%s745 + $0xd0] sm:$0xf]
        %v999 = vld [vmem:[%s745 + $0xd4] sm:$0xf]
        %v1000 = vld [vmem:[%s745 + $0xd8] sm:$0xf]
        %v1001 = vld [vmem:[%s745 + $0xdc] sm:$0xf]
        %v1002 = vld [vmem:[%s745 + $0xe0] sm:$0xf]
        %v1003 = vld [vmem:[%s745 + $0xe4] sm:$0xf]
        %v1004 = vld [vmem:[%s745 + $0xe8] sm:$0xf]
        %v1005 = vld [vmem:[%s745 + $0xec] sm:$0xf]
        %v1006 = vld [vmem:[%s745 + $0xf0] sm:$0xf]
        %v1007 = vld [vmem:[%s745 + $0xf4] sm:$0xf]
        %v1008 = vld [vmem:[%s745 + $0xf8] sm:$0xf]
        %v1009 = vld [vmem:[%s745 + $0xfc] sm:$0xf]
        %v1010 = vld [vmem:[%s745 + $0x100] sm:$0xf]
        %v1011 = vld [vmem:[%s745 + $0x104] sm:$0xf]
        %v1012 = vld [vmem:[%s745 + $0x108] sm:$0xf]
        %v1013 = vld [vmem:[%s745 + $0x10c] sm:$0xf]
        %v1014 = vld [vmem:[%s745 + $0x110] sm:$0xf]
        %v1015 = vld [vmem:[%s745 + $0x114] sm:$0xf]
        %v1016 = vld [vmem:[%s745 + $0x118] sm:$0xf]
        %v1017 = vld [vmem:[%s745 + $0x11c] sm:$0xf]
        %v1018 = vld [vmem:[%s745 + $0x120] sm:$0xf]
        %v1019 = vld [vmem:[%s745 + $0x124] sm:$0xf]
        %v1020 = vld [vmem:[%s745 + $0x128] sm:$0xf]
        %v1021 = vld [vmem:[%s745 + $0x12c] sm:$0xf]
        %v1022 = vld [vmem:[%s745 + $0x130] sm:$0xf]
        %v1023 = vld [vmem:[%s745 + $0x134] sm:$0xf]
        %v1024 = vld [vmem:[%s745 + $0x138] sm:$0xf]
        %v1025 = vld [vmem:[%s745 + $0x13c] sm:$0xf]
        %v1026 = vld [vmem:[%s745 + $0x140] sm:$0xf]
        %v1027 = vld [vmem:[%s745 + $0x144] sm:$0xf]
        %v1028 = vld [vmem:[%s745 + $0x148] sm:$0xf]
        %v1029 = vld [vmem:[%s745 + $0x14c] sm:$0xf]
        %v1030 = vld [vmem:[%s745 + $0x150] sm:$0xf]
        %v1031 = vld [vmem:[%s745 + $0x154] sm:$0xf]
        %v1032 = vld [vmem:[%s745 + $0x158] sm:$0xf]
        %v1033 = vld [vmem:[%s745 + $0x15c] sm:$0xf]
        %v1034 = vld [vmem:[%s745 + $0x160] sm:$0xf]
        %v1035 = vld [vmem:[%s745 + $0x164] sm:$0xf]
        %v1036 = vld [vmem:[%s745 + $0x168] sm:$0xf]
        %v1037 = vld [vmem:[%s745 + $0x16c] sm:$0xf]
        %v1038 = vld [vmem:[%s745 + $0x170] sm:$0xf]
        %v1039 = vld [vmem:[%s745 + $0x174] sm:$0xf]
        %v1040 = vld [vmem:[%s745 + $0x178] sm:$0xf]
        %v1041 = vld [vmem:[%s745 + $0x17c] sm:$0xf]
        %v1042 = vld [vmem:[%s745 + $0x180] sm:$0xf]
        %v1043 = vld [vmem:[%s745 + $0x184] sm:$0xf]
        %v1044 = vld [vmem:[%s745 + $0x188] sm:$0xf]
        %v1045 = vld [vmem:[%s745 + $0x18c] sm:$0xf]
        %v1046 = vld [vmem:[%s745 + $0x190] sm:$0xf]
        %v1047 = vld [vmem:[%s745 + $0x194] sm:$0xf]
        %v1048 = vld [vmem:[%s745 + $0x198] sm:$0xf]
        %v1049 = vld [vmem:[%s745 + $0x19c] sm:$0xf]
        %v1050 = vld [vmem:[%s745 + $0x1a0] sm:$0xf]
        %v1051 = vld [vmem:[%s745 + $0x1a4] sm:$0xf]
        %v1052 = vld [vmem:[%s745 + $0x1a8] sm:$0xf]
        %v1053 = vld [vmem:[%s745 + $0x1ac] sm:$0xf]
        %v1054 = vld [vmem:[%s745 + $0x1b0] sm:$0xf]
        %v1055 = vld [vmem:[%s745 + $0x1b4] sm:$0xf]
        %v1056 = vld [vmem:[%s745 + $0x1b8] sm:$0xf]
        %v1057 = vld [vmem:[%s745 + $0x1bc] sm:$0xf]
        %v1058 = vld [vmem:[%s745 + $0x1c0] sm:$0xf]
        %v1059 = vld [vmem:[%s745 + $0x1c4] sm:$0xf]
        %v1060 = vld [vmem:[%s745 + $0x1c8] sm:$0xf]
        %v1061 = vld [vmem:[%s745 + $0x1cc] sm:$0xf]
        %v1062 = vld [vmem:[%s745 + $0x1d0] sm:$0xf]
        %v1063 = vld [vmem:[%s745 + $0x1d4] sm:$0xf]
        %v1064 = vld [vmem:[%s745 + $0x1d8] sm:$0xf]
        %v1065 = vld [vmem:[%s745 + $0x1dc] sm:$0xf]
        %v1066 = vld [vmem:[%s745 + $0x1e0] sm:$0xf]
        %v1067 = vld [vmem:[%s745 + $0x1e4] sm:$0xf]
        %v1068 = vld [vmem:[%s745 + $0x1e8] sm:$0xf]
        %v1069 = vld [vmem:[%s745 + $0x1ec] sm:$0xf]
        %v1070 = vld [vmem:[%s745 + $0x1f0] sm:$0xf]
        %v1071 = vld [vmem:[%s745 + $0x1f4] sm:$0xf]
        %v1072 = vld [vmem:[%s745 + $0x1f8] sm:$0xf]
        %v1073 = vld [vmem:[%s745 + $0x1fc] sm:$0xf]
        %v1202 = vunpack.c.l.b16 %v946
        %v1203 = vunpack.c.l.b16 %v947
        %v1204 = vunpack.c.l.b16 %v948
        %v1205 = vunpack.c.l.b16 %v949
        %v1206 = vunpack.c.l.b16 %v950
        %v1207 = vunpack.c.l.b16 %v951
        %v1208 = vunpack.c.l.b16 %v952
        %v1209 = vunpack.c.l.b16 %v953
        %v1210 = vunpack.c.l.b16 %v954
        %v1211 = vunpack.c.l.b16 %v955
        %v1212 = vunpack.c.l.b16 %v956
        %v1213 = vunpack.c.l.b16 %v957
        %v1214 = vunpack.c.l.b16 %v958
        %v1215 = vunpack.c.l.b16 %v959
        %v1216 = vunpack.c.l.b16 %v960
        %v1217 = vunpack.c.l.b16 %v961
        %v1218 = vunpack.c.l.b16 %v962
        %v1219 = vunpack.c.l.b16 %v963
        %v1220 = vunpack.c.l.b16 %v964
        %v1221 = vunpack.c.l.b16 %v965
        %v1222 = vunpack.c.l.b16 %v966
        %v1223 = vunpack.c.l.b16 %v967
        %v1224 = vunpack.c.l.b16 %v968
        %v1225 = vunpack.c.l.b16 %v969
        %v1226 = vunpack.c.l.b16 %v970
        %v1227 = vunpack.c.l.b16 %v971
        %v1228 = vunpack.c.l.b16 %v972
        %v1229 = vunpack.c.l.b16 %v973
        %v1230 = vunpack.c.l.b16 %v974
        %v1231 = vunpack.c.l.b16 %v975
        %v1232 = vunpack.c.l.b16 %v976
        %v1233 = vunpack.c.l.b16 %v977
        %v1234 = vunpack.c.l.b16 %v978
        %v1235 = vunpack.c.l.b16 %v979
        %v1236 = vunpack.c.l.b16 %v980
        %v1237 = vunpack.c.l.b16 %v981
        %v1238 = vunpack.c.l.b16 %v982
        %v1239 = vunpack.c.l.b16 %v983
        %v1240 = vunpack.c.l.b16 %v984
        %v1241 = vunpack.c.l.b16 %v985
        %v1242 = vunpack.c.l.b16 %v986
        %v1243 = vunpack.c.l.b16 %v987
        %v1244 = vunpack.c.l.b16 %v988
        %v1245 = vunpack.c.l.b16 %v989
        %v1246 = vunpack.c.l.b16 %v990
        %v1247 = vunpack.c.l.b16 %v991
        %v1248 = vunpack.c.l.b16 %v992
        %v1249 = vunpack.c.l.b16 %v993
        %v1250 = vunpack.c.l.b16 %v994
        %v1251 = vunpack.c.l.b16 %v995
        %v1252 = vunpack.c.l.b16 %v996
        %v1253 = vunpack.c.l.b16 %v997
        %v1254 = vunpack.c.l.b16 %v998
        %v1255 = vunpack.c.l.b16 %v999
        %v1256 = vunpack.c.l.b16 %v1000
        %v1257 = vunpack.c.l.b16 %v1001
        %v1258 = vunpack.c.l.b16 %v1002
        %v1259 = vunpack.c.l.b16 %v1003
        %v1260 = vunpack.c.l.b16 %v1004
        %v1261 = vunpack.c.l.b16 %v1005
        %v1262 = vunpack.c.l.b16 %v1006
        %v1263 = vunpack.c.l.b16 %v1007
        %v1264 = vunpack.c.l.b16 %v1008
        %v1265 = vunpack.c.l.b16 %v1009
        %v1266 = vunpack.c.l.b16 %v1010
        %v1267 = vunpack.c.l.b16 %v1011
        %v1268 = vunpack.c.l.b16 %v1012
        %v1269 = vunpack.c.l.b16 %v1013
        %v1270 = vunpack.c.l.b16 %v1014
        %v1271 = vunpack.c.l.b16 %v1015
        %v1272 = vunpack.c.l.b16 %v1016
        %v1273 = vunpack.c.l.b16 %v1017
        %v1274 = vunpack.c.l.b16 %v1018
        %v1275 = vunpack.c.l.b16 %v1019
        %v1276 = vunpack.c.l.b16 %v1020
        %v1277 = vunpack.c.l.b16 %v1021
        %v1278 = vunpack.c.l.b16 %v1022
        %v1279 = vunpack.c.l.b16 %v1023
        %v1280 = vunpack.c.l.b16 %v1024
        %v1281 = vunpack.c.l.b16 %v1025
        %v1282 = vunpack.c.l.b16 %v1026
        %v1283 = vunpack.c.l.b16 %v1027
        %v1284 = vunpack.c.l.b16 %v1028
        %v1285 = vunpack.c.l.b16 %v1029
        %v1286 = vunpack.c.l.b16 %v1030
        %v1287 = vunpack.c.l.b16 %v1031
        %v1288 = vunpack.c.l.b16 %v1032
        %v1289 = vunpack.c.l.b16 %v1033
        %v1290 = vunpack.c.l.b16 %v1034
        %v1291 = vunpack.c.l.b16 %v1035
        %v1292 = vunpack.c.l.b16 %v1036
        %v1293 = vunpack.c.l.b16 %v1037
        %v1294 = vunpack.c.l.b16 %v1038
        %v1295 = vunpack.c.l.b16 %v1039
        %v1296 = vunpack.c.l.b16 %v1040
        %v1297 = vunpack.c.l.b16 %v1041
        %v1298 = vunpack.c.l.b16 %v1042
        %v1299 = vunpack.c.l.b16 %v1043
        %v1300 = vunpack.c.l.b16 %v1044
        %v1301 = vunpack.c.l.b16 %v1045
        %v1302 = vunpack.c.l.b16 %v1046
        %v1303 = vunpack.c.l.b16 %v1047
        %v1304 = vunpack.c.l.b16 %v1048
        %v1305 = vunpack.c.l.b16 %v1049
        %v1306 = vunpack.c.l.b16 %v1050
        %v1307 = vunpack.c.l.b16 %v1051
        %v1308 = vunpack.c.l.b16 %v1052
        %v1309 = vunpack.c.l.b16 %v1053
        %v1310 = vunpack.c.l.b16 %v1054
        %v1311 = vunpack.c.l.b16 %v1055
        %v1312 = vunpack.c.l.b16 %v1056
        %v1313 = vunpack.c.l.b16 %v1057
        %v1314 = vunpack.c.l.b16 %v1058
        %v1315 = vunpack.c.l.b16 %v1059
        %v1316 = vunpack.c.l.b16 %v1060
        %v1317 = vunpack.c.l.b16 %v1061
        %v1318 = vunpack.c.l.b16 %v1062
        %v1319 = vunpack.c.l.b16 %v1063
        %v1320 = vunpack.c.l.b16 %v1064
        %v1321 = vunpack.c.l.b16 %v1065
        %v1322 = vunpack.c.l.b16 %v1066
        %v1323 = vunpack.c.l.b16 %v1067
        %v1324 = vunpack.c.l.b16 %v1068
        %v1325 = vunpack.c.l.b16 %v1069
        %v1326 = vunpack.c.l.b16 %v1070
        %v1327 = vunpack.c.l.b16 %v1071
        %v1328 = vunpack.c.l.b16 %v1072
        %v1329 = vunpack.c.l.b16 %v1073
        %v1330 = vpack.c.b16 %v1203, %v1202
        %v1331 = vpack.c.b16 %v1205, %v1204
        %v1332 = vpack.c.b16 %v1207, %v1206
        %v1333 = vpack.c.b16 %v1209, %v1208
        %v1334 = vpack.c.b16 %v1211, %v1210
        %v1335 = vpack.c.b16 %v1213, %v1212
        %v1336 = vpack.c.b16 %v1215, %v1214
        %v1337 = vpack.c.b16 %v1217, %v1216
        %v1338 = vpack.c.b16 %v1219, %v1218
        %v1339 = vpack.c.b16 %v1221, %v1220
        %v1340 = vpack.c.b16 %v1223, %v1222
        %v1341 = vpack.c.b16 %v1225, %v1224
        %v1342 = vpack.c.b16 %v1227, %v1226
        %v1343 = vpack.c.b16 %v1229, %v1228
        %v1344 = vpack.c.b16 %v1231, %v1230
        %v1345 = vpack.c.b16 %v1233, %v1232
        %v1346 = vpack.c.b16 %v1235, %v1234
        %v1347 = vpack.c.b16 %v1237, %v1236
        %v1348 = vpack.c.b16 %v1239, %v1238
        %v1349 = vpack.c.b16 %v1241, %v1240
        %v1350 = vpack.c.b16 %v1243, %v1242
        %v1351 = vpack.c.b16 %v1245, %v1244
        %v1352 = vpack.c.b16 %v1247, %v1246
        %v1353 = vpack.c.b16 %v1249, %v1248
        %v1354 = vpack.c.b16 %v1251, %v1250
        %v1355 = vpack.c.b16 %v1253, %v1252
        %v1356 = vpack.c.b16 %v1255, %v1254
        %v1357 = vpack.c.b16 %v1257, %v1256
        %v1358 = vpack.c.b16 %v1259, %v1258
        %v1359 = vpack.c.b16 %v1261, %v1260
        %v1360 = vpack.c.b16 %v1263, %v1262
        %v1361 = vpack.c.b16 %v1265, %v1264
        %v1362 = vpack.c.b16 %v1267, %v1266
        %v1363 = vpack.c.b16 %v1269, %v1268
        %v1364 = vpack.c.b16 %v1271, %v1270
        %v1365 = vpack.c.b16 %v1273, %v1272
        %v1366 = vpack.c.b16 %v1275, %v1274
        %v1367 = vpack.c.b16 %v1277, %v1276
        %v1368 = vpack.c.b16 %v1279, %v1278
        %v1369 = vpack.c.b16 %v1281, %v1280
        %v1370 = vpack.c.b16 %v1283, %v1282
        %v1371 = vpack.c.b16 %v1285, %v1284
        %v1372 = vpack.c.b16 %v1287, %v1286
        %v1373 = vpack.c.b16 %v1289, %v1288
        %v1374 = vpack.c.b16 %v1291, %v1290
        %v1375 = vpack.c.b16 %v1293, %v1292
        %v1376 = vpack.c.b16 %v1295, %v1294
        %v1377 = vpack.c.b16 %v1297, %v1296
        %v1378 = vpack.c.b16 %v1299, %v1298
        %v1379 = vpack.c.b16 %v1301, %v1300
        %v1380 = vpack.c.b16 %v1303, %v1302
        %v1381 = vpack.c.b16 %v1305, %v1304
        %v1382 = vpack.c.b16 %v1307, %v1306
        %v1383 = vpack.c.b16 %v1309, %v1308
        %v1384 = vpack.c.b16 %v1311, %v1310
        %v1385 = vpack.c.b16 %v1313, %v1312
        %v1386 = vpack.c.b16 %v1315, %v1314
        %v1387 = vpack.c.b16 %v1317, %v1316
        %v1388 = vpack.c.b16 %v1319, %v1318
        %v1389 = vpack.c.b16 %v1321, %v1320
        %v1390 = vpack.c.b16 %v1323, %v1322
        %v1391 = vpack.c.b16 %v1325, %v1324
        %v1392 = vpack.c.b16 %v1327, %v1326
        %v1393 = vpack.c.b16 %v1329, %v1328
        %1458 = vmatprep.subr.bf16.mxu0 0
        %1459 = vmatpush1.bf16.msra.mxu0 %v1330
        %1460 = vmatprep.subr.bf16.mxu0 0
        %1461 = vmatpush1.bf16.msra.mxu0 %v1331
        %1462 = vmatprep.subr.bf16.mxu0 0
        %1463 = vmatpush1.bf16.msra.mxu0 %v1332
        %1464 = vmatprep.subr.bf16.mxu0 0
        %1465 = vmatpush1.bf16.msra.mxu0 %v1333
        %1466 = vmatprep.subr.bf16.mxu0 0
        %1467 = vmatpush1.bf16.msra.mxu0 %v1334
        %1468 = vmatprep.subr.bf16.mxu0 0
        %1469 = vmatpush1.bf16.msra.mxu0 %v1335
        %1470 = vmatprep.subr.bf16.mxu0 0
        %1471 = vmatpush1.bf16.msra.mxu0 %v1336
        %1472 = vmatprep.subr.bf16.mxu0 0
        %1473 = vmatpush1.bf16.msra.mxu0 %v1337
        %1474 = vmatprep.subr.bf16.mxu0 0
        %1475 = vmatpush1.bf16.msra.mxu0 %v1338
        %1476 = vmatprep.subr.bf16.mxu0 0
        %1477 = vmatpush1.bf16.msra.mxu0 %v1339
        %1478 = vmatprep.subr.bf16.mxu0 0
        %1479 = vmatpush1.bf16.msra.mxu0 %v1340
        %1480 = vmatprep.subr.bf16.mxu0 0
        %1481 = vmatpush1.bf16.msra.mxu0 %v1341
        %1482 = vmatprep.subr.bf16.mxu0 0
        %1483 = vmatpush1.bf16.msra.mxu0 %v1342
        %1484 = vmatprep.subr.bf16.mxu0 0
        %1485 = vmatpush1.bf16.msra.mxu0 %v1343
        %1486 = vmatprep.subr.bf16.mxu0 0
        %1487 = vmatpush1.bf16.msra.mxu0 %v1344
        %1488 = vmatprep.subr.bf16.mxu0 0
        %1489 = vmatpush1.bf16.msra.mxu0 %v1345
        %1490 = vmatprep.mubr.bf16.mxu0 %v939
        %1491 = vmatmul.mubr.bf16.gmra.mrb[0].mxu0 %v938
        %v1492 = vpop.f32.mrb[0].mxu0
        %v1493 = vadd.f32 0.0, %v1492
        %v1494 = vpop.f32.mrb[0].mxu0
        %v1495 = vpop.f32.mrb[0].mxu0
        %v1496 = vadd.f32 0.0, %v1495
        %v1497 = vpop.f32.mrb[0].mxu0
        %1498 = vdwg.mxu0
        %1499 = vmatprep.subr.bf16.mxu0 0
        %1500 = vmatpush1.bf16.msra.mxu0 %v1346
        %1501 = vmatprep.subr.bf16.mxu0 0
        %1502 = vmatpush1.bf16.msra.mxu0 %v1347
        %1503 = vmatprep.subr.bf16.mxu0 0
        %1504 = vmatpush1.bf16.msra.mxu0 %v1348
        %1505 = vmatprep.subr.bf16.mxu0 0
        %1506 = vmatpush1.bf16.msra.mxu0 %v1349
        %1507 = vmatprep.subr.bf16.mxu0 0
        %1508 = vmatpush1.bf16.msra.mxu0 %v1350
        %1509 = vmatprep.subr.bf16.mxu0 0
        %1510 = vmatpush1.bf16.msra.mxu0 %v1351
        %1511 = vmatprep.subr.bf16.mxu0 0
        %1512 = vmatpush1.bf16.msra.mxu0 %v1352
        %1513 = vmatprep.subr.bf16.mxu0 0
        %1514 = vmatpush1.bf16.msra.mxu0 %v1353
        %1515 = vmatprep.subr.bf16.mxu0 0
        %1516 = vmatpush1.bf16.msra.mxu0 %v1354
        %1517 = vmatprep.subr.bf16.mxu0 0
        %1518 = vmatpush1.bf16.msra.mxu0 %v1355
        %1519 = vmatprep.subr.bf16.mxu0 0
        %1520 = vmatpush1.bf16.msra.mxu0 %v1356
        %1521 = vmatprep.subr.bf16.mxu0 0
        %1522 = vmatpush1.bf16.msra.mxu0 %v1357
        %1523 = vmatprep.subr.bf16.mxu0 0
        %1524 = vmatpush1.bf16.msra.mxu0 %v1358
        %1525 = vmatprep.subr.bf16.mxu0 0
        %1526 = vmatpush1.bf16.msra.mxu0 %v1359
        %1527 = vmatprep.subr.bf16.mxu0 0
        %1528 = vmatpush1.bf16.msra.mxu0 %v1360
        %1529 = vmatprep.subr.bf16.mxu0 0
        %1530 = vmatpush1.bf16.msra.mxu0 %v1361
        %1531 = vmatprep.mubr.bf16.mxu0 %v941
        %1532 = vmatmul.mubr.bf16.gmra.mrb[0].mxu0 %v940
        %v1533 = vpop.f32.mrb[0].mxu0
        %v1534 = vadd.f32 %v1493, %v1533
        %v1535 = vpop.f32.mrb[0].mxu0
        %v1536 = vpop.f32.mrb[0].mxu0
        %v1537 = vadd.f32 %v1496, %v1536
        %v1538 = vpop.f32.mrb[0].mxu0
        %1539 = vdwg.mxu0
        %1540 = vmatprep.subr.bf16.mxu0 0
        %1541 = vmatpush1.bf16.msra.mxu0 %v1362
        %1542 = vmatprep.subr.bf16.mxu0 0
        %1543 = vmatpush1.bf16.msra.mxu0 %v1363
        %1544 = vmatprep.subr.bf16.mxu0 0
        %1545 = vmatpush1.bf16.msra.mxu0 %v1364
        %1546 = vmatprep.subr.bf16.mxu0 0
        %1547 = vmatpush1.bf16.msra.mxu0 %v1365
        %1548 = vmatprep.subr.bf16.mxu0 0
        %1549 = vmatpush1.bf16.msra.mxu0 %v1366
        %1550 = vmatprep.subr.bf16.mxu0 0
        %1551 = vmatpush1.bf16.msra.mxu0 %v1367
        %1552 = vmatprep.subr.bf16.mxu0 0
        %1553 = vmatpush1.bf16.msra.mxu0 %v1368
        %1554 = vmatprep.subr.bf16.mxu0 0
        %1555 = vmatpush1.bf16.msra.mxu0 %v1369
        %1556 = vmatprep.subr.bf16.mxu0 0
        %1557 = vmatpush1.bf16.msra.mxu0 %v1370
        %1558 = vmatprep.subr.bf16.mxu0 0
        %1559 = vmatpush1.bf16.msra.mxu0 %v1371
        %1560 = vmatprep.subr.bf16.mxu0 0
        %1561 = vmatpush1.bf16.msra.mxu0 %v1372
        %1562 = vmatprep.subr.bf16.mxu0 0
        %1563 = vmatpush1.bf16.msra.mxu0 %v1373
        %1564 = vmatprep.subr.bf16.mxu0 0
        %1565 = vmatpush1.bf16.msra.mxu0 %v1374
        %1566 = vmatprep.subr.bf16.mxu0 0
        %1567 = vmatpush1.bf16.msra.mxu0 %v1375
        %1568 = vmatprep.subr.bf16.mxu0 0
        %1569 = vmatpush1.bf16.msra.mxu0 %v1376
        %1570 = vmatprep.subr.bf16.mxu0 0
        %1571 = vmatpush1.bf16.msra.mxu0 %v1377
        %1572 = vmatprep.mubr.bf16.mxu0 %v943
        %1573 = vmatmul.mubr.bf16.gmra.mrb[0].mxu0 %v942
        %v1574 = vpop.f32.mrb[0].mxu0
        %v1575 = vadd.f32 %v1534, %v1574
        %v1576 = vpop.f32.mrb[0].mxu0
        %v1577 = vpop.f32.mrb[0].mxu0
        %v1578 = vadd.f32 %v1537, %v1577
        %v1579 = vpop.f32.mrb[0].mxu0
        %1580 = vdwg.mxu0
        %1581 = vmatprep.subr.bf16.mxu0 0
        %1582 = vmatpush1.bf16.msra.mxu0 %v1378
        %1583 = vmatprep.subr.bf16.mxu0 0
        %1584 = vmatpush1.bf16.msra.mxu0 %v1379
        %1585 = vmatprep.subr.bf16.mxu0 0
        %1586 = vmatpush1.bf16.msra.mxu0 %v1380
        %1587 = vmatprep.subr.bf16.mxu0 0
        %1588 = vmatpush1.bf16.msra.mxu0 %v1381
        %1589 = vmatprep.subr.bf16.mxu0 0
        %1590 = vmatpush1.bf16.msra.mxu0 %v1382
        %1591 = vmatprep.subr.bf16.mxu0 0
        %1592 = vmatpush1.bf16.msra.mxu0 %v1383
        %1593 = vmatprep.subr.bf16.mxu0 0
        %1594 = vmatpush1.bf16.msra.mxu0 %v1384
        %1595 = vmatprep.subr.bf16.mxu0 0
        %1596 = vmatpush1.bf16.msra.mxu0 %v1385
        %1597 = vmatprep.subr.bf16.mxu0 0
        %1598 = vmatpush1.bf16.msra.mxu0 %v1386
        %1599 = vmatprep.subr.bf16.mxu0 0
        %1600 = vmatpush1.bf16.msra.mxu0 %v1387
        %1601 = vmatprep.subr.bf16.mxu0 0
        %1602 = vmatpush1.bf16.msra.mxu0 %v1388
        %1603 = vmatprep.subr.bf16.mxu0 0
        %1604 = vmatpush1.bf16.msra.mxu0 %v1389
        %1605 = vmatprep.subr.bf16.mxu0 0
        %1606 = vmatpush1.bf16.msra.mxu0 %v1390
        %1607 = vmatprep.subr.bf16.mxu0 0
        %1608 = vmatpush1.bf16.msra.mxu0 %v1391
        %1609 = vmatprep.subr.bf16.mxu0 0
        %1610 = vmatpush1.bf16.msra.mxu0 %v1392
        %1611 = vmatprep.subr.bf16.mxu0 0
        %1612 = vmatpush1.bf16.msra.mxu0 %v1393
        %1613 = vmatprep.mubr.bf16.mxu0 %v945
        %1614 = vmatmul.mubr.bf16.gmra.mrb[0].mxu0 %v944
        %v1615 = vpop.f32.mrb[0].mxu0
        %v1616 = vadd.f32 %v1575, %v1615
        %v1617 = vpop.f32.mrb[0].mxu0
        %v1618 = vpop.f32.mrb[0].mxu0
        %v1619 = vadd.f32 %v1578, %v1618
        %v1620 = vpop.f32.mrb[0].mxu0
        %1621 = vdwg.mxu0
        %v1622 = vpack.c.bf16 %v1619, %v1616
        %v1624 = vunpack.c.l.b16 %v1622
        %v1625 = vunpack.c.h.b16 %v1622
        %v1626 = vpack.c.b16 %v1624, %v1624
        %v1627 = vpack.c.b16 %v1625, %v1625
        %1630 = vst [vmem:[%s772] sm:$0xf] %v1626
        %1631 = vst [vmem:[%s772 + $0x4] sm:$0xf] %v1627
        %s1632 = sand.u32 %s131, 1
        %s1633 = sand.u32 %s131, 1
        %s1634 = smul.addr %s1633, 8
        %s1635 = scalar_lea.vmem [#allocation3], %s1634
        // Predicated region
        $region78: #{densenet_forward.208} parent=72 // pred_check
          %p1636 = pneg %p141
        $region79: #{densenet_forward.208} parent=72 // pred_check_branch
          %1638 = sbr.rel (%p1636) target = $region81
        $region80: #{densenet_forward.208} parent=72 // pred_region
          %s1639 = smul.u32 2, %s19
          %s1640 = smul.addr %s1639, 4
          %s1641 = sadd.s32 %s20, %s1640
          %s1642 = smul.addr %s1641, 4
          %s1643 = scalar_lea.vmem %s4, %s1642
          // Predicated region
          $region82: #{densenet_forward.208} parent=80 // pred_check
            _
          $region83: #{densenet_forward.208} parent=80 // pred_check_branch
            %1645 = sbr.rel (0) target = $region85
          $region84: #{densenet_forward.208} parent=80 // pred_region
            // Predicated region
            $region86: #{densenet_forward.208} parent=84 // pred_check
              _
            $region87: #{densenet_forward.208} parent=84 // pred_check_branch
              %1647 = sbr.rel target = $region89
            $region88: #{densenet_forward.208} parent=84 // pred_region
              // Predicated region
              $region101: #{densenet_forward.208} parent=88 // pred_check
                _
              $region102: #{densenet_forward.208} parent=88 // pred_check_branch
                %1664 = sbr.rel (0) target = $region104
              $region103: #{densenet_forward.208} parent=88 // pred_region
                loop: start=0, step=1, limit=1
                $region105: #{densenet_forward.208} parent=103 // loop_pre_header
                  _
                $region106: #{densenet_forward.208} parent=103 // loop_header
                  %s1666 = sphi 0, %s1670
                  %p1667 = scmp.ge.s32.totalorder %s1666, 1
                  %s1671 = sphi %s1635, %s1635
                  %s1672 = sphi %s1643, %s1643
                $region107: #{densenet_forward.208} parent=103 // loop_header_branch
                  %1669 = sbr.rel (%p1667) target = $region111
                $region108: #{densenet_forward.208} parent=103 // loop_body
                  _
                $region109: #{densenet_forward.208} parent=103 // loop_footer
                  %s1670 = sadd.s32 1, %s1666
                $region110: #{densenet_forward.208} parent=103 // loop_footer_branch
                  %1665 = sbr.rel target = $region106
                $region111: #{densenet_forward.208} parent=103 // loop_exit
                  _
                loop: start=0, step=1, limit=1
                $region112: #{densenet_forward.208} parent=103 // loop_pre_header
                  _
                $region113: #{densenet_forward.208} parent=103 // loop_header
                  %s1675 = sphi 0, %s1679
                  %p1676 = scmp.ge.s32.totalorder %s1675, 1
                  %s1680 = sphi %s1635, %s1635
                  %s1681 = sphi %s1643, %s1643
                $region114: #{densenet_forward.208} parent=103 // loop_header_branch
                  %1678 = sbr.rel (%p1676) target = $region118
                $region115: #{densenet_forward.208} parent=103 // loop_body
                  %v1682 = vld [vmem:[%s1680] sm:$0xf]
                  %1683 = vst [vmem:[%s1681] sm:$0xf] %v1682
                  %v1684 = vld [vmem:[%s1680 + $0x4] sm:$0xf]
                  %1685 = vst [vmem:[%s1681 + $0x10] sm:$0xf] %v1684
                $region116: #{densenet_forward.208} parent=103 // loop_footer
                  %s1679 = sadd.s32 1, %s1675
                $region117: #{densenet_forward.208} parent=103 // loop_footer_branch
                  %1674 = sbr.rel target = $region113
                $region118: #{densenet_forward.208} parent=103 // loop_exit
                  _
              $region104: #{densenet_forward.208} parent=88 // pred_fallthru
                _
            $region89: #{densenet_forward.208} parent=84 // pred_fallthru
              _
            // Predicated region
            $region90: #{densenet_forward.208} parent=84 // pred_check
              _
            $region91: #{densenet_forward.208} parent=84 // pred_check_branch
              %1649 = sbr.rel (0) target = $region93
            $region92: #{densenet_forward.208} parent=84 // pred_region
              loop: start=0, step=1, limit=1
              $region94: #{densenet_forward.208} parent=92 // loop_pre_header
                _
              $region95: #{densenet_forward.208} parent=92 // loop_header
                %s1652 = sphi 0, %s1656
                %p1653 = scmp.ge.s32.totalorder %s1652, 1
                %s1657 = sphi %s1635, %s1635
                %s1658 = sphi %s1643, %s1643
              $region96: #{densenet_forward.208} parent=92 // loop_header_branch
                %1655 = sbr.rel (%p1653) target = $region100
              $region97: #{densenet_forward.208} parent=92 // loop_body
                %v1659 = vld [vmem:[%s1657] sm:$0xf]
                %1660 = vst [vmem:[%s1658] sm:$0xf] %v1659
                %v1661 = vld [vmem:[%s1657 + $0x4] sm:$0xf]
                %1662 = vst [vmem:[%s1658 + $0x10] sm:$0xf] %v1661
              $region98: #{densenet_forward.208} parent=92 // loop_footer
                %s1656 = sadd.s32 1, %s1652
              $region99: #{densenet_forward.208} parent=92 // loop_footer_branch
                %1651 = sbr.rel target = $region95
              $region100: #{densenet_forward.208} parent=92 // loop_exit
                _
            $region93: #{densenet_forward.208} parent=84 // pred_fallthru
              _
          $region85: #{densenet_forward.208} parent=80 // pred_fallthru
            _
          %1686 = vnop
        $region81: #{densenet_forward.208} parent=72 // pred_fallthru
          _
      $region73: #{densenet_forward.208} parent=5 // pred_fallthru
        _
      %p1687 = scmp.le.s32.totalorder 2, %s10
      // Predicated region
      $region119: #{densenet_forward.208} parent=5 // pred_check
        %p1688 = pneg %p1687
      $region120: #{densenet_forward.208} parent=5 // pred_check_branch
        %1690 = sbr.rel (%p1688) target = $region122
      $region121: #{densenet_forward.208} parent=5 // pred_region
        %s1691 = ssub.s32 %s10, 2
        // Predicated region
        $region123: #{densenet_forward.208} parent=121 // pred_check
          %p1692 = pneg %p147
        $region124: #{densenet_forward.208} parent=121 // pred_check_branch
          %1694 = sbr.rel (%p1692) target = $region126
        $region125: #{densenet_forward.208} parent=121 // pred_region
          %s1695 = sand.u32 %s132, 1
          %s1696 = sand.u32 %s132, 1
          %s1697 = smul.addr %s1696, 8
          %s1698 = scalar_lea.vmem [#allocation3], %s1697
        $region126: #{densenet_forward.208} parent=121 // pred_fallthru
          _
      $region122: #{densenet_forward.208} parent=5 // pred_fallthru
        _
    $region6: #{densenet_forward.208} parent=1 // loop_footer
      %s14 = sadd.s32 1, %s10
    $region7: #{densenet_forward.208} parent=1 // loop_footer_branch
      %9 = sbr.rel target = $region3
    $region8: #{densenet_forward.208} parent=1 // loop_exit
      _

// kernel: densenet_forward.241
$region0: #{densenet_forward.241}
  #allocation0 [shape = 'u32[]', space=smem, size = 0x4, offset = 0x4, fixed_abs, tag = 'smem constant byte address 0x4 - core index']
  #allocation1 [shape = 'u32[144,128]{1,0:T(1,128)}', space=vmem, size = 0x12000, scoped, tag = 'internal scratch']
  %s0 = inlined_call_operand.vmem [shape: bf16[16,1024], index: 0, kind: input, shape index: {}]
  %s1 = inlined_call_operand.vmem [shape: f32[1,1024], index: 1, kind: input, shape index: {}]
  %s2 = inlined_call_operand.vmem [shape: f32[1,1024], index: 2, kind: input, shape index: {}]
  %s3 = inlined_call_operand.vmem [shape: bf16[1024,128], index: 3, kind: input, shape index: {}]
  %s4 = inlined_call_operand.vmem [shape: f32[16,128], index: 4, kind: output, shape index: {}]
  %s5 = sld [smem:[#allocation0]]
  $region26: #{densenet_forward.241} parent=0
    _
  %s7 = ssub.s32 1, %s5
  %s8 = scalar_select 0, %s7, %s5
  // Predicated region
  $region2: #{densenet_forward.241} parent=0 // pred_check
    _
  $region3: #{densenet_forward.241} parent=0 // pred_check_branch
    %10 = sbr.rel (0) target = $region5
  $region4: #{densenet_forward.241} parent=0 // pred_region
    _
  $region5: #{densenet_forward.241} parent=0 // pred_fallthru
    _
  // Predicated region
  $region6: #{densenet_forward.241} parent=0 // pred_check
    _
  $region7: #{densenet_forward.241} parent=0 // pred_check_branch
    %12 = sbr.rel (0) target = $region9
  $region8: #{densenet_forward.241} parent=0 // pred_region
    _
  $region9: #{densenet_forward.241} parent=0 // pred_fallthru
    _
  // Predicated region
  $region10: #{densenet_forward.241} parent=0 // pred_check
    _
  $region11: #{densenet_forward.241} parent=0 // pred_check_branch
    %14 = sbr.rel (0) target = $region13
  $region12: #{densenet_forward.241} parent=0 // pred_region
    _
  $region13: #{densenet_forward.241} parent=0 // pred_fallthru
    _
  // Predicated region
  $region14: #{densenet_forward.241} parent=0 // pred_check
    _
  $region15: #{densenet_forward.241} parent=0 // pred_check_branch
    %16 = sbr.rel (0) target = $region17
  $region16: #{densenet_forward.241} parent=0 // pred_region
    _
  $region17: #{densenet_forward.241} parent=0 // pred_fallthru
    _
  %v18 = vld [vmem:[%s0] sm:$0xff]
  %v19 = vld [vmem:[%s0 + $0x8] sm:$0xff]
  %v20 = vld [vmem:[%s0 + $0x10] sm:$0xff]
  %v21 = vld [vmem:[%s0 + $0x18] sm:$0xff]
  %v22 = vld [vmem:[%s0 + $0x20] sm:$0xff]
  %v23 = vld [vmem:[%s0 + $0x28] sm:$0xff]
  %v24 = vld [vmem:[%s0 + $0x30] sm:$0xff]
  %v25 = vld [vmem:[%s0 + $0x38] sm:$0xff]
  %v26 = vunpack.c.l.bf16 %v18
  %v27 = vunpack.c.h.bf16 %v18
  %v28 = vunpack.c.l.bf16 %v19
  %v29 = vunpack.c.h.bf16 %v19
  %v30 = vunpack.c.l.bf16 %v20
  %v31 = vunpack.c.h.bf16 %v20
  %v32 = vunpack.c.l.bf16 %v21
  %v33 = vunpack.c.h.bf16 %v21
  %v34 = vunpack.c.l.bf16 %v22
  %v35 = vunpack.c.h.bf16 %v22
  %v36 = vunpack.c.l.bf16 %v23
  %v37 = vunpack.c.h.bf16 %v23
  %v38 = vunpack.c.l.bf16 %v24
  %v39 = vunpack.c.h.bf16 %v24
  %v40 = vunpack.c.l.bf16 %v25
  %v41 = vunpack.c.h.bf16 %v25
  %v42 = vld [vmem:[%s1] sm:$0xff]
  %v44 = vlaneseq
  %v45 = vshrl.u32 %v44, 7
  %v46 = vsub.s32 0, %v45
  %v47 = vrot.slane %v42, %v46
  %v48 = vlaneseq
  %v49 = vshrl.u32 %v48, 7
  %v50 = vsub.s32 1, %v49
  %v51 = vrot.slane %v42, %v50
  %v52 = vlaneseq
  %v53 = vshrl.u32 %v52, 7
  %v54 = vsub.s32 2, %v53
  %v55 = vrot.slane %v42, %v54
  %v56 = vlaneseq
  %v57 = vshrl.u32 %v56, 7
  %v58 = vsub.s32 3, %v57
  %v59 = vrot.slane %v42, %v58
  %v60 = vlaneseq
  %v61 = vshrl.u32 %v60, 7
  %v62 = vsub.s32 4, %v61
  %v63 = vrot.slane %v42, %v62
  %v64 = vlaneseq
  %v65 = vshrl.u32 %v64, 7
  %v66 = vsub.s32 5, %v65
  %v67 = vrot.slane %v42, %v66
  %v68 = vlaneseq
  %v69 = vshrl.u32 %v68, 7
  %v70 = vsub.s32 6, %v69
  %v71 = vrot.slane %v42, %v70
  %v72 = vlaneseq
  %v73 = vshrl.u32 %v72, 7
  %v74 = vsub.s32 7, %v73
  %v75 = vrot.slane %v42, %v74
  %v84 = vmul.f32 %v26, %v47
  %v85 = vmul.f32 %v27, %v51
  %v86 = vmul.f32 %v28, %v55
  %v87 = vmul.f32 %v29, %v59
  %v88 = vmul.f32 %v30, %v63
  %v89 = vmul.f32 %v31, %v67
  %v90 = vmul.f32 %v32, %v71
  %v91 = vmul.f32 %v33, %v75
  %v92 = vmul.f32 %v34, %v47
  %v93 = vmul.f32 %v35, %v51
  %v94 = vmul.f32 %v36, %v55
  %v95 = vmul.f32 %v37, %v59
  %v96 = vmul.f32 %v38, %v63
  %v97 = vmul.f32 %v39, %v67
  %v98 = vmul.f32 %v40, %v71
  %v99 = vmul.f32 %v41, %v75
  %v100 = vld [vmem:[%s2] sm:$0xff]
  %v102 = vlaneseq
  %v103 = vshrl.u32 %v102, 7
  %v104 = vsub.s32 0, %v103
  %v105 = vrot.slane %v100, %v104
  %v106 = vlaneseq
  %v107 = vshrl.u32 %v106, 7
  %v108 = vsub.s32 1, %v107
  %v109 = vrot.slane %v100, %v108
  %v110 = vlaneseq
  %v111 = vshrl.u32 %v110, 7
  %v112 = vsub.s32 2, %v111
  %v113 = vrot.slane %v100, %v112
  %v114 = vlaneseq
  %v115 = vshrl.u32 %v114, 7
  %v116 = vsub.s32 3, %v115
  %v117 = vrot.slane %v100, %v116
  %v118 = vlaneseq
  %v119 = vshrl.u32 %v118, 7
  %v120 = vsub.s32 4, %v119
  %v121 = vrot.slane %v100, %v120
  %v122 = vlaneseq
  %v123 = vshrl.u32 %v122, 7
  %v124 = vsub.s32 5, %v123
  %v125 = vrot.slane %v100, %v124
  %v126 = vlaneseq
  %v127 = vshrl.u32 %v126, 7
  %v128 = vsub.s32 6, %v127
  %v129 = vrot.slane %v100, %v128
  %v130 = vlaneseq
  %v131 = vshrl.u32 %v130, 7
  %v132 = vsub.s32 7, %v131
  %v133 = vrot.slane %v100, %v132
  %v142 = vadd.f32 %v84, %v105
  %v143 = vadd.f32 %v85, %v109
  %v144 = vadd.f32 %v86, %v113
  %v145 = vadd.f32 %v87, %v117
  %v146 = vadd.f32 %v88, %v121
  %v147 = vadd.f32 %v89, %v125
  %v148 = vadd.f32 %v90, %v129
  %v149 = vadd.f32 %v91, %v133
  %v150 = vadd.f32 %v92, %v105
  %v151 = vadd.f32 %v93, %v109
  %v152 = vadd.f32 %v94, %v113
  %v153 = vadd.f32 %v95, %v117
  %v154 = vadd.f32 %v96, %v121
  %v155 = vadd.f32 %v97, %v125
  %v156 = vadd.f32 %v98, %v129
  %v157 = vadd.f32 %v99, %v133
  %v158 = vmax.f32 %v142, 0.0
  %v159 = vmax.f32 %v143, 0.0
  %v160 = vmax.f32 %v144, 0.0
  %v161 = vmax.f32 %v145, 0.0
  %v162 = vmax.f32 %v146, 0.0
  %v163 = vmax.f32 %v147, 0.0
  %v164 = vmax.f32 %v148, 0.0
  %v165 = vmax.f32 %v149, 0.0
  %v166 = vmax.f32 %v150, 0.0
  %v167 = vmax.f32 %v151, 0.0
  %v168 = vmax.f32 %v152, 0.0
  %v169 = vmax.f32 %v153, 0.0
  %v170 = vmax.f32 %v154, 0.0
  %v171 = vmax.f32 %v155, 0.0
  %v172 = vmax.f32 %v156, 0.0
  %v173 = vmax.f32 %v157, 0.0
  %v174 = vpack.c.bf16 %v166, %v158
  %v175 = vpack.c.bf16 %v167, %v159
  %v176 = vpack.c.bf16 %v168, %v160
  %v177 = vpack.c.bf16 %v169, %v161
  %v178 = vpack.c.bf16 %v170, %v162
  %v179 = vpack.c.bf16 %v171, %v163
  %v180 = vpack.c.bf16 %v172, %v164
  %v181 = vpack.c.bf16 %v173, %v165
  %v182 = vld [vmem:[%s3] sm:$0xf]
  %v183 = vld [vmem:[%s3 + $0x4] sm:$0xf]
  %v184 = vld [vmem:[%s3 + $0x8] sm:$0xf]
  %v185 = vld [vmem:[%s3 + $0xc] sm:$0xf]
  %v186 = vld [vmem:[%s3 + $0x10] sm:$0xf]
  %v187 = vld [vmem:[%s3 + $0x14] sm:$0xf]
  %v188 = vld [vmem:[%s3 + $0x18] sm:$0xf]
  %v189 = vld [vmem:[%s3 + $0x1c] sm:$0xf]
  %v190 = vld [vmem:[%s3 + $0x20] sm:$0xf]
  %v191 = vld [vmem:[%s3 + $0x24] sm:$0xf]
  %v192 = vld [vmem:[%s3 + $0x28] sm:$0xf]
  %v193 = vld [vmem:[%s3 + $0x2c] sm:$0xf]
  %v194 = vld [vmem:[%s3 + $0x30] sm:$0xf]
  %v195 = vld [vmem:[%s3 + $0x34] sm:$0xf]
  %v196 = vld [vmem:[%s3 + $0x38] sm:$0xf]
  %v197 = vld [vmem:[%s3 + $0x3c] sm:$0xf]
  %v198 = vld [vmem:[%s3 + $0x40] sm:$0xf]
  %v199 = vld [vmem:[%s3 + $0x44] sm:$0xf]
  %v200 = vld [vmem:[%s3 + $0x48] sm:$0xf]
  %v201 = vld [vmem:[%s3 + $0x4c] sm:$0xf]
  %v202 = vld [vmem:[%s3 + $0x50] sm:$0xf]
  %v203 = vld [vmem:[%s3 + $0x54] sm:$0xf]
  %v204 = vld [vmem:[%s3 + $0x58] sm:$0xf]
  %v205 = vld [vmem:[%s3 + $0x5c] sm:$0xf]
  %v206 = vld [vmem:[%s3 + $0x60] sm:$0xf]
  %v207 = vld [vmem:[%s3 + $0x64] sm:$0xf]
  %v208 = vld [vmem:[%s3 + $0x68] sm:$0xf]
  %v209 = vld [vmem:[%s3 + $0x6c] sm:$0xf]
  %v210 = vld [vmem:[%s3 + $0x70] sm:$0xf]
  %v211 = vld [vmem:[%s3 + $0x74] sm:$0xf]
  %v212 = vld [vmem:[%s3 + $0x78] sm:$0xf]
  %v213 = vld [vmem:[%s3 + $0x7c] sm:$0xf]
  %v214 = vld [vmem:[%s3 + $0x80] sm:$0xf]
  %v215 = vld [vmem:[%s3 + $0x84] sm:$0xf]
  %v216 = vld [vmem:[%s3 + $0x88] sm:$0xf]
  %v217 = vld [vmem:[%s3 + $0x8c] sm:$0xf]
  %v218 = vld [vmem:[%s3 + $0x90] sm:$0xf]
  %v219 = vld [vmem:[%s3 + $0x94] sm:$0xf]
  %v220 = vld [vmem:[%s3 + $0x98] sm:$0xf]
  %v221 = vld [vmem:[%s3 + $0x9c] sm:$0xf]
  %v222 = vld [vmem:[%s3 + $0xa0] sm:$0xf]
  %v223 = vld [vmem:[%s3 + $0xa4] sm:$0xf]
  %v224 = vld [vmem:[%s3 + $0xa8] sm:$0xf]
  %v225 = vld [vmem:[%s3 + $0xac] sm:$0xf]
  %v226 = vld [vmem:[%s3 + $0xb0] sm:$0xf]
  %v227 = vld [vmem:[%s3 + $0xb4] sm:$0xf]
  %v228 = vld [vmem:[%s3 + $0xb8] sm:$0xf]
  %v229 = vld [vmem:[%s3 + $0xbc] sm:$0xf]
  %v230 = vld [vmem:[%s3 + $0xc0] sm:$0xf]
  %v231 = vld [vmem:[%s3 + $0xc4] sm:$0xf]
  %v232 = vld [vmem:[%s3 + $0xc8] sm:$0xf]
  %v233 = vld [vmem:[%s3 + $0xcc] sm:$0xf]
  %v234 = vld [vmem:[%s3 + $0xd0] sm:$0xf]
  %v235 = vld [vmem:[%s3 + $0xd4] sm:$0xf]
  %v236 = vld [vmem:[%s3 + $0xd8] sm:$0xf]
  %v237 = vld [vmem:[%s3 + $0xdc] sm:$0xf]
  %v238 = vld [vmem:[%s3 + $0xe0] sm:$0xf]
  %v239 = vld [vmem:[%s3 + $0xe4] sm:$0xf]
  %v240 = vld [vmem:[%s3 + $0xe8] sm:$0xf]
  %v241 = vld [vmem:[%s3 + $0xec] sm:$0xf]
  %v242 = vld [vmem:[%s3 + $0xf0] sm:$0xf]
  %v243 = vld [vmem:[%s3 + $0xf4] sm:$0xf]
  %v244 = vld [vmem:[%s3 + $0xf8] sm:$0xf]
  %v245 = vld [vmem:[%s3 + $0xfc] sm:$0xf]
  %v246 = vld [vmem:[%s3 + $0x100] sm:$0xf]
  %v247 = vld [vmem:[%s3 + $0x104] sm:$0xf]
  %v248 = vld [vmem:[%s3 + $0x108] sm:$0xf]
  %v249 = vld [vmem:[%s3 + $0x10c] sm:$0xf]
  %v250 = vld [vmem:[%s3 + $0x110] sm:$0xf]
  %v251 = vld [vmem:[%s3 + $0x114] sm:$0xf]
  %v252 = vld [vmem:[%s3 + $0x118] sm:$0xf]
  %v253 = vld [vmem:[%s3 + $0x11c] sm:$0xf]
  %v254 = vld [vmem:[%s3 + $0x120] sm:$0xf]
  %v255 = vld [vmem:[%s3 + $0x124] sm:$0xf]
  %v256 = vld [vmem:[%s3 + $0x128] sm:$0xf]
  %v257 = vld [vmem:[%s3 + $0x12c] sm:$0xf]
  %v258 = vld [vmem:[%s3 + $0x130] sm:$0xf]
  %v259 = vld [vmem:[%s3 + $0x134] sm:$0xf]
  %v260 = vld [vmem:[%s3 + $0x138] sm:$0xf]
  %v261 = vld [vmem:[%s3 + $0x13c] sm:$0xf]
  %v262 = vld [vmem:[%s3 + $0x140] sm:$0xf]
  %v263 = vld [vmem:[%s3 + $0x144] sm:$0xf]
  %v264 = vld [vmem:[%s3 + $0x148] sm:$0xf]
  %v265 = vld [vmem:[%s3 + $0x14c] sm:$0xf]
  %v266 = vld [vmem:[%s3 + $0x150] sm:$0xf]
  %v267 = vld [vmem:[%s3 + $0x154] sm:$0xf]
  %v268 = vld [vmem:[%s3 + $0x158] sm:$0xf]
  %v269 = vld [vmem:[%s3 + $0x15c] sm:$0xf]
  %v270 = vld [vmem:[%s3 + $0x160] sm:$0xf]
  %v271 = vld [vmem:[%s3 + $0x164] sm:$0xf]
  %v272 = vld [vmem:[%s3 + $0x168] sm:$0xf]
  %v273 = vld [vmem:[%s3 + $0x16c] sm:$0xf]
  %v274 = vld [vmem:[%s3 + $0x170] sm:$0xf]
  %v275 = vld [vmem:[%s3 + $0x174] sm:$0xf]
  %v276 = vld [vmem:[%s3 + $0x178] sm:$0xf]
  %v277 = vld [vmem:[%s3 + $0x17c] sm:$0xf]
  %v278 = vld [vmem:[%s3 + $0x180] sm:$0xf]
  %v279 = vld [vmem:[%s3 + $0x184] sm:$0xf]
  %v280 = vld [vmem:[%s3 + $0x188] sm:$0xf]
  %v281 = vld [vmem:[%s3 + $0x18c] sm:$0xf]
  %v282 = vld [vmem:[%s3 + $0x190] sm:$0xf]
  %v283 = vld [vmem:[%s3 + $0x194] sm:$0xf]
  %v284 = vld [vmem:[%s3 + $0x198] sm:$0xf]
  %v285 = vld [vmem:[%s3 + $0x19c] sm:$0xf]
  %v286 = vld [vmem:[%s3 + $0x1a0] sm:$0xf]
  %v287 = vld [vmem:[%s3 + $0x1a4] sm:$0xf]
  %v288 = vld [vmem:[%s3 + $0x1a8] sm:$0xf]
  %v289 = vld [vmem:[%s3 + $0x1ac] sm:$0xf]
  %v290 = vld [vmem:[%s3 + $0x1b0] sm:$0xf]
  %v291 = vld [vmem:[%s3 + $0x1b4] sm:$0xf]
  %v292 = vld [vmem:[%s3 + $0x1b8] sm:$0xf]
  %v293 = vld [vmem:[%s3 + $0x1bc] sm:$0xf]
  %v294 = vld [vmem:[%s3 + $0x1c0] sm:$0xf]
  %v295 = vld [vmem:[%s3 + $0x1c4] sm:$0xf]
  %v296 = vld [vmem:[%s3 + $0x1c8] sm:$0xf]
  %v297 = vld [vmem:[%s3 + $0x1cc] sm:$0xf]
  %v298 = vld [vmem:[%s3 + $0x1d0] sm:$0xf]
  %v299 = vld [vmem:[%s3 + $0x1d4] sm:$0xf]
  %v300 = vld [vmem:[%s3 + $0x1d8] sm:$0xf]
  %v301 = vld [vmem:[%s3 + $0x1dc] sm:$0xf]
  %v302 = vld [vmem:[%s3 + $0x1e0] sm:$0xf]
  %v303 = vld [vmem:[%s3 + $0x1e4] sm:$0xf]
  %v304 = vld [vmem:[%s3 + $0x1e8] sm:$0xf]
  %v305 = vld [vmem:[%s3 + $0x1ec] sm:$0xf]
  %v306 = vld [vmem:[%s3 + $0x1f0] sm:$0xf]
  %v307 = vld [vmem:[%s3 + $0x1f4] sm:$0xf]
  %v308 = vld [vmem:[%s3 + $0x1f8] sm:$0xf]
  %v309 = vld [vmem:[%s3 + $0x1fc] sm:$0xf]
  %v438 = vunpack.c.l.b16 %v182
  %v439 = vunpack.c.l.b16 %v183
  %v440 = vunpack.c.l.b16 %v184
  %v441 = vunpack.c.l.b16 %v185
  %v442 = vunpack.c.l.b16 %v186
  %v443 = vunpack.c.l.b16 %v187
  %v444 = vunpack.c.l.b16 %v188
  %v445 = vunpack.c.l.b16 %v189
  %v446 = vunpack.c.l.b16 %v190
  %v447 = vunpack.c.l.b16 %v191
  %v448 = vunpack.c.l.b16 %v192
  %v449 = vunpack.c.l.b16 %v193
  %v450 = vunpack.c.l.b16 %v194
  %v451 = vunpack.c.l.b16 %v195
  %v452 = vunpack.c.l.b16 %v196
  %v453 = vunpack.c.l.b16 %v197
  %v454 = vunpack.c.l.b16 %v198
  %v455 = vunpack.c.l.b16 %v199
  %v456 = vunpack.c.l.b16 %v200
  %v457 = vunpack.c.l.b16 %v201
  %v458 = vunpack.c.l.b16 %v202
  %v459 = vunpack.c.l.b16 %v203
  %v460 = vunpack.c.l.b16 %v204
  %v461 = vunpack.c.l.b16 %v205
  %v462 = vunpack.c.l.b16 %v206
  %v463 = vunpack.c.l.b16 %v207
  %v464 = vunpack.c.l.b16 %v208
  %v465 = vunpack.c.l.b16 %v209
  %v466 = vunpack.c.l.b16 %v210
  %v467 = vunpack.c.l.b16 %v211
  %v468 = vunpack.c.l.b16 %v212
  %v469 = vunpack.c.l.b16 %v213
  %v470 = vunpack.c.l.b16 %v214
  %v471 = vunpack.c.l.b16 %v215
  %v472 = vunpack.c.l.b16 %v216
  %v473 = vunpack.c.l.b16 %v217
  %v474 = vunpack.c.l.b16 %v218
  %v475 = vunpack.c.l.b16 %v219
  %v476 = vunpack.c.l.b16 %v220
  %v477 = vunpack.c.l.b16 %v221
  %v478 = vunpack.c.l.b16 %v222
  %v479 = vunpack.c.l.b16 %v223
  %v480 = vunpack.c.l.b16 %v224
  %v481 = vunpack.c.l.b16 %v225
  %v482 = vunpack.c.l.b16 %v226
  %v483 = vunpack.c.l.b16 %v227
  %v484 = vunpack.c.l.b16 %v228
  %v485 = vunpack.c.l.b16 %v229
  %v486 = vunpack.c.l.b16 %v230
  %v487 = vunpack.c.l.b16 %v231
  %v488 = vunpack.c.l.b16 %v232
  %v489 = vunpack.c.l.b16 %v233
  %v490 = vunpack.c.l.b16 %v234
  %v491 = vunpack.c.l.b16 %v235
  %v492 = vunpack.c.l.b16 %v236
  %v493 = vunpack.c.l.b16 %v237
  %v494 = vunpack.c.l.b16 %v238
  %v495 = vunpack.c.l.b16 %v239
  %v496 = vunpack.c.l.b16 %v240
  %v497 = vunpack.c.l.b16 %v241
  %v498 = vunpack.c.l.b16 %v242
  %v499 = vunpack.c.l.b16 %v243
  %v500 = vunpack.c.l.b16 %v244
  %v501 = vunpack.c.l.b16 %v245
  %v502 = vunpack.c.l.b16 %v246
  %v503 = vunpack.c.l.b16 %v247
  %v504 = vunpack.c.l.b16 %v248
  %v505 = vunpack.c.l.b16 %v249
  %v506 = vunpack.c.l.b16 %v250
  %v507 = vunpack.c.l.b16 %v251
  %v508 = vunpack.c.l.b16 %v252
  %v509 = vunpack.c.l.b16 %v253
  %v510 = vunpack.c.l.b16 %v254
  %v511 = vunpack.c.l.b16 %v255
  %v512 = vunpack.c.l.b16 %v256
  %v513 = vunpack.c.l.b16 %v257
  %v514 = vunpack.c.l.b16 %v258
  %v515 = vunpack.c.l.b16 %v259
  %v516 = vunpack.c.l.b16 %v260
  %v517 = vunpack.c.l.b16 %v261
  %v518 = vunpack.c.l.b16 %v262
  %v519 = vunpack.c.l.b16 %v263
  %v520 = vunpack.c.l.b16 %v264
  %v521 = vunpack.c.l.b16 %v265
  %v522 = vunpack.c.l.b16 %v266
  %v523 = vunpack.c.l.b16 %v267
  %v524 = vunpack.c.l.b16 %v268
  %v525 = vunpack.c.l.b16 %v269
  %v526 = vunpack.c.l.b16 %v270
  %v527 = vunpack.c.l.b16 %v271
  %v528 = vunpack.c.l.b16 %v272
  %v529 = vunpack.c.l.b16 %v273
  %v530 = vunpack.c.l.b16 %v274
  %v531 = vunpack.c.l.b16 %v275
  %v532 = vunpack.c.l.b16 %v276
  %v533 = vunpack.c.l.b16 %v277
  %v534 = vunpack.c.l.b16 %v278
  %v535 = vunpack.c.l.b16 %v279
  %v536 = vunpack.c.l.b16 %v280
  %v537 = vunpack.c.l.b16 %v281
  %v538 = vunpack.c.l.b16 %v282
  %v539 = vunpack.c.l.b16 %v283
  %v540 = vunpack.c.l.b16 %v284
  %v541 = vunpack.c.l.b16 %v285
  %v542 = vunpack.c.l.b16 %v286
  %v543 = vunpack.c.l.b16 %v287
  %v544 = vunpack.c.l.b16 %v288
  %v545 = vunpack.c.l.b16 %v289
  %v546 = vunpack.c.l.b16 %v290
  %v547 = vunpack.c.l.b16 %v291
  %v548 = vunpack.c.l.b16 %v292
  %v549 = vunpack.c.l.b16 %v293
  %v550 = vunpack.c.l.b16 %v294
  %v551 = vunpack.c.l.b16 %v295
  %v552 = vunpack.c.l.b16 %v296
  %v553 = vunpack.c.l.b16 %v297
  %v554 = vunpack.c.l.b16 %v298
  %v555 = vunpack.c.l.b16 %v299
  %v556 = vunpack.c.l.b16 %v300
  %v557 = vunpack.c.l.b16 %v301
  %v558 = vunpack.c.l.b16 %v302
  %v559 = vunpack.c.l.b16 %v303
  %v560 = vunpack.c.l.b16 %v304
  %v561 = vunpack.c.l.b16 %v305
  %v562 = vunpack.c.l.b16 %v306
  %v563 = vunpack.c.l.b16 %v307
  %v564 = vunpack.c.l.b16 %v308
  %v565 = vunpack.c.l.b16 %v309
  %v566 = vpack.c.b16 %v439, %v438
  %v567 = vpack.c.b16 %v441, %v440
  %v568 = vpack.c.b16 %v443, %v442
  %v569 = vpack.c.b16 %v445, %v444
  %v570 = vpack.c.b16 %v447, %v446
  %v571 = vpack.c.b16 %v449, %v448
  %v572 = vpack.c.b16 %v451, %v450
  %v573 = vpack.c.b16 %v453, %v452
  %v574 = vpack.c.b16 %v455, %v454
  %v575 = vpack.c.b16 %v457, %v456
  %v576 = vpack.c.b16 %v459, %v458
  %v577 = vpack.c.b16 %v461, %v460
  %v578 = vpack.c.b16 %v463, %v462
  %v579 = vpack.c.b16 %v465, %v464
  %v580 = vpack.c.b16 %v467, %v466
  %v581 = vpack.c.b16 %v469, %v468
  %v582 = vpack.c.b16 %v471, %v470
  %v583 = vpack.c.b16 %v473, %v472
  %v584 = vpack.c.b16 %v475, %v474
  %v585 = vpack.c.b16 %v477, %v476
  %v586 = vpack.c.b16 %v479, %v478
  %v587 = vpack.c.b16 %v481, %v480
  %v588 = vpack.c.b16 %v483, %v482
  %v589 = vpack.c.b16 %v485, %v484
  %v590 = vpack.c.b16 %v487, %v486
  %v591 = vpack.c.b16 %v489, %v488
  %v592 = vpack.c.b16 %v491, %v490
  %v593 = vpack.c.b16 %v493, %v492
  %v594 = vpack.c.b16 %v495, %v494
  %v595 = vpack.c.b16 %v497, %v496
  %v596 = vpack.c.b16 %v499, %v498
  %v597 = vpack.c.b16 %v501, %v500
  %v598 = vpack.c.b16 %v503, %v502
  %v599 = vpack.c.b16 %v505, %v504
  %v600 = vpack.c.b16 %v507, %v506
  %v601 = vpack.c.b16 %v509, %v508
  %v602 = vpack.c.b16 %v511, %v510
  %v603 = vpack.c.b16 %v513, %v512
  %v604 = vpack.c.b16 %v515, %v514
  %v605 = vpack.c.b16 %v517, %v516
  %v606 = vpack.c.b16 %v519, %v518
  %v607 = vpack.c.b16 %v521, %v520
  %v608 = vpack.c.b16 %v523, %v522
  %v609 = vpack.c.b16 %v525, %v524
  %v610 = vpack.c.b16 %v527, %v526
  %v611 = vpack.c.b16 %v529, %v528
  %v612 = vpack.c.b16 %v531, %v530
  %v613 = vpack.c.b16 %v533, %v532
  %v614 = vpack.c.b16 %v535, %v534
  %v615 = vpack.c.b16 %v537, %v536
  %v616 = vpack.c.b16 %v539, %v538
  %v617 = vpack.c.b16 %v541, %v540
  %v618 = vpack.c.b16 %v543, %v542
  %v619 = vpack.c.b16 %v545, %v544
  %v620 = vpack.c.b16 %v547, %v546
  %v621 = vpack.c.b16 %v549, %v548
  %v622 = vpack.c.b16 %v551, %v550
  %v623 = vpack.c.b16 %v553, %v552
  %v624 = vpack.c.b16 %v555, %v554
  %v625 = vpack.c.b16 %v557, %v556
  %v626 = vpack.c.b16 %v559, %v558
  %v627 = vpack.c.b16 %v561, %v560
  %v628 = vpack.c.b16 %v563, %v562
  %v629 = vpack.c.b16 %v565, %v564
  %694 = vmatprep.subr.bf16.mxu0 0
  %695 = vmatpush1.bf16.msra.mxu0 %v566
  %696 = vmatprep.subr.bf16.mxu0 0
  %697 = vmatpush1.bf16.msra.mxu0 %v567
  %698 = vmatprep.subr.bf16.mxu0 0
  %699 = vmatpush1.bf16.msra.mxu0 %v568
  %700 = vmatprep.subr.bf16.mxu0 0
  %701 = vmatpush1.bf16.msra.mxu0 %v569
  %702 = vmatprep.subr.bf16.mxu0 0
  %703 = vmatpush1.bf16.msra.mxu0 %v570
  %704 = vmatprep.subr.bf16.mxu0 0
  %705 = vmatpush1.bf16.msra.mxu0 %v571
  %706 = vmatprep.subr.bf16.mxu0 0
  %707 = vmatpush1.bf16.msra.mxu0 %v572
  %708 = vmatprep.subr.bf16.mxu0 0
  %709 = vmatpush1.bf16.msra.mxu0 %v573
  %710 = vmatprep.subr.bf16.mxu0 0
  %711 = vmatpush1.bf16.msra.mxu0 %v574
  %712 = vmatprep.subr.bf16.mxu0 0
  %713 = vmatpush1.bf16.msra.mxu0 %v575
  %714 = vmatprep.subr.bf16.mxu0 0
  %715 = vmatpush1.bf16.msra.mxu0 %v576
  %716 = vmatprep.subr.bf16.mxu0 0
  %717 = vmatpush1.bf16.msra.mxu0 %v577
  %718 = vmatprep.subr.bf16.mxu0 0
  %719 = vmatpush1.bf16.msra.mxu0 %v578
  %720 = vmatprep.subr.bf16.mxu0 0
  %721 = vmatpush1.bf16.msra.mxu0 %v579
  %722 = vmatprep.subr.bf16.mxu0 0
  %723 = vmatpush1.bf16.msra.mxu0 %v580
  %724 = vmatprep.subr.bf16.mxu0 0
  %725 = vmatpush1.bf16.msra.mxu0 %v581
  %726 = vmatprep.mubr.bf16.mxu0 %v175
  %727 = vmatmul.mubr.bf16.gmra.mrb[0].mxu0 %v174
  %v728 = vpop.f32.mrb[0].mxu0
  %v729 = vadd.f32 0.0, %v728
  %v730 = vpop.f32.mrb[0].mxu0
  %v731 = vpop.f32.mrb[0].mxu0
  %v732 = vadd.f32 0.0, %v731
  %v733 = vpop.f32.mrb[0].mxu0
  %734 = vdwg.mxu0
  %735 = vmatprep.subr.bf16.mxu0 0
  %736 = vmatpush1.bf16.msra.mxu0 %v582
  %737 = vmatprep.subr.bf16.mxu0 0
  %738 = vmatpush1.bf16.msra.mxu0 %v583
  %739 = vmatprep.subr.bf16.mxu0 0
  %740 = vmatpush1.bf16.msra.mxu0 %v584
  %741 = vmatprep.subr.bf16.mxu0 0
  %742 = vmatpush1.bf16.msra.mxu0 %v585
  %743 = vmatprep.subr.bf16.mxu0 0
  %744 = vmatpush1.bf16.msra.mxu0 %v586
  %745 = vmatprep.subr.bf16.mxu0 0
  %746 = vmatpush1.bf16.msra.mxu0 %v587
  %747 = vmatprep.subr.bf16.mxu0 0
  %748 = vmatpush1.bf16.msra.mxu0 %v588
  %749 = vmatprep.subr.bf16.mxu0 0
  %750 = vmatpush1.bf16.msra.mxu0 %v589
  %751 = vmatprep.subr.bf16.mxu0 0
  %752 = vmatpush1.bf16.msra.mxu0 %v590
  %753 = vmatprep.subr.bf16.mxu0 0
  %754 = vmatpush1.bf16.msra.mxu0 %v591
  %755 = vmatprep.subr.bf16.mxu0 0
  %756 = vmatpush1.bf16.msra.mxu0 %v592
  %757 = vmatprep.subr.bf16.mxu0 0
  %758 = vmatpush1.bf16.msra.mxu0 %v593
  %759 = vmatprep.subr.bf16.mxu0 0
  %760 = vmatpush1.bf16.msra.mxu0 %v594
  %761 = vmatprep.subr.bf16.mxu0 0
  %762 = vmatpush1.bf16.msra.mxu0 %v595
  %763 = vmatprep.subr.bf16.mxu0 0
  %764 = vmatpush1.bf16.msra.mxu0 %v596
  %765 = vmatprep.subr.bf16.mxu0 0
  %766 = vmatpush1.bf16.msra.mxu0 %v597
  %767 = vmatprep.mubr.bf16.mxu0 %v177
  %768 = vmatmul.mubr.bf16.gmra.mrb[0].mxu0 %v176
  %v769 = vpop.f32.mrb[0].mxu0
  %v770 = vadd.f32 %v729, %v769
  %v771 = vpop.f32.mrb[0].mxu0
  %v772 = vpop.f32.mrb[0].mxu0
  %v773 = vadd.f32 %v732, %v772
  %v774 = vpop.f32.mrb[0].mxu0
  %775 = vdwg.mxu0
  %776 = vmatprep.subr.bf16.mxu0 0
  %777 = vmatpush1.bf16.msra.mxu0 %v598
  %778 = vmatprep.subr.bf16.mxu0 0
  %779 = vmatpush1.bf16.msra.mxu0 %v599
  %780 = vmatprep.subr.bf16.mxu0 0
  %781 = vmatpush1.bf16.msra.mxu0 %v600
  %782 = vmatprep.subr.bf16.mxu0 0
  %783 = vmatpush1.bf16.msra.mxu0 %v601
  %784 = vmatprep.subr.bf16.mxu0 0
  %785 = vmatpush1.bf16.msra.mxu0 %v602
  %786 = vmatprep.subr.bf16.mxu0 0
  %787 = vmatpush1.bf16.msra.mxu0 %v603
  %788 = vmatprep.subr.bf16.mxu0 0
  %789 = vmatpush1.bf16.msra.mxu0 %v604
  %790 = vmatprep.subr.bf16.mxu0 0
  %791 = vmatpush1.bf16.msra.mxu0 %v605
  %792 = vmatprep.subr.bf16.mxu0 0
  %793 = vmatpush1.bf16.msra.mxu0 %v606
  %794 = vmatprep.subr.bf16.mxu0 0
  %795 = vmatpush1.bf16.msra.mxu0 %v607
  %796 = vmatprep.subr.bf16.mxu0 0
  %797 = vmatpush1.bf16.msra.mxu0 %v608
  %798 = vmatprep.subr.bf16.mxu0 0
  %799 = vmatpush1.bf16.msra.mxu0 %v609
  %800 = vmatprep.subr.bf16.mxu0 0
  %801 = vmatpush1.bf16.msra.mxu0 %v610
  %802 = vmatprep.subr.bf16.mxu0 0
  %803 = vmatpush1.bf16.msra.mxu0 %v611
  %804 = vmatprep.subr.bf16.mxu0 0
  %805 = vmatpush1.bf16.msra.mxu0 %v612
  %806 = vmatprep.subr.bf16.mxu0 0
  %807 = vmatpush1.bf16.msra.mxu0 %v613
  %808 = vmatprep.mubr.bf16.mxu0 %v179
  %809 = vmatmul.mubr.bf16.gmra.mrb[0].mxu0 %v178
  %v810 = vpop.f32.mrb[0].mxu0
  %v811 = vadd.f32 %v770, %v810
  %v812 = vpop.f32.mrb[0].mxu0
  %v813 = vpop.f32.mrb[0].mxu0
  %v814 = vadd.f32 %v773, %v813
  %v815 = vpop.f32.mrb[0].mxu0
  %816 = vdwg.mxu0
  %817 = vmatprep.subr.bf16.mxu0 0
  %818 = vmatpush1.bf16.msra.mxu0 %v614
  %819 = vmatprep.subr.bf16.mxu0 0
  %820 = vmatpush1.bf16.msra.mxu0 %v615
  %821 = vmatprep.subr.bf16.mxu0 0
  %822 = vmatpush1.bf16.msra.mxu0 %v616
  %823 = vmatprep.subr.bf16.mxu0 0
  %824 = vmatpush1.bf16.msra.mxu0 %v617
  %825 = vmatprep.subr.bf16.mxu0 0
  %826 = vmatpush1.bf16.msra.mxu0 %v618
  %827 = vmatprep.subr.bf16.mxu0 0
  %828 = vmatpush1.bf16.msra.mxu0 %v619
  %829 = vmatprep.subr.bf16.mxu0 0
  %830 = vmatpush1.bf16.msra.mxu0 %v620
  %831 = vmatprep.subr.bf16.mxu0 0
  %832 = vmatpush1.bf16.msra.mxu0 %v621
  %833 = vmatprep.subr.bf16.mxu0 0
  %834 = vmatpush1.bf16.msra.mxu0 %v622
  %835 = vmatprep.subr.bf16.mxu0 0
  %836 = vmatpush1.bf16.msra.mxu0 %v623
  %837 = vmatprep.subr.bf16.mxu0 0
  %838 = vmatpush1.bf16.msra.mxu0 %v624
  %839 = vmatprep.subr.bf16.mxu0 0
  %840 = vmatpush1.bf16.msra.mxu0 %v625
  %841 = vmatprep.subr.bf16.mxu0 0
  %842 = vmatpush1.bf16.msra.mxu0 %v626
  %843 = vmatprep.subr.bf16.mxu0 0
  %844 = vmatpush1.bf16.msra.mxu0 %v627
  %845 = vmatprep.subr.bf16.mxu0 0
  %846 = vmatpush1.bf16.msra.mxu0 %v628
  %847 = vmatprep.subr.bf16.mxu0 0
  %848 = vmatpush1.bf16.msra.mxu0 %v629
  %849 = vmatprep.mubr.bf16.mxu0 %v181
  %850 = vmatmul.mubr.bf16.gmra.mrb[0].mxu0 %v180
  %v851 = vpop.f32.mrb[0].mxu0
  %v852 = vadd.f32 %v811, %v851
  %v853 = vpop.f32.mrb[0].mxu0
  %v854 = vpop.f32.mrb[0].mxu0
  %v855 = vadd.f32 %v814, %v854
  %v856 = vpop.f32.mrb[0].mxu0
  %857 = vdwg.mxu0
  %858 = vst [vmem:[%s4] sm:$0xff] %v852
  %859 = vst [vmem:[%s4 + $0x8] sm:$0xff] %v855
  // Predicated region
  $region18: #{densenet_forward.241} parent=0 // pred_check
    _
  $region19: #{densenet_forward.241} parent=0 // pred_check_branch
    %861 = sbr.rel (0) target = $region21
  $region20: #{densenet_forward.241} parent=0 // pred_region
    _
  $region21: #{densenet_forward.241} parent=0 // pred_fallthru
    _
  // Predicated region
  $region22: #{densenet_forward.241} parent=0 // pred_check
    _
  $region23: #{densenet_forward.241} parent=0 // pred_check_branch
    %863 = sbr.rel (0) target = $region25
  $region24: #{densenet_forward.241} parent=0 // pred_region
    _
  $region25: #{densenet_forward.241} parent=0 // pred_fallthru
    _

</llo_original>
